<compile_context>
chip_gen: v5e
topology: v5e:2x2
jax: 0.10.0
libtpu: 0.0.40
codegen_flags: <defaults>
</compile_context>

<pallas_src>
import jax
import jax.numpy as jnp
import numpy as np
from jax.experimental import pallas as pl
from jax.experimental.pallas import tpu as pltpu


# --------------------------------------------------------------------------------------
# Kernel
# --------------------------------------------------------------------------------------
def vade_kernel(
    x_ref, eps_ref,
    w1, b1, w2, b2, w3, b3,            # encoder: data_dim->1024->256->64
    wh, bh,                            # fused heads: 64 -> 2*latent_dim  (mu | logvar)
    wd1, bd1, wd2, bd2, wd3, bd3, wd4, bd4,  # decoder: latent->64->256->1024->data_dim
    recon_ref, stats_ref,              # stats = concat(mu, logvar) along lanes
):
    f32 = jnp.float32
    bf16 = jnp.bfloat16

    def dense(h, w_r, b_r, act=None, mxu_dtype=None):
        w = w_r[...]
        if mxu_dtype is not None:
            h = h.astype(mxu_dtype)
            w = w.astype(mxu_dtype)
        out = jnp.dot(h, w, preferred_element_type=f32) + b_r[...].astype(f32)
        if act == "relu":
            out = jnp.maximum(out, 0.0)
        elif act == "sigmoid":
            out = jax.nn.sigmoid(out)
        return out

    x = x_ref[...].astype(f32)

    # ---- encoder (large layers in bf16, f32 accumulate) ----
    h = dense(x, w1, b1, "relu", mxu_dtype=bf16)
    h = dense(h, w2, b2, "relu", mxu_dtype=bf16)
    h = dense(h, w3, b3, "relu")                      # 256 -> 64, f32

    # ---- fused mu/logvar head: one K=64 matmul, one (B, 2L) store ----
    stats = dense(h, wh, bh)                          # (B, 2*latent)
    latent = eps_ref.shape[-1]
    mu = stats[:, :latent]
    logvar = stats[:, latent:]

    # ---- reparameterize: z = mu + eps * exp(0.5 * logvar) ----
    z = mu + eps_ref[...].astype(f32) * jnp.exp(0.5 * logvar)

    # ---- decoder ----
    d = dense(z, wd1, bd1, "relu")                    # latent -> 64, f32
    d = dense(d, wd2, bd2, "relu")                    # 64 -> 256, f32
    d = dense(d, wd3, bd3, "relu", mxu_dtype=bf16)    # 256 -> 1024, bf16
    recon = dense(d, wd4, bd4, "sigmoid", mxu_dtype=bf16)  # 1024 -> data_dim, bf16

    recon_ref[...] = recon.astype(recon_ref.dtype)
    stats_ref[...] = stats.astype(stats_ref.dtype)


# --------------------------------------------------------------------------------------
# Wrapper
# --------------------------------------------------------------------------------------
_BF16_WEIGHTS = ("w1", "w2", "wd3", "wd4")   # the 4 layers carrying >95% of FLOPs / bytes


def vade_forward(x, eps, params, *, batch_tile=256):
    """Fused VaDE forward. params: dict of (in,out) weights and (1,out) biases.

    Returns (recon, mu, logvar), matching torch VaDE.forward semantics (eps external).
    """
    B, data_dim = x.shape
    latent_dim = eps.shape[1]
    assert batch_tile % 8 == 0, "batch_tile must be a multiple of the 8-row sublane tile"

    # Fuse mu/logvar head weights into one (64, 2*latent) matmul.
    wh = jnp.concatenate([params["wmu"], params["wlv"]], axis=1)
    bh = jnp.concatenate([params["bmu"], params["blv"]], axis=1)

    def wcast(name):
        p = params[name]
        return p.astype(jnp.bfloat16) if name in _BF16_WEIGHTS else p

    param_list = [
        wcast("w1"), params["b1"], wcast("w2"), params["b2"], params["w3"], params["b3"],
        wh, bh,
        params["wd1"], params["bd1"], params["wd2"], params["bd2"],
        wcast("wd3"), params["bd3"], wcast("wd4"), params["bd4"],
    ]

    # --- batch tiling: big batches tiled at batch_tile (padded up), tiny batches in one block.
    if B > batch_tile:
        tile = batch_tile
        pad = (-B) % batch_tile
        x_p = jnp.pad(x, ((0, pad), (0, 0))) if pad else x
        eps_p = jnp.pad(eps, ((0, pad), (0, 0))) if pad else eps
        Bp = B + pad
    else:
        tile = B                # whole batch in one block (equals full dim -> tiling rule OK)
        x_p, eps_p, Bp = x, eps, B
    grid = (Bp // tile,)

    # --- VMEM budget: actual footprint + margin, capped at 64 MiB (v7x physical).
    param_bytes = sum(int(np.prod(p.shape)) * p.dtype.itemsize for p in param_list)
    act_bytes = 8 * tile * max(1024, data_dim) * 4            # intermediate activations
    io_bytes = 4 * tile * (2 * data_dim + 4 * latent_dim) * 4  # double-buffered I/O tiles
    vmem_limit = int(min(64 << 20, 2 * param_bytes + act_bytes + io_bytes + (8 << 20)))

    out_shape = (
        jax.ShapeDtypeStruct((Bp, data_dim), jnp.float32),
        jax.ShapeDtypeStruct((Bp, 2 * latent_dim), jnp.float32),
    )

    def build(weight_pipeline_mode):
        def wspec(shape):
            if weight_pipeline_mode is None:
                return pl.BlockSpec(shape, lambda i: (0, 0))
            # constant-index blocks -> single-buffer them (no 2x weight copies in VMEM)
            return pl.BlockSpec(shape, lambda i: (0, 0),
                                pipeline_mode=weight_pipeline_mode)

        in_specs = [
            pl.BlockSpec((tile, data_dim), lambda i: (i, 0)),     # x
            pl.BlockSpec((tile, latent_dim), lambda i: (i, 0)),   # eps
        ] + [wspec(p.shape) for p in param_list]

        out_specs = (
            pl.BlockSpec((tile, data_dim), lambda i: (i, 0)),           # recon
            pl.BlockSpec((tile, 2 * latent_dim), lambda i: (i, 0)),     # mu|logvar
        )

        grid_spec = pltpu.PrefetchScalarGridSpec(
            num_scalar_prefetch=0, grid=grid, in_specs=in_specs, out_specs=out_specs)

        return pl.pallas_call(
            vade_kernel,
            grid_spec=grid_spec,
            out_shape=out_shape,
            compiler_params=pltpu.CompilerParams(
                dimension_semantics=("parallel",),   # batch axis shards across TCs (v7x)
                vmem_limit_bytes=vmem_limit,
            ),
        )

    try:
        recon, stats = build(pl.Buffered(1))(x_p, eps_p, *param_list)
    except Exception:
        # Fallback: default (double-buffered) weight blocks — still correct, slightly
        # more VMEM; keeps the kernel running on jax versions without Buffered(1).
        recon, stats = build(None)(x_p, eps_p, *param_list)

    recon = recon[:B]
    stats = stats[:B]
    return recon, stats[:, :latent_dim], stats[:, latent_dim:]


# --------------------------------------------------------------------------------------
# Parameter construction (deterministic, torch-Linear-like init)
# --------------------------------------------------------------------------------------
def make_linear(key, fan_in, fan_out):
    kw, kb = jax.random.split(key)
    bound = 1.0 / np.sqrt(fan_in)
    w = jax.random.uniform(kw, (fan_in, fan_out), jnp.float32, -bound, bound)
    b = jax.random.uniform(kb, (1, fan_out), jnp.float32, -bound, bound)
    return w, b


def build_params(key, data_dim, latent_dim):
    keys = jax.random.split(key, 9)
    p = {}
    p["w1"], p["b1"] = make_linear(keys[0], data_dim, 1024)
    p["w2"], p["b2"] = make_linear(keys[1], 1024, 256)
    p["w3"], p["b3"] = make_linear(keys[2], 256, 64)
    p["wmu"], p["bmu"] = make_linear(keys[3], 64, latent_dim)
    p["wlv"], p["blv"] = make_linear(keys[4], 64, latent_dim)
    p["wd1"], p["bd1"] = make_linear(keys[5], latent_dim, 64)
    p["wd2"], p["bd2"] = make_linear(keys[6], 64, 256)
    p["wd3"], p["bd3"] = make_linear(keys[7], 256, 1024)
    p["wd4"], p["bd4"] = make_linear(keys[8], 1024, data_dim)
    return p


# --------------------------------------------------------------------------------------
# Pure-JAX reference with matched numerics (same bf16 layers, f32 accumulation)
# --------------------------------------------------------------------------------------
def ref_forward(x, eps, p):
    bf16 = jnp.bfloat16

    def dense(h, w, b, act=None, mxu_dtype=None):
        if mxu_dtype is not None:
            h = h.astype(mxu_dtype)
            w = w.astype(mxu_dtype)
        out = jnp.dot(h, w, preferred_element_type=jnp.float32) + b
        if act == "relu":
            out = jnp.maximum(out, 0.0)
        elif act == "sigmoid":
            out = jax.nn.sigmoid(out)
        return out

    h = dense(x, p["w1"], p["b1"], "relu", mxu_dtype=bf16)
    h = dense(h, p["w2"], p["b2"], "relu", mxu_dtype=bf16)
    h = dense(h, p["w3"], p["b3"], "relu")
    mu = dense(h, p["wmu"], p["bmu"])
    logvar = dense(h, p["wlv"], p["blv"])
    z = mu + eps * jnp.exp(0.5 * logvar)
    d = dense(z, p["wd1"], p["bd1"], "relu")
    d = dense(d, p["wd2"], p["bd2"], "relu")
    d = dense(d, p["wd3"], p["bd3"], "relu", mxu_dtype=bf16)
    recon = dense(d, p["wd4"], p["bd4"], "sigmoid", mxu_dtype=bf16)
    return recon, mu, logvar


if __name__ == "__main__":
    # Small shapes consistent with the module. n_classes / GMM params are unused in forward().
    B, data_dim, latent_dim = 8, 256, 32

    key = jax.random.PRNGKey(0)
    k_x, k_eps, k_params, k_x2, k_eps2 = jax.random.split(key, 5)

    x = jax.random.uniform(k_x, (B, data_dim), jnp.float32)
    eps = jax.random.normal(k_eps, (B, latent_dim), jnp.float32)  # torch.randn_like equivalent (glue)
    params = build_params(k_params, data_dim, latent_dim)

    # Tiny-batch path (single grid step, weight-DMA bound regime).
    recon, mu, logvar = jax.block_until_ready(vade_forward(x, eps, params))
    r_ref, mu_ref, lv_ref = ref_forward(x, eps, params)
    np.testing.assert_allclose(np.asarray(recon), np.asarray(r_ref), rtol=2e-3, atol=2e-3)
    np.testing.assert_allclose(np.asarray(mu), np.asarray(mu_ref), rtol=2e-3, atol=2e-3)
    np.testing.assert_allclose(np.asarray(logvar), np.asarray(lv_ref), rtol=2e-3, atol=2e-3)

    # Exercise the tiled + padded multi-step-grid path (still small & fast).
    B2 = 40
    x2 = jax.random.uniform(k_x2, (B2, data_dim), jnp.float32)
    eps2 = jax.random.normal(k_eps2, (B2, latent_dim), jnp.float32)
    r2, mu2, lv2 = jax.block_until_ready(vade_forward(x2, eps2, params, batch_tile=16))
    r2_ref, mu2_ref, lv2_ref = ref_forward(x2, eps2, params)
    np.testing.assert_allclose(np.asarray(r2), np.asarray(r2_ref), rtol=2e-3, atol=2e-3)
    np.testing.assert_allclose(np.asarray(mu2), np.asarray(mu2_ref), rtol=2e-3, atol=2e-3)
    np.testing.assert_allclose(np.asarray(lv2), np.asarray(lv2_ref), rtol=2e-3, atol=2e-3)

    print("KERNEL_OK")
</pallas_src>

<mosaic_0001>
module attributes {stable_mosaic.version = 11 : i64} {
  func.func @vade_kernel(%arg0: i32, %arg1: memref<8x256xf32, #tpu.memory_space<vmem>>, %arg2: memref<8x32xf32, #tpu.memory_space<vmem>>, %arg3: memref<256x1024xbf16, #tpu.memory_space<vmem>>, %arg4: memref<1x1024xf32, #tpu.memory_space<vmem>>, %arg5: memref<1024x256xbf16, #tpu.memory_space<vmem>>, %arg6: memref<1x256xf32, #tpu.memory_space<vmem>>, %arg7: memref<256x64xf32, #tpu.memory_space<vmem>>, %arg8: memref<1x64xf32, #tpu.memory_space<vmem>>, %arg9: memref<64x64xf32, #tpu.memory_space<vmem>>, %arg10: memref<1x64xf32, #tpu.memory_space<vmem>>, %arg11: memref<32x64xf32, #tpu.memory_space<vmem>>, %arg12: memref<1x64xf32, #tpu.memory_space<vmem>>, %arg13: memref<64x256xf32, #tpu.memory_space<vmem>>, %arg14: memref<1x256xf32, #tpu.memory_space<vmem>>, %arg15: memref<256x1024xbf16, #tpu.memory_space<vmem>>, %arg16: memref<1x1024xf32, #tpu.memory_space<vmem>>, %arg17: memref<1024x256xbf16, #tpu.memory_space<vmem>>, %arg18: memref<1x256xf32, #tpu.memory_space<vmem>>, %arg19: memref<8x256xf32, #tpu.memory_space<vmem>>, %arg20: memref<8x64xf32, #tpu.memory_space<vmem>>) attributes {dimension_semantics = [#tpu.dimension_semantics<parallel>], iteration_bounds = array<i64: 1>, scalar_prefetch = 0 : i64, scratch_operands = 0 : i64, tpu.core_type = #tpu.core_type<tc>, window_params = [{transform_indices = @transform_0, window_bounds = array<i64: 8, 256>}, {transform_indices = @transform_1, window_bounds = array<i64: 8, 32>}, {pipeline_mode = #tpu.pipeline_mode<synchronous>, transform_indices = @transform_2, window_bounds = array<i64: 256, 1024>}, {pipeline_mode = #tpu.pipeline_mode<synchronous>, transform_indices = @transform_3, window_bounds = array<i64: 1, 1024>}, {pipeline_mode = #tpu.pipeline_mode<synchronous>, transform_indices = @transform_4, window_bounds = array<i64: 1024, 256>}, {pipeline_mode = #tpu.pipeline_mode<synchronous>, transform_indices = @transform_5, window_bounds = array<i64: 1, 256>}, {pipeline_mode = #tpu.pipeline_mode<synchronous>, transform_indices = @transform_6, window_bounds = array<i64: 256, 64>}, {pipeline_mode = #tpu.pipeline_mode<synchronous>, transform_indices = @transform_7, window_bounds = array<i64: 1, 64>}, {pipeline_mode = #tpu.pipeline_mode<synchronous>, transform_indices = @transform_8, window_bounds = array<i64: 64, 64>}, {pipeline_mode = #tpu.pipeline_mode<synchronous>, transform_indices = @transform_9, window_bounds = array<i64: 1, 64>}, {pipeline_mode = #tpu.pipeline_mode<synchronous>, transform_indices = @transform_10, window_bounds = array<i64: 32, 64>}, {pipeline_mode = #tpu.pipeline_mode<synchronous>, transform_indices = @transform_11, window_bounds = array<i64: 1, 64>}, {pipeline_mode = #tpu.pipeline_mode<synchronous>, transform_indices = @transform_12, window_bounds = array<i64: 64, 256>}, {pipeline_mode = #tpu.pipeline_mode<synchronous>, transform_indices = @transform_13, window_bounds = array<i64: 1, 256>}, {pipeline_mode = #tpu.pipeline_mode<synchronous>, transform_indices = @transform_14, window_bounds = array<i64: 256, 1024>}, {pipeline_mode = #tpu.pipeline_mode<synchronous>, transform_indices = @transform_15, window_bounds = array<i64: 1, 1024>}, {pipeline_mode = #tpu.pipeline_mode<synchronous>, transform_indices = @transform_16, window_bounds = array<i64: 1024, 256>}, {pipeline_mode = #tpu.pipeline_mode<synchronous>, transform_indices = @transform_17, window_bounds = array<i64: 1, 256>}, {transform_indices = @transform_18, window_bounds = array<i64: 8, 256>}, {transform_indices = @transform_19, window_bounds = array<i64: 8, 64>}]} {
    %c0 = arith.constant 0 : index
    %c0_0 = arith.constant 0 : index
    %0 = vector.load %arg1[%c0, %c0_0] : memref<8x256xf32, #tpu.memory_space<vmem>>, vector<8x256xf32>
    %c0_1 = arith.constant 0 : index
    %c0_2 = arith.constant 0 : index
    %1 = vector.load %arg3[%c0_1, %c0_2] : memref<256x1024xbf16, #tpu.memory_space<vmem>>, vector<256x1024xbf16>
    %2 = arith.truncf %0 : vector<8x256xf32> to vector<8x256xbf16>
    %cst = arith.constant dense<0.000000e+00> : vector<8x1024xf32>
    %3 = tpu.matmul %2, %1, %cst {dimension_numbers = #tpu.dot_dimension_numbers<[1], [0], [0], [1], [0, 0, 1, 1], [], []>} : vector<8x256xbf16>, vector<256x1024xbf16>, vector<8x1024xf32> -> vector<8x1024xf32>
    %c0_3 = arith.constant 0 : index
    %c0_4 = arith.constant 0 : index
    %4 = vector.load %arg4[%c0_3, %c0_4] : memref<1x1024xf32, #tpu.memory_space<vmem>>, vector<1x1024xf32>
    %5 = vector.broadcast %4 : vector<1x1024xf32> to vector<8x1024xf32>
    %6 = arith.addf %3, %5 : vector<8x1024xf32>
    %cst_5 = arith.constant 0.000000e+00 : f32
    %7 = vector.broadcast %cst_5 : f32 to vector<8x1024xf32>
    %8 = arith.maximumf %6, %7 : vector<8x1024xf32>
    %c0_6 = arith.constant 0 : index
    %c0_7 = arith.constant 0 : index
    %9 = vector.load %arg5[%c0_6, %c0_7] : memref<1024x256xbf16, #tpu.memory_space<vmem>>, vector<1024x256xbf16>
    %10 = arith.truncf %8 : vector<8x1024xf32> to vector<8x1024xbf16>
    %cst_8 = arith.constant dense<0.000000e+00> : vector<8x256xf32>
    %11 = tpu.matmul %10, %9, %cst_8 {dimension_numbers = #tpu.dot_dimension_numbers<[1], [0], [0], [1], [0, 0, 1, 1], [], []>} : vector<8x1024xbf16>, vector<1024x256xbf16>, vector<8x256xf32> -> vector<8x256xf32>
    %c0_9 = arith.constant 0 : index
    %c0_10 = arith.constant 0 : index
    %12 = vector.load %arg6[%c0_9, %c0_10] : memref<1x256xf32, #tpu.memory_space<vmem>>, vector<1x256xf32>
    %13 = vector.broadcast %12 : vector<1x256xf32> to vector<8x256xf32>
    %14 = arith.addf %11, %13 : vector<8x256xf32>
    %cst_11 = arith.constant 0.000000e+00 : f32
    %15 = vector.broadcast %cst_11 : f32 to vector<8x256xf32>
    %16 = arith.maximumf %14, %15 : vector<8x256xf32>
    %c0_12 = arith.constant 0 : index
    %c0_13 = arith.constant 0 : index
    %17 = vector.load %arg7[%c0_12, %c0_13] : memref<256x64xf32, #tpu.memory_space<vmem>>, vector<256x64xf32>
    %cst_14 = arith.constant dense<0.000000e+00> : vector<8x64xf32>
    %18 = tpu.matmul %16, %17, %cst_14 {dimension_numbers = #tpu.dot_dimension_numbers<[1], [0], [0], [1], [0, 0, 1, 1], [], []>} : vector<8x256xf32>, vector<256x64xf32>, vector<8x64xf32> -> vector<8x64xf32>
    %c0_15 = arith.constant 0 : index
    %c0_16 = arith.constant 0 : index
    %19 = vector.load %arg8[%c0_15, %c0_16] : memref<1x64xf32, #tpu.memory_space<vmem>>, vector<1x64xf32>
    %20 = vector.broadcast %19 : vector<1x64xf32> to vector<8x64xf32>
    %21 = arith.addf %18, %20 : vector<8x64xf32>
    %cst_17 = arith.constant 0.000000e+00 : f32
    %22 = vector.broadcast %cst_17 : f32 to vector<8x64xf32>
    %23 = arith.maximumf %21, %22 : vector<8x64xf32>
    %c0_18 = arith.constant 0 : index
    %c0_19 = arith.constant 0 : index
    %24 = vector.load %arg9[%c0_18, %c0_19] : memref<64x64xf32, #tpu.memory_space<vmem>>, vector<64x64xf32>
    %cst_20 = arith.constant dense<0.000000e+00> : vector<8x64xf32>
    %25 = tpu.matmul %23, %24, %cst_20 {dimension_numbers = #tpu.dot_dimension_numbers<[1], [0], [0], [1], [0, 0, 1, 1], [], []>} : vector<8x64xf32>, vector<64x64xf32>, vector<8x64xf32> -> vector<8x64xf32>
    %c0_21 = arith.constant 0 : index
    %c0_22 = arith.constant 0 : index
    %26 = vector.load %arg10[%c0_21, %c0_22] : memref<1x64xf32, #tpu.memory_space<vmem>>, vector<1x64xf32>
    %27 = vector.broadcast %26 : vector<1x64xf32> to vector<8x64xf32>
    %28 = arith.addf %25, %27 : vector<8x64xf32>
    %29 = vector.extract_strided_slice %28 {offsets = [0, 0], sizes = [8, 32], strides = [1, 1]} : vector<8x64xf32> to vector<8x32xf32>
    %30 = vector.extract_strided_slice %28 {offsets = [0, 32], sizes = [8, 32], strides = [1, 1]} : vector<8x64xf32> to vector<8x32xf32>
    %c0_23 = arith.constant 0 : index
    %c0_24 = arith.constant 0 : index
    %31 = vector.load %arg2[%c0_23, %c0_24] : memref<8x32xf32, #tpu.memory_space<vmem>>, vector<8x32xf32>
    %cst_25 = arith.constant 5.000000e-01 : f32
    %32 = vector.broadcast %cst_25 : f32 to vector<8x32xf32>
    %33 = arith.mulf %32, %30 : vector<8x32xf32>
    %34 = math.exp %33 : vector<8x32xf32>
    %35 = arith.mulf %31, %34 : vector<8x32xf32>
    %36 = arith.addf %29, %35 : vector<8x32xf32>
    %c0_26 = arith.constant 0 : index
    %c0_27 = arith.constant 0 : index
    %37 = vector.load %arg11[%c0_26, %c0_27] : memref<32x64xf32, #tpu.memory_space<vmem>>, vector<32x64xf32>
    %cst_28 = arith.constant dense<0.000000e+00> : vector<8x64xf32>
    %38 = tpu.matmul %36, %37, %cst_28 {dimension_numbers = #tpu.dot_dimension_numbers<[1], [0], [0], [1], [0, 0, 1, 1], [], []>} : vector<8x32xf32>, vector<32x64xf32>, vector<8x64xf32> -> vector<8x64xf32>
    %c0_29 = arith.constant 0 : index
    %c0_30 = arith.constant 0 : index
    %39 = vector.load %arg12[%c0_29, %c0_30] : memref<1x64xf32, #tpu.memory_space<vmem>>, vector<1x64xf32>
    %40 = vector.broadcast %39 : vector<1x64xf32> to vector<8x64xf32>
    %41 = arith.addf %38, %40 : vector<8x64xf32>
    %cst_31 = arith.constant 0.000000e+00 : f32
    %42 = vector.broadcast %cst_31 : f32 to vector<8x64xf32>
    %43 = arith.maximumf %41, %42 : vector<8x64xf32>
    %c0_32 = arith.constant 0 : index
    %c0_33 = arith.constant 0 : index
    %44 = vector.load %arg13[%c0_32, %c0_33] : memref<64x256xf32, #tpu.memory_space<vmem>>, vector<64x256xf32>
    %cst_34 = arith.constant dense<0.000000e+00> : vector<8x256xf32>
    %45 = tpu.matmul %43, %44, %cst_34 {dimension_numbers = #tpu.dot_dimension_numbers<[1], [0], [0], [1], [0, 0, 1, 1], [], []>} : vector<8x64xf32>, vector<64x256xf32>, vector<8x256xf32> -> vector<8x256xf32>
    %c0_35 = arith.constant 0 : index
    %c0_36 = arith.constant 0 : index
    %46 = vector.load %arg14[%c0_35, %c0_36] : memref<1x256xf32, #tpu.memory_space<vmem>>, vector<1x256xf32>
    %47 = vector.broadcast %46 : vector<1x256xf32> to vector<8x256xf32>
    %48 = arith.addf %45, %47 : vector<8x256xf32>
    %cst_37 = arith.constant 0.000000e+00 : f32
    %49 = vector.broadcast %cst_37 : f32 to vector<8x256xf32>
    %50 = arith.maximumf %48, %49 : vector<8x256xf32>
    %c0_38 = arith.constant 0 : index
    %c0_39 = arith.constant 0 : index
    %51 = vector.load %arg15[%c0_38, %c0_39] : memref<256x1024xbf16, #tpu.memory_space<vmem>>, vector<256x1024xbf16>
    %52 = arith.truncf %50 : vector<8x256xf32> to vector<8x256xbf16>
    %cst_40 = arith.constant dense<0.000000e+00> : vector<8x1024xf32>
    %53 = tpu.matmul %52, %51, %cst_40 {dimension_numbers = #tpu.dot_dimension_numbers<[1], [0], [0], [1], [0, 0, 1, 1], [], []>} : vector<8x256xbf16>, vector<256x1024xbf16>, vector<8x1024xf32> -> vector<8x1024xf32>
    %c0_41 = arith.constant 0 : index
    %c0_42 = arith.constant 0 : index
    %54 = vector.load %arg16[%c0_41, %c0_42] : memref<1x1024xf32, #tpu.memory_space<vmem>>, vector<1x1024xf32>
    %55 = vector.broadcast %54 : vector<1x1024xf32> to vector<8x1024xf32>
    %56 = arith.addf %53, %55 : vector<8x1024xf32>
    %cst_43 = arith.constant 0.000000e+00 : f32
    %57 = vector.broadcast %cst_43 : f32 to vector<8x1024xf32>
    %58 = arith.maximumf %56, %57 : vector<8x1024xf32>
    %c0_44 = arith.constant 0 : index
    %c0_45 = arith.constant 0 : index
    %59 = vector.load %arg17[%c0_44, %c0_45] : memref<1024x256xbf16, #tpu.memory_space<vmem>>, vector<1024x256xbf16>
    %60 = arith.truncf %58 : vector<8x1024xf32> to vector<8x1024xbf16>
    %cst_46 = arith.constant dense<0.000000e+00> : vector<8x256xf32>
    %61 = tpu.matmul %60, %59, %cst_46 {dimension_numbers = #tpu.dot_dimension_numbers<[1], [0], [0], [1], [0, 0, 1, 1], [], []>} : vector<8x1024xbf16>, vector<1024x256xbf16>, vector<8x256xf32> -> vector<8x256xf32>
    %c0_47 = arith.constant 0 : index
    %c0_48 = arith.constant 0 : index
    %62 = vector.load %arg18[%c0_47, %c0_48] : memref<1x256xf32, #tpu.memory_space<vmem>>, vector<1x256xf32>
    %63 = vector.broadcast %62 : vector<1x256xf32> to vector<8x256xf32>
    %64 = arith.addf %61, %63 : vector<8x256xf32>
    %65 = arith.negf %64 : vector<8x256xf32>
    %66 = math.exp %65 : vector<8x256xf32>
    %cst_49 = arith.constant 1.000000e+00 : f32
    %67 = vector.broadcast %cst_49 : f32 to vector<8x256xf32>
    %68 = arith.addf %67, %66 : vector<8x256xf32>
    %69 = arith.divf %67, %68 : vector<8x256xf32>
    %c0_50 = arith.constant 0 : index
    %c0_51 = arith.constant 0 : index
    %70 = vector.load %arg19[%c0_50, %c0_51] : memref<8x256xf32, #tpu.memory_space<vmem>>, vector<8x256xf32>
    tpu.vector_store %arg19[%c0_50, %c0_51], %69 {strides = array<i32>} : memref<8x256xf32, #tpu.memory_space<vmem>>, vector<8x256xf32>,
    %c0_52 = arith.constant 0 : index
    %c0_53 = arith.constant 0 : index
    %71 = vector.load %arg20[%c0_52, %c0_53] : memref<8x64xf32, #tpu.memory_space<vmem>>, vector<8x64xf32>
    tpu.vector_store %arg20[%c0_52, %c0_53], %28 {strides = array<i32>} : memref<8x64xf32, #tpu.memory_space<vmem>>, vector<8x64xf32>,
    return
  }
  func.func @transform_0(%arg0: i32) -> (i32, i32) {
    %c0_i32 = arith.constant 0 : i32
    %c0_i32_0 = arith.constant 0 : i32
    return %arg0, %c0_i32 : i32, i32
  }
  func.func @transform_1(%arg0: i32) -> (i32, i32) {
    %c0_i32 = arith.constant 0 : i32
    %c0_i32_0 = arith.constant 0 : i32
    return %arg0, %c0_i32 : i32, i32
  }
  func.func @transform_2(%arg0: i32) -> (i32, i32) {
    %c0_i32 = arith.constant 0 : i32
    %c0_i32_0 = arith.constant 0 : i32
    %c0_i32_1 = arith.constant 0 : i32
    return %c0_i32, %c0_i32_0 : i32, i32
  }
  func.func @transform_3(%arg0: i32) -> (i32, i32) {
    %c0_i32 = arith.constant 0 : i32
    %c0_i32_0 = arith.constant 0 : i32
    %c0_i32_1 = arith.constant 0 : i32
    return %c0_i32, %c0_i32_0 : i32, i32
  }
  func.func @transform_4(%arg0: i32) -> (i32, i32) {
    %c0_i32 = arith.constant 0 : i32
    %c0_i32_0 = arith.constant 0 : i32
    %c0_i32_1 = arith.constant 0 : i32
    return %c0_i32, %c0_i32_0 : i32, i32
  }
  func.func @transform_5(%arg0: i32) -> (i32, i32) {
    %c0_i32 = arith.constant 0 : i32
    %c0_i32_0 = arith.constant 0 : i32
    %c0_i32_1 = arith.constant 0 : i32
    return %c0_i32, %c0_i32_0 : i32, i32
  }
  func.func @transform_6(%arg0: i32) -> (i32, i32) {
    %c0_i32 = arith.constant 0 : i32
    %c0_i32_0 = arith.constant 0 : i32
    %c0_i32_1 = arith.constant 0 : i32
    return %c0_i32, %c0_i32_0 : i32, i32
  }
  func.func @transform_7(%arg0: i32) -> (i32, i32) {
    %c0_i32 = arith.constant 0 : i32
    %c0_i32_0 = arith.constant 0 : i32
    %c0_i32_1 = arith.constant 0 : i32
    return %c0_i32, %c0_i32_0 : i32, i32
  }
  func.func @transform_8(%arg0: i32) -> (i32, i32) {
    %c0_i32 = arith.constant 0 : i32
    %c0_i32_0 = arith.constant 0 : i32
    %c0_i32_1 = arith.constant 0 : i32
    return %c0_i32, %c0_i32_0 : i32, i32
  }
  func.func @transform_9(%arg0: i32) -> (i32, i32) {
    %c0_i32 = arith.constant 0 : i32
    %c0_i32_0 = arith.constant 0 : i32
    %c0_i32_1 = arith.constant 0 : i32
    return %c0_i32, %c0_i32_0 : i32, i32
  }
  func.func @transform_10(%arg0: i32) -> (i32, i32) {
    %c0_i32 = arith.constant 0 : i32
    %c0_i32_0 = arith.constant 0 : i32
    %c0_i32_1 = arith.constant 0 : i32
    return %c0_i32, %c0_i32_0 : i32, i32
  }
  func.func @transform_11(%arg0: i32) -> (i32, i32) {
    %c0_i32 = arith.constant 0 : i32
    %c0_i32_0 = arith.constant 0 : i32
    %c0_i32_1 = arith.constant 0 : i32
    return %c0_i32, %c0_i32_0 : i32, i32
  }
  func.func @transform_12(%arg0: i32) -> (i32, i32) {
    %c0_i32 = arith.constant 0 : i32
    %c0_i32_0 = arith.constant 0 : i32
    %c0_i32_1 = arith.constant 0 : i32
    return %c0_i32, %c0_i32_0 : i32, i32
  }
  func.func @transform_13(%arg0: i32) -> (i32, i32) {
    %c0_i32 = arith.constant 0 : i32
    %c0_i32_0 = arith.constant 0 : i32
    %c0_i32_1 = arith.constant 0 : i32
    return %c0_i32, %c0_i32_0 : i32, i32
  }
  func.func @transform_14(%arg0: i32) -> (i32, i32) {
    %c0_i32 = arith.constant 0 : i32
    %c0_i32_0 = arith.constant 0 : i32
    %c0_i32_1 = arith.constant 0 : i32
    return %c0_i32, %c0_i32_0 : i32, i32
  }
  func.func @transform_15(%arg0: i32) -> (i32, i32) {
    %c0_i32 = arith.constant 0 : i32
    %c0_i32_0 = arith.constant 0 : i32
    %c0_i32_1 = arith.constant 0 : i32
    return %c0_i32, %c0_i32_0 : i32, i32
  }
  func.func @transform_16(%arg0: i32) -> (i32, i32) {
    %c0_i32 = arith.constant 0 : i32
    %c0_i32_0 = arith.constant 0 : i32
    %c0_i32_1 = arith.constant 0 : i32
    return %c0_i32, %c0_i32_0 : i32, i32
  }
  func.func @transform_17(%arg0: i32) -> (i32, i32) {
    %c0_i32 = arith.constant 0 : i32
    %c0_i32_0 = arith.constant 0 : i32
    %c0_i32_1 = arith.constant 0 : i32
    return %c0_i32, %c0_i32_0 : i32, i32
  }
  func.func @transform_18(%arg0: i32) -> (i32, i32) {
    %c0_i32 = arith.constant 0 : i32
    %c0_i32_0 = arith.constant 0 : i32
    return %arg0, %c0_i32 : i32, i32
  }
  func.func @transform_19(%arg0: i32) -> (i32, i32) {
    %c0_i32 = arith.constant 0 : i32
    %c0_i32_0 = arith.constant 0 : i32
    return %arg0, %c0_i32 : i32, i32
  }
}

module attributes {stable_mosaic.version = 11 : i64} {
  func.func @vade_kernel(%arg0: i32, %arg1: memref<8x256xf32, #tpu.memory_space<vmem>>, %arg2: memref<8x32xf32, #tpu.memory_space<vmem>>, %arg3: memref<256x1024xbf16, #tpu.memory_space<vmem>>, %arg4: memref<1x1024xf32, #tpu.memory_space<vmem>>, %arg5: memref<1024x256xbf16, #tpu.memory_space<vmem>>, %arg6: memref<1x256xf32, #tpu.memory_space<vmem>>, %arg7: memref<256x64xf32, #tpu.memory_space<vmem>>, %arg8: memref<1x64xf32, #tpu.memory_space<vmem>>, %arg9: memref<64x64xf32, #tpu.memory_space<vmem>>, %arg10: memref<1x64xf32, #tpu.memory_space<vmem>>, %arg11: memref<32x64xf32, #tpu.memory_space<vmem>>, %arg12: memref<1x64xf32, #tpu.memory_space<vmem>>, %arg13: memref<64x256xf32, #tpu.memory_space<vmem>>, %arg14: memref<1x256xf32, #tpu.memory_space<vmem>>, %arg15: memref<256x1024xbf16, #tpu.memory_space<vmem>>, %arg16: memref<1x1024xf32, #tpu.memory_space<vmem>>, %arg17: memref<1024x256xbf16, #tpu.memory_space<vmem>>, %arg18: memref<1x256xf32, #tpu.memory_space<vmem>>, %arg19: memref<8x256xf32, #tpu.memory_space<vmem>>, %arg20: memref<8x64xf32, #tpu.memory_space<vmem>>) attributes {dimension_semantics = [#tpu.dimension_semantics<parallel>], iteration_bounds = array<i64: 1>, scalar_prefetch = 0 : i64, scratch_operands = 0 : i64, tpu.core_type = #tpu.core_type<tc>, window_params = [{transform_indices = @transform_0, window_bounds = array<i64: 8, 256>}, {transform_indices = @transform_1, window_bounds = array<i64: 8, 32>}, {pipeline_mode = #tpu.pipeline_mode<synchronous>, transform_indices = @transform_2, window_bounds = array<i64: 256, 1024>}, {pipeline_mode = #tpu.pipeline_mode<synchronous>, transform_indices = @transform_3, window_bounds = array<i64: 1, 1024>}, {pipeline_mode = #tpu.pipeline_mode<synchronous>, transform_indices = @transform_4, window_bounds = array<i64: 1024, 256>}, {pipeline_mode = #tpu.pipeline_mode<synchronous>, transform_indices = @transform_5, window_bounds = array<i64: 1, 256>}, {pipeline_mode = #tpu.pipeline_mode<synchronous>, transform_indices = @transform_6, window_bounds = array<i64: 256, 64>}, {pipeline_mode = #tpu.pipeline_mode<synchronous>, transform_indices = @transform_7, window_bounds = array<i64: 1, 64>}, {pipeline_mode = #tpu.pipeline_mode<synchronous>, transform_indices = @transform_8, window_bounds = array<i64: 64, 64>}, {pipeline_mode = #tpu.pipeline_mode<synchronous>, transform_indices = @transform_9, window_bounds = array<i64: 1, 64>}, {pipeline_mode = #tpu.pipeline_mode<synchronous>, transform_indices = @transform_10, window_bounds = array<i64: 32, 64>}, {pipeline_mode = #tpu.pipeline_mode<synchronous>, transform_indices = @transform_11, window_bounds = array<i64: 1, 64>}, {pipeline_mode = #tpu.pipeline_mode<synchronous>, transform_indices = @transform_12, window_bounds = array<i64: 64, 256>}, {pipeline_mode = #tpu.pipeline_mode<synchronous>, transform_indices = @transform_13, window_bounds = array<i64: 1, 256>}, {pipeline_mode = #tpu.pipeline_mode<synchronous>, transform_indices = @transform_14, window_bounds = array<i64: 256, 1024>}, {pipeline_mode = #tpu.pipeline_mode<synchronous>, transform_indices = @transform_15, window_bounds = array<i64: 1, 1024>}, {pipeline_mode = #tpu.pipeline_mode<synchronous>, transform_indices = @transform_16, window_bounds = array<i64: 1024, 256>}, {pipeline_mode = #tpu.pipeline_mode<synchronous>, transform_indices = @transform_17, window_bounds = array<i64: 1, 256>}, {transform_indices = @transform_18, window_bounds = array<i64: 8, 256>}, {transform_indices = @transform_19, window_bounds = array<i64: 8, 64>}]} {
    %c0 = arith.constant 0 : index
    %c0_0 = arith.constant 0 : index
    %0 = vector.load %arg1[%c0, %c0_0] : memref<8x256xf32, #tpu.memory_space<vmem>>, vector<8x256xf32>
    %c0_1 = arith.constant 0 : index
    %c0_2 = arith.constant 0 : index
    %1 = vector.load %arg3[%c0_1, %c0_2] : memref<256x1024xbf16, #tpu.memory_space<vmem>>, vector<256x1024xbf16>
    %2 = arith.truncf %0 : vector<8x256xf32> to vector<8x256xbf16>
    %cst = arith.constant dense<0.000000e+00> : vector<8x1024xf32>
    %3 = tpu.matmul %2, %1, %cst {dimension_numbers = #tpu.dot_dimension_numbers<[1], [0], [0], [1], [0, 0, 1, 1], [], []>} : vector<8x256xbf16>, vector<256x1024xbf16>, vector<8x1024xf32> -> vector<8x1024xf32>
    %c0_3 = arith.constant 0 : index
    %c0_4 = arith.constant 0 : index
    %4 = vector.load %arg4[%c0_3, %c0_4] : memref<1x1024xf32, #tpu.memory_space<vmem>>, vector<1x1024xf32>
    %5 = vector.broadcast %4 : vector<1x1024xf32> to vector<8x1024xf32>
    %6 = arith.addf %3, %5 : vector<8x1024xf32>
    %cst_5 = arith.constant 0.000000e+00 : f32
    %7 = vector.broadcast %cst_5 : f32 to vector<8x1024xf32>
    %8 = arith.maximumf %6, %7 : vector<8x1024xf32>
    %c0_6 = arith.constant 0 : index
    %c0_7 = arith.constant 0 : index
    %9 = vector.load %arg5[%c0_6, %c0_7] : memref<1024x256xbf16, #tpu.memory_space<vmem>>, vector<1024x256xbf16>
    %10 = arith.truncf %8 : vector<8x1024xf32> to vector<8x1024xbf16>
    %cst_8 = arith.constant dense<0.000000e+00> : vector<8x256xf32>
    %11 = tpu.matmul %10, %9, %cst_8 {dimension_numbers = #tpu.dot_dimension_numbers<[1], [0], [0], [1], [0, 0, 1, 1], [], []>} : vector<8x1024xbf16>, vector<1024x256xbf16>, vector<8x256xf32> -> vector<8x256xf32>
    %c0_9 = arith.constant 0 : index
    %c0_10 = arith.constant 0 : index
    %12 = vector.load %arg6[%c0_9, %c0_10] : memref<1x256xf32, #tpu.memory_space<vmem>>, vector<1x256xf32>
    %13 = vector.broadcast %12 : vector<1x256xf32> to vector<8x256xf32>
    %14 = arith.addf %11, %13 : vector<8x256xf32>
    %cst_11 = arith.constant 0.000000e+00 : f32
    %15 = vector.broadcast %cst_11 : f32 to vector<8x256xf32>
    %16 = arith.maximumf %14, %15 : vector<8x256xf32>
    %c0_12 = arith.constant 0 : index
    %c0_13 = arith.constant 0 : index
    %17 = vector.load %arg7[%c0_12, %c0_13] : memref<256x64xf32, #tpu.memory_space<vmem>>, vector<256x64xf32>
    %cst_14 = arith.constant dense<0.000000e+00> : vector<8x64xf32>
    %18 = tpu.matmul %16, %17, %cst_14 {dimension_numbers = #tpu.dot_dimension_numbers<[1], [0], [0], [1], [0, 0, 1, 1], [], []>} : vector<8x256xf32>, vector<256x64xf32>, vector<8x64xf32> -> vector<8x64xf32>
    %c0_15 = arith.constant 0 : index
    %c0_16 = arith.constant 0 : index
    %19 = vector.load %arg8[%c0_15, %c0_16] : memref<1x64xf32, #tpu.memory_space<vmem>>, vector<1x64xf32>
    %20 = vector.broadcast %19 : vector<1x64xf32> to vector<8x64xf32>
    %21 = arith.addf %18, %20 : vector<8x64xf32>
    %cst_17 = arith.constant 0.000000e+00 : f32
    %22 = vector.broadcast %cst_17 : f32 to vector<8x64xf32>
    %23 = arith.maximumf %21, %22 : vector<8x64xf32>
    %c0_18 = arith.constant 0 : index
    %c0_19 = arith.constant 0 : index
    %24 = vector.load %arg9[%c0_18, %c0_19] : memref<64x64xf32, #tpu.memory_space<vmem>>, vector<64x64xf32>
    %cst_20 = arith.constant dense<0.000000e+00> : vector<8x64xf32>
    %25 = tpu.matmul %23, %24, %cst_20 {dimension_numbers = #tpu.dot_dimension_numbers<[1], [0], [0], [1], [0, 0, 1, 1], [], []>} : vector<8x64xf32>, vector<64x64xf32>, vector<8x64xf32> -> vector<8x64xf32>
    %c0_21 = arith.constant 0 : index
    %c0_22 = arith.constant 0 : index
    %26 = vector.load %arg10[%c0_21, %c0_22] : memref<1x64xf32, #tpu.memory_space<vmem>>, vector<1x64xf32>
    %27 = vector.broadcast %26 : vector<1x64xf32> to vector<8x64xf32>
    %28 = arith.addf %25, %27 : vector<8x64xf32>
    %29 = vector.extract_strided_slice %28 {offsets = [0, 0], sizes = [8, 32], strides = [1, 1]} : vector<8x64xf32> to vector<8x32xf32>
    %30 = vector.extract_strided_slice %28 {offsets = [0, 32], sizes = [8, 32], strides = [1, 1]} : vector<8x64xf32> to vector<8x32xf32>
    %c0_23 = arith.constant 0 : index
    %c0_24 = arith.constant 0 : index
    %31 = vector.load %arg2[%c0_23, %c0_24] : memref<8x32xf32, #tpu.memory_space<vmem>>, vector<8x32xf32>
    %cst_25 = arith.constant 5.000000e-01 : f32
    %32 = vector.broadcast %cst_25 : f32 to vector<8x32xf32>
    %33 = arith.mulf %32, %30 : vector<8x32xf32>
    %34 = math.exp %33 : vector<8x32xf32>
    %35 = arith.mulf %31, %34 : vector<8x32xf32>
    %36 = arith.addf %29, %35 : vector<8x32xf32>
    %c0_26 = arith.constant 0 : index
    %c0_27 = arith.constant 0 : index
    %37 = vector.load %arg11[%c0_26, %c0_27] : memref<32x64xf32, #tpu.memory_space<vmem>>, vector<32x64xf32>
    %cst_28 = arith.constant dense<0.000000e+00> : vector<8x64xf32>
    %38 = tpu.matmul %36, %37, %cst_28 {dimension_numbers = #tpu.dot_dimension_numbers<[1], [0], [0], [1], [0, 0, 1, 1], [], []>} : vector<8x32xf32>, vector<32x64xf32>, vector<8x64xf32> -> vector<8x64xf32>
    %c0_29 = arith.constant 0 : index
    %c0_30 = arith.constant 0 : index
    %39 = vector.load %arg12[%c0_29, %c0_30] : memref<1x64xf32, #tpu.memory_space<vmem>>, vector<1x64xf32>
    %40 = vector.broadcast %39 : vector<1x64xf32> to vector<8x64xf32>
    %41 = arith.addf %38, %40 : vector<8x64xf32>
    %cst_31 = arith.constant 0.000000e+00 : f32
    %42 = vector.broadcast %cst_31 : f32 to vector<8x64xf32>
    %43 = arith.maximumf %41, %42 : vector<8x64xf32>
    %c0_32 = arith.constant 0 : index
    %c0_33 = arith.constant 0 : index
    %44 = vector.load %arg13[%c0_32, %c0_33] : memref<64x256xf32, #tpu.memory_space<vmem>>, vector<64x256xf32>
    %cst_34 = arith.constant dense<0.000000e+00> : vector<8x256xf32>
    %45 = tpu.matmul %43, %44, %cst_34 {dimension_numbers = #tpu.dot_dimension_numbers<[1], [0], [0], [1], [0, 0, 1, 1], [], []>} : vector<8x64xf32>, vector<64x256xf32>, vector<8x256xf32> -> vector<8x256xf32>
    %c0_35 = arith.constant 0 : index
    %c0_36 = arith.constant 0 : index
    %46 = vector.load %arg14[%c0_35, %c0_36] : memref<1x256xf32, #tpu.memory_space<vmem>>, vector<1x256xf32>
    %47 = vector.broadcast %46 : vector<1x256xf32> to vector<8x256xf32>
    %48 = arith.addf %45, %47 : vector<8x256xf32>
    %cst_37 = arith.constant 0.000000e+00 : f32
    %49 = vector.broadcast %cst_37 : f32 to vector<8x256xf32>
    %50 = arith.maximumf %48, %49 : vector<8x256xf32>
    %c0_38 = arith.constant 0 : index
    %c0_39 = arith.constant 0 : index
    %51 = vector.load %arg15[%c0_38, %c0_39] : memref<256x1024xbf16, #tpu.memory_space<vmem>>, vector<256x1024xbf16>
    %52 = arith.truncf %50 : vector<8x256xf32> to vector<8x256xbf16>
    %cst_40 = arith.constant dense<0.000000e+00> : vector<8x1024xf32>
    %53 = tpu.matmul %52, %51, %cst_40 {dimension_numbers = #tpu.dot_dimension_numbers<[1], [0], [0], [1], [0, 0, 1, 1], [], []>} : vector<8x256xbf16>, vector<256x1024xbf16>, vector<8x1024xf32> -> vector<8x1024xf32>
    %c0_41 = arith.constant 0 : index
    %c0_42 = arith.constant 0 : index
    %54 = vector.load %arg16[%c0_41, %c0_42] : memref<1x1024xf32, #tpu.memory_space<vmem>>, vector<1x1024xf32>
    %55 = vector.broadcast %54 : vector<1x1024xf32> to vector<8x1024xf32>
    %56 = arith.addf %53, %55 : vector<8x1024xf32>
    %cst_43 = arith.constant 0.000000e+00 : f32
    %57 = vector.broadcast %cst_43 : f32 to vector<8x1024xf32>
    %58 = arith.maximumf %56, %57 : vector<8x1024xf32>
    %c0_44 = arith.constant 0 : index
    %c0_45 = arith.constant 0 : index
    %59 = vector.load %arg17[%c0_44, %c0_45] : memref<1024x256xbf16, #tpu.memory_space<vmem>>, vector<1024x256xbf16>
    %60 = arith.truncf %58 : vector<8x1024xf32> to vector<8x1024xbf16>
    %cst_46 = arith.constant dense<0.000000e+00> : vector<8x256xf32>
    %61 = tpu.matmul %60, %59, %cst_46 {dimension_numbers = #tpu.dot_dimension_numbers<[1], [0], [0], [1], [0, 0, 1, 1], [], []>} : vector<8x1024xbf16>, vector<1024x256xbf16>, vector<8x256xf32> -> vector<8x256xf32>
    %c0_47 = arith.constant 0 : index
    %c0_48 = arith.constant 0 : index
    %62 = vector.load %arg18[%c0_47, %c0_48] : memref<1x256xf32, #tpu.memory_space<vmem>>, vector<1x256xf32>
    %63 = vector.broadcast %62 : vector<1x256xf32> to vector<8x256xf32>
    %64 = arith.addf %61, %63 : vector<8x256xf32>
    %65 = arith.negf %64 : vector<8x256xf32>
    %66 = math.exp %65 : vector<8x256xf32>
    %cst_49 = arith.constant 1.000000e+00 : f32
    %67 = vector.broadcast %cst_49 : f32 to vector<8x256xf32>
    %68 = arith.addf %67, %66 : vector<8x256xf32>
    %69 = arith.divf %67, %68 : vector<8x256xf32>
    %c0_50 = arith.constant 0 : index
    %c0_51 = arith.constant 0 : index
    %70 = vector.load %arg19[%c0_50, %c0_51] : memref<8x256xf32, #tpu.memory_space<vmem>>, vector<8x256xf32>
    tpu.vector_store %arg19[%c0_50, %c0_51], %69 {strides = array<i32>} : memref<8x256xf32, #tpu.memory_space<vmem>>, vector<8x256xf32>,
    %c0_52 = arith.constant 0 : index
    %c0_53 = arith.constant 0 : index
    %71 = vector.load %arg20[%c0_52, %c0_53] : memref<8x64xf32, #tpu.memory_space<vmem>>, vector<8x64xf32>
    tpu.vector_store %arg20[%c0_52, %c0_53], %28 {strides = array<i32>} : memref<8x64xf32, #tpu.memory_space<vmem>>, vector<8x64xf32>,
    return
  }
  func.func @transform_0(%arg0: i32) -> (i32, i32) {
    %c0_i32 = arith.constant 0 : i32
    %c0_i32_0 = arith.constant 0 : i32
    return %arg0, %c0_i32 : i32, i32
  }
  func.func @transform_1(%arg0: i32) -> (i32, i32) {
    %c0_i32 = arith.constant 0 : i32
    %c0_i32_0 = arith.constant 0 : i32
    return %arg0, %c0_i32 : i32, i32
  }
  func.func @transform_2(%arg0: i32) -> (i32, i32) {
    %c0_i32 = arith.constant 0 : i32
    %c0_i32_0 = arith.constant 0 : i32
    %c0_i32_1 = arith.constant 0 : i32
    return %c0_i32, %c0_i32_0 : i32, i32
  }
  func.func @transform_3(%arg0: i32) -> (i32, i32) {
    %c0_i32 = arith.constant 0 : i32
    %c0_i32_0 = arith.constant 0 : i32
    %c0_i32_1 = arith.constant 0 : i32
    return %c0_i32, %c0_i32_0 : i32, i32
  }
  func.func @transform_4(%arg0: i32) -> (i32, i32) {
    %c0_i32 = arith.constant 0 : i32
    %c0_i32_0 = arith.constant 0 : i32
    %c0_i32_1 = arith.constant 0 : i32
    return %c0_i32, %c0_i32_0 : i32, i32
  }
  func.func @transform_5(%arg0: i32) -> (i32, i32) {
    %c0_i32 = arith.constant 0 : i32
    %c0_i32_0 = arith.constant 0 : i32
    %c0_i32_1 = arith.constant 0 : i32
    return %c0_i32, %c0_i32_0 : i32, i32
  }
  func.func @transform_6(%arg0: i32) -> (i32, i32) {
    %c0_i32 = arith.constant 0 : i32
    %c0_i32_0 = arith.constant 0 : i32
    %c0_i32_1 = arith.constant 0 : i32
    return %c0_i32, %c0_i32_0 : i32, i32
  }
  func.func @transform_7(%arg0: i32) -> (i32, i32) {
    %c0_i32 = arith.constant 0 : i32
    %c0_i32_0 = arith.constant 0 : i32
    %c0_i32_1 = arith.constant 0 : i32
    return %c0_i32, %c0_i32_0 : i32, i32
  }
  func.func @transform_8(%arg0: i32) -> (i32, i32) {
    %c0_i32 = arith.constant 0 : i32
    %c0_i32_0 = arith.constant 0 : i32
    %c0_i32_1 = arith.constant 0 : i32
    return %c0_i32, %c0_i32_0 : i32, i32
  }
  func.func @transform_9(%arg0: i32) -> (i32, i32) {
    %c0_i32 = arith.constant 0 : i32
    %c0_i32_0 = arith.constant 0 : i32
    %c0_i32_1 = arith.constant 0 : i32
    return %c0_i32, %c0_i32_0 : i32, i32
  }
  func.func @transform_10(%arg0: i32) -> (i32, i32) {
    %c0_i32 = arith.constant 0 : i32
    %c0_i32_0 = arith.constant 0 : i32
    %c0_i32_1 = arith.constant 0 : i32
    return %c0_i32, %c0_i32_0 : i32, i32
  }
  func.func @transform_11(%arg0: i32) -> (i32, i32) {
    %c0_i32 = arith.constant 0 : i32
    %c0_i32_0 = arith.constant 0 : i32
    %c0_i32_1 = arith.constant 0 : i32
    return %c0_i32, %c0_i32_0 : i32, i32
  }
  func.func @transform_12(%arg0: i32) -> (i32, i32) {
    %c0_i32 = arith.constant 0 : i32
    %c0_i32_0 = arith.constant 0 : i32
    %c0_i32_1 = arith.constant 0 : i32
    return %c0_i32, %c0_i32_0 : i32, i32
  }
  func.func @transform_13(%arg0: i32) -> (i32, i32) {
    %c0_i32 = arith.constant 0 : i32
    %c0_i32_0 = arith.constant 0 : i32
    %c0_i32_1 = arith.constant 0 : i32
    return %c0_i32, %c0_i32_0 : i32, i32
  }
  func.func @transform_14(%arg0: i32) -> (i32, i32) {
    %c0_i32 = arith.constant 0 : i32
    %c0_i32_0 = arith.constant 0 : i32
    %c0_i32_1 = arith.constant 0 : i32
    return %c0_i32, %c0_i32_0 : i32, i32
  }
  func.func @transform_15(%arg0: i32) -> (i32, i32) {
    %c0_i32 = arith.constant 0 : i32
    %c0_i32_0 = arith.constant 0 : i32
    %c0_i32_1 = arith.constant 0 : i32
    return %c0_i32, %c0_i32_0 : i32, i32
  }
  func.func @transform_16(%arg0: i32) -> (i32, i32) {
    %c0_i32 = arith.constant 0 : i32
    %c0_i32_0 = arith.constant 0 : i32
    %c0_i32_1 = arith.constant 0 : i32
    return %c0_i32, %c0_i32_0 : i32, i32
  }
  func.func @transform_17(%arg0: i32) -> (i32, i32) {
    %c0_i32 = arith.constant 0 : i32
    %c0_i32_0 = arith.constant 0 : i32
    %c0_i32_1 = arith.constant 0 : i32
    return %c0_i32, %c0_i32_0 : i32, i32
  }
  func.func @transform_18(%arg0: i32) -> (i32, i32) {
    %c0_i32 = arith.constant 0 : i32
    %c0_i32_0 = arith.constant 0 : i32
    return %arg0, %c0_i32 : i32, i32
  }
  func.func @transform_19(%arg0: i32) -> (i32, i32) {
    %c0_i32 = arith.constant 0 : i32
    %c0_i32_0 = arith.constant 0 : i32
    return %arg0, %c0_i32 : i32, i32
  }
}

</mosaic_0001>

<llo_original>
// kernel: tpu_custom_call.1
$region0: #{tpu_custom_call.1}
  #allocation0 [shape = 'u32[]', space=smem, size = 0x4, offset = 0x4, fixed_abs, tag = 'smem constant byte address 0x4 - core index']
  #allocation1 [shape = 'u32[72,128]{1,0:T(1,128)}', space=vmem, size = 0x9000, scoped, tag = 'internal scratch']
  %s0 = inlined_call_operand.vmem [shape: f32[8,256], index: 0, kind: input, shape index: {}]
  %s1 = inlined_call_operand.vmem [shape: f32[8,32], index: 1, kind: input, shape index: {}]
  %s2 = inlined_call_operand.hbm [shape: bf16[256,1024], index: 2, kind: input, shape index: {}]
  %s3 = inlined_call_operand.vmem [shape: f32[1,1024], index: 3, kind: input, shape index: {}]
  %s4 = inlined_call_operand.hbm [shape: bf16[1024,256], index: 4, kind: input, shape index: {}]
  %s5 = inlined_call_operand.vmem [shape: f32[1,256], index: 5, kind: input, shape index: {}]
  %s6 = inlined_call_operand.vmem [shape: f32[256,64], index: 6, kind: input, shape index: {}]
  %s7 = inlined_call_operand.vmem [shape: f32[1,64], index: 7, kind: input, shape index: {}]
  %s8 = inlined_call_operand.vmem [shape: f32[64,64], index: 8, kind: input, shape index: {}]
  %s9 = inlined_call_operand.vmem [shape: f32[1,64], index: 9, kind: input, shape index: {}]
  %s10 = inlined_call_operand.vmem [shape: f32[32,64], index: 10, kind: input, shape index: {}]
  %s11 = inlined_call_operand.vmem [shape: f32[1,64], index: 11, kind: input, shape index: {}]
  %s12 = inlined_call_operand.vmem [shape: f32[64,256], index: 12, kind: input, shape index: {}]
  %s13 = inlined_call_operand.vmem [shape: f32[1,256], index: 13, kind: input, shape index: {}]
  %s14 = inlined_call_operand.hbm [shape: bf16[256,1024], index: 14, kind: input, shape index: {}]
  %s15 = inlined_call_operand.vmem [shape: f32[1,1024], index: 15, kind: input, shape index: {}]
  %s16 = inlined_call_operand.hbm [shape: bf16[1024,256], index: 16, kind: input, shape index: {}]
  %s17 = inlined_call_operand.vmem [shape: f32[1,256], index: 17, kind: input, shape index: {}]
  %s18 = inlined_call_operand.hbm [shape: f32[8,256], index: 18, kind: output, shape index: {0}]
  %s19 = inlined_call_operand.hbm [shape: f32[8,64], index: 19, kind: output, shape index: {1}]
  %20 = xla_tuple %s18, %s19
  %s21 = sld [smem:[#allocation0]]
  $region106: #{tpu_custom_call.1} parent=0
    _
  %s23 = ssub.s32 1, %s21
  %s24 = scalar_select 0, %s23, %s21
  $region1: #{tpu_custom_call.1} parent=0
    #allocation2 [shape = 'u8[524288]{0}', space=vmem, size = 0x80000, scoped, tag = 'input window, operand 2, single buffered']
    #allocation3 [shape = 's32[1]{0}', space=sflag, size = 0x4, scoped, tag = 'scoped memory for tpu_custom_call.1']
    #allocation4 [shape = 's32[1]{0}', space=sflag, size = 0x4, scoped, tag = 'scoped memory for tpu_custom_call.1']
    #allocation5 [shape = 'u8[524288]{0}', space=vmem, size = 0x80000, scoped, tag = 'input window, operand 4, single buffered']
    #allocation6 [shape = 's32[1]{0}', space=sflag, size = 0x4, scoped, tag = 'scoped memory for tpu_custom_call.1']
    #allocation7 [shape = 'u8[524288]{0}', space=vmem, size = 0x80000, scoped, tag = 'input window, operand 14, single buffered']
    #allocation8 [shape = 'u8[524288]{0}', space=vmem, size = 0x80000, scoped, tag = 'input window, operand 16, single buffered']
    #allocation9 [shape = 's32[1]{0}', space=sflag, size = 0x4, scoped, tag = 'scoped memory for tpu_custom_call.1']
    #allocation10 [shape = 'u8[8192]{0}', space=vmem, size = 0x2000, scoped, tag = 'output window, operand 0, single buffered']
    #allocation11 [shape = 'u8[4096]{0}', space=vmem, size = 0x1000, scoped, tag = 'output window, operand 1, single buffered']
    #allocation12 [shape = 's32[1]{0}', space=sflag, size = 0x4, scoped, tag = 'scoped memory for tpu_custom_call.1']
    %25 = vsyncpa [#allocation3], 0
    %26 = vsyncpa [#allocation6], 0
    %27 = vsyncpa [#allocation9], 0
    %28 = vsyncpa [#allocation4], 0
    %29 = vsyncpa [#allocation12], 0
    // Predicated region
    $region2: #{tpu_custom_call.1} parent=1 // pred_check
      _
    $region3: #{tpu_custom_call.1} parent=1 // pred_check_branch
      %31 = sbr.rel (0) target = $region5
    $region4: #{tpu_custom_call.1} parent=1 // pred_region
      _
    $region5: #{tpu_custom_call.1} parent=1 // pred_fallthru
      _
    // Predicated region
    $region6: #{tpu_custom_call.1} parent=1 // pred_check
      _
    $region7: #{tpu_custom_call.1} parent=1 // pred_check_branch
      %33 = sbr.rel (0) target = $region9
    $region8: #{tpu_custom_call.1} parent=1 // pred_region
      _
    $region9: #{tpu_custom_call.1} parent=1 // pred_fallthru
      _
    // Predicated region
    $region10: #{tpu_custom_call.1} parent=1 // pred_check
      _
    $region11: #{tpu_custom_call.1} parent=1 // pred_check_branch
      %35 = sbr.rel (0) target = $region13
    $region12: #{tpu_custom_call.1} parent=1 // pred_region
      %37 = vsyncadd [#allocation3], 0
      %s38 = sshll.u32 %s2, 4
      %s39 = int_to_ptr.hbm [resolvable:$true] %s38
      %s40 = sshll.u32 [#allocation2], 4
      %s41 = int_to_ptr.vmem [resolvable:$true] %s40
      %46 = dma.hbm_to_vmem [thread:$0]  %s39, 16384, %s41, [#allocation3], 512, 512, 32
    $region13: #{tpu_custom_call.1} parent=1 // pred_fallthru
      _
    // Predicated region
    $region14: #{tpu_custom_call.1} parent=1 // pred_check
      _
    $region15: #{tpu_custom_call.1} parent=1 // pred_check_branch
      %48 = sbr.rel (0) target = $region17
    $region16: #{tpu_custom_call.1} parent=1 // pred_region
      _
    $region17: #{tpu_custom_call.1} parent=1 // pred_fallthru
      _
    // Predicated region
    $region18: #{tpu_custom_call.1} parent=1 // pred_check
      _
    $region19: #{tpu_custom_call.1} parent=1 // pred_check_branch
      %50 = sbr.rel (0) target = $region21
    $region20: #{tpu_custom_call.1} parent=1 // pred_region
      %52 = vsyncadd [#allocation6], 0
      %s53 = sshll.u32 %s4, 4
      %s54 = int_to_ptr.hbm [resolvable:$true] %s53
      %s55 = sshll.u32 [#allocation5], 4
      %s56 = int_to_ptr.vmem [resolvable:$true] %s55
      %61 = dma.hbm_to_vmem [thread:$0]  %s54, 16384, %s56, [#allocation6], 128, 128, 8
    $region21: #{tpu_custom_call.1} parent=1 // pred_fallthru
      _
    // Predicated region
    $region22: #{tpu_custom_call.1} parent=1 // pred_check
      _
    $region23: #{tpu_custom_call.1} parent=1 // pred_check_branch
      %63 = sbr.rel (0) target = $region25
    $region24: #{tpu_custom_call.1} parent=1 // pred_region
      _
    $region25: #{tpu_custom_call.1} parent=1 // pred_fallthru
      _
    // Predicated region
    $region26: #{tpu_custom_call.1} parent=1 // pred_check
      _
    $region27: #{tpu_custom_call.1} parent=1 // pred_check_branch
      %65 = sbr.rel (0) target = $region29
    $region28: #{tpu_custom_call.1} parent=1 // pred_region
      _
    $region29: #{tpu_custom_call.1} parent=1 // pred_fallthru
      _
    // Predicated region
    $region30: #{tpu_custom_call.1} parent=1 // pred_check
      _
    $region31: #{tpu_custom_call.1} parent=1 // pred_check_branch
      %67 = sbr.rel (0) target = $region33
    $region32: #{tpu_custom_call.1} parent=1 // pred_region
      _
    $region33: #{tpu_custom_call.1} parent=1 // pred_fallthru
      _
    // Predicated region
    $region34: #{tpu_custom_call.1} parent=1 // pred_check
      _
    $region35: #{tpu_custom_call.1} parent=1 // pred_check_branch
      %69 = sbr.rel (0) target = $region37
    $region36: #{tpu_custom_call.1} parent=1 // pred_region
      _
    $region37: #{tpu_custom_call.1} parent=1 // pred_fallthru
      _
    // Predicated region
    $region38: #{tpu_custom_call.1} parent=1 // pred_check
      _
    $region39: #{tpu_custom_call.1} parent=1 // pred_check_branch
      %71 = sbr.rel (0) target = $region41
    $region40: #{tpu_custom_call.1} parent=1 // pred_region
      _
    $region41: #{tpu_custom_call.1} parent=1 // pred_fallthru
      _
    // Predicated region
    $region42: #{tpu_custom_call.1} parent=1 // pred_check
      _
    $region43: #{tpu_custom_call.1} parent=1 // pred_check_branch
      %73 = sbr.rel (0) target = $region45
    $region44: #{tpu_custom_call.1} parent=1 // pred_region
      _
    $region45: #{tpu_custom_call.1} parent=1 // pred_fallthru
      _
    // Predicated region
    $region46: #{tpu_custom_call.1} parent=1 // pred_check
      _
    $region47: #{tpu_custom_call.1} parent=1 // pred_check_branch
      %75 = sbr.rel (0) target = $region49
    $region48: #{tpu_custom_call.1} parent=1 // pred_region
      _
    $region49: #{tpu_custom_call.1} parent=1 // pred_fallthru
      _
    // Predicated region
    $region50: #{tpu_custom_call.1} parent=1 // pred_check
      _
    $region51: #{tpu_custom_call.1} parent=1 // pred_check_branch
      %77 = sbr.rel (0) target = $region53
    $region52: #{tpu_custom_call.1} parent=1 // pred_region
      _
    $region53: #{tpu_custom_call.1} parent=1 // pred_fallthru
      _
    // Predicated region
    $region54: #{tpu_custom_call.1} parent=1 // pred_check
      _
    $region55: #{tpu_custom_call.1} parent=1 // pred_check_branch
      %79 = sbr.rel (0) target = $region57
    $region56: #{tpu_custom_call.1} parent=1 // pred_region
      _
    $region57: #{tpu_custom_call.1} parent=1 // pred_fallthru
      _
    // Predicated region
    $region58: #{tpu_custom_call.1} parent=1 // pred_check
      _
    $region59: #{tpu_custom_call.1} parent=1 // pred_check_branch
      %81 = sbr.rel (0) target = $region61
    $region60: #{tpu_custom_call.1} parent=1 // pred_region
      %83 = vsyncadd [#allocation6], 0
      %s84 = sshll.u32 %s14, 4
      %s85 = int_to_ptr.hbm [resolvable:$true] %s84
      %s86 = sshll.u32 [#allocation7], 4
      %s87 = int_to_ptr.vmem [resolvable:$true] %s86
      %92 = dma.hbm_to_vmem [thread:$0]  %s85, 16384, %s87, [#allocation6], 512, 512, 32
    $region61: #{tpu_custom_call.1} parent=1 // pred_fallthru
      _
    // Predicated region
    $region62: #{tpu_custom_call.1} parent=1 // pred_check
      _
    $region63: #{tpu_custom_call.1} parent=1 // pred_check_branch
      %94 = sbr.rel (0) target = $region65
    $region64: #{tpu_custom_call.1} parent=1 // pred_region
      _
    $region65: #{tpu_custom_call.1} parent=1 // pred_fallthru
      _
    // Predicated region
    $region66: #{tpu_custom_call.1} parent=1 // pred_check
      _
    $region67: #{tpu_custom_call.1} parent=1 // pred_check_branch
      %96 = sbr.rel (0) target = $region69
    $region68: #{tpu_custom_call.1} parent=1 // pred_region
      %98 = vsyncadd [#allocation9], 0
      %s99 = sshll.u32 %s16, 4
      %s100 = int_to_ptr.hbm [resolvable:$true] %s99
      %s101 = sshll.u32 [#allocation8], 4
      %s102 = int_to_ptr.vmem [resolvable:$true] %s101
      %107 = dma.hbm_to_vmem [thread:$0]  %s100, 16384, %s102, [#allocation9], 128, 128, 8
    $region69: #{tpu_custom_call.1} parent=1 // pred_fallthru
      _
    // Predicated region
    $region70: #{tpu_custom_call.1} parent=1 // pred_check
      _
    $region71: #{tpu_custom_call.1} parent=1 // pred_check_branch
      %109 = sbr.rel (0) target = $region73
    $region72: #{tpu_custom_call.1} parent=1 // pred_region
      _
    $region73: #{tpu_custom_call.1} parent=1 // pred_fallthru
      _
    // Predicated region
    $region74: #{tpu_custom_call.1} parent=1 // pred_check
      _
    $region75: #{tpu_custom_call.1} parent=1 // pred_check_branch
      %111 = sbr.rel (0) target = $region77
    $region76: #{tpu_custom_call.1} parent=1 // pred_region
      %113 = dma.done [#allocation3], 16384
    $region77: #{tpu_custom_call.1} parent=1 // pred_fallthru
      _
    // Predicated region
    $region78: #{tpu_custom_call.1} parent=1 // pred_check
      _
    $region79: #{tpu_custom_call.1} parent=1 // pred_check_branch
      %115 = sbr.rel (0) target = $region81
    $region80: #{tpu_custom_call.1} parent=1 // pred_region
      %117 = dma.done [#allocation6], 16384
    $region81: #{tpu_custom_call.1} parent=1 // pred_fallthru
      _
    // Predicated region
    $region82: #{tpu_custom_call.1} parent=1 // pred_check
      _
    $region83: #{tpu_custom_call.1} parent=1 // pred_check_branch
      %119 = sbr.rel (0) target = $region85
    $region84: #{tpu_custom_call.1} parent=1 // pred_region
      %121 = dma.done [#allocation6], 16384
    $region85: #{tpu_custom_call.1} parent=1 // pred_fallthru
      _
    // Predicated region
    $region86: #{tpu_custom_call.1} parent=1 // pred_check
      _
    $region87: #{tpu_custom_call.1} parent=1 // pred_check_branch
      %123 = sbr.rel (0) target = $region89
    $region88: #{tpu_custom_call.1} parent=1 // pred_region
      %125 = dma.done [#allocation9], 16384
    $region89: #{tpu_custom_call.1} parent=1 // pred_fallthru
      _
    %v126 = vld [vmem:[%s0] sm:$0xff]
    %v127 = vld [vmem:[%s0 + $0x8] sm:$0xff]
    %v128 = vld [vmem:[#allocation2] sm:$0xff]
    %v129 = vld [vmem:[#allocation2 + $0x8] sm:$0xff]
    %v130 = vld [vmem:[#allocation2 + $0x10] sm:$0xff]
    %v131 = vld [vmem:[#allocation2 + $0x18] sm:$0xff]
    %v132 = vld [vmem:[#allocation2 + $0x20] sm:$0xff]
    %v133 = vld [vmem:[#allocation2 + $0x28] sm:$0xff]
    %v134 = vld [vmem:[#allocation2 + $0x30] sm:$0xff]
    %v135 = vld [vmem:[#allocation2 + $0x38] sm:$0xff]
    %v136 = vld [vmem:[#allocation2 + $0x40] sm:$0xff]
    %v137 = vld [vmem:[#allocation2 + $0x48] sm:$0xff]
    %v138 = vld [vmem:[#allocation2 + $0x50] sm:$0xff]
    %v139 = vld [vmem:[#allocation2 + $0x58] sm:$0xff]
    %v140 = vld [vmem:[#allocation2 + $0x60] sm:$0xff]
    %v141 = vld [vmem:[#allocation2 + $0x68] sm:$0xff]
    %v142 = vld [vmem:[#allocation2 + $0x70] sm:$0xff]
    %v143 = vld [vmem:[#allocation2 + $0x78] sm:$0xff]
    %v144 = vld [vmem:[#allocation2 + $0x80] sm:$0xff]
    %v145 = vld [vmem:[#allocation2 + $0x88] sm:$0xff]
    %v146 = vld [vmem:[#allocation2 + $0x90] sm:$0xff]
    %v147 = vld [vmem:[#allocation2 + $0x98] sm:$0xff]
    %v148 = vld [vmem:[#allocation2 + $0xa0] sm:$0xff]
    %v149 = vld [vmem:[#allocation2 + $0xa8] sm:$0xff]
    %v150 = vld [vmem:[#allocation2 + $0xb0] sm:$0xff]
    %v151 = vld [vmem:[#allocation2 + $0xb8] sm:$0xff]
    %v152 = vld [vmem:[#allocation2 + $0xc0] sm:$0xff]
    %v153 = vld [vmem:[#allocation2 + $0xc8] sm:$0xff]
    %v154 = vld [vmem:[#allocation2 + $0xd0] sm:$0xff]
    %v155 = vld [vmem:[#allocation2 + $0xd8] sm:$0xff]
    %v156 = vld [vmem:[#allocation2 + $0xe0] sm:$0xff]
    %v157 = vld [vmem:[#allocation2 + $0xe8] sm:$0xff]
    %v158 = vld [vmem:[#allocation2 + $0xf0] sm:$0xff]
    %v159 = vld [vmem:[#allocation2 + $0xf8] sm:$0xff]
    %v160 = vld [vmem:[#allocation2 + $0x100] sm:$0xff]
    %v161 = vld [vmem:[#allocation2 + $0x108] sm:$0xff]
    %v162 = vld [vmem:[#allocation2 + $0x110] sm:$0xff]
    %v163 = vld [vmem:[#allocation2 + $0x118] sm:$0xff]
    %v164 = vld [vmem:[#allocation2 + $0x120] sm:$0xff]
    %v165 = vld [vmem:[#allocation2 + $0x128] sm:$0xff]
    %v166 = vld [vmem:[#allocation2 + $0x130] sm:$0xff]
    %v167 = vld [vmem:[#allocation2 + $0x138] sm:$0xff]
    %v168 = vld [vmem:[#allocation2 + $0x140] sm:$0xff]
    %v169 = vld [vmem:[#allocation2 + $0x148] sm:$0xff]
    %v170 = vld [vmem:[#allocation2 + $0x150] sm:$0xff]
    %v171 = vld [vmem:[#allocation2 + $0x158] sm:$0xff]
    %v172 = vld [vmem:[#allocation2 + $0x160] sm:$0xff]
    %v173 = vld [vmem:[#allocation2 + $0x168] sm:$0xff]
    %v174 = vld [vmem:[#allocation2 + $0x170] sm:$0xff]
    %v175 = vld [vmem:[#allocation2 + $0x178] sm:$0xff]
    %v176 = vld [vmem:[#allocation2 + $0x180] sm:$0xff]
    %v177 = vld [vmem:[#allocation2 + $0x188] sm:$0xff]
    %v178 = vld [vmem:[#allocation2 + $0x190] sm:$0xff]
    %v179 = vld [vmem:[#allocation2 + $0x198] sm:$0xff]
    %v180 = vld [vmem:[#allocation2 + $0x1a0] sm:$0xff]
    %v181 = vld [vmem:[#allocation2 + $0x1a8] sm:$0xff]
    %v182 = vld [vmem:[#allocation2 + $0x1b0] sm:$0xff]
    %v183 = vld [vmem:[#allocation2 + $0x1b8] sm:$0xff]
    %v184 = vld [vmem:[#allocation2 + $0x1c0] sm:$0xff]
    %v185 = vld [vmem:[#allocation2 + $0x1c8] sm:$0xff]
    %v186 = vld [vmem:[#allocation2 + $0x1d0] sm:$0xff]
    %v187 = vld [vmem:[#allocation2 + $0x1d8] sm:$0xff]
    %v188 = vld [vmem:[#allocation2 + $0x1e0] sm:$0xff]
    %v189 = vld [vmem:[#allocation2 + $0x1e8] sm:$0xff]
    %v190 = vld [vmem:[#allocation2 + $0x1f0] sm:$0xff]
    %v191 = vld [vmem:[#allocation2 + $0x1f8] sm:$0xff]
    %v192 = vld [vmem:[#allocation2 + $0x200] sm:$0xff]
    %v193 = vld [vmem:[#allocation2 + $0x208] sm:$0xff]
    %v194 = vld [vmem:[#allocation2 + $0x210] sm:$0xff]
    %v195 = vld [vmem:[#allocation2 + $0x218] sm:$0xff]
    %v196 = vld [vmem:[#allocation2 + $0x220] sm:$0xff]
    %v197 = vld [vmem:[#allocation2 + $0x228] sm:$0xff]
    %v198 = vld [vmem:[#allocation2 + $0x230] sm:$0xff]
    %v199 = vld [vmem:[#allocation2 + $0x238] sm:$0xff]
    %v200 = vld [vmem:[#allocation2 + $0x240] sm:$0xff]
    %v201 = vld [vmem:[#allocation2 + $0x248] sm:$0xff]
    %v202 = vld [vmem:[#allocation2 + $0x250] sm:$0xff]
    %v203 = vld [vmem:[#allocation2 + $0x258] sm:$0xff]
    %v204 = vld [vmem:[#allocation2 + $0x260] sm:$0xff]
    %v205 = vld [vmem:[#allocation2 + $0x268] sm:$0xff]
    %v206 = vld [vmem:[#allocation2 + $0x270] sm:$0xff]
    %v207 = vld [vmem:[#allocation2 + $0x278] sm:$0xff]
    %v208 = vld [vmem:[#allocation2 + $0x280] sm:$0xff]
    %v209 = vld [vmem:[#allocation2 + $0x288] sm:$0xff]
    %v210 = vld [vmem:[#allocation2 + $0x290] sm:$0xff]
    %v211 = vld [vmem:[#allocation2 + $0x298] sm:$0xff]
    %v212 = vld [vmem:[#allocation2 + $0x2a0] sm:$0xff]
    %v213 = vld [vmem:[#allocation2 + $0x2a8] sm:$0xff]
    %v214 = vld [vmem:[#allocation2 + $0x2b0] sm:$0xff]
    %v215 = vld [vmem:[#allocation2 + $0x2b8] sm:$0xff]
    %v216 = vld [vmem:[#allocation2 + $0x2c0] sm:$0xff]
    %v217 = vld [vmem:[#allocation2 + $0x2c8] sm:$0xff]
    %v218 = vld [vmem:[#allocation2 + $0x2d0] sm:$0xff]
    %v219 = vld [vmem:[#allocation2 + $0x2d8] sm:$0xff]
    %v220 = vld [vmem:[#allocation2 + $0x2e0] sm:$0xff]
    %v221 = vld [vmem:[#allocation2 + $0x2e8] sm:$0xff]
    %v222 = vld [vmem:[#allocation2 + $0x2f0] sm:$0xff]
    %v223 = vld [vmem:[#allocation2 + $0x2f8] sm:$0xff]
    %v224 = vld [vmem:[#allocation2 + $0x300] sm:$0xff]
    %v225 = vld [vmem:[#allocation2 + $0x308] sm:$0xff]
    %v226 = vld [vmem:[#allocation2 + $0x310] sm:$0xff]
    %v227 = vld [vmem:[#allocation2 + $0x318] sm:$0xff]
    %v228 = vld [vmem:[#allocation2 + $0x320] sm:$0xff]
    %v229 = vld [vmem:[#allocation2 + $0x328] sm:$0xff]
    %v230 = vld [vmem:[#allocation2 + $0x330] sm:$0xff]
    %v231 = vld [vmem:[#allocation2 + $0x338] sm:$0xff]
    %v232 = vld [vmem:[#allocation2 + $0x340] sm:$0xff]
    %v233 = vld [vmem:[#allocation2 + $0x348] sm:$0xff]
    %v234 = vld [vmem:[#allocation2 + $0x350] sm:$0xff]
    %v235 = vld [vmem:[#allocation2 + $0x358] sm:$0xff]
    %v236 = vld [vmem:[#allocation2 + $0x360] sm:$0xff]
    %v237 = vld [vmem:[#allocation2 + $0x368] sm:$0xff]
    %v238 = vld [vmem:[#allocation2 + $0x370] sm:$0xff]
    %v239 = vld [vmem:[#allocation2 + $0x378] sm:$0xff]
    %v240 = vld [vmem:[#allocation2 + $0x380] sm:$0xff]
    %v241 = vld [vmem:[#allocation2 + $0x388] sm:$0xff]
    %v242 = vld [vmem:[#allocation2 + $0x390] sm:$0xff]
    %v243 = vld [vmem:[#allocation2 + $0x398] sm:$0xff]
    %v244 = vld [vmem:[#allocation2 + $0x3a0] sm:$0xff]
    %v245 = vld [vmem:[#allocation2 + $0x3a8] sm:$0xff]
    %v246 = vld [vmem:[#allocation2 + $0x3b0] sm:$0xff]
    %v247 = vld [vmem:[#allocation2 + $0x3b8] sm:$0xff]
    %v248 = vld [vmem:[#allocation2 + $0x3c0] sm:$0xff]
    %v249 = vld [vmem:[#allocation2 + $0x3c8] sm:$0xff]
    %v250 = vld [vmem:[#allocation2 + $0x3d0] sm:$0xff]
    %v251 = vld [vmem:[#allocation2 + $0x3d8] sm:$0xff]
    %v252 = vld [vmem:[#allocation2 + $0x3e0] sm:$0xff]
    %v253 = vld [vmem:[#allocation2 + $0x3e8] sm:$0xff]
    %v254 = vld [vmem:[#allocation2 + $0x3f0] sm:$0xff]
    %v255 = vld [vmem:[#allocation2 + $0x3f8] sm:$0xff]
    %v256 = vpack.c.bf16 %v126, %v126
    %v257 = vpack.c.bf16 %v127, %v127
    %v258 = vld [vmem:[%s3] sm:$0xff]
    %v260 = vperm.slane %v258, 0
    %v261 = vperm.slane %v258, 1
    %v262 = vperm.slane %v258, 2
    %v263 = vperm.slane %v258, 3
    %v264 = vperm.slane %v258, 4
    %v265 = vperm.slane %v258, 5
    %v266 = vperm.slane %v258, 6
    %v267 = vperm.slane %v258, 7
    %v404 = vunpack.c.l.b16 %v128
    %v405 = vunpack.c.h.b16 %v128
    %v406 = vunpack.c.l.b16 %v129
    %v407 = vunpack.c.h.b16 %v129
    %v408 = vunpack.c.l.b16 %v130
    %v409 = vunpack.c.h.b16 %v130
    %v410 = vunpack.c.l.b16 %v131
    %v411 = vunpack.c.h.b16 %v131
    %v412 = vunpack.c.l.b16 %v132
    %v413 = vunpack.c.h.b16 %v132
    %v414 = vunpack.c.l.b16 %v133
    %v415 = vunpack.c.h.b16 %v133
    %v416 = vunpack.c.l.b16 %v134
    %v417 = vunpack.c.h.b16 %v134
    %v418 = vunpack.c.l.b16 %v135
    %v419 = vunpack.c.h.b16 %v135
    %v420 = vunpack.c.l.b16 %v136
    %v421 = vunpack.c.h.b16 %v136
    %v422 = vunpack.c.l.b16 %v137
    %v423 = vunpack.c.h.b16 %v137
    %v424 = vunpack.c.l.b16 %v138
    %v425 = vunpack.c.h.b16 %v138
    %v426 = vunpack.c.l.b16 %v139
    %v427 = vunpack.c.h.b16 %v139
    %v428 = vunpack.c.l.b16 %v140
    %v429 = vunpack.c.h.b16 %v140
    %v430 = vunpack.c.l.b16 %v141
    %v431 = vunpack.c.h.b16 %v141
    %v432 = vunpack.c.l.b16 %v142
    %v433 = vunpack.c.h.b16 %v142
    %v434 = vunpack.c.l.b16 %v143
    %v435 = vunpack.c.h.b16 %v143
    %v436 = vunpack.c.l.b16 %v144
    %v437 = vunpack.c.h.b16 %v144
    %v438 = vunpack.c.l.b16 %v145
    %v439 = vunpack.c.h.b16 %v145
    %v440 = vunpack.c.l.b16 %v146
    %v441 = vunpack.c.h.b16 %v146
    %v442 = vunpack.c.l.b16 %v147
    %v443 = vunpack.c.h.b16 %v147
    %v444 = vunpack.c.l.b16 %v148
    %v445 = vunpack.c.h.b16 %v148
    %v446 = vunpack.c.l.b16 %v149
    %v447 = vunpack.c.h.b16 %v149
    %v448 = vunpack.c.l.b16 %v150
    %v449 = vunpack.c.h.b16 %v150
    %v450 = vunpack.c.l.b16 %v151
    %v451 = vunpack.c.h.b16 %v151
    %v452 = vunpack.c.l.b16 %v152
    %v453 = vunpack.c.h.b16 %v152
    %v454 = vunpack.c.l.b16 %v153
    %v455 = vunpack.c.h.b16 %v153
    %v456 = vunpack.c.l.b16 %v154
    %v457 = vunpack.c.h.b16 %v154
    %v458 = vunpack.c.l.b16 %v155
    %v459 = vunpack.c.h.b16 %v155
    %v460 = vunpack.c.l.b16 %v156
    %v461 = vunpack.c.h.b16 %v156
    %v462 = vunpack.c.l.b16 %v157
    %v463 = vunpack.c.h.b16 %v157
    %v464 = vunpack.c.l.b16 %v158
    %v465 = vunpack.c.h.b16 %v158
    %v466 = vunpack.c.l.b16 %v159
    %v467 = vunpack.c.h.b16 %v159
    %v468 = vunpack.c.l.b16 %v160
    %v469 = vunpack.c.h.b16 %v160
    %v470 = vunpack.c.l.b16 %v161
    %v471 = vunpack.c.h.b16 %v161
    %v472 = vunpack.c.l.b16 %v162
    %v473 = vunpack.c.h.b16 %v162
    %v474 = vunpack.c.l.b16 %v163
    %v475 = vunpack.c.h.b16 %v163
    %v476 = vunpack.c.l.b16 %v164
    %v477 = vunpack.c.h.b16 %v164
    %v478 = vunpack.c.l.b16 %v165
    %v479 = vunpack.c.h.b16 %v165
    %v480 = vunpack.c.l.b16 %v166
    %v481 = vunpack.c.h.b16 %v166
    %v482 = vunpack.c.l.b16 %v167
    %v483 = vunpack.c.h.b16 %v167
    %v484 = vunpack.c.l.b16 %v168
    %v485 = vunpack.c.h.b16 %v168
    %v486 = vunpack.c.l.b16 %v169
    %v487 = vunpack.c.h.b16 %v169
    %v488 = vunpack.c.l.b16 %v170
    %v489 = vunpack.c.h.b16 %v170
    %v490 = vunpack.c.l.b16 %v171
    %v491 = vunpack.c.h.b16 %v171
    %v492 = vunpack.c.l.b16 %v172
    %v493 = vunpack.c.h.b16 %v172
    %v494 = vunpack.c.l.b16 %v173
    %v495 = vunpack.c.h.b16 %v173
    %v496 = vunpack.c.l.b16 %v174
    %v497 = vunpack.c.h.b16 %v174
    %v498 = vunpack.c.l.b16 %v175
    %v499 = vunpack.c.h.b16 %v175
    %v500 = vunpack.c.l.b16 %v176
    %v501 = vunpack.c.h.b16 %v176
    %v502 = vunpack.c.l.b16 %v177
    %v503 = vunpack.c.h.b16 %v177
    %v504 = vunpack.c.l.b16 %v178
    %v505 = vunpack.c.h.b16 %v178
    %v506 = vunpack.c.l.b16 %v179
    %v507 = vunpack.c.h.b16 %v179
    %v508 = vunpack.c.l.b16 %v180
    %v509 = vunpack.c.h.b16 %v180
    %v510 = vunpack.c.l.b16 %v181
    %v511 = vunpack.c.h.b16 %v181
    %v512 = vunpack.c.l.b16 %v182
    %v513 = vunpack.c.h.b16 %v182
    %v514 = vunpack.c.l.b16 %v183
    %v515 = vunpack.c.h.b16 %v183
    %v516 = vunpack.c.l.b16 %v184
    %v517 = vunpack.c.h.b16 %v184
    %v518 = vunpack.c.l.b16 %v185
    %v519 = vunpack.c.h.b16 %v185
    %v520 = vunpack.c.l.b16 %v186
    %v521 = vunpack.c.h.b16 %v186
    %v522 = vunpack.c.l.b16 %v187
    %v523 = vunpack.c.h.b16 %v187
    %v524 = vunpack.c.l.b16 %v188
    %v525 = vunpack.c.h.b16 %v188
    %v526 = vunpack.c.l.b16 %v189
    %v527 = vunpack.c.h.b16 %v189
    %v528 = vunpack.c.l.b16 %v190
    %v529 = vunpack.c.h.b16 %v190
    %v530 = vunpack.c.l.b16 %v191
    %v531 = vunpack.c.h.b16 %v191
    %v532 = vunpack.c.l.b16 %v192
    %v533 = vunpack.c.h.b16 %v192
    %v534 = vunpack.c.l.b16 %v193
    %v535 = vunpack.c.h.b16 %v193
    %v536 = vunpack.c.l.b16 %v194
    %v537 = vunpack.c.h.b16 %v194
    %v538 = vunpack.c.l.b16 %v195
    %v539 = vunpack.c.h.b16 %v195
    %v540 = vunpack.c.l.b16 %v196
    %v541 = vunpack.c.h.b16 %v196
    %v542 = vunpack.c.l.b16 %v197
    %v543 = vunpack.c.h.b16 %v197
    %v544 = vunpack.c.l.b16 %v198
    %v545 = vunpack.c.h.b16 %v198
    %v546 = vunpack.c.l.b16 %v199
    %v547 = vunpack.c.h.b16 %v199
    %v548 = vunpack.c.l.b16 %v200
    %v549 = vunpack.c.h.b16 %v200
    %v550 = vunpack.c.l.b16 %v201
    %v551 = vunpack.c.h.b16 %v201
    %v552 = vunpack.c.l.b16 %v202
    %v553 = vunpack.c.h.b16 %v202
    %v554 = vunpack.c.l.b16 %v203
    %v555 = vunpack.c.h.b16 %v203
    %v556 = vunpack.c.l.b16 %v204
    %v557 = vunpack.c.h.b16 %v204
    %v558 = vunpack.c.l.b16 %v205
    %v559 = vunpack.c.h.b16 %v205
    %v560 = vunpack.c.l.b16 %v206
    %v561 = vunpack.c.h.b16 %v206
    %v562 = vunpack.c.l.b16 %v207
    %v563 = vunpack.c.h.b16 %v207
    %v564 = vunpack.c.l.b16 %v208
    %v565 = vunpack.c.h.b16 %v208
    %v566 = vunpack.c.l.b16 %v209
    %v567 = vunpack.c.h.b16 %v209
    %v568 = vunpack.c.l.b16 %v210
    %v569 = vunpack.c.h.b16 %v210
    %v570 = vunpack.c.l.b16 %v211
    %v571 = vunpack.c.h.b16 %v211
    %v572 = vunpack.c.l.b16 %v212
    %v573 = vunpack.c.h.b16 %v212
    %v574 = vunpack.c.l.b16 %v213
    %v575 = vunpack.c.h.b16 %v213
    %v576 = vunpack.c.l.b16 %v214
    %v577 = vunpack.c.h.b16 %v214
    %v578 = vunpack.c.l.b16 %v215
    %v579 = vunpack.c.h.b16 %v215
    %v580 = vunpack.c.l.b16 %v216
    %v581 = vunpack.c.h.b16 %v216
    %v582 = vunpack.c.l.b16 %v217
    %v583 = vunpack.c.h.b16 %v217
    %v584 = vunpack.c.l.b16 %v218
    %v585 = vunpack.c.h.b16 %v218
    %v586 = vunpack.c.l.b16 %v219
    %v587 = vunpack.c.h.b16 %v219
    %v588 = vunpack.c.l.b16 %v220
    %v589 = vunpack.c.h.b16 %v220
    %v590 = vunpack.c.l.b16 %v221
    %v591 = vunpack.c.h.b16 %v221
    %v592 = vunpack.c.l.b16 %v222
    %v593 = vunpack.c.h.b16 %v222
    %v594 = vunpack.c.l.b16 %v223
    %v595 = vunpack.c.h.b16 %v223
    %v596 = vunpack.c.l.b16 %v224
    %v597 = vunpack.c.h.b16 %v224
    %v598 = vunpack.c.l.b16 %v225
    %v599 = vunpack.c.h.b16 %v225
    %v600 = vunpack.c.l.b16 %v226
    %v601 = vunpack.c.h.b16 %v226
    %v602 = vunpack.c.l.b16 %v227
    %v603 = vunpack.c.h.b16 %v227
    %v604 = vunpack.c.l.b16 %v228
    %v605 = vunpack.c.h.b16 %v228
    %v606 = vunpack.c.l.b16 %v229
    %v607 = vunpack.c.h.b16 %v229
    %v608 = vunpack.c.l.b16 %v230
    %v609 = vunpack.c.h.b16 %v230
    %v610 = vunpack.c.l.b16 %v231
    %v611 = vunpack.c.h.b16 %v231
    %v612 = vunpack.c.l.b16 %v232
    %v613 = vunpack.c.h.b16 %v232
    %v614 = vunpack.c.l.b16 %v233
    %v615 = vunpack.c.h.b16 %v233
    %v616 = vunpack.c.l.b16 %v234
    %v617 = vunpack.c.h.b16 %v234
    %v618 = vunpack.c.l.b16 %v235
    %v619 = vunpack.c.h.b16 %v235
    %v620 = vunpack.c.l.b16 %v236
    %v621 = vunpack.c.h.b16 %v236
    %v622 = vunpack.c.l.b16 %v237
    %v623 = vunpack.c.h.b16 %v237
    %v624 = vunpack.c.l.b16 %v238
    %v625 = vunpack.c.h.b16 %v238
    %v626 = vunpack.c.l.b16 %v239
    %v627 = vunpack.c.h.b16 %v239
    %v628 = vunpack.c.l.b16 %v240
    %v629 = vunpack.c.h.b16 %v240
    %v630 = vunpack.c.l.b16 %v241
    %v631 = vunpack.c.h.b16 %v241
    %v632 = vunpack.c.l.b16 %v242
    %v633 = vunpack.c.h.b16 %v242
    %v634 = vunpack.c.l.b16 %v243
    %v635 = vunpack.c.h.b16 %v243
    %v636 = vunpack.c.l.b16 %v244
    %v637 = vunpack.c.h.b16 %v244
    %v638 = vunpack.c.l.b16 %v245
    %v639 = vunpack.c.h.b16 %v245
    %v640 = vunpack.c.l.b16 %v246
    %v641 = vunpack.c.h.b16 %v246
    %v642 = vunpack.c.l.b16 %v247
    %v643 = vunpack.c.h.b16 %v247
    %v644 = vunpack.c.l.b16 %v248
    %v645 = vunpack.c.h.b16 %v248
    %v646 = vunpack.c.l.b16 %v249
    %v647 = vunpack.c.h.b16 %v249
    %v648 = vunpack.c.l.b16 %v250
    %v649 = vunpack.c.h.b16 %v250
    %v650 = vunpack.c.l.b16 %v251
    %v651 = vunpack.c.h.b16 %v251
    %v652 = vunpack.c.l.b16 %v252
    %v653 = vunpack.c.h.b16 %v252
    %v654 = vunpack.c.l.b16 %v253
    %v655 = vunpack.c.h.b16 %v253
    %v656 = vunpack.c.l.b16 %v254
    %v657 = vunpack.c.h.b16 %v254
    %v658 = vunpack.c.l.b16 %v255
    %v659 = vunpack.c.h.b16 %v255
    %v660 = vpack.c.b16 %v412, %v404
    %v661 = vpack.c.b16 %v413, %v405
    %v662 = vpack.c.b16 %v414, %v406
    %v663 = vpack.c.b16 %v415, %v407
    %v664 = vpack.c.b16 %v416, %v408
    %v665 = vpack.c.b16 %v417, %v409
    %v666 = vpack.c.b16 %v418, %v410
    %v667 = vpack.c.b16 %v419, %v411
    %v668 = vpack.c.b16 %v428, %v420
    %v669 = vpack.c.b16 %v429, %v421
    %v670 = vpack.c.b16 %v430, %v422
    %v671 = vpack.c.b16 %v431, %v423
    %v672 = vpack.c.b16 %v432, %v424
    %v673 = vpack.c.b16 %v433, %v425
    %v674 = vpack.c.b16 %v434, %v426
    %v675 = vpack.c.b16 %v435, %v427
    %v676 = vpack.c.b16 %v444, %v436
    %v677 = vpack.c.b16 %v445, %v437
    %v678 = vpack.c.b16 %v446, %v438
    %v679 = vpack.c.b16 %v447, %v439
    %v680 = vpack.c.b16 %v448, %v440
    %v681 = vpack.c.b16 %v449, %v441
    %v682 = vpack.c.b16 %v450, %v442
    %v683 = vpack.c.b16 %v451, %v443
    %v684 = vpack.c.b16 %v460, %v452
    %v685 = vpack.c.b16 %v461, %v453
    %v686 = vpack.c.b16 %v462, %v454
    %v687 = vpack.c.b16 %v463, %v455
    %v688 = vpack.c.b16 %v464, %v456
    %v689 = vpack.c.b16 %v465, %v457
    %v690 = vpack.c.b16 %v466, %v458
    %v691 = vpack.c.b16 %v467, %v459
    %v692 = vpack.c.b16 %v476, %v468
    %v693 = vpack.c.b16 %v477, %v469
    %v694 = vpack.c.b16 %v478, %v470
    %v695 = vpack.c.b16 %v479, %v471
    %v696 = vpack.c.b16 %v480, %v472
    %v697 = vpack.c.b16 %v481, %v473
    %v698 = vpack.c.b16 %v482, %v474
    %v699 = vpack.c.b16 %v483, %v475
    %v700 = vpack.c.b16 %v492, %v484
    %v701 = vpack.c.b16 %v493, %v485
    %v702 = vpack.c.b16 %v494, %v486
    %v703 = vpack.c.b16 %v495, %v487
    %v704 = vpack.c.b16 %v496, %v488
    %v705 = vpack.c.b16 %v497, %v489
    %v706 = vpack.c.b16 %v498, %v490
    %v707 = vpack.c.b16 %v499, %v491
    %v708 = vpack.c.b16 %v508, %v500
    %v709 = vpack.c.b16 %v509, %v501
    %v710 = vpack.c.b16 %v510, %v502
    %v711 = vpack.c.b16 %v511, %v503
    %v712 = vpack.c.b16 %v512, %v504
    %v713 = vpack.c.b16 %v513, %v505
    %v714 = vpack.c.b16 %v514, %v506
    %v715 = vpack.c.b16 %v515, %v507
    %v716 = vpack.c.b16 %v524, %v516
    %v717 = vpack.c.b16 %v525, %v517
    %v718 = vpack.c.b16 %v526, %v518
    %v719 = vpack.c.b16 %v527, %v519
    %v720 = vpack.c.b16 %v528, %v520
    %v721 = vpack.c.b16 %v529, %v521
    %v722 = vpack.c.b16 %v530, %v522
    %v723 = vpack.c.b16 %v531, %v523
    %v724 = vpack.c.b16 %v540, %v532
    %v725 = vpack.c.b16 %v541, %v533
    %v726 = vpack.c.b16 %v542, %v534
    %v727 = vpack.c.b16 %v543, %v535
    %v728 = vpack.c.b16 %v544, %v536
    %v729 = vpack.c.b16 %v545, %v537
    %v730 = vpack.c.b16 %v546, %v538
    %v731 = vpack.c.b16 %v547, %v539
    %v732 = vpack.c.b16 %v556, %v548
    %v733 = vpack.c.b16 %v557, %v549
    %v734 = vpack.c.b16 %v558, %v550
    %v735 = vpack.c.b16 %v559, %v551
    %v736 = vpack.c.b16 %v560, %v552
    %v737 = vpack.c.b16 %v561, %v553
    %v738 = vpack.c.b16 %v562, %v554
    %v739 = vpack.c.b16 %v563, %v555
    %v740 = vpack.c.b16 %v572, %v564
    %v741 = vpack.c.b16 %v573, %v565
    %v742 = vpack.c.b16 %v574, %v566
    %v743 = vpack.c.b16 %v575, %v567
    %v744 = vpack.c.b16 %v576, %v568
    %v745 = vpack.c.b16 %v577, %v569
    %v746 = vpack.c.b16 %v578, %v570
    %v747 = vpack.c.b16 %v579, %v571
    %v748 = vpack.c.b16 %v588, %v580
    %v749 = vpack.c.b16 %v589, %v581
    %v750 = vpack.c.b16 %v590, %v582
    %v751 = vpack.c.b16 %v591, %v583
    %v752 = vpack.c.b16 %v592, %v584
    %v753 = vpack.c.b16 %v593, %v585
    %v754 = vpack.c.b16 %v594, %v586
    %v755 = vpack.c.b16 %v595, %v587
    %v756 = vpack.c.b16 %v604, %v596
    %v757 = vpack.c.b16 %v605, %v597
    %v758 = vpack.c.b16 %v606, %v598
    %v759 = vpack.c.b16 %v607, %v599
    %v760 = vpack.c.b16 %v608, %v600
    %v761 = vpack.c.b16 %v609, %v601
    %v762 = vpack.c.b16 %v610, %v602
    %v763 = vpack.c.b16 %v611, %v603
    %v764 = vpack.c.b16 %v620, %v612
    %v765 = vpack.c.b16 %v621, %v613
    %v766 = vpack.c.b16 %v622, %v614
    %v767 = vpack.c.b16 %v623, %v615
    %v768 = vpack.c.b16 %v624, %v616
    %v769 = vpack.c.b16 %v625, %v617
    %v770 = vpack.c.b16 %v626, %v618
    %v771 = vpack.c.b16 %v627, %v619
    %v772 = vpack.c.b16 %v636, %v628
    %v773 = vpack.c.b16 %v637, %v629
    %v774 = vpack.c.b16 %v638, %v630
    %v775 = vpack.c.b16 %v639, %v631
    %v776 = vpack.c.b16 %v640, %v632
    %v777 = vpack.c.b16 %v641, %v633
    %v778 = vpack.c.b16 %v642, %v634
    %v779 = vpack.c.b16 %v643, %v635
    %v780 = vpack.c.b16 %v652, %v644
    %v781 = vpack.c.b16 %v653, %v645
    %v782 = vpack.c.b16 %v654, %v646
    %v783 = vpack.c.b16 %v655, %v647
    %v784 = vpack.c.b16 %v656, %v648
    %v785 = vpack.c.b16 %v657, %v649
    %v786 = vpack.c.b16 %v658, %v650
    %v787 = vpack.c.b16 %v659, %v651
    %916 = vmatpush.bf16.msra.mxu0 %v716
    %917 = vmatpush.bf16.msra.mxu0 %v708
    %918 = vmatpush.bf16.msra.mxu0 %v700
    %919 = vmatpush.bf16.msra.mxu0 %v692
    %920 = vmatpush.bf16.msra.mxu0 %v684
    %921 = vmatpush.bf16.msra.mxu0 %v676
    %922 = vmatpush.bf16.msra.mxu0 %v668
    %923 = vmatpush.bf16.msra.mxu0 %v660
    %924 = vmatmul.bf16.gmra.mxu0 %v256
    %v925 = vpop.f32.mrf.mxu0
    %v926 = vadd.f32 %v260, %v925
    %v927 = vpop.f32.mrf.mxu0
    %928 = vdwg.mxu0
    %929 = vmatpush.bf16.msra.mxu0 %v780
    %930 = vmatpush.bf16.msra.mxu0 %v772
    %931 = vmatpush.bf16.msra.mxu0 %v764
    %932 = vmatpush.bf16.msra.mxu0 %v756
    %933 = vmatpush.bf16.msra.mxu0 %v748
    %934 = vmatpush.bf16.msra.mxu0 %v740
    %935 = vmatpush.bf16.msra.mxu0 %v732
    %936 = vmatpush.bf16.msra.mxu0 %v724
    %937 = vmatmul.bf16.gmra.mxu0 %v257
    %v938 = vpop.f32.mrf.mxu0
    %v939 = vadd.f32 %v926, %v938
    %v940 = vpop.f32.mrf.mxu0
    %941 = vdwg.mxu0
    %942 = vmatpush.bf16.msra.mxu0 %v717
    %943 = vmatpush.bf16.msra.mxu0 %v709
    %944 = vmatpush.bf16.msra.mxu0 %v701
    %945 = vmatpush.bf16.msra.mxu0 %v693
    %946 = vmatpush.bf16.msra.mxu0 %v685
    %947 = vmatpush.bf16.msra.mxu0 %v677
    %948 = vmatpush.bf16.msra.mxu0 %v669
    %949 = vmatpush.bf16.msra.mxu0 %v661
    %950 = vmatmul.bf16.gmra.mxu0 %v256
    %v951 = vpop.f32.mrf.mxu0
    %v952 = vadd.f32 %v261, %v951
    %v953 = vpop.f32.mrf.mxu0
    %954 = vdwg.mxu0
    %955 = vmatpush.bf16.msra.mxu0 %v781
    %956 = vmatpush.bf16.msra.mxu0 %v773
    %957 = vmatpush.bf16.msra.mxu0 %v765
    %958 = vmatpush.bf16.msra.mxu0 %v757
    %959 = vmatpush.bf16.msra.mxu0 %v749
    %960 = vmatpush.bf16.msra.mxu0 %v741
    %961 = vmatpush.bf16.msra.mxu0 %v733
    %962 = vmatpush.bf16.msra.mxu0 %v725
    %963 = vmatmul.bf16.gmra.mxu0 %v257
    %v964 = vpop.f32.mrf.mxu0
    %v965 = vadd.f32 %v952, %v964
    %v966 = vpop.f32.mrf.mxu0
    %967 = vdwg.mxu0
    %968 = vmatpush.bf16.msra.mxu0 %v718
    %969 = vmatpush.bf16.msra.mxu0 %v710
    %970 = vmatpush.bf16.msra.mxu0 %v702
    %971 = vmatpush.bf16.msra.mxu0 %v694
    %972 = vmatpush.bf16.msra.mxu0 %v686
    %973 = vmatpush.bf16.msra.mxu0 %v678
    %974 = vmatpush.bf16.msra.mxu0 %v670
    %975 = vmatpush.bf16.msra.mxu0 %v662
    %976 = vmatmul.bf16.gmra.mxu0 %v256
    %v977 = vpop.f32.mrf.mxu0
    %v978 = vadd.f32 %v262, %v977
    %v979 = vpop.f32.mrf.mxu0
    %980 = vdwg.mxu0
    %981 = vmatpush.bf16.msra.mxu0 %v782
    %982 = vmatpush.bf16.msra.mxu0 %v774
    %983 = vmatpush.bf16.msra.mxu0 %v766
    %984 = vmatpush.bf16.msra.mxu0 %v758
    %985 = vmatpush.bf16.msra.mxu0 %v750
    %986 = vmatpush.bf16.msra.mxu0 %v742
    %987 = vmatpush.bf16.msra.mxu0 %v734
    %988 = vmatpush.bf16.msra.mxu0 %v726
    %989 = vmatmul.bf16.gmra.mxu0 %v257
    %v990 = vpop.f32.mrf.mxu0
    %v991 = vadd.f32 %v978, %v990
    %v992 = vpop.f32.mrf.mxu0
    %993 = vdwg.mxu0
    %994 = vmatpush.bf16.msra.mxu0 %v719
    %995 = vmatpush.bf16.msra.mxu0 %v711
    %996 = vmatpush.bf16.msra.mxu0 %v703
    %997 = vmatpush.bf16.msra.mxu0 %v695
    %998 = vmatpush.bf16.msra.mxu0 %v687
    %999 = vmatpush.bf16.msra.mxu0 %v679
    %1000 = vmatpush.bf16.msra.mxu0 %v671
    %1001 = vmatpush.bf16.msra.mxu0 %v663
    %1002 = vmatmul.bf16.gmra.mxu0 %v256
    %v1003 = vpop.f32.mrf.mxu0
    %v1004 = vadd.f32 %v263, %v1003
    %v1005 = vpop.f32.mrf.mxu0
    %1006 = vdwg.mxu0
    %1007 = vmatpush.bf16.msra.mxu0 %v783
    %1008 = vmatpush.bf16.msra.mxu0 %v775
    %1009 = vmatpush.bf16.msra.mxu0 %v767
    %1010 = vmatpush.bf16.msra.mxu0 %v759
    %1011 = vmatpush.bf16.msra.mxu0 %v751
    %1012 = vmatpush.bf16.msra.mxu0 %v743
    %1013 = vmatpush.bf16.msra.mxu0 %v735
    %1014 = vmatpush.bf16.msra.mxu0 %v727
    %1015 = vmatmul.bf16.gmra.mxu0 %v257
    %v1016 = vpop.f32.mrf.mxu0
    %v1017 = vadd.f32 %v1004, %v1016
    %v1018 = vpop.f32.mrf.mxu0
    %1019 = vdwg.mxu0
    %1020 = vmatpush.bf16.msra.mxu0 %v720
    %1021 = vmatpush.bf16.msra.mxu0 %v712
    %1022 = vmatpush.bf16.msra.mxu0 %v704
    %1023 = vmatpush.bf16.msra.mxu0 %v696
    %1024 = vmatpush.bf16.msra.mxu0 %v688
    %1025 = vmatpush.bf16.msra.mxu0 %v680
    %1026 = vmatpush.bf16.msra.mxu0 %v672
    %1027 = vmatpush.bf16.msra.mxu0 %v664
    %1028 = vmatmul.bf16.gmra.mxu0 %v256
    %v1029 = vpop.f32.mrf.mxu0
    %v1030 = vadd.f32 %v264, %v1029
    %v1031 = vpop.f32.mrf.mxu0
    %1032 = vdwg.mxu0
    %1033 = vmatpush.bf16.msra.mxu0 %v784
    %1034 = vmatpush.bf16.msra.mxu0 %v776
    %1035 = vmatpush.bf16.msra.mxu0 %v768
    %1036 = vmatpush.bf16.msra.mxu0 %v760
    %1037 = vmatpush.bf16.msra.mxu0 %v752
    %1038 = vmatpush.bf16.msra.mxu0 %v744
    %1039 = vmatpush.bf16.msra.mxu0 %v736
    %1040 = vmatpush.bf16.msra.mxu0 %v728
    %1041 = vmatmul.bf16.gmra.mxu0 %v257
    %v1042 = vpop.f32.mrf.mxu0
    %v1043 = vadd.f32 %v1030, %v1042
    %v1044 = vpop.f32.mrf.mxu0
    %1045 = vdwg.mxu0
    %1046 = vmatpush.bf16.msra.mxu0 %v721
    %1047 = vmatpush.bf16.msra.mxu0 %v713
    %1048 = vmatpush.bf16.msra.mxu0 %v705
    %1049 = vmatpush.bf16.msra.mxu0 %v697
    %1050 = vmatpush.bf16.msra.mxu0 %v689
    %1051 = vmatpush.bf16.msra.mxu0 %v681
    %1052 = vmatpush.bf16.msra.mxu0 %v673
    %1053 = vmatpush.bf16.msra.mxu0 %v665
    %1054 = vmatmul.bf16.gmra.mxu0 %v256
    %v1055 = vpop.f32.mrf.mxu0
    %v1056 = vadd.f32 %v265, %v1055
    %v1057 = vpop.f32.mrf.mxu0
    %1058 = vdwg.mxu0
    %1059 = vmatpush.bf16.msra.mxu0 %v785
    %1060 = vmatpush.bf16.msra.mxu0 %v777
    %1061 = vmatpush.bf16.msra.mxu0 %v769
    %1062 = vmatpush.bf16.msra.mxu0 %v761
    %1063 = vmatpush.bf16.msra.mxu0 %v753
    %1064 = vmatpush.bf16.msra.mxu0 %v745
    %1065 = vmatpush.bf16.msra.mxu0 %v737
    %1066 = vmatpush.bf16.msra.mxu0 %v729
    %1067 = vmatmul.bf16.gmra.mxu0 %v257
    %v1068 = vpop.f32.mrf.mxu0
    %v1069 = vadd.f32 %v1056, %v1068
    %v1070 = vpop.f32.mrf.mxu0
    %1071 = vdwg.mxu0
    %1072 = vmatpush.bf16.msra.mxu0 %v722
    %1073 = vmatpush.bf16.msra.mxu0 %v714
    %1074 = vmatpush.bf16.msra.mxu0 %v706
    %1075 = vmatpush.bf16.msra.mxu0 %v698
    %1076 = vmatpush.bf16.msra.mxu0 %v690
    %1077 = vmatpush.bf16.msra.mxu0 %v682
    %1078 = vmatpush.bf16.msra.mxu0 %v674
    %1079 = vmatpush.bf16.msra.mxu0 %v666
    %1080 = vmatmul.bf16.gmra.mxu0 %v256
    %v1081 = vpop.f32.mrf.mxu0
    %v1082 = vadd.f32 %v266, %v1081
    %v1083 = vpop.f32.mrf.mxu0
    %1084 = vdwg.mxu0
    %1085 = vmatpush.bf16.msra.mxu0 %v786
    %1086 = vmatpush.bf16.msra.mxu0 %v778
    %1087 = vmatpush.bf16.msra.mxu0 %v770
    %1088 = vmatpush.bf16.msra.mxu0 %v762
    %1089 = vmatpush.bf16.msra.mxu0 %v754
    %1090 = vmatpush.bf16.msra.mxu0 %v746
    %1091 = vmatpush.bf16.msra.mxu0 %v738
    %1092 = vmatpush.bf16.msra.mxu0 %v730
    %1093 = vmatmul.bf16.gmra.mxu0 %v257
    %v1094 = vpop.f32.mrf.mxu0
    %v1095 = vadd.f32 %v1082, %v1094
    %v1096 = vpop.f32.mrf.mxu0
    %1097 = vdwg.mxu0
    %1098 = vmatpush.bf16.msra.mxu0 %v723
    %1099 = vmatpush.bf16.msra.mxu0 %v715
    %1100 = vmatpush.bf16.msra.mxu0 %v707
    %1101 = vmatpush.bf16.msra.mxu0 %v699
    %1102 = vmatpush.bf16.msra.mxu0 %v691
    %1103 = vmatpush.bf16.msra.mxu0 %v683
    %1104 = vmatpush.bf16.msra.mxu0 %v675
    %1105 = vmatpush.bf16.msra.mxu0 %v667
    %1106 = vmatmul.bf16.gmra.mxu0 %v256
    %v1107 = vpop.f32.mrf.mxu0
    %v1108 = vadd.f32 %v267, %v1107
    %v1109 = vpop.f32.mrf.mxu0
    %1110 = vdwg.mxu0
    %1111 = vmatpush.bf16.msra.mxu0 %v787
    %1112 = vmatpush.bf16.msra.mxu0 %v779
    %1113 = vmatpush.bf16.msra.mxu0 %v771
    %1114 = vmatpush.bf16.msra.mxu0 %v763
    %1115 = vmatpush.bf16.msra.mxu0 %v755
    %1116 = vmatpush.bf16.msra.mxu0 %v747
    %1117 = vmatpush.bf16.msra.mxu0 %v739
    %1118 = vmatpush.bf16.msra.mxu0 %v731
    %1119 = vmatmul.bf16.gmra.mxu0 %v257
    %v1120 = vpop.f32.mrf.mxu0
    %v1121 = vadd.f32 %v1108, %v1120
    %v1122 = vpop.f32.mrf.mxu0
    %1123 = vdwg.mxu0
    %v1124 = vmax.f32 %v939, 0.0
    %v1125 = vmax.f32 %v965, 0.0
    %v1126 = vmax.f32 %v991, 0.0
    %v1127 = vmax.f32 %v1017, 0.0
    %v1128 = vmax.f32 %v1043, 0.0
    %v1129 = vmax.f32 %v1069, 0.0
    %v1130 = vmax.f32 %v1095, 0.0
    %v1131 = vmax.f32 %v1121, 0.0
    %v1132 = vld [vmem:[#allocation5] sm:$0xff]
    %v1133 = vld [vmem:[#allocation5 + $0x8] sm:$0xff]
    %v1134 = vld [vmem:[#allocation5 + $0x10] sm:$0xff]
    %v1135 = vld [vmem:[#allocation5 + $0x18] sm:$0xff]
    %v1136 = vld [vmem:[#allocation5 + $0x20] sm:$0xff]
    %v1137 = vld [vmem:[#allocation5 + $0x28] sm:$0xff]
    %v1138 = vld [vmem:[#allocation5 + $0x30] sm:$0xff]
    %v1139 = vld [vmem:[#allocation5 + $0x38] sm:$0xff]
    %v1140 = vld [vmem:[#allocation5 + $0x40] sm:$0xff]
    %v1141 = vld [vmem:[#allocation5 + $0x48] sm:$0xff]
    %v1142 = vld [vmem:[#allocation5 + $0x50] sm:$0xff]
    %v1143 = vld [vmem:[#allocation5 + $0x58] sm:$0xff]
    %v1144 = vld [vmem:[#allocation5 + $0x60] sm:$0xff]
    %v1145 = vld [vmem:[#allocation5 + $0x68] sm:$0xff]
    %v1146 = vld [vmem:[#allocation5 + $0x70] sm:$0xff]
    %v1147 = vld [vmem:[#allocation5 + $0x78] sm:$0xff]
    %v1148 = vld [vmem:[#allocation5 + $0x80] sm:$0xff]
    %v1149 = vld [vmem:[#allocation5 + $0x88] sm:$0xff]
    %v1150 = vld [vmem:[#allocation5 + $0x90] sm:$0xff]
    %v1151 = vld [vmem:[#allocation5 + $0x98] sm:$0xff]
    %v1152 = vld [vmem:[#allocation5 + $0xa0] sm:$0xff]
    %v1153 = vld [vmem:[#allocation5 + $0xa8] sm:$0xff]
    %v1154 = vld [vmem:[#allocation5 + $0xb0] sm:$0xff]
    %v1155 = vld [vmem:[#allocation5 + $0xb8] sm:$0xff]
    %v1156 = vld [vmem:[#allocation5 + $0xc0] sm:$0xff]
    %v1157 = vld [vmem:[#allocation5 + $0xc8] sm:$0xff]
    %v1158 = vld [vmem:[#allocation5 + $0xd0] sm:$0xff]
    %v1159 = vld [vmem:[#allocation5 + $0xd8] sm:$0xff]
    %v1160 = vld [vmem:[#allocation5 + $0xe0] sm:$0xff]
    %v1161 = vld [vmem:[#allocation5 + $0xe8] sm:$0xff]
    %v1162 = vld [vmem:[#allocation5 + $0xf0] sm:$0xff]
    %v1163 = vld [vmem:[#allocation5 + $0xf8] sm:$0xff]
    %v1164 = vld [vmem:[#allocation5 + $0x100] sm:$0xff]
    %v1165 = vld [vmem:[#allocation5 + $0x108] sm:$0xff]
    %v1166 = vld [vmem:[#allocation5 + $0x110] sm:$0xff]
    %v1167 = vld [vmem:[#allocation5 + $0x118] sm:$0xff]
    %v1168 = vld [vmem:[#allocation5 + $0x120] sm:$0xff]
    %v1169 = vld [vmem:[#allocation5 + $0x128] sm:$0xff]
    %v1170 = vld [vmem:[#allocation5 + $0x130] sm:$0xff]
    %v1171 = vld [vmem:[#allocation5 + $0x138] sm:$0xff]
    %v1172 = vld [vmem:[#allocation5 + $0x140] sm:$0xff]
    %v1173 = vld [vmem:[#allocation5 + $0x148] sm:$0xff]
    %v1174 = vld [vmem:[#allocation5 + $0x150] sm:$0xff]
    %v1175 = vld [vmem:[#allocation5 + $0x158] sm:$0xff]
    %v1176 = vld [vmem:[#allocation5 + $0x160] sm:$0xff]
    %v1177 = vld [vmem:[#allocation5 + $0x168] sm:$0xff]
    %v1178 = vld [vmem:[#allocation5 + $0x170] sm:$0xff]
    %v1179 = vld [vmem:[#allocation5 + $0x178] sm:$0xff]
    %v1180 = vld [vmem:[#allocation5 + $0x180] sm:$0xff]
    %v1181 = vld [vmem:[#allocation5 + $0x188] sm:$0xff]
    %v1182 = vld [vmem:[#allocation5 + $0x190] sm:$0xff]
    %v1183 = vld [vmem:[#allocation5 + $0x198] sm:$0xff]
    %v1184 = vld [vmem:[#allocation5 + $0x1a0] sm:$0xff]
    %v1185 = vld [vmem:[#allocation5 + $0x1a8] sm:$0xff]
    %v1186 = vld [vmem:[#allocation5 + $0x1b0] sm:$0xff]
    %v1187 = vld [vmem:[#allocation5 + $0x1b8] sm:$0xff]
    %v1188 = vld [vmem:[#allocation5 + $0x1c0] sm:$0xff]
    %v1189 = vld [vmem:[#allocation5 + $0x1c8] sm:$0xff]
    %v1190 = vld [vmem:[#allocation5 + $0x1d0] sm:$0xff]
    %v1191 = vld [vmem:[#allocation5 + $0x1d8] sm:$0xff]
    %v1192 = vld [vmem:[#allocation5 + $0x1e0] sm:$0xff]
    %v1193 = vld [vmem:[#allocation5 + $0x1e8] sm:$0xff]
    %v1194 = vld [vmem:[#allocation5 + $0x1f0] sm:$0xff]
    %v1195 = vld [vmem:[#allocation5 + $0x1f8] sm:$0xff]
    %v1196 = vld [vmem:[#allocation5 + $0x200] sm:$0xff]
    %v1197 = vld [vmem:[#allocation5 + $0x208] sm:$0xff]
    %v1198 = vld [vmem:[#allocation5 + $0x210] sm:$0xff]
    %v1199 = vld [vmem:[#allocation5 + $0x218] sm:$0xff]
    %v1200 = vld [vmem:[#allocation5 + $0x220] sm:$0xff]
    %v1201 = vld [vmem:[#allocation5 + $0x228] sm:$0xff]
    %v1202 = vld [vmem:[#allocation5 + $0x230] sm:$0xff]
    %v1203 = vld [vmem:[#allocation5 + $0x238] sm:$0xff]
    %v1204 = vld [vmem:[#allocation5 + $0x240] sm:$0xff]
    %v1205 = vld [vmem:[#allocation5 + $0x248] sm:$0xff]
    %v1206 = vld [vmem:[#allocation5 + $0x250] sm:$0xff]
    %v1207 = vld [vmem:[#allocation5 + $0x258] sm:$0xff]
    %v1208 = vld [vmem:[#allocation5 + $0x260] sm:$0xff]
    %v1209 = vld [vmem:[#allocation5 + $0x268] sm:$0xff]
    %v1210 = vld [vmem:[#allocation5 + $0x270] sm:$0xff]
    %v1211 = vld [vmem:[#allocation5 + $0x278] sm:$0xff]
    %v1212 = vld [vmem:[#allocation5 + $0x280] sm:$0xff]
    %v1213 = vld [vmem:[#allocation5 + $0x288] sm:$0xff]
    %v1214 = vld [vmem:[#allocation5 + $0x290] sm:$0xff]
    %v1215 = vld [vmem:[#allocation5 + $0x298] sm:$0xff]
    %v1216 = vld [vmem:[#allocation5 + $0x2a0] sm:$0xff]
    %v1217 = vld [vmem:[#allocation5 + $0x2a8] sm:$0xff]
    %v1218 = vld [vmem:[#allocation5 + $0x2b0] sm:$0xff]
    %v1219 = vld [vmem:[#allocation5 + $0x2b8] sm:$0xff]
    %v1220 = vld [vmem:[#allocation5 + $0x2c0] sm:$0xff]
    %v1221 = vld [vmem:[#allocation5 + $0x2c8] sm:$0xff]
    %v1222 = vld [vmem:[#allocation5 + $0x2d0] sm:$0xff]
    %v1223 = vld [vmem:[#allocation5 + $0x2d8] sm:$0xff]
    %v1224 = vld [vmem:[#allocation5 + $0x2e0] sm:$0xff]
    %v1225 = vld [vmem:[#allocation5 + $0x2e8] sm:$0xff]
    %v1226 = vld [vmem:[#allocation5 + $0x2f0] sm:$0xff]
    %v1227 = vld [vmem:[#allocation5 + $0x2f8] sm:$0xff]
    %v1228 = vld [vmem:[#allocation5 + $0x300] sm:$0xff]
    %v1229 = vld [vmem:[#allocation5 + $0x308] sm:$0xff]
    %v1230 = vld [vmem:[#allocation5 + $0x310] sm:$0xff]
    %v1231 = vld [vmem:[#allocation5 + $0x318] sm:$0xff]
    %v1232 = vld [vmem:[#allocation5 + $0x320] sm:$0xff]
    %v1233 = vld [vmem:[#allocation5 + $0x328] sm:$0xff]
    %v1234 = vld [vmem:[#allocation5 + $0x330] sm:$0xff]
    %v1235 = vld [vmem:[#allocation5 + $0x338] sm:$0xff]
    %v1236 = vld [vmem:[#allocation5 + $0x340] sm:$0xff]
    %v1237 = vld [vmem:[#allocation5 + $0x348] sm:$0xff]
    %v1238 = vld [vmem:[#allocation5 + $0x350] sm:$0xff]
    %v1239 = vld [vmem:[#allocation5 + $0x358] sm:$0xff]
    %v1240 = vld [vmem:[#allocation5 + $0x360] sm:$0xff]
    %v1241 = vld [vmem:[#allocation5 + $0x368] sm:$0xff]
    %v1242 = vld [vmem:[#allocation5 + $0x370] sm:$0xff]
    %v1243 = vld [vmem:[#allocation5 + $0x378] sm:$0xff]
    %v1244 = vld [vmem:[#allocation5 + $0x380] sm:$0xff]
    %v1245 = vld [vmem:[#allocation5 + $0x388] sm:$0xff]
    %v1246 = vld [vmem:[#allocation5 + $0x390] sm:$0xff]
    %v1247 = vld [vmem:[#allocation5 + $0x398] sm:$0xff]
    %v1248 = vld [vmem:[#allocation5 + $0x3a0] sm:$0xff]
    %v1249 = vld [vmem:[#allocation5 + $0x3a8] sm:$0xff]
    %v1250 = vld [vmem:[#allocation5 + $0x3b0] sm:$0xff]
    %v1251 = vld [vmem:[#allocation5 + $0x3b8] sm:$0xff]
    %v1252 = vld [vmem:[#allocation5 + $0x3c0] sm:$0xff]
    %v1253 = vld [vmem:[#allocation5 + $0x3c8] sm:$0xff]
    %v1254 = vld [vmem:[#allocation5 + $0x3d0] sm:$0xff]
    %v1255 = vld [vmem:[#allocation5 + $0x3d8] sm:$0xff]
    %v1256 = vld [vmem:[#allocation5 + $0x3e0] sm:$0xff]
    %v1257 = vld [vmem:[#allocation5 + $0x3e8] sm:$0xff]
    %v1258 = vld [vmem:[#allocation5 + $0x3f0] sm:$0xff]
    %v1259 = vld [vmem:[#allocation5 + $0x3f8] sm:$0xff]
    %v1260 = vpack.c.bf16 %v1124, %v1124
    %v1261 = vpack.c.bf16 %v1125, %v1125
    %v1262 = vpack.c.bf16 %v1126, %v1126
    %v1263 = vpack.c.bf16 %v1127, %v1127
    %v1264 = vpack.c.bf16 %v1128, %v1128
    %v1265 = vpack.c.bf16 %v1129, %v1129
    %v1266 = vpack.c.bf16 %v1130, %v1130
    %v1267 = vpack.c.bf16 %v1131, %v1131
    %v1268 = vld [vmem:[%s5] sm:$0x3]
    %v1270 = vperm.slane %v1268, 0
    %v1271 = vperm.slane %v1268, 1
    %v1402 = vunpack.c.l.b16 %v1132
    %v1403 = vunpack.c.h.b16 %v1132
    %v1404 = vunpack.c.l.b16 %v1133
    %v1405 = vunpack.c.h.b16 %v1133
    %v1406 = vunpack.c.l.b16 %v1134
    %v1407 = vunpack.c.h.b16 %v1134
    %v1408 = vunpack.c.l.b16 %v1135
    %v1409 = vunpack.c.h.b16 %v1135
    %v1410 = vunpack.c.l.b16 %v1136
    %v1411 = vunpack.c.h.b16 %v1136
    %v1412 = vunpack.c.l.b16 %v1137
    %v1413 = vunpack.c.h.b16 %v1137
    %v1414 = vunpack.c.l.b16 %v1138
    %v1415 = vunpack.c.h.b16 %v1138
    %v1416 = vunpack.c.l.b16 %v1139
    %v1417 = vunpack.c.h.b16 %v1139
    %v1418 = vunpack.c.l.b16 %v1140
    %v1419 = vunpack.c.h.b16 %v1140
    %v1420 = vunpack.c.l.b16 %v1141
    %v1421 = vunpack.c.h.b16 %v1141
    %v1422 = vunpack.c.l.b16 %v1142
    %v1423 = vunpack.c.h.b16 %v1142
    %v1424 = vunpack.c.l.b16 %v1143
    %v1425 = vunpack.c.h.b16 %v1143
    %v1426 = vunpack.c.l.b16 %v1144
    %v1427 = vunpack.c.h.b16 %v1144
    %v1428 = vunpack.c.l.b16 %v1145
    %v1429 = vunpack.c.h.b16 %v1145
    %v1430 = vunpack.c.l.b16 %v1146
    %v1431 = vunpack.c.h.b16 %v1146
    %v1432 = vunpack.c.l.b16 %v1147
    %v1433 = vunpack.c.h.b16 %v1147
    %v1434 = vunpack.c.l.b16 %v1148
    %v1435 = vunpack.c.h.b16 %v1148
    %v1436 = vunpack.c.l.b16 %v1149
    %v1437 = vunpack.c.h.b16 %v1149
    %v1438 = vunpack.c.l.b16 %v1150
    %v1439 = vunpack.c.h.b16 %v1150
    %v1440 = vunpack.c.l.b16 %v1151
    %v1441 = vunpack.c.h.b16 %v1151
    %v1442 = vunpack.c.l.b16 %v1152
    %v1443 = vunpack.c.h.b16 %v1152
    %v1444 = vunpack.c.l.b16 %v1153
    %v1445 = vunpack.c.h.b16 %v1153
    %v1446 = vunpack.c.l.b16 %v1154
    %v1447 = vunpack.c.h.b16 %v1154
    %v1448 = vunpack.c.l.b16 %v1155
    %v1449 = vunpack.c.h.b16 %v1155
    %v1450 = vunpack.c.l.b16 %v1156
    %v1451 = vunpack.c.h.b16 %v1156
    %v1452 = vunpack.c.l.b16 %v1157
    %v1453 = vunpack.c.h.b16 %v1157
    %v1454 = vunpack.c.l.b16 %v1158
    %v1455 = vunpack.c.h.b16 %v1158
    %v1456 = vunpack.c.l.b16 %v1159
    %v1457 = vunpack.c.h.b16 %v1159
    %v1458 = vunpack.c.l.b16 %v1160
    %v1459 = vunpack.c.h.b16 %v1160
    %v1460 = vunpack.c.l.b16 %v1161
    %v1461 = vunpack.c.h.b16 %v1161
    %v1462 = vunpack.c.l.b16 %v1162
    %v1463 = vunpack.c.h.b16 %v1162
    %v1464 = vunpack.c.l.b16 %v1163
    %v1465 = vunpack.c.h.b16 %v1163
    %v1466 = vunpack.c.l.b16 %v1164
    %v1467 = vunpack.c.h.b16 %v1164
    %v1468 = vunpack.c.l.b16 %v1165
    %v1469 = vunpack.c.h.b16 %v1165
    %v1470 = vunpack.c.l.b16 %v1166
    %v1471 = vunpack.c.h.b16 %v1166
    %v1472 = vunpack.c.l.b16 %v1167
    %v1473 = vunpack.c.h.b16 %v1167
    %v1474 = vunpack.c.l.b16 %v1168
    %v1475 = vunpack.c.h.b16 %v1168
    %v1476 = vunpack.c.l.b16 %v1169
    %v1477 = vunpack.c.h.b16 %v1169
    %v1478 = vunpack.c.l.b16 %v1170
    %v1479 = vunpack.c.h.b16 %v1170
    %v1480 = vunpack.c.l.b16 %v1171
    %v1481 = vunpack.c.h.b16 %v1171
    %v1482 = vunpack.c.l.b16 %v1172
    %v1483 = vunpack.c.h.b16 %v1172
    %v1484 = vunpack.c.l.b16 %v1173
    %v1485 = vunpack.c.h.b16 %v1173
    %v1486 = vunpack.c.l.b16 %v1174
    %v1487 = vunpack.c.h.b16 %v1174
    %v1488 = vunpack.c.l.b16 %v1175
    %v1489 = vunpack.c.h.b16 %v1175
    %v1490 = vunpack.c.l.b16 %v1176
    %v1491 = vunpack.c.h.b16 %v1176
    %v1492 = vunpack.c.l.b16 %v1177
    %v1493 = vunpack.c.h.b16 %v1177
    %v1494 = vunpack.c.l.b16 %v1178
    %v1495 = vunpack.c.h.b16 %v1178
    %v1496 = vunpack.c.l.b16 %v1179
    %v1497 = vunpack.c.h.b16 %v1179
    %v1498 = vunpack.c.l.b16 %v1180
    %v1499 = vunpack.c.h.b16 %v1180
    %v1500 = vunpack.c.l.b16 %v1181
    %v1501 = vunpack.c.h.b16 %v1181
    %v1502 = vunpack.c.l.b16 %v1182
    %v1503 = vunpack.c.h.b16 %v1182
    %v1504 = vunpack.c.l.b16 %v1183
    %v1505 = vunpack.c.h.b16 %v1183
    %v1506 = vunpack.c.l.b16 %v1184
    %v1507 = vunpack.c.h.b16 %v1184
    %v1508 = vunpack.c.l.b16 %v1185
    %v1509 = vunpack.c.h.b16 %v1185
    %v1510 = vunpack.c.l.b16 %v1186
    %v1511 = vunpack.c.h.b16 %v1186
    %v1512 = vunpack.c.l.b16 %v1187
    %v1513 = vunpack.c.h.b16 %v1187
    %v1514 = vunpack.c.l.b16 %v1188
    %v1515 = vunpack.c.h.b16 %v1188
    %v1516 = vunpack.c.l.b16 %v1189
    %v1517 = vunpack.c.h.b16 %v1189
    %v1518 = vunpack.c.l.b16 %v1190
    %v1519 = vunpack.c.h.b16 %v1190
    %v1520 = vunpack.c.l.b16 %v1191
    %v1521 = vunpack.c.h.b16 %v1191
    %v1522 = vunpack.c.l.b16 %v1192
    %v1523 = vunpack.c.h.b16 %v1192
    %v1524 = vunpack.c.l.b16 %v1193
    %v1525 = vunpack.c.h.b16 %v1193
    %v1526 = vunpack.c.l.b16 %v1194
    %v1527 = vunpack.c.h.b16 %v1194
    %v1528 = vunpack.c.l.b16 %v1195
    %v1529 = vunpack.c.h.b16 %v1195
    %v1530 = vunpack.c.l.b16 %v1196
    %v1531 = vunpack.c.h.b16 %v1196
    %v1532 = vunpack.c.l.b16 %v1197
    %v1533 = vunpack.c.h.b16 %v1197
    %v1534 = vunpack.c.l.b16 %v1198
    %v1535 = vunpack.c.h.b16 %v1198
    %v1536 = vunpack.c.l.b16 %v1199
    %v1537 = vunpack.c.h.b16 %v1199
    %v1538 = vunpack.c.l.b16 %v1200
    %v1539 = vunpack.c.h.b16 %v1200
    %v1540 = vunpack.c.l.b16 %v1201
    %v1541 = vunpack.c.h.b16 %v1201
    %v1542 = vunpack.c.l.b16 %v1202
    %v1543 = vunpack.c.h.b16 %v1202
    %v1544 = vunpack.c.l.b16 %v1203
    %v1545 = vunpack.c.h.b16 %v1203
    %v1546 = vunpack.c.l.b16 %v1204
    %v1547 = vunpack.c.h.b16 %v1204
    %v1548 = vunpack.c.l.b16 %v1205
    %v1549 = vunpack.c.h.b16 %v1205
    %v1550 = vunpack.c.l.b16 %v1206
    %v1551 = vunpack.c.h.b16 %v1206
    %v1552 = vunpack.c.l.b16 %v1207
    %v1553 = vunpack.c.h.b16 %v1207
    %v1554 = vunpack.c.l.b16 %v1208
    %v1555 = vunpack.c.h.b16 %v1208
    %v1556 = vunpack.c.l.b16 %v1209
    %v1557 = vunpack.c.h.b16 %v1209
    %v1558 = vunpack.c.l.b16 %v1210
    %v1559 = vunpack.c.h.b16 %v1210
    %v1560 = vunpack.c.l.b16 %v1211
    %v1561 = vunpack.c.h.b16 %v1211
    %v1562 = vunpack.c.l.b16 %v1212
    %v1563 = vunpack.c.h.b16 %v1212
    %v1564 = vunpack.c.l.b16 %v1213
    %v1565 = vunpack.c.h.b16 %v1213
    %v1566 = vunpack.c.l.b16 %v1214
    %v1567 = vunpack.c.h.b16 %v1214
    %v1568 = vunpack.c.l.b16 %v1215
    %v1569 = vunpack.c.h.b16 %v1215
    %v1570 = vunpack.c.l.b16 %v1216
    %v1571 = vunpack.c.h.b16 %v1216
    %v1572 = vunpack.c.l.b16 %v1217
    %v1573 = vunpack.c.h.b16 %v1217
    %v1574 = vunpack.c.l.b16 %v1218
    %v1575 = vunpack.c.h.b16 %v1218
    %v1576 = vunpack.c.l.b16 %v1219
    %v1577 = vunpack.c.h.b16 %v1219
    %v1578 = vunpack.c.l.b16 %v1220
    %v1579 = vunpack.c.h.b16 %v1220
    %v1580 = vunpack.c.l.b16 %v1221
    %v1581 = vunpack.c.h.b16 %v1221
    %v1582 = vunpack.c.l.b16 %v1222
    %v1583 = vunpack.c.h.b16 %v1222
    %v1584 = vunpack.c.l.b16 %v1223
    %v1585 = vunpack.c.h.b16 %v1223
    %v1586 = vunpack.c.l.b16 %v1224
    %v1587 = vunpack.c.h.b16 %v1224
    %v1588 = vunpack.c.l.b16 %v1225
    %v1589 = vunpack.c.h.b16 %v1225
    %v1590 = vunpack.c.l.b16 %v1226
    %v1591 = vunpack.c.h.b16 %v1226
    %v1592 = vunpack.c.l.b16 %v1227
    %v1593 = vunpack.c.h.b16 %v1227
    %v1594 = vunpack.c.l.b16 %v1228
    %v1595 = vunpack.c.h.b16 %v1228
    %v1596 = vunpack.c.l.b16 %v1229
    %v1597 = vunpack.c.h.b16 %v1229
    %v1598 = vunpack.c.l.b16 %v1230
    %v1599 = vunpack.c.h.b16 %v1230
    %v1600 = vunpack.c.l.b16 %v1231
    %v1601 = vunpack.c.h.b16 %v1231
    %v1602 = vunpack.c.l.b16 %v1232
    %v1603 = vunpack.c.h.b16 %v1232
    %v1604 = vunpack.c.l.b16 %v1233
    %v1605 = vunpack.c.h.b16 %v1233
    %v1606 = vunpack.c.l.b16 %v1234
    %v1607 = vunpack.c.h.b16 %v1234
    %v1608 = vunpack.c.l.b16 %v1235
    %v1609 = vunpack.c.h.b16 %v1235
    %v1610 = vunpack.c.l.b16 %v1236
    %v1611 = vunpack.c.h.b16 %v1236
    %v1612 = vunpack.c.l.b16 %v1237
    %v1613 = vunpack.c.h.b16 %v1237
    %v1614 = vunpack.c.l.b16 %v1238
    %v1615 = vunpack.c.h.b16 %v1238
    %v1616 = vunpack.c.l.b16 %v1239
    %v1617 = vunpack.c.h.b16 %v1239
    %v1618 = vunpack.c.l.b16 %v1240
    %v1619 = vunpack.c.h.b16 %v1240
    %v1620 = vunpack.c.l.b16 %v1241
    %v1621 = vunpack.c.h.b16 %v1241
    %v1622 = vunpack.c.l.b16 %v1242
    %v1623 = vunpack.c.h.b16 %v1242
    %v1624 = vunpack.c.l.b16 %v1243
    %v1625 = vunpack.c.h.b16 %v1243
    %v1626 = vunpack.c.l.b16 %v1244
    %v1627 = vunpack.c.h.b16 %v1244
    %v1628 = vunpack.c.l.b16 %v1245
    %v1629 = vunpack.c.h.b16 %v1245
    %v1630 = vunpack.c.l.b16 %v1246
    %v1631 = vunpack.c.h.b16 %v1246
    %v1632 = vunpack.c.l.b16 %v1247
    %v1633 = vunpack.c.h.b16 %v1247
    %v1634 = vunpack.c.l.b16 %v1248
    %v1635 = vunpack.c.h.b16 %v1248
    %v1636 = vunpack.c.l.b16 %v1249
    %v1637 = vunpack.c.h.b16 %v1249
    %v1638 = vunpack.c.l.b16 %v1250
    %v1639 = vunpack.c.h.b16 %v1250
    %v1640 = vunpack.c.l.b16 %v1251
    %v1641 = vunpack.c.h.b16 %v1251
    %v1642 = vunpack.c.l.b16 %v1252
    %v1643 = vunpack.c.h.b16 %v1252
    %v1644 = vunpack.c.l.b16 %v1253
    %v1645 = vunpack.c.h.b16 %v1253
    %v1646 = vunpack.c.l.b16 %v1254
    %v1647 = vunpack.c.h.b16 %v1254
    %v1648 = vunpack.c.l.b16 %v1255
    %v1649 = vunpack.c.h.b16 %v1255
    %v1650 = vunpack.c.l.b16 %v1256
    %v1651 = vunpack.c.h.b16 %v1256
    %v1652 = vunpack.c.l.b16 %v1257
    %v1653 = vunpack.c.h.b16 %v1257
    %v1654 = vunpack.c.l.b16 %v1258
    %v1655 = vunpack.c.h.b16 %v1258
    %v1656 = vunpack.c.l.b16 %v1259
    %v1657 = vunpack.c.h.b16 %v1259
    %v1658 = vpack.c.b16 %v1404, %v1402
    %v1659 = vpack.c.b16 %v1405, %v1403
    %v1660 = vpack.c.b16 %v1408, %v1406
    %v1661 = vpack.c.b16 %v1409, %v1407
    %v1662 = vpack.c.b16 %v1412, %v1410
    %v1663 = vpack.c.b16 %v1413, %v1411
    %v1664 = vpack.c.b16 %v1416, %v1414
    %v1665 = vpack.c.b16 %v1417, %v1415
    %v1666 = vpack.c.b16 %v1420, %v1418
    %v1667 = vpack.c.b16 %v1421, %v1419
    %v1668 = vpack.c.b16 %v1424, %v1422
    %v1669 = vpack.c.b16 %v1425, %v1423
    %v1670 = vpack.c.b16 %v1428, %v1426
    %v1671 = vpack.c.b16 %v1429, %v1427
    %v1672 = vpack.c.b16 %v1432, %v1430
    %v1673 = vpack.c.b16 %v1433, %v1431
    %v1674 = vpack.c.b16 %v1436, %v1434
    %v1675 = vpack.c.b16 %v1437, %v1435
    %v1676 = vpack.c.b16 %v1440, %v1438
    %v1677 = vpack.c.b16 %v1441, %v1439
    %v1678 = vpack.c.b16 %v1444, %v1442
    %v1679 = vpack.c.b16 %v1445, %v1443
    %v1680 = vpack.c.b16 %v1448, %v1446
    %v1681 = vpack.c.b16 %v1449, %v1447
    %v1682 = vpack.c.b16 %v1452, %v1450
    %v1683 = vpack.c.b16 %v1453, %v1451
    %v1684 = vpack.c.b16 %v1456, %v1454
    %v1685 = vpack.c.b16 %v1457, %v1455
    %v1686 = vpack.c.b16 %v1460, %v1458
    %v1687 = vpack.c.b16 %v1461, %v1459
    %v1688 = vpack.c.b16 %v1464, %v1462
    %v1689 = vpack.c.b16 %v1465, %v1463
    %v1690 = vpack.c.b16 %v1468, %v1466
    %v1691 = vpack.c.b16 %v1469, %v1467
    %v1692 = vpack.c.b16 %v1472, %v1470
    %v1693 = vpack.c.b16 %v1473, %v1471
    %v1694 = vpack.c.b16 %v1476, %v1474
    %v1695 = vpack.c.b16 %v1477, %v1475
    %v1696 = vpack.c.b16 %v1480, %v1478
    %v1697 = vpack.c.b16 %v1481, %v1479
    %v1698 = vpack.c.b16 %v1484, %v1482
    %v1699 = vpack.c.b16 %v1485, %v1483
    %v1700 = vpack.c.b16 %v1488, %v1486
    %v1701 = vpack.c.b16 %v1489, %v1487
    %v1702 = vpack.c.b16 %v1492, %v1490
    %v1703 = vpack.c.b16 %v1493, %v1491
    %v1704 = vpack.c.b16 %v1496, %v1494
    %v1705 = vpack.c.b16 %v1497, %v1495
    %v1706 = vpack.c.b16 %v1500, %v1498
    %v1707 = vpack.c.b16 %v1501, %v1499
    %v1708 = vpack.c.b16 %v1504, %v1502
    %v1709 = vpack.c.b16 %v1505, %v1503
    %v1710 = vpack.c.b16 %v1508, %v1506
    %v1711 = vpack.c.b16 %v1509, %v1507
    %v1712 = vpack.c.b16 %v1512, %v1510
    %v1713 = vpack.c.b16 %v1513, %v1511
    %v1714 = vpack.c.b16 %v1516, %v1514
    %v1715 = vpack.c.b16 %v1517, %v1515
    %v1716 = vpack.c.b16 %v1520, %v1518
    %v1717 = vpack.c.b16 %v1521, %v1519
    %v1718 = vpack.c.b16 %v1524, %v1522
    %v1719 = vpack.c.b16 %v1525, %v1523
    %v1720 = vpack.c.b16 %v1528, %v1526
    %v1721 = vpack.c.b16 %v1529, %v1527
    %v1722 = vpack.c.b16 %v1532, %v1530
    %v1723 = vpack.c.b16 %v1533, %v1531
    %v1724 = vpack.c.b16 %v1536, %v1534
    %v1725 = vpack.c.b16 %v1537, %v1535
    %v1726 = vpack.c.b16 %v1540, %v1538
    %v1727 = vpack.c.b16 %v1541, %v1539
    %v1728 = vpack.c.b16 %v1544, %v1542
    %v1729 = vpack.c.b16 %v1545, %v1543
    %v1730 = vpack.c.b16 %v1548, %v1546
    %v1731 = vpack.c.b16 %v1549, %v1547
    %v1732 = vpack.c.b16 %v1552, %v1550
    %v1733 = vpack.c.b16 %v1553, %v1551
    %v1734 = vpack.c.b16 %v1556, %v1554
    %v1735 = vpack.c.b16 %v1557, %v1555
    %v1736 = vpack.c.b16 %v1560, %v1558
    %v1737 = vpack.c.b16 %v1561, %v1559
    %v1738 = vpack.c.b16 %v1564, %v1562
    %v1739 = vpack.c.b16 %v1565, %v1563
    %v1740 = vpack.c.b16 %v1568, %v1566
    %v1741 = vpack.c.b16 %v1569, %v1567
    %v1742 = vpack.c.b16 %v1572, %v1570
    %v1743 = vpack.c.b16 %v1573, %v1571
    %v1744 = vpack.c.b16 %v1576, %v1574
    %v1745 = vpack.c.b16 %v1577, %v1575
    %v1746 = vpack.c.b16 %v1580, %v1578
    %v1747 = vpack.c.b16 %v1581, %v1579
    %v1748 = vpack.c.b16 %v1584, %v1582
    %v1749 = vpack.c.b16 %v1585, %v1583
    %v1750 = vpack.c.b16 %v1588, %v1586
    %v1751 = vpack.c.b16 %v1589, %v1587
    %v1752 = vpack.c.b16 %v1592, %v1590
    %v1753 = vpack.c.b16 %v1593, %v1591
    %v1754 = vpack.c.b16 %v1596, %v1594
    %v1755 = vpack.c.b16 %v1597, %v1595
    %v1756 = vpack.c.b16 %v1600, %v1598
    %v1757 = vpack.c.b16 %v1601, %v1599
    %v1758 = vpack.c.b16 %v1604, %v1602
    %v1759 = vpack.c.b16 %v1605, %v1603
    %v1760 = vpack.c.b16 %v1608, %v1606
    %v1761 = vpack.c.b16 %v1609, %v1607
    %v1762 = vpack.c.b16 %v1612, %v1610
    %v1763 = vpack.c.b16 %v1613, %v1611
    %v1764 = vpack.c.b16 %v1616, %v1614
    %v1765 = vpack.c.b16 %v1617, %v1615
    %v1766 = vpack.c.b16 %v1620, %v1618
    %v1767 = vpack.c.b16 %v1621, %v1619
    %v1768 = vpack.c.b16 %v1624, %v1622
    %v1769 = vpack.c.b16 %v1625, %v1623
    %v1770 = vpack.c.b16 %v1628, %v1626
    %v1771 = vpack.c.b16 %v1629, %v1627
    %v1772 = vpack.c.b16 %v1632, %v1630
    %v1773 = vpack.c.b16 %v1633, %v1631
    %v1774 = vpack.c.b16 %v1636, %v1634
    %v1775 = vpack.c.b16 %v1637, %v1635
    %v1776 = vpack.c.b16 %v1640, %v1638
    %v1777 = vpack.c.b16 %v1641, %v1639
    %v1778 = vpack.c.b16 %v1644, %v1642
    %v1779 = vpack.c.b16 %v1645, %v1643
    %v1780 = vpack.c.b16 %v1648, %v1646
    %v1781 = vpack.c.b16 %v1649, %v1647
    %v1782 = vpack.c.b16 %v1652, %v1650
    %v1783 = vpack.c.b16 %v1653, %v1651
    %v1784 = vpack.c.b16 %v1656, %v1654
    %v1785 = vpack.c.b16 %v1657, %v1655
    %1914 = vmatpush.bf16.msra.mxu0 %v1672
    %1915 = vmatpush.bf16.msra.mxu0 %v1670
    %1916 = vmatpush.bf16.msra.mxu0 %v1668
    %1917 = vmatpush.bf16.msra.mxu0 %v1666
    %1918 = vmatpush.bf16.msra.mxu0 %v1664
    %1919 = vmatpush.bf16.msra.mxu0 %v1662
    %1920 = vmatpush.bf16.msra.mxu0 %v1660
    %1921 = vmatpush.bf16.msra.mxu0 %v1658
    %1922 = vmatmul.bf16.gmra.mxu0 %v1260
    %v1923 = vpop.f32.mrf.mxu0
    %v1924 = vadd.f32 %v1270, %v1923
    %v1925 = vpop.f32.mrf.mxu0
    %1926 = vdwg.mxu0
    %1927 = vmatpush.bf16.msra.mxu0 %v1688
    %1928 = vmatpush.bf16.msra.mxu0 %v1686
    %1929 = vmatpush.bf16.msra.mxu0 %v1684
    %1930 = vmatpush.bf16.msra.mxu0 %v1682
    %1931 = vmatpush.bf16.msra.mxu0 %v1680
    %1932 = vmatpush.bf16.msra.mxu0 %v1678
    %1933 = vmatpush.bf16.msra.mxu0 %v1676
    %1934 = vmatpush.bf16.msra.mxu0 %v1674
    %1935 = vmatmul.bf16.gmra.mxu0 %v1261
    %v1936 = vpop.f32.mrf.mxu0
    %v1937 = vadd.f32 %v1924, %v1936
    %v1938 = vpop.f32.mrf.mxu0
    %1939 = vdwg.mxu0
    %1940 = vmatpush.bf16.msra.mxu0 %v1704
    %1941 = vmatpush.bf16.msra.mxu0 %v1702
    %1942 = vmatpush.bf16.msra.mxu0 %v1700
    %1943 = vmatpush.bf16.msra.mxu0 %v1698
    %1944 = vmatpush.bf16.msra.mxu0 %v1696
    %1945 = vmatpush.bf16.msra.mxu0 %v1694
    %1946 = vmatpush.bf16.msra.mxu0 %v1692
    %1947 = vmatpush.bf16.msra.mxu0 %v1690
    %1948 = vmatmul.bf16.gmra.mxu0 %v1262
    %v1949 = vpop.f32.mrf.mxu0
    %v1950 = vadd.f32 %v1937, %v1949
    %v1951 = vpop.f32.mrf.mxu0
    %1952 = vdwg.mxu0
    %1953 = vmatpush.bf16.msra.mxu0 %v1720
    %1954 = vmatpush.bf16.msra.mxu0 %v1718
    %1955 = vmatpush.bf16.msra.mxu0 %v1716
    %1956 = vmatpush.bf16.msra.mxu0 %v1714
    %1957 = vmatpush.bf16.msra.mxu0 %v1712
    %1958 = vmatpush.bf16.msra.mxu0 %v1710
    %1959 = vmatpush.bf16.msra.mxu0 %v1708
    %1960 = vmatpush.bf16.msra.mxu0 %v1706
    %1961 = vmatmul.bf16.gmra.mxu0 %v1263
    %v1962 = vpop.f32.mrf.mxu0
    %v1963 = vadd.f32 %v1950, %v1962
    %v1964 = vpop.f32.mrf.mxu0
    %1965 = vdwg.mxu0
    %1966 = vmatpush.bf16.msra.mxu0 %v1736
    %1967 = vmatpush.bf16.msra.mxu0 %v1734
    %1968 = vmatpush.bf16.msra.mxu0 %v1732
    %1969 = vmatpush.bf16.msra.mxu0 %v1730
    %1970 = vmatpush.bf16.msra.mxu0 %v1728
    %1971 = vmatpush.bf16.msra.mxu0 %v1726
    %1972 = vmatpush.bf16.msra.mxu0 %v1724
    %1973 = vmatpush.bf16.msra.mxu0 %v1722
    %1974 = vmatmul.bf16.gmra.mxu0 %v1264
    %v1975 = vpop.f32.mrf.mxu0
    %v1976 = vadd.f32 %v1963, %v1975
    %v1977 = vpop.f32.mrf.mxu0
    %1978 = vdwg.mxu0
    %1979 = vmatpush.bf16.msra.mxu0 %v1752
    %1980 = vmatpush.bf16.msra.mxu0 %v1750
    %1981 = vmatpush.bf16.msra.mxu0 %v1748
    %1982 = vmatpush.bf16.msra.mxu0 %v1746
    %1983 = vmatpush.bf16.msra.mxu0 %v1744
    %1984 = vmatpush.bf16.msra.mxu0 %v1742
    %1985 = vmatpush.bf16.msra.mxu0 %v1740
    %1986 = vmatpush.bf16.msra.mxu0 %v1738
    %1987 = vmatmul.bf16.gmra.mxu0 %v1265
    %v1988 = vpop.f32.mrf.mxu0
    %v1989 = vadd.f32 %v1976, %v1988
    %v1990 = vpop.f32.mrf.mxu0
    %1991 = vdwg.mxu0
    %1992 = vmatpush.bf16.msra.mxu0 %v1768
    %1993 = vmatpush.bf16.msra.mxu0 %v1766
    %1994 = vmatpush.bf16.msra.mxu0 %v1764
    %1995 = vmatpush.bf16.msra.mxu0 %v1762
    %1996 = vmatpush.bf16.msra.mxu0 %v1760
    %1997 = vmatpush.bf16.msra.mxu0 %v1758
    %1998 = vmatpush.bf16.msra.mxu0 %v1756
    %1999 = vmatpush.bf16.msra.mxu0 %v1754
    %2000 = vmatmul.bf16.gmra.mxu0 %v1266
    %v2001 = vpop.f32.mrf.mxu0
    %v2002 = vadd.f32 %v1989, %v2001
    %v2003 = vpop.f32.mrf.mxu0
    %2004 = vdwg.mxu0
    %2005 = vmatpush.bf16.msra.mxu0 %v1784
    %2006 = vmatpush.bf16.msra.mxu0 %v1782
    %2007 = vmatpush.bf16.msra.mxu0 %v1780
    %2008 = vmatpush.bf16.msra.mxu0 %v1778
    %2009 = vmatpush.bf16.msra.mxu0 %v1776
    %2010 = vmatpush.bf16.msra.mxu0 %v1774
    %2011 = vmatpush.bf16.msra.mxu0 %v1772
    %2012 = vmatpush.bf16.msra.mxu0 %v1770
    %2013 = vmatmul.bf16.gmra.mxu0 %v1267
    %v2014 = vpop.f32.mrf.mxu0
    %v2015 = vadd.f32 %v2002, %v2014
    %v2016 = vpop.f32.mrf.mxu0
    %2017 = vdwg.mxu0
    %2018 = vmatpush.bf16.msra.mxu0 %v1673
    %2019 = vmatpush.bf16.msra.mxu0 %v1671
    %2020 = vmatpush.bf16.msra.mxu0 %v1669
    %2021 = vmatpush.bf16.msra.mxu0 %v1667
    %2022 = vmatpush.bf16.msra.mxu0 %v1665
    %2023 = vmatpush.bf16.msra.mxu0 %v1663
    %2024 = vmatpush.bf16.msra.mxu0 %v1661
    %2025 = vmatpush.bf16.msra.mxu0 %v1659
    %2026 = vmatmul.bf16.gmra.mxu0 %v1260
    %v2027 = vpop.f32.mrf.mxu0
    %v2028 = vadd.f32 %v1271, %v2027
    %v2029 = vpop.f32.mrf.mxu0
    %2030 = vdwg.mxu0
    %2031 = vmatpush.bf16.msra.mxu0 %v1689
    %2032 = vmatpush.bf16.msra.mxu0 %v1687
    %2033 = vmatpush.bf16.msra.mxu0 %v1685
    %2034 = vmatpush.bf16.msra.mxu0 %v1683
    %2035 = vmatpush.bf16.msra.mxu0 %v1681
    %2036 = vmatpush.bf16.msra.mxu0 %v1679
    %2037 = vmatpush.bf16.msra.mxu0 %v1677
    %2038 = vmatpush.bf16.msra.mxu0 %v1675
    %2039 = vmatmul.bf16.gmra.mxu0 %v1261
    %v2040 = vpop.f32.mrf.mxu0
    %v2041 = vadd.f32 %v2028, %v2040
    %v2042 = vpop.f32.mrf.mxu0
    %2043 = vdwg.mxu0
    %2044 = vmatpush.bf16.msra.mxu0 %v1705
    %2045 = vmatpush.bf16.msra.mxu0 %v1703
    %2046 = vmatpush.bf16.msra.mxu0 %v1701
    %2047 = vmatpush.bf16.msra.mxu0 %v1699
    %2048 = vmatpush.bf16.msra.mxu0 %v1697
    %2049 = vmatpush.bf16.msra.mxu0 %v1695
    %2050 = vmatpush.bf16.msra.mxu0 %v1693
    %2051 = vmatpush.bf16.msra.mxu0 %v1691
    %2052 = vmatmul.bf16.gmra.mxu0 %v1262
    %v2053 = vpop.f32.mrf.mxu0
    %v2054 = vadd.f32 %v2041, %v2053
    %v2055 = vpop.f32.mrf.mxu0
    %2056 = vdwg.mxu0
    %2057 = vmatpush.bf16.msra.mxu0 %v1721
    %2058 = vmatpush.bf16.msra.mxu0 %v1719
    %2059 = vmatpush.bf16.msra.mxu0 %v1717
    %2060 = vmatpush.bf16.msra.mxu0 %v1715
    %2061 = vmatpush.bf16.msra.mxu0 %v1713
    %2062 = vmatpush.bf16.msra.mxu0 %v1711
    %2063 = vmatpush.bf16.msra.mxu0 %v1709
    %2064 = vmatpush.bf16.msra.mxu0 %v1707
    %2065 = vmatmul.bf16.gmra.mxu0 %v1263
    %v2066 = vpop.f32.mrf.mxu0
    %v2067 = vadd.f32 %v2054, %v2066
    %v2068 = vpop.f32.mrf.mxu0
    %2069 = vdwg.mxu0
    %2070 = vmatpush.bf16.msra.mxu0 %v1737
    %2071 = vmatpush.bf16.msra.mxu0 %v1735
    %2072 = vmatpush.bf16.msra.mxu0 %v1733
    %2073 = vmatpush.bf16.msra.mxu0 %v1731
    %2074 = vmatpush.bf16.msra.mxu0 %v1729
    %2075 = vmatpush.bf16.msra.mxu0 %v1727
    %2076 = vmatpush.bf16.msra.mxu0 %v1725
    %2077 = vmatpush.bf16.msra.mxu0 %v1723
    %2078 = vmatmul.bf16.gmra.mxu0 %v1264
    %v2079 = vpop.f32.mrf.mxu0
    %v2080 = vadd.f32 %v2067, %v2079
    %v2081 = vpop.f32.mrf.mxu0
    %2082 = vdwg.mxu0
    %2083 = vmatpush.bf16.msra.mxu0 %v1753
    %2084 = vmatpush.bf16.msra.mxu0 %v1751
    %2085 = vmatpush.bf16.msra.mxu0 %v1749
    %2086 = vmatpush.bf16.msra.mxu0 %v1747
    %2087 = vmatpush.bf16.msra.mxu0 %v1745
    %2088 = vmatpush.bf16.msra.mxu0 %v1743
    %2089 = vmatpush.bf16.msra.mxu0 %v1741
    %2090 = vmatpush.bf16.msra.mxu0 %v1739
    %2091 = vmatmul.bf16.gmra.mxu0 %v1265
    %v2092 = vpop.f32.mrf.mxu0
    %v2093 = vadd.f32 %v2080, %v2092
    %v2094 = vpop.f32.mrf.mxu0
    %2095 = vdwg.mxu0
    %2096 = vmatpush.bf16.msra.mxu0 %v1769
    %2097 = vmatpush.bf16.msra.mxu0 %v1767
    %2098 = vmatpush.bf16.msra.mxu0 %v1765
    %2099 = vmatpush.bf16.msra.mxu0 %v1763
    %2100 = vmatpush.bf16.msra.mxu0 %v1761
    %2101 = vmatpush.bf16.msra.mxu0 %v1759
    %2102 = vmatpush.bf16.msra.mxu0 %v1757
    %2103 = vmatpush.bf16.msra.mxu0 %v1755
    %2104 = vmatmul.bf16.gmra.mxu0 %v1266
    %v2105 = vpop.f32.mrf.mxu0
    %v2106 = vadd.f32 %v2093, %v2105
    %v2107 = vpop.f32.mrf.mxu0
    %2108 = vdwg.mxu0
    %2109 = vmatpush.bf16.msra.mxu0 %v1785
    %2110 = vmatpush.bf16.msra.mxu0 %v1783
    %2111 = vmatpush.bf16.msra.mxu0 %v1781
    %2112 = vmatpush.bf16.msra.mxu0 %v1779
    %2113 = vmatpush.bf16.msra.mxu0 %v1777
    %2114 = vmatpush.bf16.msra.mxu0 %v1775
    %2115 = vmatpush.bf16.msra.mxu0 %v1773
    %2116 = vmatpush.bf16.msra.mxu0 %v1771
    %2117 = vmatmul.bf16.gmra.mxu0 %v1267
    %v2118 = vpop.f32.mrf.mxu0
    %v2119 = vadd.f32 %v2106, %v2118
    %v2120 = vpop.f32.mrf.mxu0
    %2121 = vdwg.mxu0
    %v2122 = vmax.f32 %v2015, 0.0
    %v2123 = vmax.f32 %v2119, 0.0
    %v2124 = vld [vmem:[%s6] sm:$0xff]
    %v2125 = vld [vmem:[%s6 + $0x8] sm:$0xff]
    %v2126 = vld [vmem:[%s6 + $0x10] sm:$0xff]
    %v2127 = vld [vmem:[%s6 + $0x18] sm:$0xff]
    %v2128 = vld [vmem:[%s6 + $0x20] sm:$0xff]
    %v2129 = vld [vmem:[%s6 + $0x28] sm:$0xff]
    %v2130 = vld [vmem:[%s6 + $0x30] sm:$0xff]
    %v2131 = vld [vmem:[%s6 + $0x38] sm:$0xff]
    %v2132 = vld [vmem:[%s6 + $0x40] sm:$0xff]
    %v2133 = vld [vmem:[%s6 + $0x48] sm:$0xff]
    %v2134 = vld [vmem:[%s6 + $0x50] sm:$0xff]
    %v2135 = vld [vmem:[%s6 + $0x58] sm:$0xff]
    %v2136 = vld [vmem:[%s6 + $0x60] sm:$0xff]
    %v2137 = vld [vmem:[%s6 + $0x68] sm:$0xff]
    %v2138 = vld [vmem:[%s6 + $0x70] sm:$0xff]
    %v2139 = vld [vmem:[%s6 + $0x78] sm:$0xff]
    %v2140 = vld [vmem:[%s6 + $0x80] sm:$0xff]
    %v2141 = vld [vmem:[%s6 + $0x88] sm:$0xff]
    %v2142 = vld [vmem:[%s6 + $0x90] sm:$0xff]
    %v2143 = vld [vmem:[%s6 + $0x98] sm:$0xff]
    %v2144 = vld [vmem:[%s6 + $0xa0] sm:$0xff]
    %v2145 = vld [vmem:[%s6 + $0xa8] sm:$0xff]
    %v2146 = vld [vmem:[%s6 + $0xb0] sm:$0xff]
    %v2147 = vld [vmem:[%s6 + $0xb8] sm:$0xff]
    %v2148 = vld [vmem:[%s6 + $0xc0] sm:$0xff]
    %v2149 = vld [vmem:[%s6 + $0xc8] sm:$0xff]
    %v2150 = vld [vmem:[%s6 + $0xd0] sm:$0xff]
    %v2151 = vld [vmem:[%s6 + $0xd8] sm:$0xff]
    %v2152 = vld [vmem:[%s6 + $0xe0] sm:$0xff]
    %v2153 = vld [vmem:[%s6 + $0xe8] sm:$0xff]
    %v2154 = vld [vmem:[%s6 + $0xf0] sm:$0xff]
    %v2155 = vld [vmem:[%s6 + $0xf8] sm:$0xff]
    %v2156 = vld [vmem:[%s7] sm:$0x1]
    %v2158 = vperm.slane %v2156, 0
    %2160 = vmatpush.msra.mxu0 %v2139
    %2161 = vmatpush.msra.mxu0 %v2138
    %2162 = vmatpush.msra.mxu0 %v2137
    %2163 = vmatpush.msra.mxu0 %v2136
    %2164 = vmatpush.msra.mxu0 %v2135
    %2165 = vmatpush.msra.mxu0 %v2134
    %2166 = vmatpush.msra.mxu0 %v2133
    %2167 = vmatpush.msra.mxu0 %v2132
    %2168 = vmatpush.msra.mxu0 %v2131
    %2169 = vmatpush.msra.mxu0 %v2130
    %2170 = vmatpush.msra.mxu0 %v2129
    %2171 = vmatpush.msra.mxu0 %v2128
    %2172 = vmatpush.msra.mxu0 %v2127
    %2173 = vmatpush.msra.mxu0 %v2126
    %2174 = vmatpush.msra.mxu0 %v2125
    %2175 = vmatpush.msra.mxu0 %v2124
    %2176 = vmatmul.f32.gmra.mxu0 %v2122
    %v2177 = vpop.f32.mrf.mxu0
    %v2178 = vadd.f32 %v2158, %v2177
    %2179 = vdwg.mxu0
    %2180 = vmatpush.msra.mxu0 %v2155
    %2181 = vmatpush.msra.mxu0 %v2154
    %2182 = vmatpush.msra.mxu0 %v2153
    %2183 = vmatpush.msra.mxu0 %v2152
    %2184 = vmatpush.msra.mxu0 %v2151
    %2185 = vmatpush.msra.mxu0 %v2150
    %2186 = vmatpush.msra.mxu0 %v2149
    %2187 = vmatpush.msra.mxu0 %v2148
    %2188 = vmatpush.msra.mxu0 %v2147
    %2189 = vmatpush.msra.mxu0 %v2146
    %2190 = vmatpush.msra.mxu0 %v2145
    %2191 = vmatpush.msra.mxu0 %v2144
    %2192 = vmatpush.msra.mxu0 %v2143
    %2193 = vmatpush.msra.mxu0 %v2142
    %2194 = vmatpush.msra.mxu0 %v2141
    %2195 = vmatpush.msra.mxu0 %v2140
    %2196 = vmatmul.f32.gmra.mxu0 %v2123
    %v2197 = vpop.f32.mrf.mxu0
    %v2198 = vadd.f32 %v2178, %v2197
    %2199 = vdwg.mxu0
    %v2200 = vmax.f32 %v2198, 0.0
    %v2201 = vld [vmem:[%s8] sm:$0xff]
    %v2202 = vld [vmem:[%s8 + $0x8] sm:$0xff]
    %v2203 = vld [vmem:[%s8 + $0x10] sm:$0xff]
    %v2204 = vld [vmem:[%s8 + $0x18] sm:$0xff]
    %v2205 = vld [vmem:[%s8 + $0x20] sm:$0xff]
    %v2206 = vld [vmem:[%s8 + $0x28] sm:$0xff]
    %v2207 = vld [vmem:[%s8 + $0x30] sm:$0xff]
    %v2208 = vld [vmem:[%s8 + $0x38] sm:$0xff]
    %v2209 = vld [vmem:[%s9] sm:$0x1]
    %v2211 = vperm.slane %v2209, 0
    %vm2213 = vcmask 523264
    %v2215 = vsel %vm2213, %v2200, 0
    %2217 = vmatpush.msra.mxu0 0.0
    %2218 = vmatpush.msra.mxu0 0.0
    %2219 = vmatpush.msra.mxu0 0.0
    %2220 = vmatpush.msra.mxu0 0.0
    %2221 = vmatpush.msra.mxu0 0.0
    %2222 = vmatpush.msra.mxu0 0.0
    %2223 = vmatpush.msra.mxu0 0.0
    %2224 = vmatpush.msra.mxu0 0.0
    %2225 = vmatpush.msra.mxu0 %v2208
    %2226 = vmatpush.msra.mxu0 %v2207
    %2227 = vmatpush.msra.mxu0 %v2206
    %2228 = vmatpush.msra.mxu0 %v2205
    %2229 = vmatpush.msra.mxu0 %v2204
    %2230 = vmatpush.msra.mxu0 %v2203
    %2231 = vmatpush.msra.mxu0 %v2202
    %2232 = vmatpush.msra.mxu0 %v2201
    %2233 = vmatmul.f32.gmra.mxu0 %v2215
    %v2234 = vpop.f32.mrf.mxu0
    %v2235 = vadd.f32 %v2211, %v2234
    %2236 = vdwg.mxu0
    %v2237 = vld [vmem:[%s1] sm:$0xff]
    %v2238 = vmul.f32 %v2235, 0.5
    %v2239 = vmul.f32 %v2238, 1.442695
    %v2240 = vpow.pop %v2239
    %2242 = vrot.lane.b32.xlu0 %v2240, 96
    %v2243 = vpop.permute.xlu0 %2242
    %v2245 = vmul.f32 %v2237, %v2243
    %v2246 = vadd.f32 %v2235, %v2245
    %v2247 = vld [vmem:[%s10] sm:$0xff]
    %v2248 = vld [vmem:[%s10 + $0x8] sm:$0xff]
    %v2249 = vld [vmem:[%s10 + $0x10] sm:$0xff]
    %v2250 = vld [vmem:[%s10 + $0x18] sm:$0xff]
    %v2251 = vld [vmem:[%s11] sm:$0x1]
    %v2253 = vperm.slane %v2251, 0
    %vm2255 = vcmask 261120
    %v2257 = vsel %vm2255, %v2246, 0
    %2259 = vmatpush.msra.mxu0 0.0
    %2260 = vmatpush.msra.mxu0 0.0
    %2261 = vmatpush.msra.mxu0 0.0
    %2262 = vmatpush.msra.mxu0 0.0
    %2263 = vmatpush.msra.mxu0 0.0
    %2264 = vmatpush.msra.mxu0 0.0
    %2265 = vmatpush.msra.mxu0 0.0
    %2266 = vmatpush.msra.mxu0 0.0
    %2267 = vmatpush.msra.mxu0 0.0
    %2268 = vmatpush.msra.mxu0 0.0
    %2269 = vmatpush.msra.mxu0 0.0
    %2270 = vmatpush.msra.mxu0 0.0
    %2271 = vmatpush.msra.mxu0 %v2250
    %2272 = vmatpush.msra.mxu0 %v2249
    %2273 = vmatpush.msra.mxu0 %v2248
    %2274 = vmatpush.msra.mxu0 %v2247
    %2275 = vmatmul.f32.gmra.mxu0 %v2257
    %v2276 = vpop.f32.mrf.mxu0
    %v2277 = vadd.f32 %v2253, %v2276
    %2278 = vdwg.mxu0
    %v2279 = vmax.f32 %v2277, 0.0
    %v2280 = vld [vmem:[%s12] sm:$0xff]
    %v2281 = vld [vmem:[%s12 + $0x8] sm:$0xff]
    %v2282 = vld [vmem:[%s12 + $0x10] sm:$0xff]
    %v2283 = vld [vmem:[%s12 + $0x18] sm:$0xff]
    %v2284 = vld [vmem:[%s12 + $0x20] sm:$0xff]
    %v2285 = vld [vmem:[%s12 + $0x28] sm:$0xff]
    %v2286 = vld [vmem:[%s12 + $0x30] sm:$0xff]
    %v2287 = vld [vmem:[%s12 + $0x38] sm:$0xff]
    %v2288 = vld [vmem:[%s12 + $0x40] sm:$0xff]
    %v2289 = vld [vmem:[%s12 + $0x48] sm:$0xff]
    %v2290 = vld [vmem:[%s12 + $0x50] sm:$0xff]
    %v2291 = vld [vmem:[%s12 + $0x58] sm:$0xff]
    %v2292 = vld [vmem:[%s12 + $0x60] sm:$0xff]
    %v2293 = vld [vmem:[%s12 + $0x68] sm:$0xff]
    %v2294 = vld [vmem:[%s12 + $0x70] sm:$0xff]
    %v2295 = vld [vmem:[%s12 + $0x78] sm:$0xff]
    %v2296 = vld [vmem:[%s13] sm:$0x3]
    %v2298 = vperm.slane %v2296, 0
    %v2299 = vperm.slane %v2296, 1
    %v2303 = vsel %vm2213, %v2279, 0
    %2305 = vmatpush.msra.mxu0 0.0
    %2306 = vmatpush.msra.mxu0 0.0
    %2307 = vmatpush.msra.mxu0 0.0
    %2308 = vmatpush.msra.mxu0 0.0
    %2309 = vmatpush.msra.mxu0 0.0
    %2310 = vmatpush.msra.mxu0 0.0
    %2311 = vmatpush.msra.mxu0 0.0
    %2312 = vmatpush.msra.mxu0 0.0
    %2313 = vmatpush.msra.mxu0 %v2294
    %2314 = vmatpush.msra.mxu0 %v2292
    %2315 = vmatpush.msra.mxu0 %v2290
    %2316 = vmatpush.msra.mxu0 %v2288
    %2317 = vmatpush.msra.mxu0 %v2286
    %2318 = vmatpush.msra.mxu0 %v2284
    %2319 = vmatpush.msra.mxu0 %v2282
    %2320 = vmatpush.msra.mxu0 %v2280
    %2321 = vmatmul.f32.gmra.mxu0 %v2303
    %v2322 = vpop.f32.mrf.mxu0
    %v2323 = vadd.f32 %v2298, %v2322
    %2324 = vdwg.mxu0
    %2325 = vmatpush.msra.mxu0 0.0
    %2326 = vmatpush.msra.mxu0 0.0
    %2327 = vmatpush.msra.mxu0 0.0
    %2328 = vmatpush.msra.mxu0 0.0
    %2329 = vmatpush.msra.mxu0 0.0
    %2330 = vmatpush.msra.mxu0 0.0
    %2331 = vmatpush.msra.mxu0 0.0
    %2332 = vmatpush.msra.mxu0 0.0
    %2333 = vmatpush.msra.mxu0 %v2295
    %2334 = vmatpush.msra.mxu0 %v2293
    %2335 = vmatpush.msra.mxu0 %v2291
    %2336 = vmatpush.msra.mxu0 %v2289
    %2337 = vmatpush.msra.mxu0 %v2287
    %2338 = vmatpush.msra.mxu0 %v2285
    %2339 = vmatpush.msra.mxu0 %v2283
    %2340 = vmatpush.msra.mxu0 %v2281
    %2341 = vmatmul.f32.gmra.mxu0 %v2303
    %v2342 = vpop.f32.mrf.mxu0
    %v2343 = vadd.f32 %v2299, %v2342
    %2344 = vdwg.mxu0
    %v2345 = vmax.f32 %v2323, 0.0
    %v2346 = vmax.f32 %v2343, 0.0
    %v2347 = vld [vmem:[#allocation7] sm:$0xff]
    %v2348 = vld [vmem:[#allocation7 + $0x8] sm:$0xff]
    %v2349 = vld [vmem:[#allocation7 + $0x10] sm:$0xff]
    %v2350 = vld [vmem:[#allocation7 + $0x18] sm:$0xff]
    %v2351 = vld [vmem:[#allocation7 + $0x20] sm:$0xff]
    %v2352 = vld [vmem:[#allocation7 + $0x28] sm:$0xff]
    %v2353 = vld [vmem:[#allocation7 + $0x30] sm:$0xff]
    %v2354 = vld [vmem:[#allocation7 + $0x38] sm:$0xff]
    %v2355 = vld [vmem:[#allocation7 + $0x40] sm:$0xff]
    %v2356 = vld [vmem:[#allocation7 + $0x48] sm:$0xff]
    %v2357 = vld [vmem:[#allocation7 + $0x50] sm:$0xff]
    %v2358 = vld [vmem:[#allocation7 + $0x58] sm:$0xff]
    %v2359 = vld [vmem:[#allocation7 + $0x60] sm:$0xff]
    %v2360 = vld [vmem:[#allocation7 + $0x68] sm:$0xff]
    %v2361 = vld [vmem:[#allocation7 + $0x70] sm:$0xff]
    %v2362 = vld [vmem:[#allocation7 + $0x78] sm:$0xff]
    %v2363 = vld [vmem:[#allocation7 + $0x80] sm:$0xff]
    %v2364 = vld [vmem:[#allocation7 + $0x88] sm:$0xff]
    %v2365 = vld [vmem:[#allocation7 + $0x90] sm:$0xff]
    %v2366 = vld [vmem:[#allocation7 + $0x98] sm:$0xff]
    %v2367 = vld [vmem:[#allocation7 + $0xa0] sm:$0xff]
    %v2368 = vld [vmem:[#allocation7 + $0xa8] sm:$0xff]
    %v2369 = vld [vmem:[#allocation7 + $0xb0] sm:$0xff]
    %v2370 = vld [vmem:[#allocation7 + $0xb8] sm:$0xff]
    %v2371 = vld [vmem:[#allocation7 + $0xc0] sm:$0xff]
    %v2372 = vld [vmem:[#allocation7 + $0xc8] sm:$0xff]
    %v2373 = vld [vmem:[#allocation7 + $0xd0] sm:$0xff]
    %v2374 = vld [vmem:[#allocation7 + $0xd8] sm:$0xff]
    %v2375 = vld [vmem:[#allocation7 + $0xe0] sm:$0xff]
    %v2376 = vld [vmem:[#allocation7 + $0xe8] sm:$0xff]
    %v2377 = vld [vmem:[#allocation7 + $0xf0] sm:$0xff]
    %v2378 = vld [vmem:[#allocation7 + $0xf8] sm:$0xff]
    %v2379 = vld [vmem:[#allocation7 + $0x100] sm:$0xff]
    %v2380 = vld [vmem:[#allocation7 + $0x108] sm:$0xff]
    %v2381 = vld [vmem:[#allocation7 + $0x110] sm:$0xff]
    %v2382 = vld [vmem:[#allocation7 + $0x118] sm:$0xff]
    %v2383 = vld [vmem:[#allocation7 + $0x120] sm:$0xff]
    %v2384 = vld [vmem:[#allocation7 + $0x128] sm:$0xff]
    %v2385 = vld [vmem:[#allocation7 + $0x130] sm:$0xff]
    %v2386 = vld [vmem:[#allocation7 + $0x138] sm:$0xff]
    %v2387 = vld [vmem:[#allocation7 + $0x140] sm:$0xff]
    %v2388 = vld [vmem:[#allocation7 + $0x148] sm:$0xff]
    %v2389 = vld [vmem:[#allocation7 + $0x150] sm:$0xff]
    %v2390 = vld [vmem:[#allocation7 + $0x158] sm:$0xff]
    %v2391 = vld [vmem:[#allocation7 + $0x160] sm:$0xff]
    %v2392 = vld [vmem:[#allocation7 + $0x168] sm:$0xff]
    %v2393 = vld [vmem:[#allocation7 + $0x170] sm:$0xff]
    %v2394 = vld [vmem:[#allocation7 + $0x178] sm:$0xff]
    %v2395 = vld [vmem:[#allocation7 + $0x180] sm:$0xff]
    %v2396 = vld [vmem:[#allocation7 + $0x188] sm:$0xff]
    %v2397 = vld [vmem:[#allocation7 + $0x190] sm:$0xff]
    %v2398 = vld [vmem:[#allocation7 + $0x198] sm:$0xff]
    %v2399 = vld [vmem:[#allocation7 + $0x1a0] sm:$0xff]
    %v2400 = vld [vmem:[#allocation7 + $0x1a8] sm:$0xff]
    %v2401 = vld [vmem:[#allocation7 + $0x1b0] sm:$0xff]
    %v2402 = vld [vmem:[#allocation7 + $0x1b8] sm:$0xff]
    %v2403 = vld [vmem:[#allocation7 + $0x1c0] sm:$0xff]
    %v2404 = vld [vmem:[#allocation7 + $0x1c8] sm:$0xff]
    %v2405 = vld [vmem:[#allocation7 + $0x1d0] sm:$0xff]
    %v2406 = vld [vmem:[#allocation7 + $0x1d8] sm:$0xff]
    %v2407 = vld [vmem:[#allocation7 + $0x1e0] sm:$0xff]
    %v2408 = vld [vmem:[#allocation7 + $0x1e8] sm:$0xff]
    %v2409 = vld [vmem:[#allocation7 + $0x1f0] sm:$0xff]
    %v2410 = vld [vmem:[#allocation7 + $0x1f8] sm:$0xff]
    %v2411 = vld [vmem:[#allocation7 + $0x200] sm:$0xff]
    %v2412 = vld [vmem:[#allocation7 + $0x208] sm:$0xff]
    %v2413 = vld [vmem:[#allocation7 + $0x210] sm:$0xff]
    %v2414 = vld [vmem:[#allocation7 + $0x218] sm:$0xff]
    %v2415 = vld [vmem:[#allocation7 + $0x220] sm:$0xff]
    %v2416 = vld [vmem:[#allocation7 + $0x228] sm:$0xff]
    %v2417 = vld [vmem:[#allocation7 + $0x230] sm:$0xff]
    %v2418 = vld [vmem:[#allocation7 + $0x238] sm:$0xff]
    %v2419 = vld [vmem:[#allocation7 + $0x240] sm:$0xff]
    %v2420 = vld [vmem:[#allocation7 + $0x248] sm:$0xff]
    %v2421 = vld [vmem:[#allocation7 + $0x250] sm:$0xff]
    %v2422 = vld [vmem:[#allocation7 + $0x258] sm:$0xff]
    %v2423 = vld [vmem:[#allocation7 + $0x260] sm:$0xff]
    %v2424 = vld [vmem:[#allocation7 + $0x268] sm:$0xff]
    %v2425 = vld [vmem:[#allocation7 + $0x270] sm:$0xff]
    %v2426 = vld [vmem:[#allocation7 + $0x278] sm:$0xff]
    %v2427 = vld [vmem:[#allocation7 + $0x280] sm:$0xff]
    %v2428 = vld [vmem:[#allocation7 + $0x288] sm:$0xff]
    %v2429 = vld [vmem:[#allocation7 + $0x290] sm:$0xff]
    %v2430 = vld [vmem:[#allocation7 + $0x298] sm:$0xff]
    %v2431 = vld [vmem:[#allocation7 + $0x2a0] sm:$0xff]
    %v2432 = vld [vmem:[#allocation7 + $0x2a8] sm:$0xff]
    %v2433 = vld [vmem:[#allocation7 + $0x2b0] sm:$0xff]
    %v2434 = vld [vmem:[#allocation7 + $0x2b8] sm:$0xff]
    %v2435 = vld [vmem:[#allocation7 + $0x2c0] sm:$0xff]
    %v2436 = vld [vmem:[#allocation7 + $0x2c8] sm:$0xff]
    %v2437 = vld [vmem:[#allocation7 + $0x2d0] sm:$0xff]
    %v2438 = vld [vmem:[#allocation7 + $0x2d8] sm:$0xff]
    %v2439 = vld [vmem:[#allocation7 + $0x2e0] sm:$0xff]
    %v2440 = vld [vmem:[#allocation7 + $0x2e8] sm:$0xff]
    %v2441 = vld [vmem:[#allocation7 + $0x2f0] sm:$0xff]
    %v2442 = vld [vmem:[#allocation7 + $0x2f8] sm:$0xff]
    %v2443 = vld [vmem:[#allocation7 + $0x300] sm:$0xff]
    %v2444 = vld [vmem:[#allocation7 + $0x308] sm:$0xff]
    %v2445 = vld [vmem:[#allocation7 + $0x310] sm:$0xff]
    %v2446 = vld [vmem:[#allocation7 + $0x318] sm:$0xff]
    %v2447 = vld [vmem:[#allocation7 + $0x320] sm:$0xff]
    %v2448 = vld [vmem:[#allocation7 + $0x328] sm:$0xff]
    %v2449 = vld [vmem:[#allocation7 + $0x330] sm:$0xff]
    %v2450 = vld [vmem:[#allocation7 + $0x338] sm:$0xff]
    %v2451 = vld [vmem:[#allocation7 + $0x340] sm:$0xff]
    %v2452 = vld [vmem:[#allocation7 + $0x348] sm:$0xff]
    %v2453 = vld [vmem:[#allocation7 + $0x350] sm:$0xff]
    %v2454 = vld [vmem:[#allocation7 + $0x358] sm:$0xff]
    %v2455 = vld [vmem:[#allocation7 + $0x360] sm:$0xff]
    %v2456 = vld [vmem:[#allocation7 + $0x368] sm:$0xff]
    %v2457 = vld [vmem:[#allocation7 + $0x370] sm:$0xff]
    %v2458 = vld [vmem:[#allocation7 + $0x378] sm:$0xff]
    %v2459 = vld [vmem:[#allocation7 + $0x380] sm:$0xff]
    %v2460 = vld [vmem:[#allocation7 + $0x388] sm:$0xff]
    %v2461 = vld [vmem:[#allocation7 + $0x390] sm:$0xff]
    %v2462 = vld [vmem:[#allocation7 + $0x398] sm:$0xff]
    %v2463 = vld [vmem:[#allocation7 + $0x3a0] sm:$0xff]
    %v2464 = vld [vmem:[#allocation7 + $0x3a8] sm:$0xff]
    %v2465 = vld [vmem:[#allocation7 + $0x3b0] sm:$0xff]
    %v2466 = vld [vmem:[#allocation7 + $0x3b8] sm:$0xff]
    %v2467 = vld [vmem:[#allocation7 + $0x3c0] sm:$0xff]
    %v2468 = vld [vmem:[#allocation7 + $0x3c8] sm:$0xff]
    %v2469 = vld [vmem:[#allocation7 + $0x3d0] sm:$0xff]
    %v2470 = vld [vmem:[#allocation7 + $0x3d8] sm:$0xff]
    %v2471 = vld [vmem:[#allocation7 + $0x3e0] sm:$0xff]
    %v2472 = vld [vmem:[#allocation7 + $0x3e8] sm:$0xff]
    %v2473 = vld [vmem:[#allocation7 + $0x3f0] sm:$0xff]
    %v2474 = vld [vmem:[#allocation7 + $0x3f8] sm:$0xff]
    %v2475 = vpack.c.bf16 %v2345, %v2345
    %v2476 = vpack.c.bf16 %v2346, %v2346
    %v2477 = vld [vmem:[%s15] sm:$0xff]
    %v2479 = vperm.slane %v2477, 0
    %v2480 = vperm.slane %v2477, 1
    %v2481 = vperm.slane %v2477, 2
    %v2482 = vperm.slane %v2477, 3
    %v2483 = vperm.slane %v2477, 4
    %v2484 = vperm.slane %v2477, 5
    %v2485 = vperm.slane %v2477, 6
    %v2486 = vperm.slane %v2477, 7
    %v2623 = vunpack.c.l.b16 %v2347
    %v2624 = vunpack.c.h.b16 %v2347
    %v2625 = vunpack.c.l.b16 %v2348
    %v2626 = vunpack.c.h.b16 %v2348
    %v2627 = vunpack.c.l.b16 %v2349
    %v2628 = vunpack.c.h.b16 %v2349
    %v2629 = vunpack.c.l.b16 %v2350
    %v2630 = vunpack.c.h.b16 %v2350
    %v2631 = vunpack.c.l.b16 %v2351
    %v2632 = vunpack.c.h.b16 %v2351
    %v2633 = vunpack.c.l.b16 %v2352
    %v2634 = vunpack.c.h.b16 %v2352
    %v2635 = vunpack.c.l.b16 %v2353
    %v2636 = vunpack.c.h.b16 %v2353
    %v2637 = vunpack.c.l.b16 %v2354
    %v2638 = vunpack.c.h.b16 %v2354
    %v2639 = vunpack.c.l.b16 %v2355
    %v2640 = vunpack.c.h.b16 %v2355
    %v2641 = vunpack.c.l.b16 %v2356
    %v2642 = vunpack.c.h.b16 %v2356
    %v2643 = vunpack.c.l.b16 %v2357
    %v2644 = vunpack.c.h.b16 %v2357
    %v2645 = vunpack.c.l.b16 %v2358
    %v2646 = vunpack.c.h.b16 %v2358
    %v2647 = vunpack.c.l.b16 %v2359
    %v2648 = vunpack.c.h.b16 %v2359
    %v2649 = vunpack.c.l.b16 %v2360
    %v2650 = vunpack.c.h.b16 %v2360
    %v2651 = vunpack.c.l.b16 %v2361
    %v2652 = vunpack.c.h.b16 %v2361
    %v2653 = vunpack.c.l.b16 %v2362
    %v2654 = vunpack.c.h.b16 %v2362
    %v2655 = vunpack.c.l.b16 %v2363
    %v2656 = vunpack.c.h.b16 %v2363
    %v2657 = vunpack.c.l.b16 %v2364
    %v2658 = vunpack.c.h.b16 %v2364
    %v2659 = vunpack.c.l.b16 %v2365
    %v2660 = vunpack.c.h.b16 %v2365
    %v2661 = vunpack.c.l.b16 %v2366
    %v2662 = vunpack.c.h.b16 %v2366
    %v2663 = vunpack.c.l.b16 %v2367
    %v2664 = vunpack.c.h.b16 %v2367
    %v2665 = vunpack.c.l.b16 %v2368
    %v2666 = vunpack.c.h.b16 %v2368
    %v2667 = vunpack.c.l.b16 %v2369
    %v2668 = vunpack.c.h.b16 %v2369
    %v2669 = vunpack.c.l.b16 %v2370
    %v2670 = vunpack.c.h.b16 %v2370
    %v2671 = vunpack.c.l.b16 %v2371
    %v2672 = vunpack.c.h.b16 %v2371
    %v2673 = vunpack.c.l.b16 %v2372
    %v2674 = vunpack.c.h.b16 %v2372
    %v2675 = vunpack.c.l.b16 %v2373
    %v2676 = vunpack.c.h.b16 %v2373
    %v2677 = vunpack.c.l.b16 %v2374
    %v2678 = vunpack.c.h.b16 %v2374
    %v2679 = vunpack.c.l.b16 %v2375
    %v2680 = vunpack.c.h.b16 %v2375
    %v2681 = vunpack.c.l.b16 %v2376
    %v2682 = vunpack.c.h.b16 %v2376
    %v2683 = vunpack.c.l.b16 %v2377
    %v2684 = vunpack.c.h.b16 %v2377
    %v2685 = vunpack.c.l.b16 %v2378
    %v2686 = vunpack.c.h.b16 %v2378
    %v2687 = vunpack.c.l.b16 %v2379
    %v2688 = vunpack.c.h.b16 %v2379
    %v2689 = vunpack.c.l.b16 %v2380
    %v2690 = vunpack.c.h.b16 %v2380
    %v2691 = vunpack.c.l.b16 %v2381
    %v2692 = vunpack.c.h.b16 %v2381
    %v2693 = vunpack.c.l.b16 %v2382
    %v2694 = vunpack.c.h.b16 %v2382
    %v2695 = vunpack.c.l.b16 %v2383
    %v2696 = vunpack.c.h.b16 %v2383
    %v2697 = vunpack.c.l.b16 %v2384
    %v2698 = vunpack.c.h.b16 %v2384
    %v2699 = vunpack.c.l.b16 %v2385
    %v2700 = vunpack.c.h.b16 %v2385
    %v2701 = vunpack.c.l.b16 %v2386
    %v2702 = vunpack.c.h.b16 %v2386
    %v2703 = vunpack.c.l.b16 %v2387
    %v2704 = vunpack.c.h.b16 %v2387
    %v2705 = vunpack.c.l.b16 %v2388
    %v2706 = vunpack.c.h.b16 %v2388
    %v2707 = vunpack.c.l.b16 %v2389
    %v2708 = vunpack.c.h.b16 %v2389
    %v2709 = vunpack.c.l.b16 %v2390
    %v2710 = vunpack.c.h.b16 %v2390
    %v2711 = vunpack.c.l.b16 %v2391
    %v2712 = vunpack.c.h.b16 %v2391
    %v2713 = vunpack.c.l.b16 %v2392
    %v2714 = vunpack.c.h.b16 %v2392
    %v2715 = vunpack.c.l.b16 %v2393
    %v2716 = vunpack.c.h.b16 %v2393
    %v2717 = vunpack.c.l.b16 %v2394
    %v2718 = vunpack.c.h.b16 %v2394
    %v2719 = vunpack.c.l.b16 %v2395
    %v2720 = vunpack.c.h.b16 %v2395
    %v2721 = vunpack.c.l.b16 %v2396
    %v2722 = vunpack.c.h.b16 %v2396
    %v2723 = vunpack.c.l.b16 %v2397
    %v2724 = vunpack.c.h.b16 %v2397
    %v2725 = vunpack.c.l.b16 %v2398
    %v2726 = vunpack.c.h.b16 %v2398
    %v2727 = vunpack.c.l.b16 %v2399
    %v2728 = vunpack.c.h.b16 %v2399
    %v2729 = vunpack.c.l.b16 %v2400
    %v2730 = vunpack.c.h.b16 %v2400
    %v2731 = vunpack.c.l.b16 %v2401
    %v2732 = vunpack.c.h.b16 %v2401
    %v2733 = vunpack.c.l.b16 %v2402
    %v2734 = vunpack.c.h.b16 %v2402
    %v2735 = vunpack.c.l.b16 %v2403
    %v2736 = vunpack.c.h.b16 %v2403
    %v2737 = vunpack.c.l.b16 %v2404
    %v2738 = vunpack.c.h.b16 %v2404
    %v2739 = vunpack.c.l.b16 %v2405
    %v2740 = vunpack.c.h.b16 %v2405
    %v2741 = vunpack.c.l.b16 %v2406
    %v2742 = vunpack.c.h.b16 %v2406
    %v2743 = vunpack.c.l.b16 %v2407
    %v2744 = vunpack.c.h.b16 %v2407
    %v2745 = vunpack.c.l.b16 %v2408
    %v2746 = vunpack.c.h.b16 %v2408
    %v2747 = vunpack.c.l.b16 %v2409
    %v2748 = vunpack.c.h.b16 %v2409
    %v2749 = vunpack.c.l.b16 %v2410
    %v2750 = vunpack.c.h.b16 %v2410
    %v2751 = vunpack.c.l.b16 %v2411
    %v2752 = vunpack.c.h.b16 %v2411
    %v2753 = vunpack.c.l.b16 %v2412
    %v2754 = vunpack.c.h.b16 %v2412
    %v2755 = vunpack.c.l.b16 %v2413
    %v2756 = vunpack.c.h.b16 %v2413
    %v2757 = vunpack.c.l.b16 %v2414
    %v2758 = vunpack.c.h.b16 %v2414
    %v2759 = vunpack.c.l.b16 %v2415
    %v2760 = vunpack.c.h.b16 %v2415
    %v2761 = vunpack.c.l.b16 %v2416
    %v2762 = vunpack.c.h.b16 %v2416
    %v2763 = vunpack.c.l.b16 %v2417
    %v2764 = vunpack.c.h.b16 %v2417
    %v2765 = vunpack.c.l.b16 %v2418
    %v2766 = vunpack.c.h.b16 %v2418
    %v2767 = vunpack.c.l.b16 %v2419
    %v2768 = vunpack.c.h.b16 %v2419
    %v2769 = vunpack.c.l.b16 %v2420
    %v2770 = vunpack.c.h.b16 %v2420
    %v2771 = vunpack.c.l.b16 %v2421
    %v2772 = vunpack.c.h.b16 %v2421
    %v2773 = vunpack.c.l.b16 %v2422
    %v2774 = vunpack.c.h.b16 %v2422
    %v2775 = vunpack.c.l.b16 %v2423
    %v2776 = vunpack.c.h.b16 %v2423
    %v2777 = vunpack.c.l.b16 %v2424
    %v2778 = vunpack.c.h.b16 %v2424
    %v2779 = vunpack.c.l.b16 %v2425
    %v2780 = vunpack.c.h.b16 %v2425
    %v2781 = vunpack.c.l.b16 %v2426
    %v2782 = vunpack.c.h.b16 %v2426
    %v2783 = vunpack.c.l.b16 %v2427
    %v2784 = vunpack.c.h.b16 %v2427
    %v2785 = vunpack.c.l.b16 %v2428
    %v2786 = vunpack.c.h.b16 %v2428
    %v2787 = vunpack.c.l.b16 %v2429
    %v2788 = vunpack.c.h.b16 %v2429
    %v2789 = vunpack.c.l.b16 %v2430
    %v2790 = vunpack.c.h.b16 %v2430
    %v2791 = vunpack.c.l.b16 %v2431
    %v2792 = vunpack.c.h.b16 %v2431
    %v2793 = vunpack.c.l.b16 %v2432
    %v2794 = vunpack.c.h.b16 %v2432
    %v2795 = vunpack.c.l.b16 %v2433
    %v2796 = vunpack.c.h.b16 %v2433
    %v2797 = vunpack.c.l.b16 %v2434
    %v2798 = vunpack.c.h.b16 %v2434
    %v2799 = vunpack.c.l.b16 %v2435
    %v2800 = vunpack.c.h.b16 %v2435
    %v2801 = vunpack.c.l.b16 %v2436
    %v2802 = vunpack.c.h.b16 %v2436
    %v2803 = vunpack.c.l.b16 %v2437
    %v2804 = vunpack.c.h.b16 %v2437
    %v2805 = vunpack.c.l.b16 %v2438
    %v2806 = vunpack.c.h.b16 %v2438
    %v2807 = vunpack.c.l.b16 %v2439
    %v2808 = vunpack.c.h.b16 %v2439
    %v2809 = vunpack.c.l.b16 %v2440
    %v2810 = vunpack.c.h.b16 %v2440
    %v2811 = vunpack.c.l.b16 %v2441
    %v2812 = vunpack.c.h.b16 %v2441
    %v2813 = vunpack.c.l.b16 %v2442
    %v2814 = vunpack.c.h.b16 %v2442
    %v2815 = vunpack.c.l.b16 %v2443
    %v2816 = vunpack.c.h.b16 %v2443
    %v2817 = vunpack.c.l.b16 %v2444
    %v2818 = vunpack.c.h.b16 %v2444
    %v2819 = vunpack.c.l.b16 %v2445
    %v2820 = vunpack.c.h.b16 %v2445
    %v2821 = vunpack.c.l.b16 %v2446
    %v2822 = vunpack.c.h.b16 %v2446
    %v2823 = vunpack.c.l.b16 %v2447
    %v2824 = vunpack.c.h.b16 %v2447
    %v2825 = vunpack.c.l.b16 %v2448
    %v2826 = vunpack.c.h.b16 %v2448
    %v2827 = vunpack.c.l.b16 %v2449
    %v2828 = vunpack.c.h.b16 %v2449
    %v2829 = vunpack.c.l.b16 %v2450
    %v2830 = vunpack.c.h.b16 %v2450
    %v2831 = vunpack.c.l.b16 %v2451
    %v2832 = vunpack.c.h.b16 %v2451
    %v2833 = vunpack.c.l.b16 %v2452
    %v2834 = vunpack.c.h.b16 %v2452
    %v2835 = vunpack.c.l.b16 %v2453
    %v2836 = vunpack.c.h.b16 %v2453
    %v2837 = vunpack.c.l.b16 %v2454
    %v2838 = vunpack.c.h.b16 %v2454
    %v2839 = vunpack.c.l.b16 %v2455
    %v2840 = vunpack.c.h.b16 %v2455
    %v2841 = vunpack.c.l.b16 %v2456
    %v2842 = vunpack.c.h.b16 %v2456
    %v2843 = vunpack.c.l.b16 %v2457
    %v2844 = vunpack.c.h.b16 %v2457
    %v2845 = vunpack.c.l.b16 %v2458
    %v2846 = vunpack.c.h.b16 %v2458
    %v2847 = vunpack.c.l.b16 %v2459
    %v2848 = vunpack.c.h.b16 %v2459
    %v2849 = vunpack.c.l.b16 %v2460
    %v2850 = vunpack.c.h.b16 %v2460
    %v2851 = vunpack.c.l.b16 %v2461
    %v2852 = vunpack.c.h.b16 %v2461
    %v2853 = vunpack.c.l.b16 %v2462
    %v2854 = vunpack.c.h.b16 %v2462
    %v2855 = vunpack.c.l.b16 %v2463
    %v2856 = vunpack.c.h.b16 %v2463
    %v2857 = vunpack.c.l.b16 %v2464
    %v2858 = vunpack.c.h.b16 %v2464
    %v2859 = vunpack.c.l.b16 %v2465
    %v2860 = vunpack.c.h.b16 %v2465
    %v2861 = vunpack.c.l.b16 %v2466
    %v2862 = vunpack.c.h.b16 %v2466
    %v2863 = vunpack.c.l.b16 %v2467
    %v2864 = vunpack.c.h.b16 %v2467
    %v2865 = vunpack.c.l.b16 %v2468
    %v2866 = vunpack.c.h.b16 %v2468
    %v2867 = vunpack.c.l.b16 %v2469
    %v2868 = vunpack.c.h.b16 %v2469
    %v2869 = vunpack.c.l.b16 %v2470
    %v2870 = vunpack.c.h.b16 %v2470
    %v2871 = vunpack.c.l.b16 %v2471
    %v2872 = vunpack.c.h.b16 %v2471
    %v2873 = vunpack.c.l.b16 %v2472
    %v2874 = vunpack.c.h.b16 %v2472
    %v2875 = vunpack.c.l.b16 %v2473
    %v2876 = vunpack.c.h.b16 %v2473
    %v2877 = vunpack.c.l.b16 %v2474
    %v2878 = vunpack.c.h.b16 %v2474
    %v2879 = vpack.c.b16 %v2631, %v2623
    %v2880 = vpack.c.b16 %v2632, %v2624
    %v2881 = vpack.c.b16 %v2633, %v2625
    %v2882 = vpack.c.b16 %v2634, %v2626
    %v2883 = vpack.c.b16 %v2635, %v2627
    %v2884 = vpack.c.b16 %v2636, %v2628
    %v2885 = vpack.c.b16 %v2637, %v2629
    %v2886 = vpack.c.b16 %v2638, %v2630
    %v2887 = vpack.c.b16 %v2647, %v2639
    %v2888 = vpack.c.b16 %v2648, %v2640
    %v2889 = vpack.c.b16 %v2649, %v2641
    %v2890 = vpack.c.b16 %v2650, %v2642
    %v2891 = vpack.c.b16 %v2651, %v2643
    %v2892 = vpack.c.b16 %v2652, %v2644
    %v2893 = vpack.c.b16 %v2653, %v2645
    %v2894 = vpack.c.b16 %v2654, %v2646
    %v2895 = vpack.c.b16 %v2663, %v2655
    %v2896 = vpack.c.b16 %v2664, %v2656
    %v2897 = vpack.c.b16 %v2665, %v2657
    %v2898 = vpack.c.b16 %v2666, %v2658
    %v2899 = vpack.c.b16 %v2667, %v2659
    %v2900 = vpack.c.b16 %v2668, %v2660
    %v2901 = vpack.c.b16 %v2669, %v2661
    %v2902 = vpack.c.b16 %v2670, %v2662
    %v2903 = vpack.c.b16 %v2679, %v2671
    %v2904 = vpack.c.b16 %v2680, %v2672
    %v2905 = vpack.c.b16 %v2681, %v2673
    %v2906 = vpack.c.b16 %v2682, %v2674
    %v2907 = vpack.c.b16 %v2683, %v2675
    %v2908 = vpack.c.b16 %v2684, %v2676
    %v2909 = vpack.c.b16 %v2685, %v2677
    %v2910 = vpack.c.b16 %v2686, %v2678
    %v2911 = vpack.c.b16 %v2695, %v2687
    %v2912 = vpack.c.b16 %v2696, %v2688
    %v2913 = vpack.c.b16 %v2697, %v2689
    %v2914 = vpack.c.b16 %v2698, %v2690
    %v2915 = vpack.c.b16 %v2699, %v2691
    %v2916 = vpack.c.b16 %v2700, %v2692
    %v2917 = vpack.c.b16 %v2701, %v2693
    %v2918 = vpack.c.b16 %v2702, %v2694
    %v2919 = vpack.c.b16 %v2711, %v2703
    %v2920 = vpack.c.b16 %v2712, %v2704
    %v2921 = vpack.c.b16 %v2713, %v2705
    %v2922 = vpack.c.b16 %v2714, %v2706
    %v2923 = vpack.c.b16 %v2715, %v2707
    %v2924 = vpack.c.b16 %v2716, %v2708
    %v2925 = vpack.c.b16 %v2717, %v2709
    %v2926 = vpack.c.b16 %v2718, %v2710
    %v2927 = vpack.c.b16 %v2727, %v2719
    %v2928 = vpack.c.b16 %v2728, %v2720
    %v2929 = vpack.c.b16 %v2729, %v2721
    %v2930 = vpack.c.b16 %v2730, %v2722
    %v2931 = vpack.c.b16 %v2731, %v2723
    %v2932 = vpack.c.b16 %v2732, %v2724
    %v2933 = vpack.c.b16 %v2733, %v2725
    %v2934 = vpack.c.b16 %v2734, %v2726
    %v2935 = vpack.c.b16 %v2743, %v2735
    %v2936 = vpack.c.b16 %v2744, %v2736
    %v2937 = vpack.c.b16 %v2745, %v2737
    %v2938 = vpack.c.b16 %v2746, %v2738
    %v2939 = vpack.c.b16 %v2747, %v2739
    %v2940 = vpack.c.b16 %v2748, %v2740
    %v2941 = vpack.c.b16 %v2749, %v2741
    %v2942 = vpack.c.b16 %v2750, %v2742
    %v2943 = vpack.c.b16 %v2759, %v2751
    %v2944 = vpack.c.b16 %v2760, %v2752
    %v2945 = vpack.c.b16 %v2761, %v2753
    %v2946 = vpack.c.b16 %v2762, %v2754
    %v2947 = vpack.c.b16 %v2763, %v2755
    %v2948 = vpack.c.b16 %v2764, %v2756
    %v2949 = vpack.c.b16 %v2765, %v2757
    %v2950 = vpack.c.b16 %v2766, %v2758
    %v2951 = vpack.c.b16 %v2775, %v2767
    %v2952 = vpack.c.b16 %v2776, %v2768
    %v2953 = vpack.c.b16 %v2777, %v2769
    %v2954 = vpack.c.b16 %v2778, %v2770
    %v2955 = vpack.c.b16 %v2779, %v2771
    %v2956 = vpack.c.b16 %v2780, %v2772
    %v2957 = vpack.c.b16 %v2781, %v2773
    %v2958 = vpack.c.b16 %v2782, %v2774
    %v2959 = vpack.c.b16 %v2791, %v2783
    %v2960 = vpack.c.b16 %v2792, %v2784
    %v2961 = vpack.c.b16 %v2793, %v2785
    %v2962 = vpack.c.b16 %v2794, %v2786
    %v2963 = vpack.c.b16 %v2795, %v2787
    %v2964 = vpack.c.b16 %v2796, %v2788
    %v2965 = vpack.c.b16 %v2797, %v2789
    %v2966 = vpack.c.b16 %v2798, %v2790
    %v2967 = vpack.c.b16 %v2807, %v2799
    %v2968 = vpack.c.b16 %v2808, %v2800
    %v2969 = vpack.c.b16 %v2809, %v2801
    %v2970 = vpack.c.b16 %v2810, %v2802
    %v2971 = vpack.c.b16 %v2811, %v2803
    %v2972 = vpack.c.b16 %v2812, %v2804
    %v2973 = vpack.c.b16 %v2813, %v2805
    %v2974 = vpack.c.b16 %v2814, %v2806
    %v2975 = vpack.c.b16 %v2823, %v2815
    %v2976 = vpack.c.b16 %v2824, %v2816
    %v2977 = vpack.c.b16 %v2825, %v2817
    %v2978 = vpack.c.b16 %v2826, %v2818
    %v2979 = vpack.c.b16 %v2827, %v2819
    %v2980 = vpack.c.b16 %v2828, %v2820
    %v2981 = vpack.c.b16 %v2829, %v2821
    %v2982 = vpack.c.b16 %v2830, %v2822
    %v2983 = vpack.c.b16 %v2839, %v2831
    %v2984 = vpack.c.b16 %v2840, %v2832
    %v2985 = vpack.c.b16 %v2841, %v2833
    %v2986 = vpack.c.b16 %v2842, %v2834
    %v2987 = vpack.c.b16 %v2843, %v2835
    %v2988 = vpack.c.b16 %v2844, %v2836
    %v2989 = vpack.c.b16 %v2845, %v2837
    %v2990 = vpack.c.b16 %v2846, %v2838
    %v2991 = vpack.c.b16 %v2855, %v2847
    %v2992 = vpack.c.b16 %v2856, %v2848
    %v2993 = vpack.c.b16 %v2857, %v2849
    %v2994 = vpack.c.b16 %v2858, %v2850
    %v2995 = vpack.c.b16 %v2859, %v2851
    %v2996 = vpack.c.b16 %v2860, %v2852
    %v2997 = vpack.c.b16 %v2861, %v2853
    %v2998 = vpack.c.b16 %v2862, %v2854
    %v2999 = vpack.c.b16 %v2871, %v2863
    %v3000 = vpack.c.b16 %v2872, %v2864
    %v3001 = vpack.c.b16 %v2873, %v2865
    %v3002 = vpack.c.b16 %v2874, %v2866
    %v3003 = vpack.c.b16 %v2875, %v2867
    %v3004 = vpack.c.b16 %v2876, %v2868
    %v3005 = vpack.c.b16 %v2877, %v2869
    %v3006 = vpack.c.b16 %v2878, %v2870
    %3135 = vmatpush.bf16.msra.mxu0 %v2935
    %3136 = vmatpush.bf16.msra.mxu0 %v2927
    %3137 = vmatpush.bf16.msra.mxu0 %v2919
    %3138 = vmatpush.bf16.msra.mxu0 %v2911
    %3139 = vmatpush.bf16.msra.mxu0 %v2903
    %3140 = vmatpush.bf16.msra.mxu0 %v2895
    %3141 = vmatpush.bf16.msra.mxu0 %v2887
    %3142 = vmatpush.bf16.msra.mxu0 %v2879
    %3143 = vmatmul.bf16.gmra.mxu0 %v2475
    %v3144 = vpop.f32.mrf.mxu0
    %v3145 = vadd.f32 %v2479, %v3144
    %v3146 = vpop.f32.mrf.mxu0
    %3147 = vdwg.mxu0
    %3148 = vmatpush.bf16.msra.mxu0 %v2999
    %3149 = vmatpush.bf16.msra.mxu0 %v2991
    %3150 = vmatpush.bf16.msra.mxu0 %v2983
    %3151 = vmatpush.bf16.msra.mxu0 %v2975
    %3152 = vmatpush.bf16.msra.mxu0 %v2967
    %3153 = vmatpush.bf16.msra.mxu0 %v2959
    %3154 = vmatpush.bf16.msra.mxu0 %v2951
    %3155 = vmatpush.bf16.msra.mxu0 %v2943
    %3156 = vmatmul.bf16.gmra.mxu0 %v2476
    %v3157 = vpop.f32.mrf.mxu0
    %v3158 = vadd.f32 %v3145, %v3157
    %v3159 = vpop.f32.mrf.mxu0
    %3160 = vdwg.mxu0
    %3161 = vmatpush.bf16.msra.mxu0 %v2936
    %3162 = vmatpush.bf16.msra.mxu0 %v2928
    %3163 = vmatpush.bf16.msra.mxu0 %v2920
    %3164 = vmatpush.bf16.msra.mxu0 %v2912
    %3165 = vmatpush.bf16.msra.mxu0 %v2904
    %3166 = vmatpush.bf16.msra.mxu0 %v2896
    %3167 = vmatpush.bf16.msra.mxu0 %v2888
    %3168 = vmatpush.bf16.msra.mxu0 %v2880
    %3169 = vmatmul.bf16.gmra.mxu0 %v2475
    %v3170 = vpop.f32.mrf.mxu0
    %v3171 = vadd.f32 %v2480, %v3170
    %v3172 = vpop.f32.mrf.mxu0
    %3173 = vdwg.mxu0
    %3174 = vmatpush.bf16.msra.mxu0 %v3000
    %3175 = vmatpush.bf16.msra.mxu0 %v2992
    %3176 = vmatpush.bf16.msra.mxu0 %v2984
    %3177 = vmatpush.bf16.msra.mxu0 %v2976
    %3178 = vmatpush.bf16.msra.mxu0 %v2968
    %3179 = vmatpush.bf16.msra.mxu0 %v2960
    %3180 = vmatpush.bf16.msra.mxu0 %v2952
    %3181 = vmatpush.bf16.msra.mxu0 %v2944
    %3182 = vmatmul.bf16.gmra.mxu0 %v2476
    %v3183 = vpop.f32.mrf.mxu0
    %v3184 = vadd.f32 %v3171, %v3183
    %v3185 = vpop.f32.mrf.mxu0
    %3186 = vdwg.mxu0
    %3187 = vmatpush.bf16.msra.mxu0 %v2937
    %3188 = vmatpush.bf16.msra.mxu0 %v2929
    %3189 = vmatpush.bf16.msra.mxu0 %v2921
    %3190 = vmatpush.bf16.msra.mxu0 %v2913
    %3191 = vmatpush.bf16.msra.mxu0 %v2905
    %3192 = vmatpush.bf16.msra.mxu0 %v2897
    %3193 = vmatpush.bf16.msra.mxu0 %v2889
    %3194 = vmatpush.bf16.msra.mxu0 %v2881
    %3195 = vmatmul.bf16.gmra.mxu0 %v2475
    %v3196 = vpop.f32.mrf.mxu0
    %v3197 = vadd.f32 %v2481, %v3196
    %v3198 = vpop.f32.mrf.mxu0
    %3199 = vdwg.mxu0
    %3200 = vmatpush.bf16.msra.mxu0 %v3001
    %3201 = vmatpush.bf16.msra.mxu0 %v2993
    %3202 = vmatpush.bf16.msra.mxu0 %v2985
    %3203 = vmatpush.bf16.msra.mxu0 %v2977
    %3204 = vmatpush.bf16.msra.mxu0 %v2969
    %3205 = vmatpush.bf16.msra.mxu0 %v2961
    %3206 = vmatpush.bf16.msra.mxu0 %v2953
    %3207 = vmatpush.bf16.msra.mxu0 %v2945
    %3208 = vmatmul.bf16.gmra.mxu0 %v2476
    %v3209 = vpop.f32.mrf.mxu0
    %v3210 = vadd.f32 %v3197, %v3209
    %v3211 = vpop.f32.mrf.mxu0
    %3212 = vdwg.mxu0
    %3213 = vmatpush.bf16.msra.mxu0 %v2938
    %3214 = vmatpush.bf16.msra.mxu0 %v2930
    %3215 = vmatpush.bf16.msra.mxu0 %v2922
    %3216 = vmatpush.bf16.msra.mxu0 %v2914
    %3217 = vmatpush.bf16.msra.mxu0 %v2906
    %3218 = vmatpush.bf16.msra.mxu0 %v2898
    %3219 = vmatpush.bf16.msra.mxu0 %v2890
    %3220 = vmatpush.bf16.msra.mxu0 %v2882
    %3221 = vmatmul.bf16.gmra.mxu0 %v2475
    %v3222 = vpop.f32.mrf.mxu0
    %v3223 = vadd.f32 %v2482, %v3222
    %v3224 = vpop.f32.mrf.mxu0
    %3225 = vdwg.mxu0
    %3226 = vmatpush.bf16.msra.mxu0 %v3002
    %3227 = vmatpush.bf16.msra.mxu0 %v2994
    %3228 = vmatpush.bf16.msra.mxu0 %v2986
    %3229 = vmatpush.bf16.msra.mxu0 %v2978
    %3230 = vmatpush.bf16.msra.mxu0 %v2970
    %3231 = vmatpush.bf16.msra.mxu0 %v2962
    %3232 = vmatpush.bf16.msra.mxu0 %v2954
    %3233 = vmatpush.bf16.msra.mxu0 %v2946
    %3234 = vmatmul.bf16.gmra.mxu0 %v2476
    %v3235 = vpop.f32.mrf.mxu0
    %v3236 = vadd.f32 %v3223, %v3235
    %v3237 = vpop.f32.mrf.mxu0
    %3238 = vdwg.mxu0
    %3239 = vmatpush.bf16.msra.mxu0 %v2939
    %3240 = vmatpush.bf16.msra.mxu0 %v2931
    %3241 = vmatpush.bf16.msra.mxu0 %v2923
    %3242 = vmatpush.bf16.msra.mxu0 %v2915
    %3243 = vmatpush.bf16.msra.mxu0 %v2907
    %3244 = vmatpush.bf16.msra.mxu0 %v2899
    %3245 = vmatpush.bf16.msra.mxu0 %v2891
    %3246 = vmatpush.bf16.msra.mxu0 %v2883
    %3247 = vmatmul.bf16.gmra.mxu0 %v2475
    %v3248 = vpop.f32.mrf.mxu0
    %v3249 = vadd.f32 %v2483, %v3248
    %v3250 = vpop.f32.mrf.mxu0
    %3251 = vdwg.mxu0
    %3252 = vmatpush.bf16.msra.mxu0 %v3003
    %3253 = vmatpush.bf16.msra.mxu0 %v2995
    %3254 = vmatpush.bf16.msra.mxu0 %v2987
    %3255 = vmatpush.bf16.msra.mxu0 %v2979
    %3256 = vmatpush.bf16.msra.mxu0 %v2971
    %3257 = vmatpush.bf16.msra.mxu0 %v2963
    %3258 = vmatpush.bf16.msra.mxu0 %v2955
    %3259 = vmatpush.bf16.msra.mxu0 %v2947
    %3260 = vmatmul.bf16.gmra.mxu0 %v2476
    %v3261 = vpop.f32.mrf.mxu0
    %v3262 = vadd.f32 %v3249, %v3261
    %v3263 = vpop.f32.mrf.mxu0
    %3264 = vdwg.mxu0
    %3265 = vmatpush.bf16.msra.mxu0 %v2940
    %3266 = vmatpush.bf16.msra.mxu0 %v2932
    %3267 = vmatpush.bf16.msra.mxu0 %v2924
    %3268 = vmatpush.bf16.msra.mxu0 %v2916
    %3269 = vmatpush.bf16.msra.mxu0 %v2908
    %3270 = vmatpush.bf16.msra.mxu0 %v2900
    %3271 = vmatpush.bf16.msra.mxu0 %v2892
    %3272 = vmatpush.bf16.msra.mxu0 %v2884
    %3273 = vmatmul.bf16.gmra.mxu0 %v2475
    %v3274 = vpop.f32.mrf.mxu0
    %v3275 = vadd.f32 %v2484, %v3274
    %v3276 = vpop.f32.mrf.mxu0
    %3277 = vdwg.mxu0
    %3278 = vmatpush.bf16.msra.mxu0 %v3004
    %3279 = vmatpush.bf16.msra.mxu0 %v2996
    %3280 = vmatpush.bf16.msra.mxu0 %v2988
    %3281 = vmatpush.bf16.msra.mxu0 %v2980
    %3282 = vmatpush.bf16.msra.mxu0 %v2972
    %3283 = vmatpush.bf16.msra.mxu0 %v2964
    %3284 = vmatpush.bf16.msra.mxu0 %v2956
    %3285 = vmatpush.bf16.msra.mxu0 %v2948
    %3286 = vmatmul.bf16.gmra.mxu0 %v2476
    %v3287 = vpop.f32.mrf.mxu0
    %v3288 = vadd.f32 %v3275, %v3287
    %v3289 = vpop.f32.mrf.mxu0
    %3290 = vdwg.mxu0
    %3291 = vmatpush.bf16.msra.mxu0 %v2941
    %3292 = vmatpush.bf16.msra.mxu0 %v2933
    %3293 = vmatpush.bf16.msra.mxu0 %v2925
    %3294 = vmatpush.bf16.msra.mxu0 %v2917
    %3295 = vmatpush.bf16.msra.mxu0 %v2909
    %3296 = vmatpush.bf16.msra.mxu0 %v2901
    %3297 = vmatpush.bf16.msra.mxu0 %v2893
    %3298 = vmatpush.bf16.msra.mxu0 %v2885
    %3299 = vmatmul.bf16.gmra.mxu0 %v2475
    %v3300 = vpop.f32.mrf.mxu0
    %v3301 = vadd.f32 %v2485, %v3300
    %v3302 = vpop.f32.mrf.mxu0
    %3303 = vdwg.mxu0
    %3304 = vmatpush.bf16.msra.mxu0 %v3005
    %3305 = vmatpush.bf16.msra.mxu0 %v2997
    %3306 = vmatpush.bf16.msra.mxu0 %v2989
    %3307 = vmatpush.bf16.msra.mxu0 %v2981
    %3308 = vmatpush.bf16.msra.mxu0 %v2973
    %3309 = vmatpush.bf16.msra.mxu0 %v2965
    %3310 = vmatpush.bf16.msra.mxu0 %v2957
    %3311 = vmatpush.bf16.msra.mxu0 %v2949
    %3312 = vmatmul.bf16.gmra.mxu0 %v2476
    %v3313 = vpop.f32.mrf.mxu0
    %v3314 = vadd.f32 %v3301, %v3313
    %v3315 = vpop.f32.mrf.mxu0
    %3316 = vdwg.mxu0
    %3317 = vmatpush.bf16.msra.mxu0 %v2942
    %3318 = vmatpush.bf16.msra.mxu0 %v2934
    %3319 = vmatpush.bf16.msra.mxu0 %v2926
    %3320 = vmatpush.bf16.msra.mxu0 %v2918
    %3321 = vmatpush.bf16.msra.mxu0 %v2910
    %3322 = vmatpush.bf16.msra.mxu0 %v2902
    %3323 = vmatpush.bf16.msra.mxu0 %v2894
    %3324 = vmatpush.bf16.msra.mxu0 %v2886
    %3325 = vmatmul.bf16.gmra.mxu0 %v2475
    %v3326 = vpop.f32.mrf.mxu0
    %v3327 = vadd.f32 %v2486, %v3326
    %v3328 = vpop.f32.mrf.mxu0
    %3329 = vdwg.mxu0
    %3330 = vmatpush.bf16.msra.mxu0 %v3006
    %3331 = vmatpush.bf16.msra.mxu0 %v2998
    %3332 = vmatpush.bf16.msra.mxu0 %v2990
    %3333 = vmatpush.bf16.msra.mxu0 %v2982
    %3334 = vmatpush.bf16.msra.mxu0 %v2974
    %3335 = vmatpush.bf16.msra.mxu0 %v2966
    %3336 = vmatpush.bf16.msra.mxu0 %v2958
    %3337 = vmatpush.bf16.msra.mxu0 %v2950
    %3338 = vmatmul.bf16.gmra.mxu0 %v2476
    %v3339 = vpop.f32.mrf.mxu0
    %v3340 = vadd.f32 %v3327, %v3339
    %v3341 = vpop.f32.mrf.mxu0
    %3342 = vdwg.mxu0
    %v3343 = vmax.f32 %v3158, 0.0
    %v3344 = vmax.f32 %v3184, 0.0
    %v3345 = vmax.f32 %v3210, 0.0
    %v3346 = vmax.f32 %v3236, 0.0
    %v3347 = vmax.f32 %v3262, 0.0
    %v3348 = vmax.f32 %v3288, 0.0
    %v3349 = vmax.f32 %v3314, 0.0
    %v3350 = vmax.f32 %v3340, 0.0
    %v3351 = vld [vmem:[#allocation8] sm:$0xff]
    %v3352 = vld [vmem:[#allocation8 + $0x8] sm:$0xff]
    %v3353 = vld [vmem:[#allocation8 + $0x10] sm:$0xff]
    %v3354 = vld [vmem:[#allocation8 + $0x18] sm:$0xff]
    %v3355 = vld [vmem:[#allocation8 + $0x20] sm:$0xff]
    %v3356 = vld [vmem:[#allocation8 + $0x28] sm:$0xff]
    %v3357 = vld [vmem:[#allocation8 + $0x30] sm:$0xff]
    %v3358 = vld [vmem:[#allocation8 + $0x38] sm:$0xff]
    %v3359 = vld [vmem:[#allocation8 + $0x40] sm:$0xff]
    %v3360 = vld [vmem:[#allocation8 + $0x48] sm:$0xff]
    %v3361 = vld [vmem:[#allocation8 + $0x50] sm:$0xff]
    %v3362 = vld [vmem:[#allocation8 + $0x58] sm:$0xff]
    %v3363 = vld [vmem:[#allocation8 + $0x60] sm:$0xff]
    %v3364 = vld [vmem:[#allocation8 + $0x68] sm:$0xff]
    %v3365 = vld [vmem:[#allocation8 + $0x70] sm:$0xff]
    %v3366 = vld [vmem:[#allocation8 + $0x78] sm:$0xff]
    %v3367 = vld [vmem:[#allocation8 + $0x80] sm:$0xff]
    %v3368 = vld [vmem:[#allocation8 + $0x88] sm:$0xff]
    %v3369 = vld [vmem:[#allocation8 + $0x90] sm:$0xff]
    %v3370 = vld [vmem:[#allocation8 + $0x98] sm:$0xff]
    %v3371 = vld [vmem:[#allocation8 + $0xa0] sm:$0xff]
    %v3372 = vld [vmem:[#allocation8 + $0xa8] sm:$0xff]
    %v3373 = vld [vmem:[#allocation8 + $0xb0] sm:$0xff]
    %v3374 = vld [vmem:[#allocation8 + $0xb8] sm:$0xff]
    %v3375 = vld [vmem:[#allocation8 + $0xc0] sm:$0xff]
    %v3376 = vld [vmem:[#allocation8 + $0xc8] sm:$0xff]
    %v3377 = vld [vmem:[#allocation8 + $0xd0] sm:$0xff]
    %v3378 = vld [vmem:[#allocation8 + $0xd8] sm:$0xff]
    %v3379 = vld [vmem:[#allocation8 + $0xe0] sm:$0xff]
    %v3380 = vld [vmem:[#allocation8 + $0xe8] sm:$0xff]
    %v3381 = vld [vmem:[#allocation8 + $0xf0] sm:$0xff]
    %v3382 = vld [vmem:[#allocation8 + $0xf8] sm:$0xff]
    %v3383 = vld [vmem:[#allocation8 + $0x100] sm:$0xff]
    %v3384 = vld [vmem:[#allocation8 + $0x108] sm:$0xff]
    %v3385 = vld [vmem:[#allocation8 + $0x110] sm:$0xff]
    %v3386 = vld [vmem:[#allocation8 + $0x118] sm:$0xff]
    %v3387 = vld [vmem:[#allocation8 + $0x120] sm:$0xff]
    %v3388 = vld [vmem:[#allocation8 + $0x128] sm:$0xff]
    %v3389 = vld [vmem:[#allocation8 + $0x130] sm:$0xff]
    %v3390 = vld [vmem:[#allocation8 + $0x138] sm:$0xff]
    %v3391 = vld [vmem:[#allocation8 + $0x140] sm:$0xff]
    %v3392 = vld [vmem:[#allocation8 + $0x148] sm:$0xff]
    %v3393 = vld [vmem:[#allocation8 + $0x150] sm:$0xff]
    %v3394 = vld [vmem:[#allocation8 + $0x158] sm:$0xff]
    %v3395 = vld [vmem:[#allocation8 + $0x160] sm:$0xff]
    %v3396 = vld [vmem:[#allocation8 + $0x168] sm:$0xff]
    %v3397 = vld [vmem:[#allocation8 + $0x170] sm:$0xff]
    %v3398 = vld [vmem:[#allocation8 + $0x178] sm:$0xff]
    %v3399 = vld [vmem:[#allocation8 + $0x180] sm:$0xff]
    %v3400 = vld [vmem:[#allocation8 + $0x188] sm:$0xff]
    %v3401 = vld [vmem:[#allocation8 + $0x190] sm:$0xff]
    %v3402 = vld [vmem:[#allocation8 + $0x198] sm:$0xff]
    %v3403 = vld [vmem:[#allocation8 + $0x1a0] sm:$0xff]
    %v3404 = vld [vmem:[#allocation8 + $0x1a8] sm:$0xff]
    %v3405 = vld [vmem:[#allocation8 + $0x1b0] sm:$0xff]
    %v3406 = vld [vmem:[#allocation8 + $0x1b8] sm:$0xff]
    %v3407 = vld [vmem:[#allocation8 + $0x1c0] sm:$0xff]
    %v3408 = vld [vmem:[#allocation8 + $0x1c8] sm:$0xff]
    %v3409 = vld [vmem:[#allocation8 + $0x1d0] sm:$0xff]
    %v3410 = vld [vmem:[#allocation8 + $0x1d8] sm:$0xff]
    %v3411 = vld [vmem:[#allocation8 + $0x1e0] sm:$0xff]
    %v3412 = vld [vmem:[#allocation8 + $0x1e8] sm:$0xff]
    %v3413 = vld [vmem:[#allocation8 + $0x1f0] sm:$0xff]
    %v3414 = vld [vmem:[#allocation8 + $0x1f8] sm:$0xff]
    %v3415 = vld [vmem:[#allocation8 + $0x200] sm:$0xff]
    %v3416 = vld [vmem:[#allocation8 + $0x208] sm:$0xff]
    %v3417 = vld [vmem:[#allocation8 + $0x210] sm:$0xff]
    %v3418 = vld [vmem:[#allocation8 + $0x218] sm:$0xff]
    %v3419 = vld [vmem:[#allocation8 + $0x220] sm:$0xff]
    %v3420 = vld [vmem:[#allocation8 + $0x228] sm:$0xff]
    %v3421 = vld [vmem:[#allocation8 + $0x230] sm:$0xff]
    %v3422 = vld [vmem:[#allocation8 + $0x238] sm:$0xff]
    %v3423 = vld [vmem:[#allocation8 + $0x240] sm:$0xff]
    %v3424 = vld [vmem:[#allocation8 + $0x248] sm:$0xff]
    %v3425 = vld [vmem:[#allocation8 + $0x250] sm:$0xff]
    %v3426 = vld [vmem:[#allocation8 + $0x258] sm:$0xff]
    %v3427 = vld [vmem:[#allocation8 + $0x260] sm:$0xff]
    %v3428 = vld [vmem:[#allocation8 + $0x268] sm:$0xff]
    %v3429 = vld [vmem:[#allocation8 + $0x270] sm:$0xff]
    %v3430 = vld [vmem:[#allocation8 + $0x278] sm:$0xff]
    %v3431 = vld [vmem:[#allocation8 + $0x280] sm:$0xff]
    %v3432 = vld [vmem:[#allocation8 + $0x288] sm:$0xff]
    %v3433 = vld [vmem:[#allocation8 + $0x290] sm:$0xff]
    %v3434 = vld [vmem:[#allocation8 + $0x298] sm:$0xff]
    %v3435 = vld [vmem:[#allocation8 + $0x2a0] sm:$0xff]
    %v3436 = vld [vmem:[#allocation8 + $0x2a8] sm:$0xff]
    %v3437 = vld [vmem:[#allocation8 + $0x2b0] sm:$0xff]
    %v3438 = vld [vmem:[#allocation8 + $0x2b8] sm:$0xff]
    %v3439 = vld [vmem:[#allocation8 + $0x2c0] sm:$0xff]
    %v3440 = vld [vmem:[#allocation8 + $0x2c8] sm:$0xff]
    %v3441 = vld [vmem:[#allocation8 + $0x2d0] sm:$0xff]
    %v3442 = vld [vmem:[#allocation8 + $0x2d8] sm:$0xff]
    %v3443 = vld [vmem:[#allocation8 + $0x2e0] sm:$0xff]
    %v3444 = vld [vmem:[#allocation8 + $0x2e8] sm:$0xff]
    %v3445 = vld [vmem:[#allocation8 + $0x2f0] sm:$0xff]
    %v3446 = vld [vmem:[#allocation8 + $0x2f8] sm:$0xff]
    %v3447 = vld [vmem:[#allocation8 + $0x300] sm:$0xff]
    %v3448 = vld [vmem:[#allocation8 + $0x308] sm:$0xff]
    %v3449 = vld [vmem:[#allocation8 + $0x310] sm:$0xff]
    %v3450 = vld [vmem:[#allocation8 + $0x318] sm:$0xff]
    %v3451 = vld [vmem:[#allocation8 + $0x320] sm:$0xff]
    %v3452 = vld [vmem:[#allocation8 + $0x328] sm:$0xff]
    %v3453 = vld [vmem:[#allocation8 + $0x330] sm:$0xff]
    %v3454 = vld [vmem:[#allocation8 + $0x338] sm:$0xff]
    %v3455 = vld [vmem:[#allocation8 + $0x340] sm:$0xff]
    %v3456 = vld [vmem:[#allocation8 + $0x348] sm:$0xff]
    %v3457 = vld [vmem:[#allocation8 + $0x350] sm:$0xff]
    %v3458 = vld [vmem:[#allocation8 + $0x358] sm:$0xff]
    %v3459 = vld [vmem:[#allocation8 + $0x360] sm:$0xff]
    %v3460 = vld [vmem:[#allocation8 + $0x368] sm:$0xff]
    %v3461 = vld [vmem:[#allocation8 + $0x370] sm:$0xff]
    %v3462 = vld [vmem:[#allocation8 + $0x378] sm:$0xff]
    %v3463 = vld [vmem:[#allocation8 + $0x380] sm:$0xff]
    %v3464 = vld [vmem:[#allocation8 + $0x388] sm:$0xff]
    %v3465 = vld [vmem:[#allocation8 + $0x390] sm:$0xff]
    %v3466 = vld [vmem:[#allocation8 + $0x398] sm:$0xff]
    %v3467 = vld [vmem:[#allocation8 + $0x3a0] sm:$0xff]
    %v3468 = vld [vmem:[#allocation8 + $0x3a8] sm:$0xff]
    %v3469 = vld [vmem:[#allocation8 + $0x3b0] sm:$0xff]
    %v3470 = vld [vmem:[#allocation8 + $0x3b8] sm:$0xff]
    %v3471 = vld [vmem:[#allocation8 + $0x3c0] sm:$0xff]
    %v3472 = vld [vmem:[#allocation8 + $0x3c8] sm:$0xff]
    %v3473 = vld [vmem:[#allocation8 + $0x3d0] sm:$0xff]
    %v3474 = vld [vmem:[#allocation8 + $0x3d8] sm:$0xff]
    %v3475 = vld [vmem:[#allocation8 + $0x3e0] sm:$0xff]
    %v3476 = vld [vmem:[#allocation8 + $0x3e8] sm:$0xff]
    %v3477 = vld [vmem:[#allocation8 + $0x3f0] sm:$0xff]
    %v3478 = vld [vmem:[#allocation8 + $0x3f8] sm:$0xff]
    %v3479 = vpack.c.bf16 %v3343, %v3343
    %v3480 = vpack.c.bf16 %v3344, %v3344
    %v3481 = vpack.c.bf16 %v3345, %v3345
    %v3482 = vpack.c.bf16 %v3346, %v3346
    %v3483 = vpack.c.bf16 %v3347, %v3347
    %v3484 = vpack.c.bf16 %v3348, %v3348
    %v3485 = vpack.c.bf16 %v3349, %v3349
    %v3486 = vpack.c.bf16 %v3350, %v3350
    %v3487 = vld [vmem:[%s17] sm:$0x3]
    %v3489 = vperm.slane %v3487, 0
    %v3490 = vperm.slane %v3487, 1
    %v3621 = vunpack.c.l.b16 %v3351
    %v3622 = vunpack.c.h.b16 %v3351
    %v3623 = vunpack.c.l.b16 %v3352
    %v3624 = vunpack.c.h.b16 %v3352
    %v3625 = vunpack.c.l.b16 %v3353
    %v3626 = vunpack.c.h.b16 %v3353
    %v3627 = vunpack.c.l.b16 %v3354
    %v3628 = vunpack.c.h.b16 %v3354
    %v3629 = vunpack.c.l.b16 %v3355
    %v3630 = vunpack.c.h.b16 %v3355
    %v3631 = vunpack.c.l.b16 %v3356
    %v3632 = vunpack.c.h.b16 %v3356
    %v3633 = vunpack.c.l.b16 %v3357
    %v3634 = vunpack.c.h.b16 %v3357
    %v3635 = vunpack.c.l.b16 %v3358
    %v3636 = vunpack.c.h.b16 %v3358
    %v3637 = vunpack.c.l.b16 %v3359
    %v3638 = vunpack.c.h.b16 %v3359
    %v3639 = vunpack.c.l.b16 %v3360
    %v3640 = vunpack.c.h.b16 %v3360
    %v3641 = vunpack.c.l.b16 %v3361
    %v3642 = vunpack.c.h.b16 %v3361
    %v3643 = vunpack.c.l.b16 %v3362
    %v3644 = vunpack.c.h.b16 %v3362
    %v3645 = vunpack.c.l.b16 %v3363
    %v3646 = vunpack.c.h.b16 %v3363
    %v3647 = vunpack.c.l.b16 %v3364
    %v3648 = vunpack.c.h.b16 %v3364
    %v3649 = vunpack.c.l.b16 %v3365
    %v3650 = vunpack.c.h.b16 %v3365
    %v3651 = vunpack.c.l.b16 %v3366
    %v3652 = vunpack.c.h.b16 %v3366
    %v3653 = vunpack.c.l.b16 %v3367
    %v3654 = vunpack.c.h.b16 %v3367
    %v3655 = vunpack.c.l.b16 %v3368
    %v3656 = vunpack.c.h.b16 %v3368
    %v3657 = vunpack.c.l.b16 %v3369
    %v3658 = vunpack.c.h.b16 %v3369
    %v3659 = vunpack.c.l.b16 %v3370
    %v3660 = vunpack.c.h.b16 %v3370
    %v3661 = vunpack.c.l.b16 %v3371
    %v3662 = vunpack.c.h.b16 %v3371
    %v3663 = vunpack.c.l.b16 %v3372
    %v3664 = vunpack.c.h.b16 %v3372
    %v3665 = vunpack.c.l.b16 %v3373
    %v3666 = vunpack.c.h.b16 %v3373
    %v3667 = vunpack.c.l.b16 %v3374
    %v3668 = vunpack.c.h.b16 %v3374
    %v3669 = vunpack.c.l.b16 %v3375
    %v3670 = vunpack.c.h.b16 %v3375
    %v3671 = vunpack.c.l.b16 %v3376
    %v3672 = vunpack.c.h.b16 %v3376
    %v3673 = vunpack.c.l.b16 %v3377
    %v3674 = vunpack.c.h.b16 %v3377
    %v3675 = vunpack.c.l.b16 %v3378
    %v3676 = vunpack.c.h.b16 %v3378
    %v3677 = vunpack.c.l.b16 %v3379
    %v3678 = vunpack.c.h.b16 %v3379
    %v3679 = vunpack.c.l.b16 %v3380
    %v3680 = vunpack.c.h.b16 %v3380
    %v3681 = vunpack.c.l.b16 %v3381
    %v3682 = vunpack.c.h.b16 %v3381
    %v3683 = vunpack.c.l.b16 %v3382
    %v3684 = vunpack.c.h.b16 %v3382
    %v3685 = vunpack.c.l.b16 %v3383
    %v3686 = vunpack.c.h.b16 %v3383
    %v3687 = vunpack.c.l.b16 %v3384
    %v3688 = vunpack.c.h.b16 %v3384
    %v3689 = vunpack.c.l.b16 %v3385
    %v3690 = vunpack.c.h.b16 %v3385
    %v3691 = vunpack.c.l.b16 %v3386
    %v3692 = vunpack.c.h.b16 %v3386
    %v3693 = vunpack.c.l.b16 %v3387
    %v3694 = vunpack.c.h.b16 %v3387
    %v3695 = vunpack.c.l.b16 %v3388
    %v3696 = vunpack.c.h.b16 %v3388
    %v3697 = vunpack.c.l.b16 %v3389
    %v3698 = vunpack.c.h.b16 %v3389
    %v3699 = vunpack.c.l.b16 %v3390
    %v3700 = vunpack.c.h.b16 %v3390
    %v3701 = vunpack.c.l.b16 %v3391
    %v3702 = vunpack.c.h.b16 %v3391
    %v3703 = vunpack.c.l.b16 %v3392
    %v3704 = vunpack.c.h.b16 %v3392
    %v3705 = vunpack.c.l.b16 %v3393
    %v3706 = vunpack.c.h.b16 %v3393
    %v3707 = vunpack.c.l.b16 %v3394
    %v3708 = vunpack.c.h.b16 %v3394
    %v3709 = vunpack.c.l.b16 %v3395
    %v3710 = vunpack.c.h.b16 %v3395
    %v3711 = vunpack.c.l.b16 %v3396
    %v3712 = vunpack.c.h.b16 %v3396
    %v3713 = vunpack.c.l.b16 %v3397
    %v3714 = vunpack.c.h.b16 %v3397
    %v3715 = vunpack.c.l.b16 %v3398
    %v3716 = vunpack.c.h.b16 %v3398
    %v3717 = vunpack.c.l.b16 %v3399
    %v3718 = vunpack.c.h.b16 %v3399
    %v3719 = vunpack.c.l.b16 %v3400
    %v3720 = vunpack.c.h.b16 %v3400
    %v3721 = vunpack.c.l.b16 %v3401
    %v3722 = vunpack.c.h.b16 %v3401
    %v3723 = vunpack.c.l.b16 %v3402
    %v3724 = vunpack.c.h.b16 %v3402
    %v3725 = vunpack.c.l.b16 %v3403
    %v3726 = vunpack.c.h.b16 %v3403
    %v3727 = vunpack.c.l.b16 %v3404
    %v3728 = vunpack.c.h.b16 %v3404
    %v3729 = vunpack.c.l.b16 %v3405
    %v3730 = vunpack.c.h.b16 %v3405
    %v3731 = vunpack.c.l.b16 %v3406
    %v3732 = vunpack.c.h.b16 %v3406
    %v3733 = vunpack.c.l.b16 %v3407
    %v3734 = vunpack.c.h.b16 %v3407
    %v3735 = vunpack.c.l.b16 %v3408
    %v3736 = vunpack.c.h.b16 %v3408
    %v3737 = vunpack.c.l.b16 %v3409
    %v3738 = vunpack.c.h.b16 %v3409
    %v3739 = vunpack.c.l.b16 %v3410
    %v3740 = vunpack.c.h.b16 %v3410
    %v3741 = vunpack.c.l.b16 %v3411
    %v3742 = vunpack.c.h.b16 %v3411
    %v3743 = vunpack.c.l.b16 %v3412
    %v3744 = vunpack.c.h.b16 %v3412
    %v3745 = vunpack.c.l.b16 %v3413
    %v3746 = vunpack.c.h.b16 %v3413
    %v3747 = vunpack.c.l.b16 %v3414
    %v3748 = vunpack.c.h.b16 %v3414
    %v3749 = vunpack.c.l.b16 %v3415
    %v3750 = vunpack.c.h.b16 %v3415
    %v3751 = vunpack.c.l.b16 %v3416
    %v3752 = vunpack.c.h.b16 %v3416
    %v3753 = vunpack.c.l.b16 %v3417
    %v3754 = vunpack.c.h.b16 %v3417
    %v3755 = vunpack.c.l.b16 %v3418
    %v3756 = vunpack.c.h.b16 %v3418
    %v3757 = vunpack.c.l.b16 %v3419
    %v3758 = vunpack.c.h.b16 %v3419
    %v3759 = vunpack.c.l.b16 %v3420
    %v3760 = vunpack.c.h.b16 %v3420
    %v3761 = vunpack.c.l.b16 %v3421
    %v3762 = vunpack.c.h.b16 %v3421
    %v3763 = vunpack.c.l.b16 %v3422
    %v3764 = vunpack.c.h.b16 %v3422
    %v3765 = vunpack.c.l.b16 %v3423
    %v3766 = vunpack.c.h.b16 %v3423
    %v3767 = vunpack.c.l.b16 %v3424
    %v3768 = vunpack.c.h.b16 %v3424
    %v3769 = vunpack.c.l.b16 %v3425
    %v3770 = vunpack.c.h.b16 %v3425
    %v3771 = vunpack.c.l.b16 %v3426
    %v3772 = vunpack.c.h.b16 %v3426
    %v3773 = vunpack.c.l.b16 %v3427
    %v3774 = vunpack.c.h.b16 %v3427
    %v3775 = vunpack.c.l.b16 %v3428
    %v3776 = vunpack.c.h.b16 %v3428
    %v3777 = vunpack.c.l.b16 %v3429
    %v3778 = vunpack.c.h.b16 %v3429
    %v3779 = vunpack.c.l.b16 %v3430
    %v3780 = vunpack.c.h.b16 %v3430
    %v3781 = vunpack.c.l.b16 %v3431
    %v3782 = vunpack.c.h.b16 %v3431
    %v3783 = vunpack.c.l.b16 %v3432
    %v3784 = vunpack.c.h.b16 %v3432
    %v3785 = vunpack.c.l.b16 %v3433
    %v3786 = vunpack.c.h.b16 %v3433
    %v3787 = vunpack.c.l.b16 %v3434
    %v3788 = vunpack.c.h.b16 %v3434
    %v3789 = vunpack.c.l.b16 %v3435
    %v3790 = vunpack.c.h.b16 %v3435
    %v3791 = vunpack.c.l.b16 %v3436
    %v3792 = vunpack.c.h.b16 %v3436
    %v3793 = vunpack.c.l.b16 %v3437
    %v3794 = vunpack.c.h.b16 %v3437
    %v3795 = vunpack.c.l.b16 %v3438
    %v3796 = vunpack.c.h.b16 %v3438
    %v3797 = vunpack.c.l.b16 %v3439
    %v3798 = vunpack.c.h.b16 %v3439
    %v3799 = vunpack.c.l.b16 %v3440
    %v3800 = vunpack.c.h.b16 %v3440
    %v3801 = vunpack.c.l.b16 %v3441
    %v3802 = vunpack.c.h.b16 %v3441
    %v3803 = vunpack.c.l.b16 %v3442
    %v3804 = vunpack.c.h.b16 %v3442
    %v3805 = vunpack.c.l.b16 %v3443
    %v3806 = vunpack.c.h.b16 %v3443
    %v3807 = vunpack.c.l.b16 %v3444
    %v3808 = vunpack.c.h.b16 %v3444
    %v3809 = vunpack.c.l.b16 %v3445
    %v3810 = vunpack.c.h.b16 %v3445
    %v3811 = vunpack.c.l.b16 %v3446
    %v3812 = vunpack.c.h.b16 %v3446
    %v3813 = vunpack.c.l.b16 %v3447
    %v3814 = vunpack.c.h.b16 %v3447
    %v3815 = vunpack.c.l.b16 %v3448
    %v3816 = vunpack.c.h.b16 %v3448
    %v3817 = vunpack.c.l.b16 %v3449
    %v3818 = vunpack.c.h.b16 %v3449
    %v3819 = vunpack.c.l.b16 %v3450
    %v3820 = vunpack.c.h.b16 %v3450
    %v3821 = vunpack.c.l.b16 %v3451
    %v3822 = vunpack.c.h.b16 %v3451
    %v3823 = vunpack.c.l.b16 %v3452
    %v3824 = vunpack.c.h.b16 %v3452
    %v3825 = vunpack.c.l.b16 %v3453
    %v3826 = vunpack.c.h.b16 %v3453
    %v3827 = vunpack.c.l.b16 %v3454
    %v3828 = vunpack.c.h.b16 %v3454
    %v3829 = vunpack.c.l.b16 %v3455
    %v3830 = vunpack.c.h.b16 %v3455
    %v3831 = vunpack.c.l.b16 %v3456
    %v3832 = vunpack.c.h.b16 %v3456
    %v3833 = vunpack.c.l.b16 %v3457
    %v3834 = vunpack.c.h.b16 %v3457
    %v3835 = vunpack.c.l.b16 %v3458
    %v3836 = vunpack.c.h.b16 %v3458
    %v3837 = vunpack.c.l.b16 %v3459
    %v3838 = vunpack.c.h.b16 %v3459
    %v3839 = vunpack.c.l.b16 %v3460
    %v3840 = vunpack.c.h.b16 %v3460
    %v3841 = vunpack.c.l.b16 %v3461
    %v3842 = vunpack.c.h.b16 %v3461
    %v3843 = vunpack.c.l.b16 %v3462
    %v3844 = vunpack.c.h.b16 %v3462
    %v3845 = vunpack.c.l.b16 %v3463
    %v3846 = vunpack.c.h.b16 %v3463
    %v3847 = vunpack.c.l.b16 %v3464
    %v3848 = vunpack.c.h.b16 %v3464
    %v3849 = vunpack.c.l.b16 %v3465
    %v3850 = vunpack.c.h.b16 %v3465
    %v3851 = vunpack.c.l.b16 %v3466
    %v3852 = vunpack.c.h.b16 %v3466
    %v3853 = vunpack.c.l.b16 %v3467
    %v3854 = vunpack.c.h.b16 %v3467
    %v3855 = vunpack.c.l.b16 %v3468
    %v3856 = vunpack.c.h.b16 %v3468
    %v3857 = vunpack.c.l.b16 %v3469
    %v3858 = vunpack.c.h.b16 %v3469
    %v3859 = vunpack.c.l.b16 %v3470
    %v3860 = vunpack.c.h.b16 %v3470
    %v3861 = vunpack.c.l.b16 %v3471
    %v3862 = vunpack.c.h.b16 %v3471
    %v3863 = vunpack.c.l.b16 %v3472
    %v3864 = vunpack.c.h.b16 %v3472
    %v3865 = vunpack.c.l.b16 %v3473
    %v3866 = vunpack.c.h.b16 %v3473
    %v3867 = vunpack.c.l.b16 %v3474
    %v3868 = vunpack.c.h.b16 %v3474
    %v3869 = vunpack.c.l.b16 %v3475
    %v3870 = vunpack.c.h.b16 %v3475
    %v3871 = vunpack.c.l.b16 %v3476
    %v3872 = vunpack.c.h.b16 %v3476
    %v3873 = vunpack.c.l.b16 %v3477
    %v3874 = vunpack.c.h.b16 %v3477
    %v3875 = vunpack.c.l.b16 %v3478
    %v3876 = vunpack.c.h.b16 %v3478
    %v3877 = vpack.c.b16 %v3623, %v3621
    %v3878 = vpack.c.b16 %v3624, %v3622
    %v3879 = vpack.c.b16 %v3627, %v3625
    %v3880 = vpack.c.b16 %v3628, %v3626
    %v3881 = vpack.c.b16 %v3631, %v3629
    %v3882 = vpack.c.b16 %v3632, %v3630
    %v3883 = vpack.c.b16 %v3635, %v3633
    %v3884 = vpack.c.b16 %v3636, %v3634
    %v3885 = vpack.c.b16 %v3639, %v3637
    %v3886 = vpack.c.b16 %v3640, %v3638
    %v3887 = vpack.c.b16 %v3643, %v3641
    %v3888 = vpack.c.b16 %v3644, %v3642
    %v3889 = vpack.c.b16 %v3647, %v3645
    %v3890 = vpack.c.b16 %v3648, %v3646
    %v3891 = vpack.c.b16 %v3651, %v3649
    %v3892 = vpack.c.b16 %v3652, %v3650
    %v3893 = vpack.c.b16 %v3655, %v3653
    %v3894 = vpack.c.b16 %v3656, %v3654
    %v3895 = vpack.c.b16 %v3659, %v3657
    %v3896 = vpack.c.b16 %v3660, %v3658
    %v3897 = vpack.c.b16 %v3663, %v3661
    %v3898 = vpack.c.b16 %v3664, %v3662
    %v3899 = vpack.c.b16 %v3667, %v3665
    %v3900 = vpack.c.b16 %v3668, %v3666
    %v3901 = vpack.c.b16 %v3671, %v3669
    %v3902 = vpack.c.b16 %v3672, %v3670
    %v3903 = vpack.c.b16 %v3675, %v3673
    %v3904 = vpack.c.b16 %v3676, %v3674
    %v3905 = vpack.c.b16 %v3679, %v3677
    %v3906 = vpack.c.b16 %v3680, %v3678
    %v3907 = vpack.c.b16 %v3683, %v3681
    %v3908 = vpack.c.b16 %v3684, %v3682
    %v3909 = vpack.c.b16 %v3687, %v3685
    %v3910 = vpack.c.b16 %v3688, %v3686
    %v3911 = vpack.c.b16 %v3691, %v3689
    %v3912 = vpack.c.b16 %v3692, %v3690
    %v3913 = vpack.c.b16 %v3695, %v3693
    %v3914 = vpack.c.b16 %v3696, %v3694
    %v3915 = vpack.c.b16 %v3699, %v3697
    %v3916 = vpack.c.b16 %v3700, %v3698
    %v3917 = vpack.c.b16 %v3703, %v3701
    %v3918 = vpack.c.b16 %v3704, %v3702
    %v3919 = vpack.c.b16 %v3707, %v3705
    %v3920 = vpack.c.b16 %v3708, %v3706
    %v3921 = vpack.c.b16 %v3711, %v3709
    %v3922 = vpack.c.b16 %v3712, %v3710
    %v3923 = vpack.c.b16 %v3715, %v3713
    %v3924 = vpack.c.b16 %v3716, %v3714
    %v3925 = vpack.c.b16 %v3719, %v3717
    %v3926 = vpack.c.b16 %v3720, %v3718
    %v3927 = vpack.c.b16 %v3723, %v3721
    %v3928 = vpack.c.b16 %v3724, %v3722
    %v3929 = vpack.c.b16 %v3727, %v3725
    %v3930 = vpack.c.b16 %v3728, %v3726
    %v3931 = vpack.c.b16 %v3731, %v3729
    %v3932 = vpack.c.b16 %v3732, %v3730
    %v3933 = vpack.c.b16 %v3735, %v3733
    %v3934 = vpack.c.b16 %v3736, %v3734
    %v3935 = vpack.c.b16 %v3739, %v3737
    %v3936 = vpack.c.b16 %v3740, %v3738
    %v3937 = vpack.c.b16 %v3743, %v3741
    %v3938 = vpack.c.b16 %v3744, %v3742
    %v3939 = vpack.c.b16 %v3747, %v3745
    %v3940 = vpack.c.b16 %v3748, %v3746
    %v3941 = vpack.c.b16 %v3751, %v3749
    %v3942 = vpack.c.b16 %v3752, %v3750
    %v3943 = vpack.c.b16 %v3755, %v3753
    %v3944 = vpack.c.b16 %v3756, %v3754
    %v3945 = vpack.c.b16 %v3759, %v3757
    %v3946 = vpack.c.b16 %v3760, %v3758
    %v3947 = vpack.c.b16 %v3763, %v3761
    %v3948 = vpack.c.b16 %v3764, %v3762
    %v3949 = vpack.c.b16 %v3767, %v3765
    %v3950 = vpack.c.b16 %v3768, %v3766
    %v3951 = vpack.c.b16 %v3771, %v3769
    %v3952 = vpack.c.b16 %v3772, %v3770
    %v3953 = vpack.c.b16 %v3775, %v3773
    %v3954 = vpack.c.b16 %v3776, %v3774
    %v3955 = vpack.c.b16 %v3779, %v3777
    %v3956 = vpack.c.b16 %v3780, %v3778
    %v3957 = vpack.c.b16 %v3783, %v3781
    %v3958 = vpack.c.b16 %v3784, %v3782
    %v3959 = vpack.c.b16 %v3787, %v3785
    %v3960 = vpack.c.b16 %v3788, %v3786
    %v3961 = vpack.c.b16 %v3791, %v3789
    %v3962 = vpack.c.b16 %v3792, %v3790
    %v3963 = vpack.c.b16 %v3795, %v3793
    %v3964 = vpack.c.b16 %v3796, %v3794
    %v3965 = vpack.c.b16 %v3799, %v3797
    %v3966 = vpack.c.b16 %v3800, %v3798
    %v3967 = vpack.c.b16 %v3803, %v3801
    %v3968 = vpack.c.b16 %v3804, %v3802
    %v3969 = vpack.c.b16 %v3807, %v3805
    %v3970 = vpack.c.b16 %v3808, %v3806
    %v3971 = vpack.c.b16 %v3811, %v3809
    %v3972 = vpack.c.b16 %v3812, %v3810
    %v3973 = vpack.c.b16 %v3815, %v3813
    %v3974 = vpack.c.b16 %v3816, %v3814
    %v3975 = vpack.c.b16 %v3819, %v3817
    %v3976 = vpack.c.b16 %v3820, %v3818
    %v3977 = vpack.c.b16 %v3823, %v3821
    %v3978 = vpack.c.b16 %v3824, %v3822
    %v3979 = vpack.c.b16 %v3827, %v3825
    %v3980 = vpack.c.b16 %v3828, %v3826
    %v3981 = vpack.c.b16 %v3831, %v3829
    %v3982 = vpack.c.b16 %v3832, %v3830
    %v3983 = vpack.c.b16 %v3835, %v3833
    %v3984 = vpack.c.b16 %v3836, %v3834
    %v3985 = vpack.c.b16 %v3839, %v3837
    %v3986 = vpack.c.b16 %v3840, %v3838
    %v3987 = vpack.c.b16 %v3843, %v3841
    %v3988 = vpack.c.b16 %v3844, %v3842
    %v3989 = vpack.c.b16 %v3847, %v3845
    %v3990 = vpack.c.b16 %v3848, %v3846
    %v3991 = vpack.c.b16 %v3851, %v3849
    %v3992 = vpack.c.b16 %v3852, %v3850
    %v3993 = vpack.c.b16 %v3855, %v3853
    %v3994 = vpack.c.b16 %v3856, %v3854
    %v3995 = vpack.c.b16 %v3859, %v3857
    %v3996 = vpack.c.b16 %v3860, %v3858
    %v3997 = vpack.c.b16 %v3863, %v3861
    %v3998 = vpack.c.b16 %v3864, %v3862
    %v3999 = vpack.c.b16 %v3867, %v3865
    %v4000 = vpack.c.b16 %v3868, %v3866
    %v4001 = vpack.c.b16 %v3871, %v3869
    %v4002 = vpack.c.b16 %v3872, %v3870
    %v4003 = vpack.c.b16 %v3875, %v3873
    %v4004 = vpack.c.b16 %v3876, %v3874
    %4133 = vmatpush.bf16.msra.mxu0 %v3891
    %4134 = vmatpush.bf16.msra.mxu0 %v3889
    %4135 = vmatpush.bf16.msra.mxu0 %v3887
    %4136 = vmatpush.bf16.msra.mxu0 %v3885
    %4137 = vmatpush.bf16.msra.mxu0 %v3883
    %4138 = vmatpush.bf16.msra.mxu0 %v3881
    %4139 = vmatpush.bf16.msra.mxu0 %v3879
    %4140 = vmatpush.bf16.msra.mxu0 %v3877
    %4141 = vmatmul.bf16.gmra.mxu0 %v3479
    %v4142 = vpop.f32.mrf.mxu0
    %v4143 = vadd.f32 %v3489, %v4142
    %v4144 = vpop.f32.mrf.mxu0
    %4145 = vdwg.mxu0
    %4146 = vmatpush.bf16.msra.mxu0 %v3907
    %4147 = vmatpush.bf16.msra.mxu0 %v3905
    %4148 = vmatpush.bf16.msra.mxu0 %v3903
    %4149 = vmatpush.bf16.msra.mxu0 %v3901
    %4150 = vmatpush.bf16.msra.mxu0 %v3899
    %4151 = vmatpush.bf16.msra.mxu0 %v3897
    %4152 = vmatpush.bf16.msra.mxu0 %v3895
    %4153 = vmatpush.bf16.msra.mxu0 %v3893
    %4154 = vmatmul.bf16.gmra.mxu0 %v3480
    %v4155 = vpop.f32.mrf.mxu0
    %v4156 = vadd.f32 %v4143, %v4155
    %v4157 = vpop.f32.mrf.mxu0
    %4158 = vdwg.mxu0
    %4159 = vmatpush.bf16.msra.mxu0 %v3923
    %4160 = vmatpush.bf16.msra.mxu0 %v3921
    %4161 = vmatpush.bf16.msra.mxu0 %v3919
    %4162 = vmatpush.bf16.msra.mxu0 %v3917
    %4163 = vmatpush.bf16.msra.mxu0 %v3915
    %4164 = vmatpush.bf16.msra.mxu0 %v3913
    %4165 = vmatpush.bf16.msra.mxu0 %v3911
    %4166 = vmatpush.bf16.msra.mxu0 %v3909
    %4167 = vmatmul.bf16.gmra.mxu0 %v3481
    %v4168 = vpop.f32.mrf.mxu0
    %v4169 = vadd.f32 %v4156, %v4168
    %v4170 = vpop.f32.mrf.mxu0
    %4171 = vdwg.mxu0
    %4172 = vmatpush.bf16.msra.mxu0 %v3939
    %4173 = vmatpush.bf16.msra.mxu0 %v3937
    %4174 = vmatpush.bf16.msra.mxu0 %v3935
    %4175 = vmatpush.bf16.msra.mxu0 %v3933
    %4176 = vmatpush.bf16.msra.mxu0 %v3931
    %4177 = vmatpush.bf16.msra.mxu0 %v3929
    %4178 = vmatpush.bf16.msra.mxu0 %v3927
    %4179 = vmatpush.bf16.msra.mxu0 %v3925
    %4180 = vmatmul.bf16.gmra.mxu0 %v3482
    %v4181 = vpop.f32.mrf.mxu0
    %v4182 = vadd.f32 %v4169, %v4181
    %v4183 = vpop.f32.mrf.mxu0
    %4184 = vdwg.mxu0
    %4185 = vmatpush.bf16.msra.mxu0 %v3955
    %4186 = vmatpush.bf16.msra.mxu0 %v3953
    %4187 = vmatpush.bf16.msra.mxu0 %v3951
    %4188 = vmatpush.bf16.msra.mxu0 %v3949
    %4189 = vmatpush.bf16.msra.mxu0 %v3947
    %4190 = vmatpush.bf16.msra.mxu0 %v3945
    %4191 = vmatpush.bf16.msra.mxu0 %v3943
    %4192 = vmatpush.bf16.msra.mxu0 %v3941
    %4193 = vmatmul.bf16.gmra.mxu0 %v3483
    %v4194 = vpop.f32.mrf.mxu0
    %v4195 = vadd.f32 %v4182, %v4194
    %v4196 = vpop.f32.mrf.mxu0
    %4197 = vdwg.mxu0
    %4198 = vmatpush.bf16.msra.mxu0 %v3971
    %4199 = vmatpush.bf16.msra.mxu0 %v3969
    %4200 = vmatpush.bf16.msra.mxu0 %v3967
    %4201 = vmatpush.bf16.msra.mxu0 %v3965
    %4202 = vmatpush.bf16.msra.mxu0 %v3963
    %4203 = vmatpush.bf16.msra.mxu0 %v3961
    %4204 = vmatpush.bf16.msra.mxu0 %v3959
    %4205 = vmatpush.bf16.msra.mxu0 %v3957
    %4206 = vmatmul.bf16.gmra.mxu0 %v3484
    %v4207 = vpop.f32.mrf.mxu0
    %v4208 = vadd.f32 %v4195, %v4207
    %v4209 = vpop.f32.mrf.mxu0
    %4210 = vdwg.mxu0
    %4211 = vmatpush.bf16.msra.mxu0 %v3987
    %4212 = vmatpush.bf16.msra.mxu0 %v3985
    %4213 = vmatpush.bf16.msra.mxu0 %v3983
    %4214 = vmatpush.bf16.msra.mxu0 %v3981
    %4215 = vmatpush.bf16.msra.mxu0 %v3979
    %4216 = vmatpush.bf16.msra.mxu0 %v3977
    %4217 = vmatpush.bf16.msra.mxu0 %v3975
    %4218 = vmatpush.bf16.msra.mxu0 %v3973
    %4219 = vmatmul.bf16.gmra.mxu0 %v3485
    %v4220 = vpop.f32.mrf.mxu0
    %v4221 = vadd.f32 %v4208, %v4220
    %v4222 = vpop.f32.mrf.mxu0
    %4223 = vdwg.mxu0
    %4224 = vmatpush.bf16.msra.mxu0 %v4003
    %4225 = vmatpush.bf16.msra.mxu0 %v4001
    %4226 = vmatpush.bf16.msra.mxu0 %v3999
    %4227 = vmatpush.bf16.msra.mxu0 %v3997
    %4228 = vmatpush.bf16.msra.mxu0 %v3995
    %4229 = vmatpush.bf16.msra.mxu0 %v3993
    %4230 = vmatpush.bf16.msra.mxu0 %v3991
    %4231 = vmatpush.bf16.msra.mxu0 %v3989
    %4232 = vmatmul.bf16.gmra.mxu0 %v3486
    %v4233 = vpop.f32.mrf.mxu0
    %v4234 = vadd.f32 %v4221, %v4233
    %v4235 = vpop.f32.mrf.mxu0
    %4236 = vdwg.mxu0
    %4237 = vmatpush.bf16.msra.mxu0 %v3892
    %4238 = vmatpush.bf16.msra.mxu0 %v3890
    %4239 = vmatpush.bf16.msra.mxu0 %v3888
    %4240 = vmatpush.bf16.msra.mxu0 %v3886
    %4241 = vmatpush.bf16.msra.mxu0 %v3884
    %4242 = vmatpush.bf16.msra.mxu0 %v3882
    %4243 = vmatpush.bf16.msra.mxu0 %v3880
    %4244 = vmatpush.bf16.msra.mxu0 %v3878
    %4245 = vmatmul.bf16.gmra.mxu0 %v3479
    %v4246 = vpop.f32.mrf.mxu0
    %v4247 = vadd.f32 %v3490, %v4246
    %v4248 = vpop.f32.mrf.mxu0
    %4249 = vdwg.mxu0
    %4250 = vmatpush.bf16.msra.mxu0 %v3908
    %4251 = vmatpush.bf16.msra.mxu0 %v3906
    %4252 = vmatpush.bf16.msra.mxu0 %v3904
    %4253 = vmatpush.bf16.msra.mxu0 %v3902
    %4254 = vmatpush.bf16.msra.mxu0 %v3900
    %4255 = vmatpush.bf16.msra.mxu0 %v3898
    %4256 = vmatpush.bf16.msra.mxu0 %v3896
    %4257 = vmatpush.bf16.msra.mxu0 %v3894
    %4258 = vmatmul.bf16.gmra.mxu0 %v3480
    %v4259 = vpop.f32.mrf.mxu0
    %v4260 = vadd.f32 %v4247, %v4259
    %v4261 = vpop.f32.mrf.mxu0
    %4262 = vdwg.mxu0
    %4263 = vmatpush.bf16.msra.mxu0 %v3924
    %4264 = vmatpush.bf16.msra.mxu0 %v3922
    %4265 = vmatpush.bf16.msra.mxu0 %v3920
    %4266 = vmatpush.bf16.msra.mxu0 %v3918
    %4267 = vmatpush.bf16.msra.mxu0 %v3916
    %4268 = vmatpush.bf16.msra.mxu0 %v3914
    %4269 = vmatpush.bf16.msra.mxu0 %v3912
    %4270 = vmatpush.bf16.msra.mxu0 %v3910
    %4271 = vmatmul.bf16.gmra.mxu0 %v3481
    %v4272 = vpop.f32.mrf.mxu0
    %v4273 = vadd.f32 %v4260, %v4272
    %v4274 = vpop.f32.mrf.mxu0
    %4275 = vdwg.mxu0
    %4276 = vmatpush.bf16.msra.mxu0 %v3940
    %4277 = vmatpush.bf16.msra.mxu0 %v3938
    %4278 = vmatpush.bf16.msra.mxu0 %v3936
    %4279 = vmatpush.bf16.msra.mxu0 %v3934
    %4280 = vmatpush.bf16.msra.mxu0 %v3932
    %4281 = vmatpush.bf16.msra.mxu0 %v3930
    %4282 = vmatpush.bf16.msra.mxu0 %v3928
    %4283 = vmatpush.bf16.msra.mxu0 %v3926
    %4284 = vmatmul.bf16.gmra.mxu0 %v3482
    %v4285 = vpop.f32.mrf.mxu0
    %v4286 = vadd.f32 %v4273, %v4285
    %v4287 = vpop.f32.mrf.mxu0
    %4288 = vdwg.mxu0
    %4289 = vmatpush.bf16.msra.mxu0 %v3956
    %4290 = vmatpush.bf16.msra.mxu0 %v3954
    %4291 = vmatpush.bf16.msra.mxu0 %v3952
    %4292 = vmatpush.bf16.msra.mxu0 %v3950
    %4293 = vmatpush.bf16.msra.mxu0 %v3948
    %4294 = vmatpush.bf16.msra.mxu0 %v3946
    %4295 = vmatpush.bf16.msra.mxu0 %v3944
    %4296 = vmatpush.bf16.msra.mxu0 %v3942
    %4297 = vmatmul.bf16.gmra.mxu0 %v3483
    %v4298 = vpop.f32.mrf.mxu0
    %v4299 = vadd.f32 %v4286, %v4298
    %v4300 = vpop.f32.mrf.mxu0
    %4301 = vdwg.mxu0
    %4302 = vmatpush.bf16.msra.mxu0 %v3972
    %4303 = vmatpush.bf16.msra.mxu0 %v3970
    %4304 = vmatpush.bf16.msra.mxu0 %v3968
    %4305 = vmatpush.bf16.msra.mxu0 %v3966
    %4306 = vmatpush.bf16.msra.mxu0 %v3964
    %4307 = vmatpush.bf16.msra.mxu0 %v3962
    %4308 = vmatpush.bf16.msra.mxu0 %v3960
    %4309 = vmatpush.bf16.msra.mxu0 %v3958
    %4310 = vmatmul.bf16.gmra.mxu0 %v3484
    %v4311 = vpop.f32.mrf.mxu0
    %v4312 = vadd.f32 %v4299, %v4311
    %v4313 = vpop.f32.mrf.mxu0
    %4314 = vdwg.mxu0
    %4315 = vmatpush.bf16.msra.mxu0 %v3988
    %4316 = vmatpush.bf16.msra.mxu0 %v3986
    %4317 = vmatpush.bf16.msra.mxu0 %v3984
    %4318 = vmatpush.bf16.msra.mxu0 %v3982
    %4319 = vmatpush.bf16.msra.mxu0 %v3980
    %4320 = vmatpush.bf16.msra.mxu0 %v3978
    %4321 = vmatpush.bf16.msra.mxu0 %v3976
    %4322 = vmatpush.bf16.msra.mxu0 %v3974
    %4323 = vmatmul.bf16.gmra.mxu0 %v3485
    %v4324 = vpop.f32.mrf.mxu0
    %v4325 = vadd.f32 %v4312, %v4324
    %v4326 = vpop.f32.mrf.mxu0
    %4327 = vdwg.mxu0
    %4328 = vmatpush.bf16.msra.mxu0 %v4004
    %4329 = vmatpush.bf16.msra.mxu0 %v4002
    %4330 = vmatpush.bf16.msra.mxu0 %v4000
    %4331 = vmatpush.bf16.msra.mxu0 %v3998
    %4332 = vmatpush.bf16.msra.mxu0 %v3996
    %4333 = vmatpush.bf16.msra.mxu0 %v3994
    %4334 = vmatpush.bf16.msra.mxu0 %v3992
    %4335 = vmatpush.bf16.msra.mxu0 %v3990
    %4336 = vmatmul.bf16.gmra.mxu0 %v3486
    %v4337 = vpop.f32.mrf.mxu0
    %v4338 = vadd.f32 %v4325, %v4337
    %v4339 = vpop.f32.mrf.mxu0
    %4340 = vdwg.mxu0
    %v4341 = vxor.u32 %v4234, 2147483648
    %v4342 = vxor.u32 %v4338, 2147483648
    %v4343 = vmul.f32 %v4341, 1.442695
    %v4344 = vpow.pop %v4343
    %v4345 = vmul.f32 %v4342, 1.442695
    %v4346 = vpow.pop %v4345
    %v4347 = vadd.f32 %v4344, 1.0
    %v4348 = vadd.f32 %v4346, 1.0
    %v4349 = vrcp.pop %v4347
    %v4350 = vmul.f32 %v4347, %v4349
    %v4351 = vsub.f32 1.0, %v4350
    %v4352 = vmul.f32 %v4349, %v4351
    %v4353 = vadd.f32 %v4349, %v4352
    %vm4354 = vweird.f32 %v4347
    %vm4355 = vweird.f32 %v4349
    %vm4356 = vmor %vm4354, %vm4355
    %v4357 = vsel %vm4356, %v4349, %v4353
    %v4358 = vand.u32 2147483647, %v4347
    %vm4359 = vcmp.eq.f32.partialorder %v4358, 8.507059e+37
    %v4360 = vand.u32 %v4347, 2147483648
    %v4361 = vor.u32 1.1754944e-38, %v4360
    %v4362 = vsel %vm4359, %v4361, %v4357
    %v4363 = vmul.f32 1.0, %v4362
    %v4364 = vrcp.pop %v4348
    %v4365 = vmul.f32 %v4348, %v4364
    %v4366 = vsub.f32 1.0, %v4365
    %v4367 = vmul.f32 %v4364, %v4366
    %v4368 = vadd.f32 %v4364, %v4367
    %vm4369 = vweird.f32 %v4348
    %vm4370 = vweird.f32 %v4364
    %vm4371 = vmor %vm4369, %vm4370
    %v4372 = vsel %vm4371, %v4364, %v4368
    %v4373 = vand.u32 2147483647, %v4348
    %vm4374 = vcmp.eq.f32.partialorder %v4373, 8.507059e+37
    %v4375 = vand.u32 %v4348, 2147483648
    %v4376 = vor.u32 1.1754944e-38, %v4375
    %v4377 = vsel %vm4374, %v4376, %v4372
    %v4378 = vmul.f32 1.0, %v4377
    %4379 = vst [vmem:[#allocation10] sm:$0xff] %v4363
    %4380 = vst [vmem:[#allocation10 + $0x8] sm:$0xff] %v4378
    %4381 = vst.msk [vmem:[#allocation11] sm:$0xff] %vm2213, %v2235
    // Predicated region
    $region90: #{tpu_custom_call.1} parent=1 // pred_check
      _
    $region91: #{tpu_custom_call.1} parent=1 // pred_check_branch
      %4383 = sbr.rel (0) target = $region93
    $region92: #{tpu_custom_call.1} parent=1 // pred_region
      %4385 = vsyncadd [#allocation4], 0
      %s4387 = sshll.u32 [#allocation10], 4
      %s4388 = int_to_ptr.vmem [resolvable:$true] %s4387
      %s4389 = sshll.u32 %s18, 4
      %s4390 = int_to_ptr.hbm [resolvable:$true] %s4389
      %4392 = dma.vmem_to_hbm [thread:$0]  %s4388, 256, %s4390, [#allocation4]
    $region93: #{tpu_custom_call.1} parent=1 // pred_fallthru
      _
    // Predicated region
    $region94: #{tpu_custom_call.1} parent=1 // pred_check
      _
    $region95: #{tpu_custom_call.1} parent=1 // pred_check_branch
      %4394 = sbr.rel (0) target = $region97
    $region96: #{tpu_custom_call.1} parent=1 // pred_region
      %4396 = vsyncadd [#allocation12], 0
      %s4398 = sshll.u32 [#allocation11], 4
      %s4399 = int_to_ptr.vmem [resolvable:$true] %s4398
      %s4400 = sshll.u32 %s19, 4
      %s4401 = int_to_ptr.hbm [resolvable:$true] %s4400
      %4403 = dma.vmem_to_hbm [thread:$0]  %s4399, 128, %s4401, [#allocation12]
    $region97: #{tpu_custom_call.1} parent=1 // pred_fallthru
      _
    // Predicated region
    $region98: #{tpu_custom_call.1} parent=1 // pred_check
      _
    $region99: #{tpu_custom_call.1} parent=1 // pred_check_branch
      %4405 = sbr.rel (0) target = $region101
    $region100: #{tpu_custom_call.1} parent=1 // pred_region
      %4407 = dma.done [#allocation4], 256
    $region101: #{tpu_custom_call.1} parent=1 // pred_fallthru
      _
    // Predicated region
    $region102: #{tpu_custom_call.1} parent=1 // pred_check
      _
    $region103: #{tpu_custom_call.1} parent=1 // pred_check_branch
      %4409 = sbr.rel (0) target = $region105
    $region104: #{tpu_custom_call.1} parent=1 // pred_region
      %4411 = dma.done [#allocation12], 128
    $region105: #{tpu_custom_call.1} parent=1 // pred_fallthru
      _
    %4412 = vsyncpa [#allocation3], 1
    %4413 = vsyncpa [#allocation6], 1
    %4414 = vsyncpa [#allocation9], 1
    %4415 = vsyncpa [#allocation4], 1
    %4416 = vsyncpa [#allocation12], 1

// kernel: tpu_custom_call.1
$region0: #{tpu_custom_call.1}
  #allocation0 [shape = 'u32[]', space=smem, size = 0x4, offset = 0x4, fixed_abs, tag = 'smem constant byte address 0x4 - core index']
  #allocation1 [shape = 'u32[72,128]{1,0:T(1,128)}', space=vmem, size = 0x9000, scoped, tag = 'internal scratch']
  %s0 = inlined_call_operand.vmem [shape: f32[8,256], index: 0, kind: input, shape index: {}]
  %s1 = inlined_call_operand.vmem [shape: f32[8,32], index: 1, kind: input, shape index: {}]
  %s2 = inlined_call_operand.hbm [shape: bf16[256,1024], index: 2, kind: input, shape index: {}]
  %s3 = inlined_call_operand.vmem [shape: f32[1,1024], index: 3, kind: input, shape index: {}]
  %s4 = inlined_call_operand.hbm [shape: bf16[1024,256], index: 4, kind: input, shape index: {}]
  %s5 = inlined_call_operand.vmem [shape: f32[1,256], index: 5, kind: input, shape index: {}]
  %s6 = inlined_call_operand.vmem [shape: f32[256,64], index: 6, kind: input, shape index: {}]
  %s7 = inlined_call_operand.vmem [shape: f32[1,64], index: 7, kind: input, shape index: {}]
  %s8 = inlined_call_operand.vmem [shape: f32[64,64], index: 8, kind: input, shape index: {}]
  %s9 = inlined_call_operand.vmem [shape: f32[1,64], index: 9, kind: input, shape index: {}]
  %s10 = inlined_call_operand.vmem [shape: f32[32,64], index: 10, kind: input, shape index: {}]
  %s11 = inlined_call_operand.vmem [shape: f32[1,64], index: 11, kind: input, shape index: {}]
  %s12 = inlined_call_operand.vmem [shape: f32[64,256], index: 12, kind: input, shape index: {}]
  %s13 = inlined_call_operand.vmem [shape: f32[1,256], index: 13, kind: input, shape index: {}]
  %s14 = inlined_call_operand.hbm [shape: bf16[256,1024], index: 14, kind: input, shape index: {}]
  %s15 = inlined_call_operand.vmem [shape: f32[1,1024], index: 15, kind: input, shape index: {}]
  %s16 = inlined_call_operand.hbm [shape: bf16[1024,256], index: 16, kind: input, shape index: {}]
  %s17 = inlined_call_operand.vmem [shape: f32[1,256], index: 17, kind: input, shape index: {}]
  %s18 = inlined_call_operand.hbm [shape: f32[8,256], index: 18, kind: output, shape index: {0}]
  %s19 = inlined_call_operand.hbm [shape: f32[8,64], index: 19, kind: output, shape index: {1}]
  %20 = xla_tuple %s18, %s19
  %s21 = sld [smem:[#allocation0]]
  $region106: #{tpu_custom_call.1} parent=0
    _
  %s23 = ssub.s32 1, %s21
  %s24 = scalar_select 0, %s23, %s21
  $region1: #{tpu_custom_call.1} parent=0
    #allocation2 [shape = 'u8[524288]{0}', space=vmem, size = 0x80000, scoped, tag = 'input window, operand 2, single buffered']
    #allocation3 [shape = 's32[1]{0}', space=sflag, size = 0x4, scoped, tag = 'scoped memory for tpu_custom_call.1']
    #allocation4 [shape = 's32[1]{0}', space=sflag, size = 0x4, scoped, tag = 'scoped memory for tpu_custom_call.1']
    #allocation5 [shape = 'u8[524288]{0}', space=vmem, size = 0x80000, scoped, tag = 'input window, operand 4, single buffered']
    #allocation6 [shape = 's32[1]{0}', space=sflag, size = 0x4, scoped, tag = 'scoped memory for tpu_custom_call.1']
    #allocation7 [shape = 'u8[524288]{0}', space=vmem, size = 0x80000, scoped, tag = 'input window, operand 14, single buffered']
    #allocation8 [shape = 'u8[524288]{0}', space=vmem, size = 0x80000, scoped, tag = 'input window, operand 16, single buffered']
    #allocation9 [shape = 's32[1]{0}', space=sflag, size = 0x4, scoped, tag = 'scoped memory for tpu_custom_call.1']
    #allocation10 [shape = 'u8[8192]{0}', space=vmem, size = 0x2000, scoped, tag = 'output window, operand 0, single buffered']
    #allocation11 [shape = 'u8[4096]{0}', space=vmem, size = 0x1000, scoped, tag = 'output window, operand 1, single buffered']
    #allocation12 [shape = 's32[1]{0}', space=sflag, size = 0x4, scoped, tag = 'scoped memory for tpu_custom_call.1']
    %25 = vsyncpa [#allocation3], 0
    %26 = vsyncpa [#allocation6], 0
    %27 = vsyncpa [#allocation9], 0
    %28 = vsyncpa [#allocation4], 0
    %29 = vsyncpa [#allocation12], 0
    // Predicated region
    $region2: #{tpu_custom_call.1} parent=1 // pred_check
      _
    $region3: #{tpu_custom_call.1} parent=1 // pred_check_branch
      %31 = sbr.rel (0) target = $region5
    $region4: #{tpu_custom_call.1} parent=1 // pred_region
      _
    $region5: #{tpu_custom_call.1} parent=1 // pred_fallthru
      _
    // Predicated region
    $region6: #{tpu_custom_call.1} parent=1 // pred_check
      _
    $region7: #{tpu_custom_call.1} parent=1 // pred_check_branch
      %33 = sbr.rel (0) target = $region9
    $region8: #{tpu_custom_call.1} parent=1 // pred_region
      _
    $region9: #{tpu_custom_call.1} parent=1 // pred_fallthru
      _
    // Predicated region
    $region10: #{tpu_custom_call.1} parent=1 // pred_check
      _
    $region11: #{tpu_custom_call.1} parent=1 // pred_check_branch
      %35 = sbr.rel (0) target = $region13
    $region12: #{tpu_custom_call.1} parent=1 // pred_region
      %37 = vsyncadd [#allocation3], 0
      %s38 = sshll.u32 %s2, 4
      %s39 = int_to_ptr.hbm [resolvable:$true] %s38
      %s40 = sshll.u32 [#allocation2], 4
      %s41 = int_to_ptr.vmem [resolvable:$true] %s40
      %46 = dma.hbm_to_vmem [thread:$0]  %s39, 16384, %s41, [#allocation3], 512, 512, 32
    $region13: #{tpu_custom_call.1} parent=1 // pred_fallthru
      _
    // Predicated region
    $region14: #{tpu_custom_call.1} parent=1 // pred_check
      _
    $region15: #{tpu_custom_call.1} parent=1 // pred_check_branch
      %48 = sbr.rel (0) target = $region17
    $region16: #{tpu_custom_call.1} parent=1 // pred_region
      _
    $region17: #{tpu_custom_call.1} parent=1 // pred_fallthru
      _
    // Predicated region
    $region18: #{tpu_custom_call.1} parent=1 // pred_check
      _
    $region19: #{tpu_custom_call.1} parent=1 // pred_check_branch
      %50 = sbr.rel (0) target = $region21
    $region20: #{tpu_custom_call.1} parent=1 // pred_region
      %52 = vsyncadd [#allocation6], 0
      %s53 = sshll.u32 %s4, 4
      %s54 = int_to_ptr.hbm [resolvable:$true] %s53
      %s55 = sshll.u32 [#allocation5], 4
      %s56 = int_to_ptr.vmem [resolvable:$true] %s55
      %61 = dma.hbm_to_vmem [thread:$0]  %s54, 16384, %s56, [#allocation6], 128, 128, 8
    $region21: #{tpu_custom_call.1} parent=1 // pred_fallthru
      _
    // Predicated region
    $region22: #{tpu_custom_call.1} parent=1 // pred_check
      _
    $region23: #{tpu_custom_call.1} parent=1 // pred_check_branch
      %63 = sbr.rel (0) target = $region25
    $region24: #{tpu_custom_call.1} parent=1 // pred_region
      _
    $region25: #{tpu_custom_call.1} parent=1 // pred_fallthru
      _
    // Predicated region
    $region26: #{tpu_custom_call.1} parent=1 // pred_check
      _
    $region27: #{tpu_custom_call.1} parent=1 // pred_check_branch
      %65 = sbr.rel (0) target = $region29
    $region28: #{tpu_custom_call.1} parent=1 // pred_region
      _
    $region29: #{tpu_custom_call.1} parent=1 // pred_fallthru
      _
    // Predicated region
    $region30: #{tpu_custom_call.1} parent=1 // pred_check
      _
    $region31: #{tpu_custom_call.1} parent=1 // pred_check_branch
      %67 = sbr.rel (0) target = $region33
    $region32: #{tpu_custom_call.1} parent=1 // pred_region
      _
    $region33: #{tpu_custom_call.1} parent=1 // pred_fallthru
      _
    // Predicated region
    $region34: #{tpu_custom_call.1} parent=1 // pred_check
      _
    $region35: #{tpu_custom_call.1} parent=1 // pred_check_branch
      %69 = sbr.rel (0) target = $region37
    $region36: #{tpu_custom_call.1} parent=1 // pred_region
      _
    $region37: #{tpu_custom_call.1} parent=1 // pred_fallthru
      _
    // Predicated region
    $region38: #{tpu_custom_call.1} parent=1 // pred_check
      _
    $region39: #{tpu_custom_call.1} parent=1 // pred_check_branch
      %71 = sbr.rel (0) target = $region41
    $region40: #{tpu_custom_call.1} parent=1 // pred_region
      _
    $region41: #{tpu_custom_call.1} parent=1 // pred_fallthru
      _
    // Predicated region
    $region42: #{tpu_custom_call.1} parent=1 // pred_check
      _
    $region43: #{tpu_custom_call.1} parent=1 // pred_check_branch
      %73 = sbr.rel (0) target = $region45
    $region44: #{tpu_custom_call.1} parent=1 // pred_region
      _
    $region45: #{tpu_custom_call.1} parent=1 // pred_fallthru
      _
    // Predicated region
    $region46: #{tpu_custom_call.1} parent=1 // pred_check
      _
    $region47: #{tpu_custom_call.1} parent=1 // pred_check_branch
      %75 = sbr.rel (0) target = $region49
    $region48: #{tpu_custom_call.1} parent=1 // pred_region
      _
    $region49: #{tpu_custom_call.1} parent=1 // pred_fallthru
      _
    // Predicated region
    $region50: #{tpu_custom_call.1} parent=1 // pred_check
      _
    $region51: #{tpu_custom_call.1} parent=1 // pred_check_branch
      %77 = sbr.rel (0) target = $region53
    $region52: #{tpu_custom_call.1} parent=1 // pred_region
      _
    $region53: #{tpu_custom_call.1} parent=1 // pred_fallthru
      _
    // Predicated region
    $region54: #{tpu_custom_call.1} parent=1 // pred_check
      _
    $region55: #{tpu_custom_call.1} parent=1 // pred_check_branch
      %79 = sbr.rel (0) target = $region57
    $region56: #{tpu_custom_call.1} parent=1 // pred_region
      _
    $region57: #{tpu_custom_call.1} parent=1 // pred_fallthru
      _
    // Predicated region
    $region58: #{tpu_custom_call.1} parent=1 // pred_check
      _
    $region59: #{tpu_custom_call.1} parent=1 // pred_check_branch
      %81 = sbr.rel (0) target = $region61
    $region60: #{tpu_custom_call.1} parent=1 // pred_region
      %83 = vsyncadd [#allocation6], 0
      %s84 = sshll.u32 %s14, 4
      %s85 = int_to_ptr.hbm [resolvable:$true] %s84
      %s86 = sshll.u32 [#allocation7], 4
      %s87 = int_to_ptr.vmem [resolvable:$true] %s86
      %92 = dma.hbm_to_vmem [thread:$0]  %s85, 16384, %s87, [#allocation6], 512, 512, 32
    $region61: #{tpu_custom_call.1} parent=1 // pred_fallthru
      _
    // Predicated region
    $region62: #{tpu_custom_call.1} parent=1 // pred_check
      _
    $region63: #{tpu_custom_call.1} parent=1 // pred_check_branch
      %94 = sbr.rel (0) target = $region65
    $region64: #{tpu_custom_call.1} parent=1 // pred_region
      _
    $region65: #{tpu_custom_call.1} parent=1 // pred_fallthru
      _
    // Predicated region
    $region66: #{tpu_custom_call.1} parent=1 // pred_check
      _
    $region67: #{tpu_custom_call.1} parent=1 // pred_check_branch
      %96 = sbr.rel (0) target = $region69
    $region68: #{tpu_custom_call.1} parent=1 // pred_region
      %98 = vsyncadd [#allocation9], 0
      %s99 = sshll.u32 %s16, 4
      %s100 = int_to_ptr.hbm [resolvable:$true] %s99
      %s101 = sshll.u32 [#allocation8], 4
      %s102 = int_to_ptr.vmem [resolvable:$true] %s101
      %107 = dma.hbm_to_vmem [thread:$0]  %s100, 16384, %s102, [#allocation9], 128, 128, 8
    $region69: #{tpu_custom_call.1} parent=1 // pred_fallthru
      _
    // Predicated region
    $region70: #{tpu_custom_call.1} parent=1 // pred_check
      _
    $region71: #{tpu_custom_call.1} parent=1 // pred_check_branch
      %109 = sbr.rel (0) target = $region73
    $region72: #{tpu_custom_call.1} parent=1 // pred_region
      _
    $region73: #{tpu_custom_call.1} parent=1 // pred_fallthru
      _
    // Predicated region
    $region74: #{tpu_custom_call.1} parent=1 // pred_check
      _
    $region75: #{tpu_custom_call.1} parent=1 // pred_check_branch
      %111 = sbr.rel (0) target = $region77
    $region76: #{tpu_custom_call.1} parent=1 // pred_region
      %113 = dma.done [#allocation3], 16384
    $region77: #{tpu_custom_call.1} parent=1 // pred_fallthru
      _
    // Predicated region
    $region78: #{tpu_custom_call.1} parent=1 // pred_check
      _
    $region79: #{tpu_custom_call.1} parent=1 // pred_check_branch
      %115 = sbr.rel (0) target = $region81
    $region80: #{tpu_custom_call.1} parent=1 // pred_region
      %117 = dma.done [#allocation6], 16384
    $region81: #{tpu_custom_call.1} parent=1 // pred_fallthru
      _
    // Predicated region
    $region82: #{tpu_custom_call.1} parent=1 // pred_check
      _
    $region83: #{tpu_custom_call.1} parent=1 // pred_check_branch
      %119 = sbr.rel (0) target = $region85
    $region84: #{tpu_custom_call.1} parent=1 // pred_region
      %121 = dma.done [#allocation6], 16384
    $region85: #{tpu_custom_call.1} parent=1 // pred_fallthru
      _
    // Predicated region
    $region86: #{tpu_custom_call.1} parent=1 // pred_check
      _
    $region87: #{tpu_custom_call.1} parent=1 // pred_check_branch
      %123 = sbr.rel (0) target = $region89
    $region88: #{tpu_custom_call.1} parent=1 // pred_region
      %125 = dma.done [#allocation9], 16384
    $region89: #{tpu_custom_call.1} parent=1 // pred_fallthru
      _
    %v126 = vld [vmem:[%s0] sm:$0xff]
    %v127 = vld [vmem:[%s0 + $0x8] sm:$0xff]
    %v128 = vld [vmem:[#allocation2] sm:$0xff]
    %v129 = vld [vmem:[#allocation2 + $0x8] sm:$0xff]
    %v130 = vld [vmem:[#allocation2 + $0x10] sm:$0xff]
    %v131 = vld [vmem:[#allocation2 + $0x18] sm:$0xff]
    %v132 = vld [vmem:[#allocation2 + $0x20] sm:$0xff]
    %v133 = vld [vmem:[#allocation2 + $0x28] sm:$0xff]
    %v134 = vld [vmem:[#allocation2 + $0x30] sm:$0xff]
    %v135 = vld [vmem:[#allocation2 + $0x38] sm:$0xff]
    %v136 = vld [vmem:[#allocation2 + $0x40] sm:$0xff]
    %v137 = vld [vmem:[#allocation2 + $0x48] sm:$0xff]
    %v138 = vld [vmem:[#allocation2 + $0x50] sm:$0xff]
    %v139 = vld [vmem:[#allocation2 + $0x58] sm:$0xff]
    %v140 = vld [vmem:[#allocation2 + $0x60] sm:$0xff]
    %v141 = vld [vmem:[#allocation2 + $0x68] sm:$0xff]
    %v142 = vld [vmem:[#allocation2 + $0x70] sm:$0xff]
    %v143 = vld [vmem:[#allocation2 + $0x78] sm:$0xff]
    %v144 = vld [vmem:[#allocation2 + $0x80] sm:$0xff]
    %v145 = vld [vmem:[#allocation2 + $0x88] sm:$0xff]
    %v146 = vld [vmem:[#allocation2 + $0x90] sm:$0xff]
    %v147 = vld [vmem:[#allocation2 + $0x98] sm:$0xff]
    %v148 = vld [vmem:[#allocation2 + $0xa0] sm:$0xff]
    %v149 = vld [vmem:[#allocation2 + $0xa8] sm:$0xff]
    %v150 = vld [vmem:[#allocation2 + $0xb0] sm:$0xff]
    %v151 = vld [vmem:[#allocation2 + $0xb8] sm:$0xff]
    %v152 = vld [vmem:[#allocation2 + $0xc0] sm:$0xff]
    %v153 = vld [vmem:[#allocation2 + $0xc8] sm:$0xff]
    %v154 = vld [vmem:[#allocation2 + $0xd0] sm:$0xff]
    %v155 = vld [vmem:[#allocation2 + $0xd8] sm:$0xff]
    %v156 = vld [vmem:[#allocation2 + $0xe0] sm:$0xff]
    %v157 = vld [vmem:[#allocation2 + $0xe8] sm:$0xff]
    %v158 = vld [vmem:[#allocation2 + $0xf0] sm:$0xff]
    %v159 = vld [vmem:[#allocation2 + $0xf8] sm:$0xff]
    %v160 = vld [vmem:[#allocation2 + $0x100] sm:$0xff]
    %v161 = vld [vmem:[#allocation2 + $0x108] sm:$0xff]
    %v162 = vld [vmem:[#allocation2 + $0x110] sm:$0xff]
    %v163 = vld [vmem:[#allocation2 + $0x118] sm:$0xff]
    %v164 = vld [vmem:[#allocation2 + $0x120] sm:$0xff]
    %v165 = vld [vmem:[#allocation2 + $0x128] sm:$0xff]
    %v166 = vld [vmem:[#allocation2 + $0x130] sm:$0xff]
    %v167 = vld [vmem:[#allocation2 + $0x138] sm:$0xff]
    %v168 = vld [vmem:[#allocation2 + $0x140] sm:$0xff]
    %v169 = vld [vmem:[#allocation2 + $0x148] sm:$0xff]
    %v170 = vld [vmem:[#allocation2 + $0x150] sm:$0xff]
    %v171 = vld [vmem:[#allocation2 + $0x158] sm:$0xff]
    %v172 = vld [vmem:[#allocation2 + $0x160] sm:$0xff]
    %v173 = vld [vmem:[#allocation2 + $0x168] sm:$0xff]
    %v174 = vld [vmem:[#allocation2 + $0x170] sm:$0xff]
    %v175 = vld [vmem:[#allocation2 + $0x178] sm:$0xff]
    %v176 = vld [vmem:[#allocation2 + $0x180] sm:$0xff]
    %v177 = vld [vmem:[#allocation2 + $0x188] sm:$0xff]
    %v178 = vld [vmem:[#allocation2 + $0x190] sm:$0xff]
    %v179 = vld [vmem:[#allocation2 + $0x198] sm:$0xff]
    %v180 = vld [vmem:[#allocation2 + $0x1a0] sm:$0xff]
    %v181 = vld [vmem:[#allocation2 + $0x1a8] sm:$0xff]
    %v182 = vld [vmem:[#allocation2 + $0x1b0] sm:$0xff]
    %v183 = vld [vmem:[#allocation2 + $0x1b8] sm:$0xff]
    %v184 = vld [vmem:[#allocation2 + $0x1c0] sm:$0xff]
    %v185 = vld [vmem:[#allocation2 + $0x1c8] sm:$0xff]
    %v186 = vld [vmem:[#allocation2 + $0x1d0] sm:$0xff]
    %v187 = vld [vmem:[#allocation2 + $0x1d8] sm:$0xff]
    %v188 = vld [vmem:[#allocation2 + $0x1e0] sm:$0xff]
    %v189 = vld [vmem:[#allocation2 + $0x1e8] sm:$0xff]
    %v190 = vld [vmem:[#allocation2 + $0x1f0] sm:$0xff]
    %v191 = vld [vmem:[#allocation2 + $0x1f8] sm:$0xff]
    %v192 = vld [vmem:[#allocation2 + $0x200] sm:$0xff]
    %v193 = vld [vmem:[#allocation2 + $0x208] sm:$0xff]
    %v194 = vld [vmem:[#allocation2 + $0x210] sm:$0xff]
    %v195 = vld [vmem:[#allocation2 + $0x218] sm:$0xff]
    %v196 = vld [vmem:[#allocation2 + $0x220] sm:$0xff]
    %v197 = vld [vmem:[#allocation2 + $0x228] sm:$0xff]
    %v198 = vld [vmem:[#allocation2 + $0x230] sm:$0xff]
    %v199 = vld [vmem:[#allocation2 + $0x238] sm:$0xff]
    %v200 = vld [vmem:[#allocation2 + $0x240] sm:$0xff]
    %v201 = vld [vmem:[#allocation2 + $0x248] sm:$0xff]
    %v202 = vld [vmem:[#allocation2 + $0x250] sm:$0xff]
    %v203 = vld [vmem:[#allocation2 + $0x258] sm:$0xff]
    %v204 = vld [vmem:[#allocation2 + $0x260] sm:$0xff]
    %v205 = vld [vmem:[#allocation2 + $0x268] sm:$0xff]
    %v206 = vld [vmem:[#allocation2 + $0x270] sm:$0xff]
    %v207 = vld [vmem:[#allocation2 + $0x278] sm:$0xff]
    %v208 = vld [vmem:[#allocation2 + $0x280] sm:$0xff]
    %v209 = vld [vmem:[#allocation2 + $0x288] sm:$0xff]
    %v210 = vld [vmem:[#allocation2 + $0x290] sm:$0xff]
    %v211 = vld [vmem:[#allocation2 + $0x298] sm:$0xff]
    %v212 = vld [vmem:[#allocation2 + $0x2a0] sm:$0xff]
    %v213 = vld [vmem:[#allocation2 + $0x2a8] sm:$0xff]
    %v214 = vld [vmem:[#allocation2 + $0x2b0] sm:$0xff]
    %v215 = vld [vmem:[#allocation2 + $0x2b8] sm:$0xff]
    %v216 = vld [vmem:[#allocation2 + $0x2c0] sm:$0xff]
    %v217 = vld [vmem:[#allocation2 + $0x2c8] sm:$0xff]
    %v218 = vld [vmem:[#allocation2 + $0x2d0] sm:$0xff]
    %v219 = vld [vmem:[#allocation2 + $0x2d8] sm:$0xff]
    %v220 = vld [vmem:[#allocation2 + $0x2e0] sm:$0xff]
    %v221 = vld [vmem:[#allocation2 + $0x2e8] sm:$0xff]
    %v222 = vld [vmem:[#allocation2 + $0x2f0] sm:$0xff]
    %v223 = vld [vmem:[#allocation2 + $0x2f8] sm:$0xff]
    %v224 = vld [vmem:[#allocation2 + $0x300] sm:$0xff]
    %v225 = vld [vmem:[#allocation2 + $0x308] sm:$0xff]
    %v226 = vld [vmem:[#allocation2 + $0x310] sm:$0xff]
    %v227 = vld [vmem:[#allocation2 + $0x318] sm:$0xff]
    %v228 = vld [vmem:[#allocation2 + $0x320] sm:$0xff]
    %v229 = vld [vmem:[#allocation2 + $0x328] sm:$0xff]
    %v230 = vld [vmem:[#allocation2 + $0x330] sm:$0xff]
    %v231 = vld [vmem:[#allocation2 + $0x338] sm:$0xff]
    %v232 = vld [vmem:[#allocation2 + $0x340] sm:$0xff]
    %v233 = vld [vmem:[#allocation2 + $0x348] sm:$0xff]
    %v234 = vld [vmem:[#allocation2 + $0x350] sm:$0xff]
    %v235 = vld [vmem:[#allocation2 + $0x358] sm:$0xff]
    %v236 = vld [vmem:[#allocation2 + $0x360] sm:$0xff]
    %v237 = vld [vmem:[#allocation2 + $0x368] sm:$0xff]
    %v238 = vld [vmem:[#allocation2 + $0x370] sm:$0xff]
    %v239 = vld [vmem:[#allocation2 + $0x378] sm:$0xff]
    %v240 = vld [vmem:[#allocation2 + $0x380] sm:$0xff]
    %v241 = vld [vmem:[#allocation2 + $0x388] sm:$0xff]
    %v242 = vld [vmem:[#allocation2 + $0x390] sm:$0xff]
    %v243 = vld [vmem:[#allocation2 + $0x398] sm:$0xff]
    %v244 = vld [vmem:[#allocation2 + $0x3a0] sm:$0xff]
    %v245 = vld [vmem:[#allocation2 + $0x3a8] sm:$0xff]
    %v246 = vld [vmem:[#allocation2 + $0x3b0] sm:$0xff]
    %v247 = vld [vmem:[#allocation2 + $0x3b8] sm:$0xff]
    %v248 = vld [vmem:[#allocation2 + $0x3c0] sm:$0xff]
    %v249 = vld [vmem:[#allocation2 + $0x3c8] sm:$0xff]
    %v250 = vld [vmem:[#allocation2 + $0x3d0] sm:$0xff]
    %v251 = vld [vmem:[#allocation2 + $0x3d8] sm:$0xff]
    %v252 = vld [vmem:[#allocation2 + $0x3e0] sm:$0xff]
    %v253 = vld [vmem:[#allocation2 + $0x3e8] sm:$0xff]
    %v254 = vld [vmem:[#allocation2 + $0x3f0] sm:$0xff]
    %v255 = vld [vmem:[#allocation2 + $0x3f8] sm:$0xff]
    %v256 = vpack.c.bf16 %v126, %v126
    %v257 = vpack.c.bf16 %v127, %v127
    %v258 = vld [vmem:[%s3] sm:$0xff]
    %v260 = vperm.slane %v258, 0
    %v261 = vperm.slane %v258, 1
    %v262 = vperm.slane %v258, 2
    %v263 = vperm.slane %v258, 3
    %v264 = vperm.slane %v258, 4
    %v265 = vperm.slane %v258, 5
    %v266 = vperm.slane %v258, 6
    %v267 = vperm.slane %v258, 7
    %v404 = vunpack.c.l.b16 %v128
    %v405 = vunpack.c.h.b16 %v128
    %v406 = vunpack.c.l.b16 %v129
    %v407 = vunpack.c.h.b16 %v129
    %v408 = vunpack.c.l.b16 %v130
    %v409 = vunpack.c.h.b16 %v130
    %v410 = vunpack.c.l.b16 %v131
    %v411 = vunpack.c.h.b16 %v131
    %v412 = vunpack.c.l.b16 %v132
    %v413 = vunpack.c.h.b16 %v132
    %v414 = vunpack.c.l.b16 %v133
    %v415 = vunpack.c.h.b16 %v133
    %v416 = vunpack.c.l.b16 %v134
    %v417 = vunpack.c.h.b16 %v134
    %v418 = vunpack.c.l.b16 %v135
    %v419 = vunpack.c.h.b16 %v135
    %v420 = vunpack.c.l.b16 %v136
    %v421 = vunpack.c.h.b16 %v136
    %v422 = vunpack.c.l.b16 %v137
    %v423 = vunpack.c.h.b16 %v137
    %v424 = vunpack.c.l.b16 %v138
    %v425 = vunpack.c.h.b16 %v138
    %v426 = vunpack.c.l.b16 %v139
    %v427 = vunpack.c.h.b16 %v139
    %v428 = vunpack.c.l.b16 %v140
    %v429 = vunpack.c.h.b16 %v140
    %v430 = vunpack.c.l.b16 %v141
    %v431 = vunpack.c.h.b16 %v141
    %v432 = vunpack.c.l.b16 %v142
    %v433 = vunpack.c.h.b16 %v142
    %v434 = vunpack.c.l.b16 %v143
    %v435 = vunpack.c.h.b16 %v143
    %v436 = vunpack.c.l.b16 %v144
    %v437 = vunpack.c.h.b16 %v144
    %v438 = vunpack.c.l.b16 %v145
    %v439 = vunpack.c.h.b16 %v145
    %v440 = vunpack.c.l.b16 %v146
    %v441 = vunpack.c.h.b16 %v146
    %v442 = vunpack.c.l.b16 %v147
    %v443 = vunpack.c.h.b16 %v147
    %v444 = vunpack.c.l.b16 %v148
    %v445 = vunpack.c.h.b16 %v148
    %v446 = vunpack.c.l.b16 %v149
    %v447 = vunpack.c.h.b16 %v149
    %v448 = vunpack.c.l.b16 %v150
    %v449 = vunpack.c.h.b16 %v150
    %v450 = vunpack.c.l.b16 %v151
    %v451 = vunpack.c.h.b16 %v151
    %v452 = vunpack.c.l.b16 %v152
    %v453 = vunpack.c.h.b16 %v152
    %v454 = vunpack.c.l.b16 %v153
    %v455 = vunpack.c.h.b16 %v153
    %v456 = vunpack.c.l.b16 %v154
    %v457 = vunpack.c.h.b16 %v154
    %v458 = vunpack.c.l.b16 %v155
    %v459 = vunpack.c.h.b16 %v155
    %v460 = vunpack.c.l.b16 %v156
    %v461 = vunpack.c.h.b16 %v156
    %v462 = vunpack.c.l.b16 %v157
    %v463 = vunpack.c.h.b16 %v157
    %v464 = vunpack.c.l.b16 %v158
    %v465 = vunpack.c.h.b16 %v158
    %v466 = vunpack.c.l.b16 %v159
    %v467 = vunpack.c.h.b16 %v159
    %v468 = vunpack.c.l.b16 %v160
    %v469 = vunpack.c.h.b16 %v160
    %v470 = vunpack.c.l.b16 %v161
    %v471 = vunpack.c.h.b16 %v161
    %v472 = vunpack.c.l.b16 %v162
    %v473 = vunpack.c.h.b16 %v162
    %v474 = vunpack.c.l.b16 %v163
    %v475 = vunpack.c.h.b16 %v163
    %v476 = vunpack.c.l.b16 %v164
    %v477 = vunpack.c.h.b16 %v164
    %v478 = vunpack.c.l.b16 %v165
    %v479 = vunpack.c.h.b16 %v165
    %v480 = vunpack.c.l.b16 %v166
    %v481 = vunpack.c.h.b16 %v166
    %v482 = vunpack.c.l.b16 %v167
    %v483 = vunpack.c.h.b16 %v167
    %v484 = vunpack.c.l.b16 %v168
    %v485 = vunpack.c.h.b16 %v168
    %v486 = vunpack.c.l.b16 %v169
    %v487 = vunpack.c.h.b16 %v169
    %v488 = vunpack.c.l.b16 %v170
    %v489 = vunpack.c.h.b16 %v170
    %v490 = vunpack.c.l.b16 %v171
    %v491 = vunpack.c.h.b16 %v171
    %v492 = vunpack.c.l.b16 %v172
    %v493 = vunpack.c.h.b16 %v172
    %v494 = vunpack.c.l.b16 %v173
    %v495 = vunpack.c.h.b16 %v173
    %v496 = vunpack.c.l.b16 %v174
    %v497 = vunpack.c.h.b16 %v174
    %v498 = vunpack.c.l.b16 %v175
    %v499 = vunpack.c.h.b16 %v175
    %v500 = vunpack.c.l.b16 %v176
    %v501 = vunpack.c.h.b16 %v176
    %v502 = vunpack.c.l.b16 %v177
    %v503 = vunpack.c.h.b16 %v177
    %v504 = vunpack.c.l.b16 %v178
    %v505 = vunpack.c.h.b16 %v178
    %v506 = vunpack.c.l.b16 %v179
    %v507 = vunpack.c.h.b16 %v179
    %v508 = vunpack.c.l.b16 %v180
    %v509 = vunpack.c.h.b16 %v180
    %v510 = vunpack.c.l.b16 %v181
    %v511 = vunpack.c.h.b16 %v181
    %v512 = vunpack.c.l.b16 %v182
    %v513 = vunpack.c.h.b16 %v182
    %v514 = vunpack.c.l.b16 %v183
    %v515 = vunpack.c.h.b16 %v183
    %v516 = vunpack.c.l.b16 %v184
    %v517 = vunpack.c.h.b16 %v184
    %v518 = vunpack.c.l.b16 %v185
    %v519 = vunpack.c.h.b16 %v185
    %v520 = vunpack.c.l.b16 %v186
    %v521 = vunpack.c.h.b16 %v186
    %v522 = vunpack.c.l.b16 %v187
    %v523 = vunpack.c.h.b16 %v187
    %v524 = vunpack.c.l.b16 %v188
    %v525 = vunpack.c.h.b16 %v188
    %v526 = vunpack.c.l.b16 %v189
    %v527 = vunpack.c.h.b16 %v189
    %v528 = vunpack.c.l.b16 %v190
    %v529 = vunpack.c.h.b16 %v190
    %v530 = vunpack.c.l.b16 %v191
    %v531 = vunpack.c.h.b16 %v191
    %v532 = vunpack.c.l.b16 %v192
    %v533 = vunpack.c.h.b16 %v192
    %v534 = vunpack.c.l.b16 %v193
    %v535 = vunpack.c.h.b16 %v193
    %v536 = vunpack.c.l.b16 %v194
    %v537 = vunpack.c.h.b16 %v194
    %v538 = vunpack.c.l.b16 %v195
    %v539 = vunpack.c.h.b16 %v195
    %v540 = vunpack.c.l.b16 %v196
    %v541 = vunpack.c.h.b16 %v196
    %v542 = vunpack.c.l.b16 %v197
    %v543 = vunpack.c.h.b16 %v197
    %v544 = vunpack.c.l.b16 %v198
    %v545 = vunpack.c.h.b16 %v198
    %v546 = vunpack.c.l.b16 %v199
    %v547 = vunpack.c.h.b16 %v199
    %v548 = vunpack.c.l.b16 %v200
    %v549 = vunpack.c.h.b16 %v200
    %v550 = vunpack.c.l.b16 %v201
    %v551 = vunpack.c.h.b16 %v201
    %v552 = vunpack.c.l.b16 %v202
    %v553 = vunpack.c.h.b16 %v202
    %v554 = vunpack.c.l.b16 %v203
    %v555 = vunpack.c.h.b16 %v203
    %v556 = vunpack.c.l.b16 %v204
    %v557 = vunpack.c.h.b16 %v204
    %v558 = vunpack.c.l.b16 %v205
    %v559 = vunpack.c.h.b16 %v205
    %v560 = vunpack.c.l.b16 %v206
    %v561 = vunpack.c.h.b16 %v206
    %v562 = vunpack.c.l.b16 %v207
    %v563 = vunpack.c.h.b16 %v207
    %v564 = vunpack.c.l.b16 %v208
    %v565 = vunpack.c.h.b16 %v208
    %v566 = vunpack.c.l.b16 %v209
    %v567 = vunpack.c.h.b16 %v209
    %v568 = vunpack.c.l.b16 %v210
    %v569 = vunpack.c.h.b16 %v210
    %v570 = vunpack.c.l.b16 %v211
    %v571 = vunpack.c.h.b16 %v211
    %v572 = vunpack.c.l.b16 %v212
    %v573 = vunpack.c.h.b16 %v212
    %v574 = vunpack.c.l.b16 %v213
    %v575 = vunpack.c.h.b16 %v213
    %v576 = vunpack.c.l.b16 %v214
    %v577 = vunpack.c.h.b16 %v214
    %v578 = vunpack.c.l.b16 %v215
    %v579 = vunpack.c.h.b16 %v215
    %v580 = vunpack.c.l.b16 %v216
    %v581 = vunpack.c.h.b16 %v216
    %v582 = vunpack.c.l.b16 %v217
    %v583 = vunpack.c.h.b16 %v217
    %v584 = vunpack.c.l.b16 %v218
    %v585 = vunpack.c.h.b16 %v218
    %v586 = vunpack.c.l.b16 %v219
    %v587 = vunpack.c.h.b16 %v219
    %v588 = vunpack.c.l.b16 %v220
    %v589 = vunpack.c.h.b16 %v220
    %v590 = vunpack.c.l.b16 %v221
    %v591 = vunpack.c.h.b16 %v221
    %v592 = vunpack.c.l.b16 %v222
    %v593 = vunpack.c.h.b16 %v222
    %v594 = vunpack.c.l.b16 %v223
    %v595 = vunpack.c.h.b16 %v223
    %v596 = vunpack.c.l.b16 %v224
    %v597 = vunpack.c.h.b16 %v224
    %v598 = vunpack.c.l.b16 %v225
    %v599 = vunpack.c.h.b16 %v225
    %v600 = vunpack.c.l.b16 %v226
    %v601 = vunpack.c.h.b16 %v226
    %v602 = vunpack.c.l.b16 %v227
    %v603 = vunpack.c.h.b16 %v227
    %v604 = vunpack.c.l.b16 %v228
    %v605 = vunpack.c.h.b16 %v228
    %v606 = vunpack.c.l.b16 %v229
    %v607 = vunpack.c.h.b16 %v229
    %v608 = vunpack.c.l.b16 %v230
    %v609 = vunpack.c.h.b16 %v230
    %v610 = vunpack.c.l.b16 %v231
    %v611 = vunpack.c.h.b16 %v231
    %v612 = vunpack.c.l.b16 %v232
    %v613 = vunpack.c.h.b16 %v232
    %v614 = vunpack.c.l.b16 %v233
    %v615 = vunpack.c.h.b16 %v233
    %v616 = vunpack.c.l.b16 %v234
    %v617 = vunpack.c.h.b16 %v234
    %v618 = vunpack.c.l.b16 %v235
    %v619 = vunpack.c.h.b16 %v235
    %v620 = vunpack.c.l.b16 %v236
    %v621 = vunpack.c.h.b16 %v236
    %v622 = vunpack.c.l.b16 %v237
    %v623 = vunpack.c.h.b16 %v237
    %v624 = vunpack.c.l.b16 %v238
    %v625 = vunpack.c.h.b16 %v238
    %v626 = vunpack.c.l.b16 %v239
    %v627 = vunpack.c.h.b16 %v239
    %v628 = vunpack.c.l.b16 %v240
    %v629 = vunpack.c.h.b16 %v240
    %v630 = vunpack.c.l.b16 %v241
    %v631 = vunpack.c.h.b16 %v241
    %v632 = vunpack.c.l.b16 %v242
    %v633 = vunpack.c.h.b16 %v242
    %v634 = vunpack.c.l.b16 %v243
    %v635 = vunpack.c.h.b16 %v243
    %v636 = vunpack.c.l.b16 %v244
    %v637 = vunpack.c.h.b16 %v244
    %v638 = vunpack.c.l.b16 %v245
    %v639 = vunpack.c.h.b16 %v245
    %v640 = vunpack.c.l.b16 %v246
    %v641 = vunpack.c.h.b16 %v246
    %v642 = vunpack.c.l.b16 %v247
    %v643 = vunpack.c.h.b16 %v247
    %v644 = vunpack.c.l.b16 %v248
    %v645 = vunpack.c.h.b16 %v248
    %v646 = vunpack.c.l.b16 %v249
    %v647 = vunpack.c.h.b16 %v249
    %v648 = vunpack.c.l.b16 %v250
    %v649 = vunpack.c.h.b16 %v250
    %v650 = vunpack.c.l.b16 %v251
    %v651 = vunpack.c.h.b16 %v251
    %v652 = vunpack.c.l.b16 %v252
    %v653 = vunpack.c.h.b16 %v252
    %v654 = vunpack.c.l.b16 %v253
    %v655 = vunpack.c.h.b16 %v253
    %v656 = vunpack.c.l.b16 %v254
    %v657 = vunpack.c.h.b16 %v254
    %v658 = vunpack.c.l.b16 %v255
    %v659 = vunpack.c.h.b16 %v255
    %v660 = vpack.c.b16 %v412, %v404
    %v661 = vpack.c.b16 %v413, %v405
    %v662 = vpack.c.b16 %v414, %v406
    %v663 = vpack.c.b16 %v415, %v407
    %v664 = vpack.c.b16 %v416, %v408
    %v665 = vpack.c.b16 %v417, %v409
    %v666 = vpack.c.b16 %v418, %v410
    %v667 = vpack.c.b16 %v419, %v411
    %v668 = vpack.c.b16 %v428, %v420
    %v669 = vpack.c.b16 %v429, %v421
    %v670 = vpack.c.b16 %v430, %v422
    %v671 = vpack.c.b16 %v431, %v423
    %v672 = vpack.c.b16 %v432, %v424
    %v673 = vpack.c.b16 %v433, %v425
    %v674 = vpack.c.b16 %v434, %v426
    %v675 = vpack.c.b16 %v435, %v427
    %v676 = vpack.c.b16 %v444, %v436
    %v677 = vpack.c.b16 %v445, %v437
    %v678 = vpack.c.b16 %v446, %v438
    %v679 = vpack.c.b16 %v447, %v439
    %v680 = vpack.c.b16 %v448, %v440
    %v681 = vpack.c.b16 %v449, %v441
    %v682 = vpack.c.b16 %v450, %v442
    %v683 = vpack.c.b16 %v451, %v443
    %v684 = vpack.c.b16 %v460, %v452
    %v685 = vpack.c.b16 %v461, %v453
    %v686 = vpack.c.b16 %v462, %v454
    %v687 = vpack.c.b16 %v463, %v455
    %v688 = vpack.c.b16 %v464, %v456
    %v689 = vpack.c.b16 %v465, %v457
    %v690 = vpack.c.b16 %v466, %v458
    %v691 = vpack.c.b16 %v467, %v459
    %v692 = vpack.c.b16 %v476, %v468
    %v693 = vpack.c.b16 %v477, %v469
    %v694 = vpack.c.b16 %v478, %v470
    %v695 = vpack.c.b16 %v479, %v471
    %v696 = vpack.c.b16 %v480, %v472
    %v697 = vpack.c.b16 %v481, %v473
    %v698 = vpack.c.b16 %v482, %v474
    %v699 = vpack.c.b16 %v483, %v475
    %v700 = vpack.c.b16 %v492, %v484
    %v701 = vpack.c.b16 %v493, %v485
    %v702 = vpack.c.b16 %v494, %v486
    %v703 = vpack.c.b16 %v495, %v487
    %v704 = vpack.c.b16 %v496, %v488
    %v705 = vpack.c.b16 %v497, %v489
    %v706 = vpack.c.b16 %v498, %v490
    %v707 = vpack.c.b16 %v499, %v491
    %v708 = vpack.c.b16 %v508, %v500
    %v709 = vpack.c.b16 %v509, %v501
    %v710 = vpack.c.b16 %v510, %v502
    %v711 = vpack.c.b16 %v511, %v503
    %v712 = vpack.c.b16 %v512, %v504
    %v713 = vpack.c.b16 %v513, %v505
    %v714 = vpack.c.b16 %v514, %v506
    %v715 = vpack.c.b16 %v515, %v507
    %v716 = vpack.c.b16 %v524, %v516
    %v717 = vpack.c.b16 %v525, %v517
    %v718 = vpack.c.b16 %v526, %v518
    %v719 = vpack.c.b16 %v527, %v519
    %v720 = vpack.c.b16 %v528, %v520
    %v721 = vpack.c.b16 %v529, %v521
    %v722 = vpack.c.b16 %v530, %v522
    %v723 = vpack.c.b16 %v531, %v523
    %v724 = vpack.c.b16 %v540, %v532
    %v725 = vpack.c.b16 %v541, %v533
    %v726 = vpack.c.b16 %v542, %v534
    %v727 = vpack.c.b16 %v543, %v535
    %v728 = vpack.c.b16 %v544, %v536
    %v729 = vpack.c.b16 %v545, %v537
    %v730 = vpack.c.b16 %v546, %v538
    %v731 = vpack.c.b16 %v547, %v539
    %v732 = vpack.c.b16 %v556, %v548
    %v733 = vpack.c.b16 %v557, %v549
    %v734 = vpack.c.b16 %v558, %v550
    %v735 = vpack.c.b16 %v559, %v551
    %v736 = vpack.c.b16 %v560, %v552
    %v737 = vpack.c.b16 %v561, %v553
    %v738 = vpack.c.b16 %v562, %v554
    %v739 = vpack.c.b16 %v563, %v555
    %v740 = vpack.c.b16 %v572, %v564
    %v741 = vpack.c.b16 %v573, %v565
    %v742 = vpack.c.b16 %v574, %v566
    %v743 = vpack.c.b16 %v575, %v567
    %v744 = vpack.c.b16 %v576, %v568
    %v745 = vpack.c.b16 %v577, %v569
    %v746 = vpack.c.b16 %v578, %v570
    %v747 = vpack.c.b16 %v579, %v571
    %v748 = vpack.c.b16 %v588, %v580
    %v749 = vpack.c.b16 %v589, %v581
    %v750 = vpack.c.b16 %v590, %v582
    %v751 = vpack.c.b16 %v591, %v583
    %v752 = vpack.c.b16 %v592, %v584
    %v753 = vpack.c.b16 %v593, %v585
    %v754 = vpack.c.b16 %v594, %v586
    %v755 = vpack.c.b16 %v595, %v587
    %v756 = vpack.c.b16 %v604, %v596
    %v757 = vpack.c.b16 %v605, %v597
    %v758 = vpack.c.b16 %v606, %v598
    %v759 = vpack.c.b16 %v607, %v599
    %v760 = vpack.c.b16 %v608, %v600
    %v761 = vpack.c.b16 %v609, %v601
    %v762 = vpack.c.b16 %v610, %v602
    %v763 = vpack.c.b16 %v611, %v603
    %v764 = vpack.c.b16 %v620, %v612
    %v765 = vpack.c.b16 %v621, %v613
    %v766 = vpack.c.b16 %v622, %v614
    %v767 = vpack.c.b16 %v623, %v615
    %v768 = vpack.c.b16 %v624, %v616
    %v769 = vpack.c.b16 %v625, %v617
    %v770 = vpack.c.b16 %v626, %v618
    %v771 = vpack.c.b16 %v627, %v619
    %v772 = vpack.c.b16 %v636, %v628
    %v773 = vpack.c.b16 %v637, %v629
    %v774 = vpack.c.b16 %v638, %v630
    %v775 = vpack.c.b16 %v639, %v631
    %v776 = vpack.c.b16 %v640, %v632
    %v777 = vpack.c.b16 %v641, %v633
    %v778 = vpack.c.b16 %v642, %v634
    %v779 = vpack.c.b16 %v643, %v635
    %v780 = vpack.c.b16 %v652, %v644
    %v781 = vpack.c.b16 %v653, %v645
    %v782 = vpack.c.b16 %v654, %v646
    %v783 = vpack.c.b16 %v655, %v647
    %v784 = vpack.c.b16 %v656, %v648
    %v785 = vpack.c.b16 %v657, %v649
    %v786 = vpack.c.b16 %v658, %v650
    %v787 = vpack.c.b16 %v659, %v651
    %916 = vmatpush.bf16.msra.mxu0 %v716
    %917 = vmatpush.bf16.msra.mxu0 %v708
    %918 = vmatpush.bf16.msra.mxu0 %v700
    %919 = vmatpush.bf16.msra.mxu0 %v692
    %920 = vmatpush.bf16.msra.mxu0 %v684
    %921 = vmatpush.bf16.msra.mxu0 %v676
    %922 = vmatpush.bf16.msra.mxu0 %v668
    %923 = vmatpush.bf16.msra.mxu0 %v660
    %924 = vmatmul.bf16.gmra.mxu0 %v256
    %v925 = vpop.f32.mrf.mxu0
    %v926 = vadd.f32 %v260, %v925
    %v927 = vpop.f32.mrf.mxu0
    %928 = vdwg.mxu0
    %929 = vmatpush.bf16.msra.mxu0 %v780
    %930 = vmatpush.bf16.msra.mxu0 %v772
    %931 = vmatpush.bf16.msra.mxu0 %v764
    %932 = vmatpush.bf16.msra.mxu0 %v756
    %933 = vmatpush.bf16.msra.mxu0 %v748
    %934 = vmatpush.bf16.msra.mxu0 %v740
    %935 = vmatpush.bf16.msra.mxu0 %v732
    %936 = vmatpush.bf16.msra.mxu0 %v724
    %937 = vmatmul.bf16.gmra.mxu0 %v257
    %v938 = vpop.f32.mrf.mxu0
    %v939 = vadd.f32 %v926, %v938
    %v940 = vpop.f32.mrf.mxu0
    %941 = vdwg.mxu0
    %942 = vmatpush.bf16.msra.mxu0 %v717
    %943 = vmatpush.bf16.msra.mxu0 %v709
    %944 = vmatpush.bf16.msra.mxu0 %v701
    %945 = vmatpush.bf16.msra.mxu0 %v693
    %946 = vmatpush.bf16.msra.mxu0 %v685
    %947 = vmatpush.bf16.msra.mxu0 %v677
    %948 = vmatpush.bf16.msra.mxu0 %v669
    %949 = vmatpush.bf16.msra.mxu0 %v661
    %950 = vmatmul.bf16.gmra.mxu0 %v256
    %v951 = vpop.f32.mrf.mxu0
    %v952 = vadd.f32 %v261, %v951
    %v953 = vpop.f32.mrf.mxu0
    %954 = vdwg.mxu0
    %955 = vmatpush.bf16.msra.mxu0 %v781
    %956 = vmatpush.bf16.msra.mxu0 %v773
    %957 = vmatpush.bf16.msra.mxu0 %v765
    %958 = vmatpush.bf16.msra.mxu0 %v757
    %959 = vmatpush.bf16.msra.mxu0 %v749
    %960 = vmatpush.bf16.msra.mxu0 %v741
    %961 = vmatpush.bf16.msra.mxu0 %v733
    %962 = vmatpush.bf16.msra.mxu0 %v725
    %963 = vmatmul.bf16.gmra.mxu0 %v257
    %v964 = vpop.f32.mrf.mxu0
    %v965 = vadd.f32 %v952, %v964
    %v966 = vpop.f32.mrf.mxu0
    %967 = vdwg.mxu0
    %968 = vmatpush.bf16.msra.mxu0 %v718
    %969 = vmatpush.bf16.msra.mxu0 %v710
    %970 = vmatpush.bf16.msra.mxu0 %v702
    %971 = vmatpush.bf16.msra.mxu0 %v694
    %972 = vmatpush.bf16.msra.mxu0 %v686
    %973 = vmatpush.bf16.msra.mxu0 %v678
    %974 = vmatpush.bf16.msra.mxu0 %v670
    %975 = vmatpush.bf16.msra.mxu0 %v662
    %976 = vmatmul.bf16.gmra.mxu0 %v256
    %v977 = vpop.f32.mrf.mxu0
    %v978 = vadd.f32 %v262, %v977
    %v979 = vpop.f32.mrf.mxu0
    %980 = vdwg.mxu0
    %981 = vmatpush.bf16.msra.mxu0 %v782
    %982 = vmatpush.bf16.msra.mxu0 %v774
    %983 = vmatpush.bf16.msra.mxu0 %v766
    %984 = vmatpush.bf16.msra.mxu0 %v758
    %985 = vmatpush.bf16.msra.mxu0 %v750
    %986 = vmatpush.bf16.msra.mxu0 %v742
    %987 = vmatpush.bf16.msra.mxu0 %v734
    %988 = vmatpush.bf16.msra.mxu0 %v726
    %989 = vmatmul.bf16.gmra.mxu0 %v257
    %v990 = vpop.f32.mrf.mxu0
    %v991 = vadd.f32 %v978, %v990
    %v992 = vpop.f32.mrf.mxu0
    %993 = vdwg.mxu0
    %994 = vmatpush.bf16.msra.mxu0 %v719
    %995 = vmatpush.bf16.msra.mxu0 %v711
    %996 = vmatpush.bf16.msra.mxu0 %v703
    %997 = vmatpush.bf16.msra.mxu0 %v695
    %998 = vmatpush.bf16.msra.mxu0 %v687
    %999 = vmatpush.bf16.msra.mxu0 %v679
    %1000 = vmatpush.bf16.msra.mxu0 %v671
    %1001 = vmatpush.bf16.msra.mxu0 %v663
    %1002 = vmatmul.bf16.gmra.mxu0 %v256
    %v1003 = vpop.f32.mrf.mxu0
    %v1004 = vadd.f32 %v263, %v1003
    %v1005 = vpop.f32.mrf.mxu0
    %1006 = vdwg.mxu0
    %1007 = vmatpush.bf16.msra.mxu0 %v783
    %1008 = vmatpush.bf16.msra.mxu0 %v775
    %1009 = vmatpush.bf16.msra.mxu0 %v767
    %1010 = vmatpush.bf16.msra.mxu0 %v759
    %1011 = vmatpush.bf16.msra.mxu0 %v751
    %1012 = vmatpush.bf16.msra.mxu0 %v743
    %1013 = vmatpush.bf16.msra.mxu0 %v735
    %1014 = vmatpush.bf16.msra.mxu0 %v727
    %1015 = vmatmul.bf16.gmra.mxu0 %v257
    %v1016 = vpop.f32.mrf.mxu0
    %v1017 = vadd.f32 %v1004, %v1016
    %v1018 = vpop.f32.mrf.mxu0
    %1019 = vdwg.mxu0
    %1020 = vmatpush.bf16.msra.mxu0 %v720
    %1021 = vmatpush.bf16.msra.mxu0 %v712
    %1022 = vmatpush.bf16.msra.mxu0 %v704
    %1023 = vmatpush.bf16.msra.mxu0 %v696
    %1024 = vmatpush.bf16.msra.mxu0 %v688
    %1025 = vmatpush.bf16.msra.mxu0 %v680
    %1026 = vmatpush.bf16.msra.mxu0 %v672
    %1027 = vmatpush.bf16.msra.mxu0 %v664
    %1028 = vmatmul.bf16.gmra.mxu0 %v256
    %v1029 = vpop.f32.mrf.mxu0
    %v1030 = vadd.f32 %v264, %v1029
    %v1031 = vpop.f32.mrf.mxu0
    %1032 = vdwg.mxu0
    %1033 = vmatpush.bf16.msra.mxu0 %v784
    %1034 = vmatpush.bf16.msra.mxu0 %v776
    %1035 = vmatpush.bf16.msra.mxu0 %v768
    %1036 = vmatpush.bf16.msra.mxu0 %v760
    %1037 = vmatpush.bf16.msra.mxu0 %v752
    %1038 = vmatpush.bf16.msra.mxu0 %v744
    %1039 = vmatpush.bf16.msra.mxu0 %v736
    %1040 = vmatpush.bf16.msra.mxu0 %v728
    %1041 = vmatmul.bf16.gmra.mxu0 %v257
    %v1042 = vpop.f32.mrf.mxu0
    %v1043 = vadd.f32 %v1030, %v1042
    %v1044 = vpop.f32.mrf.mxu0
    %1045 = vdwg.mxu0
    %1046 = vmatpush.bf16.msra.mxu0 %v721
    %1047 = vmatpush.bf16.msra.mxu0 %v713
    %1048 = vmatpush.bf16.msra.mxu0 %v705
    %1049 = vmatpush.bf16.msra.mxu0 %v697
    %1050 = vmatpush.bf16.msra.mxu0 %v689
    %1051 = vmatpush.bf16.msra.mxu0 %v681
    %1052 = vmatpush.bf16.msra.mxu0 %v673
    %1053 = vmatpush.bf16.msra.mxu0 %v665
    %1054 = vmatmul.bf16.gmra.mxu0 %v256
    %v1055 = vpop.f32.mrf.mxu0
    %v1056 = vadd.f32 %v265, %v1055
    %v1057 = vpop.f32.mrf.mxu0
    %1058 = vdwg.mxu0
    %1059 = vmatpush.bf16.msra.mxu0 %v785
    %1060 = vmatpush.bf16.msra.mxu0 %v777
    %1061 = vmatpush.bf16.msra.mxu0 %v769
    %1062 = vmatpush.bf16.msra.mxu0 %v761
    %1063 = vmatpush.bf16.msra.mxu0 %v753
    %1064 = vmatpush.bf16.msra.mxu0 %v745
    %1065 = vmatpush.bf16.msra.mxu0 %v737
    %1066 = vmatpush.bf16.msra.mxu0 %v729
    %1067 = vmatmul.bf16.gmra.mxu0 %v257
    %v1068 = vpop.f32.mrf.mxu0
    %v1069 = vadd.f32 %v1056, %v1068
    %v1070 = vpop.f32.mrf.mxu0
    %1071 = vdwg.mxu0
    %1072 = vmatpush.bf16.msra.mxu0 %v722
    %1073 = vmatpush.bf16.msra.mxu0 %v714
    %1074 = vmatpush.bf16.msra.mxu0 %v706
    %1075 = vmatpush.bf16.msra.mxu0 %v698
    %1076 = vmatpush.bf16.msra.mxu0 %v690
    %1077 = vmatpush.bf16.msra.mxu0 %v682
    %1078 = vmatpush.bf16.msra.mxu0 %v674
    %1079 = vmatpush.bf16.msra.mxu0 %v666
    %1080 = vmatmul.bf16.gmra.mxu0 %v256
    %v1081 = vpop.f32.mrf.mxu0
    %v1082 = vadd.f32 %v266, %v1081
    %v1083 = vpop.f32.mrf.mxu0
    %1084 = vdwg.mxu0
    %1085 = vmatpush.bf16.msra.mxu0 %v786
    %1086 = vmatpush.bf16.msra.mxu0 %v778
    %1087 = vmatpush.bf16.msra.mxu0 %v770
    %1088 = vmatpush.bf16.msra.mxu0 %v762
    %1089 = vmatpush.bf16.msra.mxu0 %v754
    %1090 = vmatpush.bf16.msra.mxu0 %v746
    %1091 = vmatpush.bf16.msra.mxu0 %v738
    %1092 = vmatpush.bf16.msra.mxu0 %v730
    %1093 = vmatmul.bf16.gmra.mxu0 %v257
    %v1094 = vpop.f32.mrf.mxu0
    %v1095 = vadd.f32 %v1082, %v1094
    %v1096 = vpop.f32.mrf.mxu0
    %1097 = vdwg.mxu0
    %1098 = vmatpush.bf16.msra.mxu0 %v723
    %1099 = vmatpush.bf16.msra.mxu0 %v715
    %1100 = vmatpush.bf16.msra.mxu0 %v707
    %1101 = vmatpush.bf16.msra.mxu0 %v699
    %1102 = vmatpush.bf16.msra.mxu0 %v691
    %1103 = vmatpush.bf16.msra.mxu0 %v683
    %1104 = vmatpush.bf16.msra.mxu0 %v675
    %1105 = vmatpush.bf16.msra.mxu0 %v667
    %1106 = vmatmul.bf16.gmra.mxu0 %v256
    %v1107 = vpop.f32.mrf.mxu0
    %v1108 = vadd.f32 %v267, %v1107
    %v1109 = vpop.f32.mrf.mxu0
    %1110 = vdwg.mxu0
    %1111 = vmatpush.bf16.msra.mxu0 %v787
    %1112 = vmatpush.bf16.msra.mxu0 %v779
    %1113 = vmatpush.bf16.msra.mxu0 %v771
    %1114 = vmatpush.bf16.msra.mxu0 %v763
    %1115 = vmatpush.bf16.msra.mxu0 %v755
    %1116 = vmatpush.bf16.msra.mxu0 %v747
    %1117 = vmatpush.bf16.msra.mxu0 %v739
    %1118 = vmatpush.bf16.msra.mxu0 %v731
    %1119 = vmatmul.bf16.gmra.mxu0 %v257
    %v1120 = vpop.f32.mrf.mxu0
    %v1121 = vadd.f32 %v1108, %v1120
    %v1122 = vpop.f32.mrf.mxu0
    %1123 = vdwg.mxu0
    %v1124 = vmax.f32 %v939, 0.0
    %v1125 = vmax.f32 %v965, 0.0
    %v1126 = vmax.f32 %v991, 0.0
    %v1127 = vmax.f32 %v1017, 0.0
    %v1128 = vmax.f32 %v1043, 0.0
    %v1129 = vmax.f32 %v1069, 0.0
    %v1130 = vmax.f32 %v1095, 0.0
    %v1131 = vmax.f32 %v1121, 0.0
    %v1132 = vld [vmem:[#allocation5] sm:$0xff]
    %v1133 = vld [vmem:[#allocation5 + $0x8] sm:$0xff]
    %v1134 = vld [vmem:[#allocation5 + $0x10] sm:$0xff]
    %v1135 = vld [vmem:[#allocation5 + $0x18] sm:$0xff]
    %v1136 = vld [vmem:[#allocation5 + $0x20] sm:$0xff]
    %v1137 = vld [vmem:[#allocation5 + $0x28] sm:$0xff]
    %v1138 = vld [vmem:[#allocation5 + $0x30] sm:$0xff]
    %v1139 = vld [vmem:[#allocation5 + $0x38] sm:$0xff]
    %v1140 = vld [vmem:[#allocation5 + $0x40] sm:$0xff]
    %v1141 = vld [vmem:[#allocation5 + $0x48] sm:$0xff]
    %v1142 = vld [vmem:[#allocation5 + $0x50] sm:$0xff]
    %v1143 = vld [vmem:[#allocation5 + $0x58] sm:$0xff]
    %v1144 = vld [vmem:[#allocation5 + $0x60] sm:$0xff]
    %v1145 = vld [vmem:[#allocation5 + $0x68] sm:$0xff]
    %v1146 = vld [vmem:[#allocation5 + $0x70] sm:$0xff]
    %v1147 = vld [vmem:[#allocation5 + $0x78] sm:$0xff]
    %v1148 = vld [vmem:[#allocation5 + $0x80] sm:$0xff]
    %v1149 = vld [vmem:[#allocation5 + $0x88] sm:$0xff]
    %v1150 = vld [vmem:[#allocation5 + $0x90] sm:$0xff]
    %v1151 = vld [vmem:[#allocation5 + $0x98] sm:$0xff]
    %v1152 = vld [vmem:[#allocation5 + $0xa0] sm:$0xff]
    %v1153 = vld [vmem:[#allocation5 + $0xa8] sm:$0xff]
    %v1154 = vld [vmem:[#allocation5 + $0xb0] sm:$0xff]
    %v1155 = vld [vmem:[#allocation5 + $0xb8] sm:$0xff]
    %v1156 = vld [vmem:[#allocation5 + $0xc0] sm:$0xff]
    %v1157 = vld [vmem:[#allocation5 + $0xc8] sm:$0xff]
    %v1158 = vld [vmem:[#allocation5 + $0xd0] sm:$0xff]
    %v1159 = vld [vmem:[#allocation5 + $0xd8] sm:$0xff]
    %v1160 = vld [vmem:[#allocation5 + $0xe0] sm:$0xff]
    %v1161 = vld [vmem:[#allocation5 + $0xe8] sm:$0xff]
    %v1162 = vld [vmem:[#allocation5 + $0xf0] sm:$0xff]
    %v1163 = vld [vmem:[#allocation5 + $0xf8] sm:$0xff]
    %v1164 = vld [vmem:[#allocation5 + $0x100] sm:$0xff]
    %v1165 = vld [vmem:[#allocation5 + $0x108] sm:$0xff]
    %v1166 = vld [vmem:[#allocation5 + $0x110] sm:$0xff]
    %v1167 = vld [vmem:[#allocation5 + $0x118] sm:$0xff]
    %v1168 = vld [vmem:[#allocation5 + $0x120] sm:$0xff]
    %v1169 = vld [vmem:[#allocation5 + $0x128] sm:$0xff]
    %v1170 = vld [vmem:[#allocation5 + $0x130] sm:$0xff]
    %v1171 = vld [vmem:[#allocation5 + $0x138] sm:$0xff]
    %v1172 = vld [vmem:[#allocation5 + $0x140] sm:$0xff]
    %v1173 = vld [vmem:[#allocation5 + $0x148] sm:$0xff]
    %v1174 = vld [vmem:[#allocation5 + $0x150] sm:$0xff]
    %v1175 = vld [vmem:[#allocation5 + $0x158] sm:$0xff]
    %v1176 = vld [vmem:[#allocation5 + $0x160] sm:$0xff]
    %v1177 = vld [vmem:[#allocation5 + $0x168] sm:$0xff]
    %v1178 = vld [vmem:[#allocation5 + $0x170] sm:$0xff]
    %v1179 = vld [vmem:[#allocation5 + $0x178] sm:$0xff]
    %v1180 = vld [vmem:[#allocation5 + $0x180] sm:$0xff]
    %v1181 = vld [vmem:[#allocation5 + $0x188] sm:$0xff]
    %v1182 = vld [vmem:[#allocation5 + $0x190] sm:$0xff]
    %v1183 = vld [vmem:[#allocation5 + $0x198] sm:$0xff]
    %v1184 = vld [vmem:[#allocation5 + $0x1a0] sm:$0xff]
    %v1185 = vld [vmem:[#allocation5 + $0x1a8] sm:$0xff]
    %v1186 = vld [vmem:[#allocation5 + $0x1b0] sm:$0xff]
    %v1187 = vld [vmem:[#allocation5 + $0x1b8] sm:$0xff]
    %v1188 = vld [vmem:[#allocation5 + $0x1c0] sm:$0xff]
    %v1189 = vld [vmem:[#allocation5 + $0x1c8] sm:$0xff]
    %v1190 = vld [vmem:[#allocation5 + $0x1d0] sm:$0xff]
    %v1191 = vld [vmem:[#allocation5 + $0x1d8] sm:$0xff]
    %v1192 = vld [vmem:[#allocation5 + $0x1e0] sm:$0xff]
    %v1193 = vld [vmem:[#allocation5 + $0x1e8] sm:$0xff]
    %v1194 = vld [vmem:[#allocation5 + $0x1f0] sm:$0xff]
    %v1195 = vld [vmem:[#allocation5 + $0x1f8] sm:$0xff]
    %v1196 = vld [vmem:[#allocation5 + $0x200] sm:$0xff]
    %v1197 = vld [vmem:[#allocation5 + $0x208] sm:$0xff]
    %v1198 = vld [vmem:[#allocation5 + $0x210] sm:$0xff]
    %v1199 = vld [vmem:[#allocation5 + $0x218] sm:$0xff]
    %v1200 = vld [vmem:[#allocation5 + $0x220] sm:$0xff]
    %v1201 = vld [vmem:[#allocation5 + $0x228] sm:$0xff]
    %v1202 = vld [vmem:[#allocation5 + $0x230] sm:$0xff]
    %v1203 = vld [vmem:[#allocation5 + $0x238] sm:$0xff]
    %v1204 = vld [vmem:[#allocation5 + $0x240] sm:$0xff]
    %v1205 = vld [vmem:[#allocation5 + $0x248] sm:$0xff]
    %v1206 = vld [vmem:[#allocation5 + $0x250] sm:$0xff]
    %v1207 = vld [vmem:[#allocation5 + $0x258] sm:$0xff]
    %v1208 = vld [vmem:[#allocation5 + $0x260] sm:$0xff]
    %v1209 = vld [vmem:[#allocation5 + $0x268] sm:$0xff]
    %v1210 = vld [vmem:[#allocation5 + $0x270] sm:$0xff]
    %v1211 = vld [vmem:[#allocation5 + $0x278] sm:$0xff]
    %v1212 = vld [vmem:[#allocation5 + $0x280] sm:$0xff]
    %v1213 = vld [vmem:[#allocation5 + $0x288] sm:$0xff]
    %v1214 = vld [vmem:[#allocation5 + $0x290] sm:$0xff]
    %v1215 = vld [vmem:[#allocation5 + $0x298] sm:$0xff]
    %v1216 = vld [vmem:[#allocation5 + $0x2a0] sm:$0xff]
    %v1217 = vld [vmem:[#allocation5 + $0x2a8] sm:$0xff]
    %v1218 = vld [vmem:[#allocation5 + $0x2b0] sm:$0xff]
    %v1219 = vld [vmem:[#allocation5 + $0x2b8] sm:$0xff]
    %v1220 = vld [vmem:[#allocation5 + $0x2c0] sm:$0xff]
    %v1221 = vld [vmem:[#allocation5 + $0x2c8] sm:$0xff]
    %v1222 = vld [vmem:[#allocation5 + $0x2d0] sm:$0xff]
    %v1223 = vld [vmem:[#allocation5 + $0x2d8] sm:$0xff]
    %v1224 = vld [vmem:[#allocation5 + $0x2e0] sm:$0xff]
    %v1225 = vld [vmem:[#allocation5 + $0x2e8] sm:$0xff]
    %v1226 = vld [vmem:[#allocation5 + $0x2f0] sm:$0xff]
    %v1227 = vld [vmem:[#allocation5 + $0x2f8] sm:$0xff]
    %v1228 = vld [vmem:[#allocation5 + $0x300] sm:$0xff]
    %v1229 = vld [vmem:[#allocation5 + $0x308] sm:$0xff]
    %v1230 = vld [vmem:[#allocation5 + $0x310] sm:$0xff]
    %v1231 = vld [vmem:[#allocation5 + $0x318] sm:$0xff]
    %v1232 = vld [vmem:[#allocation5 + $0x320] sm:$0xff]
    %v1233 = vld [vmem:[#allocation5 + $0x328] sm:$0xff]
    %v1234 = vld [vmem:[#allocation5 + $0x330] sm:$0xff]
    %v1235 = vld [vmem:[#allocation5 + $0x338] sm:$0xff]
    %v1236 = vld [vmem:[#allocation5 + $0x340] sm:$0xff]
    %v1237 = vld [vmem:[#allocation5 + $0x348] sm:$0xff]
    %v1238 = vld [vmem:[#allocation5 + $0x350] sm:$0xff]
    %v1239 = vld [vmem:[#allocation5 + $0x358] sm:$0xff]
    %v1240 = vld [vmem:[#allocation5 + $0x360] sm:$0xff]
    %v1241 = vld [vmem:[#allocation5 + $0x368] sm:$0xff]
    %v1242 = vld [vmem:[#allocation5 + $0x370] sm:$0xff]
    %v1243 = vld [vmem:[#allocation5 + $0x378] sm:$0xff]
    %v1244 = vld [vmem:[#allocation5 + $0x380] sm:$0xff]
    %v1245 = vld [vmem:[#allocation5 + $0x388] sm:$0xff]
    %v1246 = vld [vmem:[#allocation5 + $0x390] sm:$0xff]
    %v1247 = vld [vmem:[#allocation5 + $0x398] sm:$0xff]
    %v1248 = vld [vmem:[#allocation5 + $0x3a0] sm:$0xff]
    %v1249 = vld [vmem:[#allocation5 + $0x3a8] sm:$0xff]
    %v1250 = vld [vmem:[#allocation5 + $0x3b0] sm:$0xff]
    %v1251 = vld [vmem:[#allocation5 + $0x3b8] sm:$0xff]
    %v1252 = vld [vmem:[#allocation5 + $0x3c0] sm:$0xff]
    %v1253 = vld [vmem:[#allocation5 + $0x3c8] sm:$0xff]
    %v1254 = vld [vmem:[#allocation5 + $0x3d0] sm:$0xff]
    %v1255 = vld [vmem:[#allocation5 + $0x3d8] sm:$0xff]
    %v1256 = vld [vmem:[#allocation5 + $0x3e0] sm:$0xff]
    %v1257 = vld [vmem:[#allocation5 + $0x3e8] sm:$0xff]
    %v1258 = vld [vmem:[#allocation5 + $0x3f0] sm:$0xff]
    %v1259 = vld [vmem:[#allocation5 + $0x3f8] sm:$0xff]
    %v1260 = vpack.c.bf16 %v1124, %v1124
    %v1261 = vpack.c.bf16 %v1125, %v1125
    %v1262 = vpack.c.bf16 %v1126, %v1126
    %v1263 = vpack.c.bf16 %v1127, %v1127
    %v1264 = vpack.c.bf16 %v1128, %v1128
    %v1265 = vpack.c.bf16 %v1129, %v1129
    %v1266 = vpack.c.bf16 %v1130, %v1130
    %v1267 = vpack.c.bf16 %v1131, %v1131
    %v1268 = vld [vmem:[%s5] sm:$0x3]
    %v1270 = vperm.slane %v1268, 0
    %v1271 = vperm.slane %v1268, 1
    %v1402 = vunpack.c.l.b16 %v1132
    %v1403 = vunpack.c.h.b16 %v1132
    %v1404 = vunpack.c.l.b16 %v1133
    %v1405 = vunpack.c.h.b16 %v1133
    %v1406 = vunpack.c.l.b16 %v1134
    %v1407 = vunpack.c.h.b16 %v1134
    %v1408 = vunpack.c.l.b16 %v1135
    %v1409 = vunpack.c.h.b16 %v1135
    %v1410 = vunpack.c.l.b16 %v1136
    %v1411 = vunpack.c.h.b16 %v1136
    %v1412 = vunpack.c.l.b16 %v1137
    %v1413 = vunpack.c.h.b16 %v1137
    %v1414 = vunpack.c.l.b16 %v1138
    %v1415 = vunpack.c.h.b16 %v1138
    %v1416 = vunpack.c.l.b16 %v1139
    %v1417 = vunpack.c.h.b16 %v1139
    %v1418 = vunpack.c.l.b16 %v1140
    %v1419 = vunpack.c.h.b16 %v1140
    %v1420 = vunpack.c.l.b16 %v1141
    %v1421 = vunpack.c.h.b16 %v1141
    %v1422 = vunpack.c.l.b16 %v1142
    %v1423 = vunpack.c.h.b16 %v1142
    %v1424 = vunpack.c.l.b16 %v1143
    %v1425 = vunpack.c.h.b16 %v1143
    %v1426 = vunpack.c.l.b16 %v1144
    %v1427 = vunpack.c.h.b16 %v1144
    %v1428 = vunpack.c.l.b16 %v1145
    %v1429 = vunpack.c.h.b16 %v1145
    %v1430 = vunpack.c.l.b16 %v1146
    %v1431 = vunpack.c.h.b16 %v1146
    %v1432 = vunpack.c.l.b16 %v1147
    %v1433 = vunpack.c.h.b16 %v1147
    %v1434 = vunpack.c.l.b16 %v1148
    %v1435 = vunpack.c.h.b16 %v1148
    %v1436 = vunpack.c.l.b16 %v1149
    %v1437 = vunpack.c.h.b16 %v1149
    %v1438 = vunpack.c.l.b16 %v1150
    %v1439 = vunpack.c.h.b16 %v1150
    %v1440 = vunpack.c.l.b16 %v1151
    %v1441 = vunpack.c.h.b16 %v1151
    %v1442 = vunpack.c.l.b16 %v1152
    %v1443 = vunpack.c.h.b16 %v1152
    %v1444 = vunpack.c.l.b16 %v1153
    %v1445 = vunpack.c.h.b16 %v1153
    %v1446 = vunpack.c.l.b16 %v1154
    %v1447 = vunpack.c.h.b16 %v1154
    %v1448 = vunpack.c.l.b16 %v1155
    %v1449 = vunpack.c.h.b16 %v1155
    %v1450 = vunpack.c.l.b16 %v1156
    %v1451 = vunpack.c.h.b16 %v1156
    %v1452 = vunpack.c.l.b16 %v1157
    %v1453 = vunpack.c.h.b16 %v1157
    %v1454 = vunpack.c.l.b16 %v1158
    %v1455 = vunpack.c.h.b16 %v1158
    %v1456 = vunpack.c.l.b16 %v1159
    %v1457 = vunpack.c.h.b16 %v1159
    %v1458 = vunpack.c.l.b16 %v1160
    %v1459 = vunpack.c.h.b16 %v1160
    %v1460 = vunpack.c.l.b16 %v1161
    %v1461 = vunpack.c.h.b16 %v1161
    %v1462 = vunpack.c.l.b16 %v1162
    %v1463 = vunpack.c.h.b16 %v1162
    %v1464 = vunpack.c.l.b16 %v1163
    %v1465 = vunpack.c.h.b16 %v1163
    %v1466 = vunpack.c.l.b16 %v1164
    %v1467 = vunpack.c.h.b16 %v1164
    %v1468 = vunpack.c.l.b16 %v1165
    %v1469 = vunpack.c.h.b16 %v1165
    %v1470 = vunpack.c.l.b16 %v1166
    %v1471 = vunpack.c.h.b16 %v1166
    %v1472 = vunpack.c.l.b16 %v1167
    %v1473 = vunpack.c.h.b16 %v1167
    %v1474 = vunpack.c.l.b16 %v1168
    %v1475 = vunpack.c.h.b16 %v1168
    %v1476 = vunpack.c.l.b16 %v1169
    %v1477 = vunpack.c.h.b16 %v1169
    %v1478 = vunpack.c.l.b16 %v1170
    %v1479 = vunpack.c.h.b16 %v1170
    %v1480 = vunpack.c.l.b16 %v1171
    %v1481 = vunpack.c.h.b16 %v1171
    %v1482 = vunpack.c.l.b16 %v1172
    %v1483 = vunpack.c.h.b16 %v1172
    %v1484 = vunpack.c.l.b16 %v1173
    %v1485 = vunpack.c.h.b16 %v1173
    %v1486 = vunpack.c.l.b16 %v1174
    %v1487 = vunpack.c.h.b16 %v1174
    %v1488 = vunpack.c.l.b16 %v1175
    %v1489 = vunpack.c.h.b16 %v1175
    %v1490 = vunpack.c.l.b16 %v1176
    %v1491 = vunpack.c.h.b16 %v1176
    %v1492 = vunpack.c.l.b16 %v1177
    %v1493 = vunpack.c.h.b16 %v1177
    %v1494 = vunpack.c.l.b16 %v1178
    %v1495 = vunpack.c.h.b16 %v1178
    %v1496 = vunpack.c.l.b16 %v1179
    %v1497 = vunpack.c.h.b16 %v1179
    %v1498 = vunpack.c.l.b16 %v1180
    %v1499 = vunpack.c.h.b16 %v1180
    %v1500 = vunpack.c.l.b16 %v1181
    %v1501 = vunpack.c.h.b16 %v1181
    %v1502 = vunpack.c.l.b16 %v1182
    %v1503 = vunpack.c.h.b16 %v1182
    %v1504 = vunpack.c.l.b16 %v1183
    %v1505 = vunpack.c.h.b16 %v1183
    %v1506 = vunpack.c.l.b16 %v1184
    %v1507 = vunpack.c.h.b16 %v1184
    %v1508 = vunpack.c.l.b16 %v1185
    %v1509 = vunpack.c.h.b16 %v1185
    %v1510 = vunpack.c.l.b16 %v1186
    %v1511 = vunpack.c.h.b16 %v1186
    %v1512 = vunpack.c.l.b16 %v1187
    %v1513 = vunpack.c.h.b16 %v1187
    %v1514 = vunpack.c.l.b16 %v1188
    %v1515 = vunpack.c.h.b16 %v1188
    %v1516 = vunpack.c.l.b16 %v1189
    %v1517 = vunpack.c.h.b16 %v1189
    %v1518 = vunpack.c.l.b16 %v1190
    %v1519 = vunpack.c.h.b16 %v1190
    %v1520 = vunpack.c.l.b16 %v1191
    %v1521 = vunpack.c.h.b16 %v1191
    %v1522 = vunpack.c.l.b16 %v1192
    %v1523 = vunpack.c.h.b16 %v1192
    %v1524 = vunpack.c.l.b16 %v1193
    %v1525 = vunpack.c.h.b16 %v1193
    %v1526 = vunpack.c.l.b16 %v1194
    %v1527 = vunpack.c.h.b16 %v1194
    %v1528 = vunpack.c.l.b16 %v1195
    %v1529 = vunpack.c.h.b16 %v1195
    %v1530 = vunpack.c.l.b16 %v1196
    %v1531 = vunpack.c.h.b16 %v1196
    %v1532 = vunpack.c.l.b16 %v1197
    %v1533 = vunpack.c.h.b16 %v1197
    %v1534 = vunpack.c.l.b16 %v1198
    %v1535 = vunpack.c.h.b16 %v1198
    %v1536 = vunpack.c.l.b16 %v1199
    %v1537 = vunpack.c.h.b16 %v1199
    %v1538 = vunpack.c.l.b16 %v1200
    %v1539 = vunpack.c.h.b16 %v1200
    %v1540 = vunpack.c.l.b16 %v1201
    %v1541 = vunpack.c.h.b16 %v1201
    %v1542 = vunpack.c.l.b16 %v1202
    %v1543 = vunpack.c.h.b16 %v1202
    %v1544 = vunpack.c.l.b16 %v1203
    %v1545 = vunpack.c.h.b16 %v1203
    %v1546 = vunpack.c.l.b16 %v1204
    %v1547 = vunpack.c.h.b16 %v1204
    %v1548 = vunpack.c.l.b16 %v1205
    %v1549 = vunpack.c.h.b16 %v1205
    %v1550 = vunpack.c.l.b16 %v1206
    %v1551 = vunpack.c.h.b16 %v1206
    %v1552 = vunpack.c.l.b16 %v1207
    %v1553 = vunpack.c.h.b16 %v1207
    %v1554 = vunpack.c.l.b16 %v1208
    %v1555 = vunpack.c.h.b16 %v1208
    %v1556 = vunpack.c.l.b16 %v1209
    %v1557 = vunpack.c.h.b16 %v1209
    %v1558 = vunpack.c.l.b16 %v1210
    %v1559 = vunpack.c.h.b16 %v1210
    %v1560 = vunpack.c.l.b16 %v1211
    %v1561 = vunpack.c.h.b16 %v1211
    %v1562 = vunpack.c.l.b16 %v1212
    %v1563 = vunpack.c.h.b16 %v1212
    %v1564 = vunpack.c.l.b16 %v1213
    %v1565 = vunpack.c.h.b16 %v1213
    %v1566 = vunpack.c.l.b16 %v1214
    %v1567 = vunpack.c.h.b16 %v1214
    %v1568 = vunpack.c.l.b16 %v1215
    %v1569 = vunpack.c.h.b16 %v1215
    %v1570 = vunpack.c.l.b16 %v1216
    %v1571 = vunpack.c.h.b16 %v1216
    %v1572 = vunpack.c.l.b16 %v1217
    %v1573 = vunpack.c.h.b16 %v1217
    %v1574 = vunpack.c.l.b16 %v1218
    %v1575 = vunpack.c.h.b16 %v1218
    %v1576 = vunpack.c.l.b16 %v1219
    %v1577 = vunpack.c.h.b16 %v1219
    %v1578 = vunpack.c.l.b16 %v1220
    %v1579 = vunpack.c.h.b16 %v1220
    %v1580 = vunpack.c.l.b16 %v1221
    %v1581 = vunpack.c.h.b16 %v1221
    %v1582 = vunpack.c.l.b16 %v1222
    %v1583 = vunpack.c.h.b16 %v1222
    %v1584 = vunpack.c.l.b16 %v1223
    %v1585 = vunpack.c.h.b16 %v1223
    %v1586 = vunpack.c.l.b16 %v1224
    %v1587 = vunpack.c.h.b16 %v1224
    %v1588 = vunpack.c.l.b16 %v1225
    %v1589 = vunpack.c.h.b16 %v1225
    %v1590 = vunpack.c.l.b16 %v1226
    %v1591 = vunpack.c.h.b16 %v1226
    %v1592 = vunpack.c.l.b16 %v1227
    %v1593 = vunpack.c.h.b16 %v1227
    %v1594 = vunpack.c.l.b16 %v1228
    %v1595 = vunpack.c.h.b16 %v1228
    %v1596 = vunpack.c.l.b16 %v1229
    %v1597 = vunpack.c.h.b16 %v1229
    %v1598 = vunpack.c.l.b16 %v1230
    %v1599 = vunpack.c.h.b16 %v1230
    %v1600 = vunpack.c.l.b16 %v1231
    %v1601 = vunpack.c.h.b16 %v1231
    %v1602 = vunpack.c.l.b16 %v1232
    %v1603 = vunpack.c.h.b16 %v1232
    %v1604 = vunpack.c.l.b16 %v1233
    %v1605 = vunpack.c.h.b16 %v1233
    %v1606 = vunpack.c.l.b16 %v1234
    %v1607 = vunpack.c.h.b16 %v1234
    %v1608 = vunpack.c.l.b16 %v1235
    %v1609 = vunpack.c.h.b16 %v1235
    %v1610 = vunpack.c.l.b16 %v1236
    %v1611 = vunpack.c.h.b16 %v1236
    %v1612 = vunpack.c.l.b16 %v1237
    %v1613 = vunpack.c.h.b16 %v1237
    %v1614 = vunpack.c.l.b16 %v1238
    %v1615 = vunpack.c.h.b16 %v1238
    %v1616 = vunpack.c.l.b16 %v1239
    %v1617 = vunpack.c.h.b16 %v1239
    %v1618 = vunpack.c.l.b16 %v1240
    %v1619 = vunpack.c.h.b16 %v1240
    %v1620 = vunpack.c.l.b16 %v1241
    %v1621 = vunpack.c.h.b16 %v1241
    %v1622 = vunpack.c.l.b16 %v1242
    %v1623 = vunpack.c.h.b16 %v1242
    %v1624 = vunpack.c.l.b16 %v1243
    %v1625 = vunpack.c.h.b16 %v1243
    %v1626 = vunpack.c.l.b16 %v1244
    %v1627 = vunpack.c.h.b16 %v1244
    %v1628 = vunpack.c.l.b16 %v1245
    %v1629 = vunpack.c.h.b16 %v1245
    %v1630 = vunpack.c.l.b16 %v1246
    %v1631 = vunpack.c.h.b16 %v1246
    %v1632 = vunpack.c.l.b16 %v1247
    %v1633 = vunpack.c.h.b16 %v1247
    %v1634 = vunpack.c.l.b16 %v1248
    %v1635 = vunpack.c.h.b16 %v1248
    %v1636 = vunpack.c.l.b16 %v1249
    %v1637 = vunpack.c.h.b16 %v1249
    %v1638 = vunpack.c.l.b16 %v1250
    %v1639 = vunpack.c.h.b16 %v1250
    %v1640 = vunpack.c.l.b16 %v1251
    %v1641 = vunpack.c.h.b16 %v1251
    %v1642 = vunpack.c.l.b16 %v1252
    %v1643 = vunpack.c.h.b16 %v1252
    %v1644 = vunpack.c.l.b16 %v1253
    %v1645 = vunpack.c.h.b16 %v1253
    %v1646 = vunpack.c.l.b16 %v1254
    %v1647 = vunpack.c.h.b16 %v1254
    %v1648 = vunpack.c.l.b16 %v1255
    %v1649 = vunpack.c.h.b16 %v1255
    %v1650 = vunpack.c.l.b16 %v1256
    %v1651 = vunpack.c.h.b16 %v1256
    %v1652 = vunpack.c.l.b16 %v1257
    %v1653 = vunpack.c.h.b16 %v1257
    %v1654 = vunpack.c.l.b16 %v1258
    %v1655 = vunpack.c.h.b16 %v1258
    %v1656 = vunpack.c.l.b16 %v1259
    %v1657 = vunpack.c.h.b16 %v1259
    %v1658 = vpack.c.b16 %v1404, %v1402
    %v1659 = vpack.c.b16 %v1405, %v1403
    %v1660 = vpack.c.b16 %v1408, %v1406
    %v1661 = vpack.c.b16 %v1409, %v1407
    %v1662 = vpack.c.b16 %v1412, %v1410
    %v1663 = vpack.c.b16 %v1413, %v1411
    %v1664 = vpack.c.b16 %v1416, %v1414
    %v1665 = vpack.c.b16 %v1417, %v1415
    %v1666 = vpack.c.b16 %v1420, %v1418
    %v1667 = vpack.c.b16 %v1421, %v1419
    %v1668 = vpack.c.b16 %v1424, %v1422
    %v1669 = vpack.c.b16 %v1425, %v1423
    %v1670 = vpack.c.b16 %v1428, %v1426
    %v1671 = vpack.c.b16 %v1429, %v1427
    %v1672 = vpack.c.b16 %v1432, %v1430
    %v1673 = vpack.c.b16 %v1433, %v1431
    %v1674 = vpack.c.b16 %v1436, %v1434
    %v1675 = vpack.c.b16 %v1437, %v1435
    %v1676 = vpack.c.b16 %v1440, %v1438
    %v1677 = vpack.c.b16 %v1441, %v1439
    %v1678 = vpack.c.b16 %v1444, %v1442
    %v1679 = vpack.c.b16 %v1445, %v1443
    %v1680 = vpack.c.b16 %v1448, %v1446
    %v1681 = vpack.c.b16 %v1449, %v1447
    %v1682 = vpack.c.b16 %v1452, %v1450
    %v1683 = vpack.c.b16 %v1453, %v1451
    %v1684 = vpack.c.b16 %v1456, %v1454
    %v1685 = vpack.c.b16 %v1457, %v1455
    %v1686 = vpack.c.b16 %v1460, %v1458
    %v1687 = vpack.c.b16 %v1461, %v1459
    %v1688 = vpack.c.b16 %v1464, %v1462
    %v1689 = vpack.c.b16 %v1465, %v1463
    %v1690 = vpack.c.b16 %v1468, %v1466
    %v1691 = vpack.c.b16 %v1469, %v1467
    %v1692 = vpack.c.b16 %v1472, %v1470
    %v1693 = vpack.c.b16 %v1473, %v1471
    %v1694 = vpack.c.b16 %v1476, %v1474
    %v1695 = vpack.c.b16 %v1477, %v1475
    %v1696 = vpack.c.b16 %v1480, %v1478
    %v1697 = vpack.c.b16 %v1481, %v1479
    %v1698 = vpack.c.b16 %v1484, %v1482
    %v1699 = vpack.c.b16 %v1485, %v1483
    %v1700 = vpack.c.b16 %v1488, %v1486
    %v1701 = vpack.c.b16 %v1489, %v1487
    %v1702 = vpack.c.b16 %v1492, %v1490
    %v1703 = vpack.c.b16 %v1493, %v1491
    %v1704 = vpack.c.b16 %v1496, %v1494
    %v1705 = vpack.c.b16 %v1497, %v1495
    %v1706 = vpack.c.b16 %v1500, %v1498
    %v1707 = vpack.c.b16 %v1501, %v1499
    %v1708 = vpack.c.b16 %v1504, %v1502
    %v1709 = vpack.c.b16 %v1505, %v1503
    %v1710 = vpack.c.b16 %v1508, %v1506
    %v1711 = vpack.c.b16 %v1509, %v1507
    %v1712 = vpack.c.b16 %v1512, %v1510
    %v1713 = vpack.c.b16 %v1513, %v1511
    %v1714 = vpack.c.b16 %v1516, %v1514
    %v1715 = vpack.c.b16 %v1517, %v1515
    %v1716 = vpack.c.b16 %v1520, %v1518
    %v1717 = vpack.c.b16 %v1521, %v1519
    %v1718 = vpack.c.b16 %v1524, %v1522
    %v1719 = vpack.c.b16 %v1525, %v1523
    %v1720 = vpack.c.b16 %v1528, %v1526
    %v1721 = vpack.c.b16 %v1529, %v1527
    %v1722 = vpack.c.b16 %v1532, %v1530
    %v1723 = vpack.c.b16 %v1533, %v1531
    %v1724 = vpack.c.b16 %v1536, %v1534
    %v1725 = vpack.c.b16 %v1537, %v1535
    %v1726 = vpack.c.b16 %v1540, %v1538
    %v1727 = vpack.c.b16 %v1541, %v1539
    %v1728 = vpack.c.b16 %v1544, %v1542
    %v1729 = vpack.c.b16 %v1545, %v1543
    %v1730 = vpack.c.b16 %v1548, %v1546
    %v1731 = vpack.c.b16 %v1549, %v1547
    %v1732 = vpack.c.b16 %v1552, %v1550
    %v1733 = vpack.c.b16 %v1553, %v1551
    %v1734 = vpack.c.b16 %v1556, %v1554
    %v1735 = vpack.c.b16 %v1557, %v1555
    %v1736 = vpack.c.b16 %v1560, %v1558
    %v1737 = vpack.c.b16 %v1561, %v1559
    %v1738 = vpack.c.b16 %v1564, %v1562
    %v1739 = vpack.c.b16 %v1565, %v1563
    %v1740 = vpack.c.b16 %v1568, %v1566
    %v1741 = vpack.c.b16 %v1569, %v1567
    %v1742 = vpack.c.b16 %v1572, %v1570
    %v1743 = vpack.c.b16 %v1573, %v1571
    %v1744 = vpack.c.b16 %v1576, %v1574
    %v1745 = vpack.c.b16 %v1577, %v1575
    %v1746 = vpack.c.b16 %v1580, %v1578
    %v1747 = vpack.c.b16 %v1581, %v1579
    %v1748 = vpack.c.b16 %v1584, %v1582
    %v1749 = vpack.c.b16 %v1585, %v1583
    %v1750 = vpack.c.b16 %v1588, %v1586
    %v1751 = vpack.c.b16 %v1589, %v1587
    %v1752 = vpack.c.b16 %v1592, %v1590
    %v1753 = vpack.c.b16 %v1593, %v1591
    %v1754 = vpack.c.b16 %v1596, %v1594
    %v1755 = vpack.c.b16 %v1597, %v1595
    %v1756 = vpack.c.b16 %v1600, %v1598
    %v1757 = vpack.c.b16 %v1601, %v1599
    %v1758 = vpack.c.b16 %v1604, %v1602
    %v1759 = vpack.c.b16 %v1605, %v1603
    %v1760 = vpack.c.b16 %v1608, %v1606
    %v1761 = vpack.c.b16 %v1609, %v1607
    %v1762 = vpack.c.b16 %v1612, %v1610
    %v1763 = vpack.c.b16 %v1613, %v1611
    %v1764 = vpack.c.b16 %v1616, %v1614
    %v1765 = vpack.c.b16 %v1617, %v1615
    %v1766 = vpack.c.b16 %v1620, %v1618
    %v1767 = vpack.c.b16 %v1621, %v1619
    %v1768 = vpack.c.b16 %v1624, %v1622
    %v1769 = vpack.c.b16 %v1625, %v1623
    %v1770 = vpack.c.b16 %v1628, %v1626
    %v1771 = vpack.c.b16 %v1629, %v1627
    %v1772 = vpack.c.b16 %v1632, %v1630
    %v1773 = vpack.c.b16 %v1633, %v1631
    %v1774 = vpack.c.b16 %v1636, %v1634
    %v1775 = vpack.c.b16 %v1637, %v1635
    %v1776 = vpack.c.b16 %v1640, %v1638
    %v1777 = vpack.c.b16 %v1641, %v1639
    %v1778 = vpack.c.b16 %v1644, %v1642
    %v1779 = vpack.c.b16 %v1645, %v1643
    %v1780 = vpack.c.b16 %v1648, %v1646
    %v1781 = vpack.c.b16 %v1649, %v1647
    %v1782 = vpack.c.b16 %v1652, %v1650
    %v1783 = vpack.c.b16 %v1653, %v1651
    %v1784 = vpack.c.b16 %v1656, %v1654
    %v1785 = vpack.c.b16 %v1657, %v1655
    %1914 = vmatpush.bf16.msra.mxu0 %v1672
    %1915 = vmatpush.bf16.msra.mxu0 %v1670
    %1916 = vmatpush.bf16.msra.mxu0 %v1668
    %1917 = vmatpush.bf16.msra.mxu0 %v1666
    %1918 = vmatpush.bf16.msra.mxu0 %v1664
    %1919 = vmatpush.bf16.msra.mxu0 %v1662
    %1920 = vmatpush.bf16.msra.mxu0 %v1660
    %1921 = vmatpush.bf16.msra.mxu0 %v1658
    %1922 = vmatmul.bf16.gmra.mxu0 %v1260
    %v1923 = vpop.f32.mrf.mxu0
    %v1924 = vadd.f32 %v1270, %v1923
    %v1925 = vpop.f32.mrf.mxu0
    %1926 = vdwg.mxu0
    %1927 = vmatpush.bf16.msra.mxu0 %v1688
    %1928 = vmatpush.bf16.msra.mxu0 %v1686
    %1929 = vmatpush.bf16.msra.mxu0 %v1684
    %1930 = vmatpush.bf16.msra.mxu0 %v1682
    %1931 = vmatpush.bf16.msra.mxu0 %v1680
    %1932 = vmatpush.bf16.msra.mxu0 %v1678
    %1933 = vmatpush.bf16.msra.mxu0 %v1676
    %1934 = vmatpush.bf16.msra.mxu0 %v1674
    %1935 = vmatmul.bf16.gmra.mxu0 %v1261
    %v1936 = vpop.f32.mrf.mxu0
    %v1937 = vadd.f32 %v1924, %v1936
    %v1938 = vpop.f32.mrf.mxu0
    %1939 = vdwg.mxu0
    %1940 = vmatpush.bf16.msra.mxu0 %v1704
    %1941 = vmatpush.bf16.msra.mxu0 %v1702
    %1942 = vmatpush.bf16.msra.mxu0 %v1700
    %1943 = vmatpush.bf16.msra.mxu0 %v1698
    %1944 = vmatpush.bf16.msra.mxu0 %v1696
    %1945 = vmatpush.bf16.msra.mxu0 %v1694
    %1946 = vmatpush.bf16.msra.mxu0 %v1692
    %1947 = vmatpush.bf16.msra.mxu0 %v1690
    %1948 = vmatmul.bf16.gmra.mxu0 %v1262
    %v1949 = vpop.f32.mrf.mxu0
    %v1950 = vadd.f32 %v1937, %v1949
    %v1951 = vpop.f32.mrf.mxu0
    %1952 = vdwg.mxu0
    %1953 = vmatpush.bf16.msra.mxu0 %v1720
    %1954 = vmatpush.bf16.msra.mxu0 %v1718
    %1955 = vmatpush.bf16.msra.mxu0 %v1716
    %1956 = vmatpush.bf16.msra.mxu0 %v1714
    %1957 = vmatpush.bf16.msra.mxu0 %v1712
    %1958 = vmatpush.bf16.msra.mxu0 %v1710
    %1959 = vmatpush.bf16.msra.mxu0 %v1708
    %1960 = vmatpush.bf16.msra.mxu0 %v1706
    %1961 = vmatmul.bf16.gmra.mxu0 %v1263
    %v1962 = vpop.f32.mrf.mxu0
    %v1963 = vadd.f32 %v1950, %v1962
    %v1964 = vpop.f32.mrf.mxu0
    %1965 = vdwg.mxu0
    %1966 = vmatpush.bf16.msra.mxu0 %v1736
    %1967 = vmatpush.bf16.msra.mxu0 %v1734
    %1968 = vmatpush.bf16.msra.mxu0 %v1732
    %1969 = vmatpush.bf16.msra.mxu0 %v1730
    %1970 = vmatpush.bf16.msra.mxu0 %v1728
    %1971 = vmatpush.bf16.msra.mxu0 %v1726
    %1972 = vmatpush.bf16.msra.mxu0 %v1724
    %1973 = vmatpush.bf16.msra.mxu0 %v1722
    %1974 = vmatmul.bf16.gmra.mxu0 %v1264
    %v1975 = vpop.f32.mrf.mxu0
    %v1976 = vadd.f32 %v1963, %v1975
    %v1977 = vpop.f32.mrf.mxu0
    %1978 = vdwg.mxu0
    %1979 = vmatpush.bf16.msra.mxu0 %v1752
    %1980 = vmatpush.bf16.msra.mxu0 %v1750
    %1981 = vmatpush.bf16.msra.mxu0 %v1748
    %1982 = vmatpush.bf16.msra.mxu0 %v1746
    %1983 = vmatpush.bf16.msra.mxu0 %v1744
    %1984 = vmatpush.bf16.msra.mxu0 %v1742
    %1985 = vmatpush.bf16.msra.mxu0 %v1740
    %1986 = vmatpush.bf16.msra.mxu0 %v1738
    %1987 = vmatmul.bf16.gmra.mxu0 %v1265
    %v1988 = vpop.f32.mrf.mxu0
    %v1989 = vadd.f32 %v1976, %v1988
    %v1990 = vpop.f32.mrf.mxu0
    %1991 = vdwg.mxu0
    %1992 = vmatpush.bf16.msra.mxu0 %v1768
    %1993 = vmatpush.bf16.msra.mxu0 %v1766
    %1994 = vmatpush.bf16.msra.mxu0 %v1764
    %1995 = vmatpush.bf16.msra.mxu0 %v1762
    %1996 = vmatpush.bf16.msra.mxu0 %v1760
    %1997 = vmatpush.bf16.msra.mxu0 %v1758
    %1998 = vmatpush.bf16.msra.mxu0 %v1756
    %1999 = vmatpush.bf16.msra.mxu0 %v1754
    %2000 = vmatmul.bf16.gmra.mxu0 %v1266
    %v2001 = vpop.f32.mrf.mxu0
    %v2002 = vadd.f32 %v1989, %v2001
    %v2003 = vpop.f32.mrf.mxu0
    %2004 = vdwg.mxu0
    %2005 = vmatpush.bf16.msra.mxu0 %v1784
    %2006 = vmatpush.bf16.msra.mxu0 %v1782
    %2007 = vmatpush.bf16.msra.mxu0 %v1780
    %2008 = vmatpush.bf16.msra.mxu0 %v1778
    %2009 = vmatpush.bf16.msra.mxu0 %v1776
    %2010 = vmatpush.bf16.msra.mxu0 %v1774
    %2011 = vmatpush.bf16.msra.mxu0 %v1772
    %2012 = vmatpush.bf16.msra.mxu0 %v1770
    %2013 = vmatmul.bf16.gmra.mxu0 %v1267
    %v2014 = vpop.f32.mrf.mxu0
    %v2015 = vadd.f32 %v2002, %v2014
    %v2016 = vpop.f32.mrf.mxu0
    %2017 = vdwg.mxu0
    %2018 = vmatpush.bf16.msra.mxu0 %v1673
    %2019 = vmatpush.bf16.msra.mxu0 %v1671
    %2020 = vmatpush.bf16.msra.mxu0 %v1669
    %2021 = vmatpush.bf16.msra.mxu0 %v1667
    %2022 = vmatpush.bf16.msra.mxu0 %v1665
    %2023 = vmatpush.bf16.msra.mxu0 %v1663
    %2024 = vmatpush.bf16.msra.mxu0 %v1661
    %2025 = vmatpush.bf16.msra.mxu0 %v1659
    %2026 = vmatmul.bf16.gmra.mxu0 %v1260
    %v2027 = vpop.f32.mrf.mxu0
    %v2028 = vadd.f32 %v1271, %v2027
    %v2029 = vpop.f32.mrf.mxu0
    %2030 = vdwg.mxu0
    %2031 = vmatpush.bf16.msra.mxu0 %v1689
    %2032 = vmatpush.bf16.msra.mxu0 %v1687
    %2033 = vmatpush.bf16.msra.mxu0 %v1685
    %2034 = vmatpush.bf16.msra.mxu0 %v1683
    %2035 = vmatpush.bf16.msra.mxu0 %v1681
    %2036 = vmatpush.bf16.msra.mxu0 %v1679
    %2037 = vmatpush.bf16.msra.mxu0 %v1677
    %2038 = vmatpush.bf16.msra.mxu0 %v1675
    %2039 = vmatmul.bf16.gmra.mxu0 %v1261
    %v2040 = vpop.f32.mrf.mxu0
    %v2041 = vadd.f32 %v2028, %v2040
    %v2042 = vpop.f32.mrf.mxu0
    %2043 = vdwg.mxu0
    %2044 = vmatpush.bf16.msra.mxu0 %v1705
    %2045 = vmatpush.bf16.msra.mxu0 %v1703
    %2046 = vmatpush.bf16.msra.mxu0 %v1701
    %2047 = vmatpush.bf16.msra.mxu0 %v1699
    %2048 = vmatpush.bf16.msra.mxu0 %v1697
    %2049 = vmatpush.bf16.msra.mxu0 %v1695
    %2050 = vmatpush.bf16.msra.mxu0 %v1693
    %2051 = vmatpush.bf16.msra.mxu0 %v1691
    %2052 = vmatmul.bf16.gmra.mxu0 %v1262
    %v2053 = vpop.f32.mrf.mxu0
    %v2054 = vadd.f32 %v2041, %v2053
    %v2055 = vpop.f32.mrf.mxu0
    %2056 = vdwg.mxu0
    %2057 = vmatpush.bf16.msra.mxu0 %v1721
    %2058 = vmatpush.bf16.msra.mxu0 %v1719
    %2059 = vmatpush.bf16.msra.mxu0 %v1717
    %2060 = vmatpush.bf16.msra.mxu0 %v1715
    %2061 = vmatpush.bf16.msra.mxu0 %v1713
    %2062 = vmatpush.bf16.msra.mxu0 %v1711
    %2063 = vmatpush.bf16.msra.mxu0 %v1709
    %2064 = vmatpush.bf16.msra.mxu0 %v1707
    %2065 = vmatmul.bf16.gmra.mxu0 %v1263
    %v2066 = vpop.f32.mrf.mxu0
    %v2067 = vadd.f32 %v2054, %v2066
    %v2068 = vpop.f32.mrf.mxu0
    %2069 = vdwg.mxu0
    %2070 = vmatpush.bf16.msra.mxu0 %v1737
    %2071 = vmatpush.bf16.msra.mxu0 %v1735
    %2072 = vmatpush.bf16.msra.mxu0 %v1733
    %2073 = vmatpush.bf16.msra.mxu0 %v1731
    %2074 = vmatpush.bf16.msra.mxu0 %v1729
    %2075 = vmatpush.bf16.msra.mxu0 %v1727
    %2076 = vmatpush.bf16.msra.mxu0 %v1725
    %2077 = vmatpush.bf16.msra.mxu0 %v1723
    %2078 = vmatmul.bf16.gmra.mxu0 %v1264
    %v2079 = vpop.f32.mrf.mxu0
    %v2080 = vadd.f32 %v2067, %v2079
    %v2081 = vpop.f32.mrf.mxu0
    %2082 = vdwg.mxu0
    %2083 = vmatpush.bf16.msra.mxu0 %v1753
    %2084 = vmatpush.bf16.msra.mxu0 %v1751
    %2085 = vmatpush.bf16.msra.mxu0 %v1749
    %2086 = vmatpush.bf16.msra.mxu0 %v1747
    %2087 = vmatpush.bf16.msra.mxu0 %v1745
    %2088 = vmatpush.bf16.msra.mxu0 %v1743
    %2089 = vmatpush.bf16.msra.mxu0 %v1741
    %2090 = vmatpush.bf16.msra.mxu0 %v1739
    %2091 = vmatmul.bf16.gmra.mxu0 %v1265
    %v2092 = vpop.f32.mrf.mxu0
    %v2093 = vadd.f32 %v2080, %v2092
    %v2094 = vpop.f32.mrf.mxu0
    %2095 = vdwg.mxu0
    %2096 = vmatpush.bf16.msra.mxu0 %v1769
    %2097 = vmatpush.bf16.msra.mxu0 %v1767
    %2098 = vmatpush.bf16.msra.mxu0 %v1765
    %2099 = vmatpush.bf16.msra.mxu0 %v1763
    %2100 = vmatpush.bf16.msra.mxu0 %v1761
    %2101 = vmatpush.bf16.msra.mxu0 %v1759
    %2102 = vmatpush.bf16.msra.mxu0 %v1757
    %2103 = vmatpush.bf16.msra.mxu0 %v1755
    %2104 = vmatmul.bf16.gmra.mxu0 %v1266
    %v2105 = vpop.f32.mrf.mxu0
    %v2106 = vadd.f32 %v2093, %v2105
    %v2107 = vpop.f32.mrf.mxu0
    %2108 = vdwg.mxu0
    %2109 = vmatpush.bf16.msra.mxu0 %v1785
    %2110 = vmatpush.bf16.msra.mxu0 %v1783
    %2111 = vmatpush.bf16.msra.mxu0 %v1781
    %2112 = vmatpush.bf16.msra.mxu0 %v1779
    %2113 = vmatpush.bf16.msra.mxu0 %v1777
    %2114 = vmatpush.bf16.msra.mxu0 %v1775
    %2115 = vmatpush.bf16.msra.mxu0 %v1773
    %2116 = vmatpush.bf16.msra.mxu0 %v1771
    %2117 = vmatmul.bf16.gmra.mxu0 %v1267
    %v2118 = vpop.f32.mrf.mxu0
    %v2119 = vadd.f32 %v2106, %v2118
    %v2120 = vpop.f32.mrf.mxu0
    %2121 = vdwg.mxu0
    %v2122 = vmax.f32 %v2015, 0.0
    %v2123 = vmax.f32 %v2119, 0.0
    %v2124 = vld [vmem:[%s6] sm:$0xff]
    %v2125 = vld [vmem:[%s6 + $0x8] sm:$0xff]
    %v2126 = vld [vmem:[%s6 + $0x10] sm:$0xff]
    %v2127 = vld [vmem:[%s6 + $0x18] sm:$0xff]
    %v2128 = vld [vmem:[%s6 + $0x20] sm:$0xff]
    %v2129 = vld [vmem:[%s6 + $0x28] sm:$0xff]
    %v2130 = vld [vmem:[%s6 + $0x30] sm:$0xff]
    %v2131 = vld [vmem:[%s6 + $0x38] sm:$0xff]
    %v2132 = vld [vmem:[%s6 + $0x40] sm:$0xff]
    %v2133 = vld [vmem:[%s6 + $0x48] sm:$0xff]
    %v2134 = vld [vmem:[%s6 + $0x50] sm:$0xff]
    %v2135 = vld [vmem:[%s6 + $0x58] sm:$0xff]
    %v2136 = vld [vmem:[%s6 + $0x60] sm:$0xff]
    %v2137 = vld [vmem:[%s6 + $0x68] sm:$0xff]
    %v2138 = vld [vmem:[%s6 + $0x70] sm:$0xff]
    %v2139 = vld [vmem:[%s6 + $0x78] sm:$0xff]
    %v2140 = vld [vmem:[%s6 + $0x80] sm:$0xff]
    %v2141 = vld [vmem:[%s6 + $0x88] sm:$0xff]
    %v2142 = vld [vmem:[%s6 + $0x90] sm:$0xff]
    %v2143 = vld [vmem:[%s6 + $0x98] sm:$0xff]
    %v2144 = vld [vmem:[%s6 + $0xa0] sm:$0xff]
    %v2145 = vld [vmem:[%s6 + $0xa8] sm:$0xff]
    %v2146 = vld [vmem:[%s6 + $0xb0] sm:$0xff]
    %v2147 = vld [vmem:[%s6 + $0xb8] sm:$0xff]
    %v2148 = vld [vmem:[%s6 + $0xc0] sm:$0xff]
    %v2149 = vld [vmem:[%s6 + $0xc8] sm:$0xff]
    %v2150 = vld [vmem:[%s6 + $0xd0] sm:$0xff]
    %v2151 = vld [vmem:[%s6 + $0xd8] sm:$0xff]
    %v2152 = vld [vmem:[%s6 + $0xe0] sm:$0xff]
    %v2153 = vld [vmem:[%s6 + $0xe8] sm:$0xff]
    %v2154 = vld [vmem:[%s6 + $0xf0] sm:$0xff]
    %v2155 = vld [vmem:[%s6 + $0xf8] sm:$0xff]
    %v2156 = vld [vmem:[%s7] sm:$0x1]
    %v2158 = vperm.slane %v2156, 0
    %2160 = vmatpush.msra.mxu0 %v2139
    %2161 = vmatpush.msra.mxu0 %v2138
    %2162 = vmatpush.msra.mxu0 %v2137
    %2163 = vmatpush.msra.mxu0 %v2136
    %2164 = vmatpush.msra.mxu0 %v2135
    %2165 = vmatpush.msra.mxu0 %v2134
    %2166 = vmatpush.msra.mxu0 %v2133
    %2167 = vmatpush.msra.mxu0 %v2132
    %2168 = vmatpush.msra.mxu0 %v2131
    %2169 = vmatpush.msra.mxu0 %v2130
    %2170 = vmatpush.msra.mxu0 %v2129
    %2171 = vmatpush.msra.mxu0 %v2128
    %2172 = vmatpush.msra.mxu0 %v2127
    %2173 = vmatpush.msra.mxu0 %v2126
    %2174 = vmatpush.msra.mxu0 %v2125
    %2175 = vmatpush.msra.mxu0 %v2124
    %2176 = vmatmul.f32.gmra.mxu0 %v2122
    %v2177 = vpop.f32.mrf.mxu0
    %v2178 = vadd.f32 %v2158, %v2177
    %2179 = vdwg.mxu0
    %2180 = vmatpush.msra.mxu0 %v2155
    %2181 = vmatpush.msra.mxu0 %v2154
    %2182 = vmatpush.msra.mxu0 %v2153
    %2183 = vmatpush.msra.mxu0 %v2152
    %2184 = vmatpush.msra.mxu0 %v2151
    %2185 = vmatpush.msra.mxu0 %v2150
    %2186 = vmatpush.msra.mxu0 %v2149
    %2187 = vmatpush.msra.mxu0 %v2148
    %2188 = vmatpush.msra.mxu0 %v2147
    %2189 = vmatpush.msra.mxu0 %v2146
    %2190 = vmatpush.msra.mxu0 %v2145
    %2191 = vmatpush.msra.mxu0 %v2144
    %2192 = vmatpush.msra.mxu0 %v2143
    %2193 = vmatpush.msra.mxu0 %v2142
    %2194 = vmatpush.msra.mxu0 %v2141
    %2195 = vmatpush.msra.mxu0 %v2140
    %2196 = vmatmul.f32.gmra.mxu0 %v2123
    %v2197 = vpop.f32.mrf.mxu0
    %v2198 = vadd.f32 %v2178, %v2197
    %2199 = vdwg.mxu0
    %v2200 = vmax.f32 %v2198, 0.0
    %v2201 = vld [vmem:[%s8] sm:$0xff]
    %v2202 = vld [vmem:[%s8 + $0x8] sm:$0xff]
    %v2203 = vld [vmem:[%s8 + $0x10] sm:$0xff]
    %v2204 = vld [vmem:[%s8 + $0x18] sm:$0xff]
    %v2205 = vld [vmem:[%s8 + $0x20] sm:$0xff]
    %v2206 = vld [vmem:[%s8 + $0x28] sm:$0xff]
    %v2207 = vld [vmem:[%s8 + $0x30] sm:$0xff]
    %v2208 = vld [vmem:[%s8 + $0x38] sm:$0xff]
    %v2209 = vld [vmem:[%s9] sm:$0x1]
    %v2211 = vperm.slane %v2209, 0
    %vm2213 = vcmask 523264
    %v2215 = vsel %vm2213, %v2200, 0
    %2217 = vmatpush.msra.mxu0 0.0
    %2218 = vmatpush.msra.mxu0 0.0
    %2219 = vmatpush.msra.mxu0 0.0
    %2220 = vmatpush.msra.mxu0 0.0
    %2221 = vmatpush.msra.mxu0 0.0
    %2222 = vmatpush.msra.mxu0 0.0
    %2223 = vmatpush.msra.mxu0 0.0
    %2224 = vmatpush.msra.mxu0 0.0
    %2225 = vmatpush.msra.mxu0 %v2208
    %2226 = vmatpush.msra.mxu0 %v2207
    %2227 = vmatpush.msra.mxu0 %v2206
    %2228 = vmatpush.msra.mxu0 %v2205
    %2229 = vmatpush.msra.mxu0 %v2204
    %2230 = vmatpush.msra.mxu0 %v2203
    %2231 = vmatpush.msra.mxu0 %v2202
    %2232 = vmatpush.msra.mxu0 %v2201
    %2233 = vmatmul.f32.gmra.mxu0 %v2215
    %v2234 = vpop.f32.mrf.mxu0
    %v2235 = vadd.f32 %v2211, %v2234
    %2236 = vdwg.mxu0
    %v2237 = vld [vmem:[%s1] sm:$0xff]
    %v2238 = vmul.f32 %v2235, 0.5
    %v2239 = vmul.f32 %v2238, 1.442695
    %v2240 = vpow.pop %v2239
    %2242 = vrot.lane.b32.xlu0 %v2240, 96
    %v2243 = vpop.permute.xlu0 %2242
    %v2245 = vmul.f32 %v2237, %v2243
    %v2246 = vadd.f32 %v2235, %v2245
    %v2247 = vld [vmem:[%s10] sm:$0xff]
    %v2248 = vld [vmem:[%s10 + $0x8] sm:$0xff]
    %v2249 = vld [vmem:[%s10 + $0x10] sm:$0xff]
    %v2250 = vld [vmem:[%s10 + $0x18] sm:$0xff]
    %v2251 = vld [vmem:[%s11] sm:$0x1]
    %v2253 = vperm.slane %v2251, 0
    %vm2255 = vcmask 261120
    %v2257 = vsel %vm2255, %v2246, 0
    %2259 = vmatpush.msra.mxu0 0.0
    %2260 = vmatpush.msra.mxu0 0.0
    %2261 = vmatpush.msra.mxu0 0.0
    %2262 = vmatpush.msra.mxu0 0.0
    %2263 = vmatpush.msra.mxu0 0.0
    %2264 = vmatpush.msra.mxu0 0.0
    %2265 = vmatpush.msra.mxu0 0.0
    %2266 = vmatpush.msra.mxu0 0.0
    %2267 = vmatpush.msra.mxu0 0.0
    %2268 = vmatpush.msra.mxu0 0.0
    %2269 = vmatpush.msra.mxu0 0.0
    %2270 = vmatpush.msra.mxu0 0.0
    %2271 = vmatpush.msra.mxu0 %v2250
    %2272 = vmatpush.msra.mxu0 %v2249
    %2273 = vmatpush.msra.mxu0 %v2248
    %2274 = vmatpush.msra.mxu0 %v2247
    %2275 = vmatmul.f32.gmra.mxu0 %v2257
    %v2276 = vpop.f32.mrf.mxu0
    %v2277 = vadd.f32 %v2253, %v2276
    %2278 = vdwg.mxu0
    %v2279 = vmax.f32 %v2277, 0.0
    %v2280 = vld [vmem:[%s12] sm:$0xff]
    %v2281 = vld [vmem:[%s12 + $0x8] sm:$0xff]
    %v2282 = vld [vmem:[%s12 + $0x10] sm:$0xff]
    %v2283 = vld [vmem:[%s12 + $0x18] sm:$0xff]
    %v2284 = vld [vmem:[%s12 + $0x20] sm:$0xff]
    %v2285 = vld [vmem:[%s12 + $0x28] sm:$0xff]
    %v2286 = vld [vmem:[%s12 + $0x30] sm:$0xff]
    %v2287 = vld [vmem:[%s12 + $0x38] sm:$0xff]
    %v2288 = vld [vmem:[%s12 + $0x40] sm:$0xff]
    %v2289 = vld [vmem:[%s12 + $0x48] sm:$0xff]
    %v2290 = vld [vmem:[%s12 + $0x50] sm:$0xff]
    %v2291 = vld [vmem:[%s12 + $0x58] sm:$0xff]
    %v2292 = vld [vmem:[%s12 + $0x60] sm:$0xff]
    %v2293 = vld [vmem:[%s12 + $0x68] sm:$0xff]
    %v2294 = vld [vmem:[%s12 + $0x70] sm:$0xff]
    %v2295 = vld [vmem:[%s12 + $0x78] sm:$0xff]
    %v2296 = vld [vmem:[%s13] sm:$0x3]
    %v2298 = vperm.slane %v2296, 0
    %v2299 = vperm.slane %v2296, 1
    %v2303 = vsel %vm2213, %v2279, 0
    %2305 = vmatpush.msra.mxu0 0.0
    %2306 = vmatpush.msra.mxu0 0.0
    %2307 = vmatpush.msra.mxu0 0.0
    %2308 = vmatpush.msra.mxu0 0.0
    %2309 = vmatpush.msra.mxu0 0.0
    %2310 = vmatpush.msra.mxu0 0.0
    %2311 = vmatpush.msra.mxu0 0.0
    %2312 = vmatpush.msra.mxu0 0.0
    %2313 = vmatpush.msra.mxu0 %v2294
    %2314 = vmatpush.msra.mxu0 %v2292
    %2315 = vmatpush.msra.mxu0 %v2290
    %2316 = vmatpush.msra.mxu0 %v2288
    %2317 = vmatpush.msra.mxu0 %v2286
    %2318 = vmatpush.msra.mxu0 %v2284
    %2319 = vmatpush.msra.mxu0 %v2282
    %2320 = vmatpush.msra.mxu0 %v2280
    %2321 = vmatmul.f32.gmra.mxu0 %v2303
    %v2322 = vpop.f32.mrf.mxu0
    %v2323 = vadd.f32 %v2298, %v2322
    %2324 = vdwg.mxu0
    %2325 = vmatpush.msra.mxu0 0.0
    %2326 = vmatpush.msra.mxu0 0.0
    %2327 = vmatpush.msra.mxu0 0.0
    %2328 = vmatpush.msra.mxu0 0.0
    %2329 = vmatpush.msra.mxu0 0.0
    %2330 = vmatpush.msra.mxu0 0.0
    %2331 = vmatpush.msra.mxu0 0.0
    %2332 = vmatpush.msra.mxu0 0.0
    %2333 = vmatpush.msra.mxu0 %v2295
    %2334 = vmatpush.msra.mxu0 %v2293
    %2335 = vmatpush.msra.mxu0 %v2291
    %2336 = vmatpush.msra.mxu0 %v2289
    %2337 = vmatpush.msra.mxu0 %v2287
    %2338 = vmatpush.msra.mxu0 %v2285
    %2339 = vmatpush.msra.mxu0 %v2283
    %2340 = vmatpush.msra.mxu0 %v2281
    %2341 = vmatmul.f32.gmra.mxu0 %v2303
    %v2342 = vpop.f32.mrf.mxu0
    %v2343 = vadd.f32 %v2299, %v2342
    %2344 = vdwg.mxu0
    %v2345 = vmax.f32 %v2323, 0.0
    %v2346 = vmax.f32 %v2343, 0.0
    %v2347 = vld [vmem:[#allocation7] sm:$0xff]
    %v2348 = vld [vmem:[#allocation7 + $0x8] sm:$0xff]
    %v2349 = vld [vmem:[#allocation7 + $0x10] sm:$0xff]
    %v2350 = vld [vmem:[#allocation7 + $0x18] sm:$0xff]
    %v2351 = vld [vmem:[#allocation7 + $0x20] sm:$0xff]
    %v2352 = vld [vmem:[#allocation7 + $0x28] sm:$0xff]
    %v2353 = vld [vmem:[#allocation7 + $0x30] sm:$0xff]
    %v2354 = vld [vmem:[#allocation7 + $0x38] sm:$0xff]
    %v2355 = vld [vmem:[#allocation7 + $0x40] sm:$0xff]
    %v2356 = vld [vmem:[#allocation7 + $0x48] sm:$0xff]
    %v2357 = vld [vmem:[#allocation7 + $0x50] sm:$0xff]
    %v2358 = vld [vmem:[#allocation7 + $0x58] sm:$0xff]
    %v2359 = vld [vmem:[#allocation7 + $0x60] sm:$0xff]
    %v2360 = vld [vmem:[#allocation7 + $0x68] sm:$0xff]
    %v2361 = vld [vmem:[#allocation7 + $0x70] sm:$0xff]
    %v2362 = vld [vmem:[#allocation7 + $0x78] sm:$0xff]
    %v2363 = vld [vmem:[#allocation7 + $0x80] sm:$0xff]
    %v2364 = vld [vmem:[#allocation7 + $0x88] sm:$0xff]
    %v2365 = vld [vmem:[#allocation7 + $0x90] sm:$0xff]
    %v2366 = vld [vmem:[#allocation7 + $0x98] sm:$0xff]
    %v2367 = vld [vmem:[#allocation7 + $0xa0] sm:$0xff]
    %v2368 = vld [vmem:[#allocation7 + $0xa8] sm:$0xff]
    %v2369 = vld [vmem:[#allocation7 + $0xb0] sm:$0xff]
    %v2370 = vld [vmem:[#allocation7 + $0xb8] sm:$0xff]
    %v2371 = vld [vmem:[#allocation7 + $0xc0] sm:$0xff]
    %v2372 = vld [vmem:[#allocation7 + $0xc8] sm:$0xff]
    %v2373 = vld [vmem:[#allocation7 + $0xd0] sm:$0xff]
    %v2374 = vld [vmem:[#allocation7 + $0xd8] sm:$0xff]
    %v2375 = vld [vmem:[#allocation7 + $0xe0] sm:$0xff]
    %v2376 = vld [vmem:[#allocation7 + $0xe8] sm:$0xff]
    %v2377 = vld [vmem:[#allocation7 + $0xf0] sm:$0xff]
    %v2378 = vld [vmem:[#allocation7 + $0xf8] sm:$0xff]
    %v2379 = vld [vmem:[#allocation7 + $0x100] sm:$0xff]
    %v2380 = vld [vmem:[#allocation7 + $0x108] sm:$0xff]
    %v2381 = vld [vmem:[#allocation7 + $0x110] sm:$0xff]
    %v2382 = vld [vmem:[#allocation7 + $0x118] sm:$0xff]
    %v2383 = vld [vmem:[#allocation7 + $0x120] sm:$0xff]
    %v2384 = vld [vmem:[#allocation7 + $0x128] sm:$0xff]
    %v2385 = vld [vmem:[#allocation7 + $0x130] sm:$0xff]
    %v2386 = vld [vmem:[#allocation7 + $0x138] sm:$0xff]
    %v2387 = vld [vmem:[#allocation7 + $0x140] sm:$0xff]
    %v2388 = vld [vmem:[#allocation7 + $0x148] sm:$0xff]
    %v2389 = vld [vmem:[#allocation7 + $0x150] sm:$0xff]
    %v2390 = vld [vmem:[#allocation7 + $0x158] sm:$0xff]
    %v2391 = vld [vmem:[#allocation7 + $0x160] sm:$0xff]
    %v2392 = vld [vmem:[#allocation7 + $0x168] sm:$0xff]
    %v2393 = vld [vmem:[#allocation7 + $0x170] sm:$0xff]
    %v2394 = vld [vmem:[#allocation7 + $0x178] sm:$0xff]
    %v2395 = vld [vmem:[#allocation7 + $0x180] sm:$0xff]
    %v2396 = vld [vmem:[#allocation7 + $0x188] sm:$0xff]
    %v2397 = vld [vmem:[#allocation7 + $0x190] sm:$0xff]
    %v2398 = vld [vmem:[#allocation7 + $0x198] sm:$0xff]
    %v2399 = vld [vmem:[#allocation7 + $0x1a0] sm:$0xff]
    %v2400 = vld [vmem:[#allocation7 + $0x1a8] sm:$0xff]
    %v2401 = vld [vmem:[#allocation7 + $0x1b0] sm:$0xff]
    %v2402 = vld [vmem:[#allocation7 + $0x1b8] sm:$0xff]
    %v2403 = vld [vmem:[#allocation7 + $0x1c0] sm:$0xff]
    %v2404 = vld [vmem:[#allocation7 + $0x1c8] sm:$0xff]
    %v2405 = vld [vmem:[#allocation7 + $0x1d0] sm:$0xff]
    %v2406 = vld [vmem:[#allocation7 + $0x1d8] sm:$0xff]
    %v2407 = vld [vmem:[#allocation7 + $0x1e0] sm:$0xff]
    %v2408 = vld [vmem:[#allocation7 + $0x1e8] sm:$0xff]
    %v2409 = vld [vmem:[#allocation7 + $0x1f0] sm:$0xff]
    %v2410 = vld [vmem:[#allocation7 + $0x1f8] sm:$0xff]
    %v2411 = vld [vmem:[#allocation7 + $0x200] sm:$0xff]
    %v2412 = vld [vmem:[#allocation7 + $0x208] sm:$0xff]
    %v2413 = vld [vmem:[#allocation7 + $0x210] sm:$0xff]
    %v2414 = vld [vmem:[#allocation7 + $0x218] sm:$0xff]
    %v2415 = vld [vmem:[#allocation7 + $0x220] sm:$0xff]
    %v2416 = vld [vmem:[#allocation7 + $0x228] sm:$0xff]
    %v2417 = vld [vmem:[#allocation7 + $0x230] sm:$0xff]
    %v2418 = vld [vmem:[#allocation7 + $0x238] sm:$0xff]
    %v2419 = vld [vmem:[#allocation7 + $0x240] sm:$0xff]
    %v2420 = vld [vmem:[#allocation7 + $0x248] sm:$0xff]
    %v2421 = vld [vmem:[#allocation7 + $0x250] sm:$0xff]
    %v2422 = vld [vmem:[#allocation7 + $0x258] sm:$0xff]
    %v2423 = vld [vmem:[#allocation7 + $0x260] sm:$0xff]
    %v2424 = vld [vmem:[#allocation7 + $0x268] sm:$0xff]
    %v2425 = vld [vmem:[#allocation7 + $0x270] sm:$0xff]
    %v2426 = vld [vmem:[#allocation7 + $0x278] sm:$0xff]
    %v2427 = vld [vmem:[#allocation7 + $0x280] sm:$0xff]
    %v2428 = vld [vmem:[#allocation7 + $0x288] sm:$0xff]
    %v2429 = vld [vmem:[#allocation7 + $0x290] sm:$0xff]
    %v2430 = vld [vmem:[#allocation7 + $0x298] sm:$0xff]
    %v2431 = vld [vmem:[#allocation7 + $0x2a0] sm:$0xff]
    %v2432 = vld [vmem:[#allocation7 + $0x2a8] sm:$0xff]
    %v2433 = vld [vmem:[#allocation7 + $0x2b0] sm:$0xff]
    %v2434 = vld [vmem:[#allocation7 + $0x2b8] sm:$0xff]
    %v2435 = vld [vmem:[#allocation7 + $0x2c0] sm:$0xff]
    %v2436 = vld [vmem:[#allocation7 + $0x2c8] sm:$0xff]
    %v2437 = vld [vmem:[#allocation7 + $0x2d0] sm:$0xff]
    %v2438 = vld [vmem:[#allocation7 + $0x2d8] sm:$0xff]
    %v2439 = vld [vmem:[#allocation7 + $0x2e0] sm:$0xff]
    %v2440 = vld [vmem:[#allocation7 + $0x2e8] sm:$0xff]
    %v2441 = vld [vmem:[#allocation7 + $0x2f0] sm:$0xff]
    %v2442 = vld [vmem:[#allocation7 + $0x2f8] sm:$0xff]
    %v2443 = vld [vmem:[#allocation7 + $0x300] sm:$0xff]
    %v2444 = vld [vmem:[#allocation7 + $0x308] sm:$0xff]
    %v2445 = vld [vmem:[#allocation7 + $0x310] sm:$0xff]
    %v2446 = vld [vmem:[#allocation7 + $0x318] sm:$0xff]
    %v2447 = vld [vmem:[#allocation7 + $0x320] sm:$0xff]
    %v2448 = vld [vmem:[#allocation7 + $0x328] sm:$0xff]
    %v2449 = vld [vmem:[#allocation7 + $0x330] sm:$0xff]
    %v2450 = vld [vmem:[#allocation7 + $0x338] sm:$0xff]
    %v2451 = vld [vmem:[#allocation7 + $0x340] sm:$0xff]
    %v2452 = vld [vmem:[#allocation7 + $0x348] sm:$0xff]
    %v2453 = vld [vmem:[#allocation7 + $0x350] sm:$0xff]
    %v2454 = vld [vmem:[#allocation7 + $0x358] sm:$0xff]
    %v2455 = vld [vmem:[#allocation7 + $0x360] sm:$0xff]
    %v2456 = vld [vmem:[#allocation7 + $0x368] sm:$0xff]
    %v2457 = vld [vmem:[#allocation7 + $0x370] sm:$0xff]
    %v2458 = vld [vmem:[#allocation7 + $0x378] sm:$0xff]
    %v2459 = vld [vmem:[#allocation7 + $0x380] sm:$0xff]
    %v2460 = vld [vmem:[#allocation7 + $0x388] sm:$0xff]
    %v2461 = vld [vmem:[#allocation7 + $0x390] sm:$0xff]
    %v2462 = vld [vmem:[#allocation7 + $0x398] sm:$0xff]
    %v2463 = vld [vmem:[#allocation7 + $0x3a0] sm:$0xff]
    %v2464 = vld [vmem:[#allocation7 + $0x3a8] sm:$0xff]
    %v2465 = vld [vmem:[#allocation7 + $0x3b0] sm:$0xff]
    %v2466 = vld [vmem:[#allocation7 + $0x3b8] sm:$0xff]
    %v2467 = vld [vmem:[#allocation7 + $0x3c0] sm:$0xff]
    %v2468 = vld [vmem:[#allocation7 + $0x3c8] sm:$0xff]
    %v2469 = vld [vmem:[#allocation7 + $0x3d0] sm:$0xff]
    %v2470 = vld [vmem:[#allocation7 + $0x3d8] sm:$0xff]
    %v2471 = vld [vmem:[#allocation7 + $0x3e0] sm:$0xff]
    %v2472 = vld [vmem:[#allocation7 + $0x3e8] sm:$0xff]
    %v2473 = vld [vmem:[#allocation7 + $0x3f0] sm:$0xff]
    %v2474 = vld [vmem:[#allocation7 + $0x3f8] sm:$0xff]
    %v2475 = vpack.c.bf16 %v2345, %v2345
    %v2476 = vpack.c.bf16 %v2346, %v2346
    %v2477 = vld [vmem:[%s15] sm:$0xff]
    %v2479 = vperm.slane %v2477, 0
    %v2480 = vperm.slane %v2477, 1
    %v2481 = vperm.slane %v2477, 2
    %v2482 = vperm.slane %v2477, 3
    %v2483 = vperm.slane %v2477, 4
    %v2484 = vperm.slane %v2477, 5
    %v2485 = vperm.slane %v2477, 6
    %v2486 = vperm.slane %v2477, 7
    %v2623 = vunpack.c.l.b16 %v2347
    %v2624 = vunpack.c.h.b16 %v2347
    %v2625 = vunpack.c.l.b16 %v2348
    %v2626 = vunpack.c.h.b16 %v2348
    %v2627 = vunpack.c.l.b16 %v2349
    %v2628 = vunpack.c.h.b16 %v2349
    %v2629 = vunpack.c.l.b16 %v2350
    %v2630 = vunpack.c.h.b16 %v2350
    %v2631 = vunpack.c.l.b16 %v2351
    %v2632 = vunpack.c.h.b16 %v2351
    %v2633 = vunpack.c.l.b16 %v2352
    %v2634 = vunpack.c.h.b16 %v2352
    %v2635 = vunpack.c.l.b16 %v2353
    %v2636 = vunpack.c.h.b16 %v2353
    %v2637 = vunpack.c.l.b16 %v2354
    %v2638 = vunpack.c.h.b16 %v2354
    %v2639 = vunpack.c.l.b16 %v2355
    %v2640 = vunpack.c.h.b16 %v2355
    %v2641 = vunpack.c.l.b16 %v2356
    %v2642 = vunpack.c.h.b16 %v2356
    %v2643 = vunpack.c.l.b16 %v2357
    %v2644 = vunpack.c.h.b16 %v2357
    %v2645 = vunpack.c.l.b16 %v2358
    %v2646 = vunpack.c.h.b16 %v2358
    %v2647 = vunpack.c.l.b16 %v2359
    %v2648 = vunpack.c.h.b16 %v2359
    %v2649 = vunpack.c.l.b16 %v2360
    %v2650 = vunpack.c.h.b16 %v2360
    %v2651 = vunpack.c.l.b16 %v2361
    %v2652 = vunpack.c.h.b16 %v2361
    %v2653 = vunpack.c.l.b16 %v2362
    %v2654 = vunpack.c.h.b16 %v2362
    %v2655 = vunpack.c.l.b16 %v2363
    %v2656 = vunpack.c.h.b16 %v2363
    %v2657 = vunpack.c.l.b16 %v2364
    %v2658 = vunpack.c.h.b16 %v2364
    %v2659 = vunpack.c.l.b16 %v2365
    %v2660 = vunpack.c.h.b16 %v2365
    %v2661 = vunpack.c.l.b16 %v2366
    %v2662 = vunpack.c.h.b16 %v2366
    %v2663 = vunpack.c.l.b16 %v2367
    %v2664 = vunpack.c.h.b16 %v2367
    %v2665 = vunpack.c.l.b16 %v2368
    %v2666 = vunpack.c.h.b16 %v2368
    %v2667 = vunpack.c.l.b16 %v2369
    %v2668 = vunpack.c.h.b16 %v2369
    %v2669 = vunpack.c.l.b16 %v2370
    %v2670 = vunpack.c.h.b16 %v2370
    %v2671 = vunpack.c.l.b16 %v2371
    %v2672 = vunpack.c.h.b16 %v2371
    %v2673 = vunpack.c.l.b16 %v2372
    %v2674 = vunpack.c.h.b16 %v2372
    %v2675 = vunpack.c.l.b16 %v2373
    %v2676 = vunpack.c.h.b16 %v2373
    %v2677 = vunpack.c.l.b16 %v2374
    %v2678 = vunpack.c.h.b16 %v2374
    %v2679 = vunpack.c.l.b16 %v2375
    %v2680 = vunpack.c.h.b16 %v2375
    %v2681 = vunpack.c.l.b16 %v2376
    %v2682 = vunpack.c.h.b16 %v2376
    %v2683 = vunpack.c.l.b16 %v2377
    %v2684 = vunpack.c.h.b16 %v2377
    %v2685 = vunpack.c.l.b16 %v2378
    %v2686 = vunpack.c.h.b16 %v2378
    %v2687 = vunpack.c.l.b16 %v2379
    %v2688 = vunpack.c.h.b16 %v2379
    %v2689 = vunpack.c.l.b16 %v2380
    %v2690 = vunpack.c.h.b16 %v2380
    %v2691 = vunpack.c.l.b16 %v2381
    %v2692 = vunpack.c.h.b16 %v2381
    %v2693 = vunpack.c.l.b16 %v2382
    %v2694 = vunpack.c.h.b16 %v2382
    %v2695 = vunpack.c.l.b16 %v2383
    %v2696 = vunpack.c.h.b16 %v2383
    %v2697 = vunpack.c.l.b16 %v2384
    %v2698 = vunpack.c.h.b16 %v2384
    %v2699 = vunpack.c.l.b16 %v2385
    %v2700 = vunpack.c.h.b16 %v2385
    %v2701 = vunpack.c.l.b16 %v2386
    %v2702 = vunpack.c.h.b16 %v2386
    %v2703 = vunpack.c.l.b16 %v2387
    %v2704 = vunpack.c.h.b16 %v2387
    %v2705 = vunpack.c.l.b16 %v2388
    %v2706 = vunpack.c.h.b16 %v2388
    %v2707 = vunpack.c.l.b16 %v2389
    %v2708 = vunpack.c.h.b16 %v2389
    %v2709 = vunpack.c.l.b16 %v2390
    %v2710 = vunpack.c.h.b16 %v2390
    %v2711 = vunpack.c.l.b16 %v2391
    %v2712 = vunpack.c.h.b16 %v2391
    %v2713 = vunpack.c.l.b16 %v2392
    %v2714 = vunpack.c.h.b16 %v2392
    %v2715 = vunpack.c.l.b16 %v2393
    %v2716 = vunpack.c.h.b16 %v2393
    %v2717 = vunpack.c.l.b16 %v2394
    %v2718 = vunpack.c.h.b16 %v2394
    %v2719 = vunpack.c.l.b16 %v2395
    %v2720 = vunpack.c.h.b16 %v2395
    %v2721 = vunpack.c.l.b16 %v2396
    %v2722 = vunpack.c.h.b16 %v2396
    %v2723 = vunpack.c.l.b16 %v2397
    %v2724 = vunpack.c.h.b16 %v2397
    %v2725 = vunpack.c.l.b16 %v2398
    %v2726 = vunpack.c.h.b16 %v2398
    %v2727 = vunpack.c.l.b16 %v2399
    %v2728 = vunpack.c.h.b16 %v2399
    %v2729 = vunpack.c.l.b16 %v2400
    %v2730 = vunpack.c.h.b16 %v2400
    %v2731 = vunpack.c.l.b16 %v2401
    %v2732 = vunpack.c.h.b16 %v2401
    %v2733 = vunpack.c.l.b16 %v2402
    %v2734 = vunpack.c.h.b16 %v2402
    %v2735 = vunpack.c.l.b16 %v2403
    %v2736 = vunpack.c.h.b16 %v2403
    %v2737 = vunpack.c.l.b16 %v2404
    %v2738 = vunpack.c.h.b16 %v2404
    %v2739 = vunpack.c.l.b16 %v2405
    %v2740 = vunpack.c.h.b16 %v2405
    %v2741 = vunpack.c.l.b16 %v2406
    %v2742 = vunpack.c.h.b16 %v2406
    %v2743 = vunpack.c.l.b16 %v2407
    %v2744 = vunpack.c.h.b16 %v2407
    %v2745 = vunpack.c.l.b16 %v2408
    %v2746 = vunpack.c.h.b16 %v2408
    %v2747 = vunpack.c.l.b16 %v2409
    %v2748 = vunpack.c.h.b16 %v2409
    %v2749 = vunpack.c.l.b16 %v2410
    %v2750 = vunpack.c.h.b16 %v2410
    %v2751 = vunpack.c.l.b16 %v2411
    %v2752 = vunpack.c.h.b16 %v2411
    %v2753 = vunpack.c.l.b16 %v2412
    %v2754 = vunpack.c.h.b16 %v2412
    %v2755 = vunpack.c.l.b16 %v2413
    %v2756 = vunpack.c.h.b16 %v2413
    %v2757 = vunpack.c.l.b16 %v2414
    %v2758 = vunpack.c.h.b16 %v2414
    %v2759 = vunpack.c.l.b16 %v2415
    %v2760 = vunpack.c.h.b16 %v2415
    %v2761 = vunpack.c.l.b16 %v2416
    %v2762 = vunpack.c.h.b16 %v2416
    %v2763 = vunpack.c.l.b16 %v2417
    %v2764 = vunpack.c.h.b16 %v2417
    %v2765 = vunpack.c.l.b16 %v2418
    %v2766 = vunpack.c.h.b16 %v2418
    %v2767 = vunpack.c.l.b16 %v2419
    %v2768 = vunpack.c.h.b16 %v2419
    %v2769 = vunpack.c.l.b16 %v2420
    %v2770 = vunpack.c.h.b16 %v2420
    %v2771 = vunpack.c.l.b16 %v2421
    %v2772 = vunpack.c.h.b16 %v2421
    %v2773 = vunpack.c.l.b16 %v2422
    %v2774 = vunpack.c.h.b16 %v2422
    %v2775 = vunpack.c.l.b16 %v2423
    %v2776 = vunpack.c.h.b16 %v2423
    %v2777 = vunpack.c.l.b16 %v2424
    %v2778 = vunpack.c.h.b16 %v2424
    %v2779 = vunpack.c.l.b16 %v2425
    %v2780 = vunpack.c.h.b16 %v2425
    %v2781 = vunpack.c.l.b16 %v2426
    %v2782 = vunpack.c.h.b16 %v2426
    %v2783 = vunpack.c.l.b16 %v2427
    %v2784 = vunpack.c.h.b16 %v2427
    %v2785 = vunpack.c.l.b16 %v2428
    %v2786 = vunpack.c.h.b16 %v2428
    %v2787 = vunpack.c.l.b16 %v2429
    %v2788 = vunpack.c.h.b16 %v2429
    %v2789 = vunpack.c.l.b16 %v2430
    %v2790 = vunpack.c.h.b16 %v2430
    %v2791 = vunpack.c.l.b16 %v2431
    %v2792 = vunpack.c.h.b16 %v2431
    %v2793 = vunpack.c.l.b16 %v2432
    %v2794 = vunpack.c.h.b16 %v2432
    %v2795 = vunpack.c.l.b16 %v2433
    %v2796 = vunpack.c.h.b16 %v2433
    %v2797 = vunpack.c.l.b16 %v2434
    %v2798 = vunpack.c.h.b16 %v2434
    %v2799 = vunpack.c.l.b16 %v2435
    %v2800 = vunpack.c.h.b16 %v2435
    %v2801 = vunpack.c.l.b16 %v2436
    %v2802 = vunpack.c.h.b16 %v2436
    %v2803 = vunpack.c.l.b16 %v2437
    %v2804 = vunpack.c.h.b16 %v2437
    %v2805 = vunpack.c.l.b16 %v2438
    %v2806 = vunpack.c.h.b16 %v2438
    %v2807 = vunpack.c.l.b16 %v2439
    %v2808 = vunpack.c.h.b16 %v2439
    %v2809 = vunpack.c.l.b16 %v2440
    %v2810 = vunpack.c.h.b16 %v2440
    %v2811 = vunpack.c.l.b16 %v2441
    %v2812 = vunpack.c.h.b16 %v2441
    %v2813 = vunpack.c.l.b16 %v2442
    %v2814 = vunpack.c.h.b16 %v2442
    %v2815 = vunpack.c.l.b16 %v2443
    %v2816 = vunpack.c.h.b16 %v2443
    %v2817 = vunpack.c.l.b16 %v2444
    %v2818 = vunpack.c.h.b16 %v2444
    %v2819 = vunpack.c.l.b16 %v2445
    %v2820 = vunpack.c.h.b16 %v2445
    %v2821 = vunpack.c.l.b16 %v2446
    %v2822 = vunpack.c.h.b16 %v2446
    %v2823 = vunpack.c.l.b16 %v2447
    %v2824 = vunpack.c.h.b16 %v2447
    %v2825 = vunpack.c.l.b16 %v2448
    %v2826 = vunpack.c.h.b16 %v2448
    %v2827 = vunpack.c.l.b16 %v2449
    %v2828 = vunpack.c.h.b16 %v2449
    %v2829 = vunpack.c.l.b16 %v2450
    %v2830 = vunpack.c.h.b16 %v2450
    %v2831 = vunpack.c.l.b16 %v2451
    %v2832 = vunpack.c.h.b16 %v2451
    %v2833 = vunpack.c.l.b16 %v2452
    %v2834 = vunpack.c.h.b16 %v2452
    %v2835 = vunpack.c.l.b16 %v2453
    %v2836 = vunpack.c.h.b16 %v2453
    %v2837 = vunpack.c.l.b16 %v2454
    %v2838 = vunpack.c.h.b16 %v2454
    %v2839 = vunpack.c.l.b16 %v2455
    %v2840 = vunpack.c.h.b16 %v2455
    %v2841 = vunpack.c.l.b16 %v2456
    %v2842 = vunpack.c.h.b16 %v2456
    %v2843 = vunpack.c.l.b16 %v2457
    %v2844 = vunpack.c.h.b16 %v2457
    %v2845 = vunpack.c.l.b16 %v2458
    %v2846 = vunpack.c.h.b16 %v2458
    %v2847 = vunpack.c.l.b16 %v2459
    %v2848 = vunpack.c.h.b16 %v2459
    %v2849 = vunpack.c.l.b16 %v2460
    %v2850 = vunpack.c.h.b16 %v2460
    %v2851 = vunpack.c.l.b16 %v2461
    %v2852 = vunpack.c.h.b16 %v2461
    %v2853 = vunpack.c.l.b16 %v2462
    %v2854 = vunpack.c.h.b16 %v2462
    %v2855 = vunpack.c.l.b16 %v2463
    %v2856 = vunpack.c.h.b16 %v2463
    %v2857 = vunpack.c.l.b16 %v2464
    %v2858 = vunpack.c.h.b16 %v2464
    %v2859 = vunpack.c.l.b16 %v2465
    %v2860 = vunpack.c.h.b16 %v2465
    %v2861 = vunpack.c.l.b16 %v2466
    %v2862 = vunpack.c.h.b16 %v2466
    %v2863 = vunpack.c.l.b16 %v2467
    %v2864 = vunpack.c.h.b16 %v2467
    %v2865 = vunpack.c.l.b16 %v2468
    %v2866 = vunpack.c.h.b16 %v2468
    %v2867 = vunpack.c.l.b16 %v2469
    %v2868 = vunpack.c.h.b16 %v2469
    %v2869 = vunpack.c.l.b16 %v2470
    %v2870 = vunpack.c.h.b16 %v2470
    %v2871 = vunpack.c.l.b16 %v2471
    %v2872 = vunpack.c.h.b16 %v2471
    %v2873 = vunpack.c.l.b16 %v2472
    %v2874 = vunpack.c.h.b16 %v2472
    %v2875 = vunpack.c.l.b16 %v2473
    %v2876 = vunpack.c.h.b16 %v2473
    %v2877 = vunpack.c.l.b16 %v2474
    %v2878 = vunpack.c.h.b16 %v2474
    %v2879 = vpack.c.b16 %v2631, %v2623
    %v2880 = vpack.c.b16 %v2632, %v2624
    %v2881 = vpack.c.b16 %v2633, %v2625
    %v2882 = vpack.c.b16 %v2634, %v2626
    %v2883 = vpack.c.b16 %v2635, %v2627
    %v2884 = vpack.c.b16 %v2636, %v2628
    %v2885 = vpack.c.b16 %v2637, %v2629
    %v2886 = vpack.c.b16 %v2638, %v2630
    %v2887 = vpack.c.b16 %v2647, %v2639
    %v2888 = vpack.c.b16 %v2648, %v2640
    %v2889 = vpack.c.b16 %v2649, %v2641
    %v2890 = vpack.c.b16 %v2650, %v2642
    %v2891 = vpack.c.b16 %v2651, %v2643
    %v2892 = vpack.c.b16 %v2652, %v2644
    %v2893 = vpack.c.b16 %v2653, %v2645
    %v2894 = vpack.c.b16 %v2654, %v2646
    %v2895 = vpack.c.b16 %v2663, %v2655
    %v2896 = vpack.c.b16 %v2664, %v2656
    %v2897 = vpack.c.b16 %v2665, %v2657
    %v2898 = vpack.c.b16 %v2666, %v2658
    %v2899 = vpack.c.b16 %v2667, %v2659
    %v2900 = vpack.c.b16 %v2668, %v2660
    %v2901 = vpack.c.b16 %v2669, %v2661
    %v2902 = vpack.c.b16 %v2670, %v2662
    %v2903 = vpack.c.b16 %v2679, %v2671
    %v2904 = vpack.c.b16 %v2680, %v2672
    %v2905 = vpack.c.b16 %v2681, %v2673
    %v2906 = vpack.c.b16 %v2682, %v2674
    %v2907 = vpack.c.b16 %v2683, %v2675
    %v2908 = vpack.c.b16 %v2684, %v2676
    %v2909 = vpack.c.b16 %v2685, %v2677
    %v2910 = vpack.c.b16 %v2686, %v2678
    %v2911 = vpack.c.b16 %v2695, %v2687
    %v2912 = vpack.c.b16 %v2696, %v2688
    %v2913 = vpack.c.b16 %v2697, %v2689
    %v2914 = vpack.c.b16 %v2698, %v2690
    %v2915 = vpack.c.b16 %v2699, %v2691
    %v2916 = vpack.c.b16 %v2700, %v2692
    %v2917 = vpack.c.b16 %v2701, %v2693
    %v2918 = vpack.c.b16 %v2702, %v2694
    %v2919 = vpack.c.b16 %v2711, %v2703
    %v2920 = vpack.c.b16 %v2712, %v2704
    %v2921 = vpack.c.b16 %v2713, %v2705
    %v2922 = vpack.c.b16 %v2714, %v2706
    %v2923 = vpack.c.b16 %v2715, %v2707
    %v2924 = vpack.c.b16 %v2716, %v2708
    %v2925 = vpack.c.b16 %v2717, %v2709
    %v2926 = vpack.c.b16 %v2718, %v2710
    %v2927 = vpack.c.b16 %v2727, %v2719
    %v2928 = vpack.c.b16 %v2728, %v2720
    %v2929 = vpack.c.b16 %v2729, %v2721
    %v2930 = vpack.c.b16 %v2730, %v2722
    %v2931 = vpack.c.b16 %v2731, %v2723
    %v2932 = vpack.c.b16 %v2732, %v2724
    %v2933 = vpack.c.b16 %v2733, %v2725
    %v2934 = vpack.c.b16 %v2734, %v2726
    %v2935 = vpack.c.b16 %v2743, %v2735
    %v2936 = vpack.c.b16 %v2744, %v2736
    %v2937 = vpack.c.b16 %v2745, %v2737
    %v2938 = vpack.c.b16 %v2746, %v2738
    %v2939 = vpack.c.b16 %v2747, %v2739
    %v2940 = vpack.c.b16 %v2748, %v2740
    %v2941 = vpack.c.b16 %v2749, %v2741
    %v2942 = vpack.c.b16 %v2750, %v2742
    %v2943 = vpack.c.b16 %v2759, %v2751
    %v2944 = vpack.c.b16 %v2760, %v2752
    %v2945 = vpack.c.b16 %v2761, %v2753
    %v2946 = vpack.c.b16 %v2762, %v2754
    %v2947 = vpack.c.b16 %v2763, %v2755
    %v2948 = vpack.c.b16 %v2764, %v2756
    %v2949 = vpack.c.b16 %v2765, %v2757
    %v2950 = vpack.c.b16 %v2766, %v2758
    %v2951 = vpack.c.b16 %v2775, %v2767
    %v2952 = vpack.c.b16 %v2776, %v2768
    %v2953 = vpack.c.b16 %v2777, %v2769
    %v2954 = vpack.c.b16 %v2778, %v2770
    %v2955 = vpack.c.b16 %v2779, %v2771
    %v2956 = vpack.c.b16 %v2780, %v2772
    %v2957 = vpack.c.b16 %v2781, %v2773
    %v2958 = vpack.c.b16 %v2782, %v2774
    %v2959 = vpack.c.b16 %v2791, %v2783
    %v2960 = vpack.c.b16 %v2792, %v2784
    %v2961 = vpack.c.b16 %v2793, %v2785
    %v2962 = vpack.c.b16 %v2794, %v2786
    %v2963 = vpack.c.b16 %v2795, %v2787
    %v2964 = vpack.c.b16 %v2796, %v2788
    %v2965 = vpack.c.b16 %v2797, %v2789
    %v2966 = vpack.c.b16 %v2798, %v2790
    %v2967 = vpack.c.b16 %v2807, %v2799
    %v2968 = vpack.c.b16 %v2808, %v2800
    %v2969 = vpack.c.b16 %v2809, %v2801
    %v2970 = vpack.c.b16 %v2810, %v2802
    %v2971 = vpack.c.b16 %v2811, %v2803
    %v2972 = vpack.c.b16 %v2812, %v2804
    %v2973 = vpack.c.b16 %v2813, %v2805
    %v2974 = vpack.c.b16 %v2814, %v2806
    %v2975 = vpack.c.b16 %v2823, %v2815
    %v2976 = vpack.c.b16 %v2824, %v2816
    %v2977 = vpack.c.b16 %v2825, %v2817
    %v2978 = vpack.c.b16 %v2826, %v2818
    %v2979 = vpack.c.b16 %v2827, %v2819
    %v2980 = vpack.c.b16 %v2828, %v2820
    %v2981 = vpack.c.b16 %v2829, %v2821
    %v2982 = vpack.c.b16 %v2830, %v2822
    %v2983 = vpack.c.b16 %v2839, %v2831
    %v2984 = vpack.c.b16 %v2840, %v2832
    %v2985 = vpack.c.b16 %v2841, %v2833
    %v2986 = vpack.c.b16 %v2842, %v2834
    %v2987 = vpack.c.b16 %v2843, %v2835
    %v2988 = vpack.c.b16 %v2844, %v2836
    %v2989 = vpack.c.b16 %v2845, %v2837
    %v2990 = vpack.c.b16 %v2846, %v2838
    %v2991 = vpack.c.b16 %v2855, %v2847
    %v2992 = vpack.c.b16 %v2856, %v2848
    %v2993 = vpack.c.b16 %v2857, %v2849
    %v2994 = vpack.c.b16 %v2858, %v2850
    %v2995 = vpack.c.b16 %v2859, %v2851
    %v2996 = vpack.c.b16 %v2860, %v2852
    %v2997 = vpack.c.b16 %v2861, %v2853
    %v2998 = vpack.c.b16 %v2862, %v2854
    %v2999 = vpack.c.b16 %v2871, %v2863
    %v3000 = vpack.c.b16 %v2872, %v2864
    %v3001 = vpack.c.b16 %v2873, %v2865
    %v3002 = vpack.c.b16 %v2874, %v2866
    %v3003 = vpack.c.b16 %v2875, %v2867
    %v3004 = vpack.c.b16 %v2876, %v2868
    %v3005 = vpack.c.b16 %v2877, %v2869
    %v3006 = vpack.c.b16 %v2878, %v2870
    %3135 = vmatpush.bf16.msra.mxu0 %v2935
    %3136 = vmatpush.bf16.msra.mxu0 %v2927
    %3137 = vmatpush.bf16.msra.mxu0 %v2919
    %3138 = vmatpush.bf16.msra.mxu0 %v2911
    %3139 = vmatpush.bf16.msra.mxu0 %v2903
    %3140 = vmatpush.bf16.msra.mxu0 %v2895
    %3141 = vmatpush.bf16.msra.mxu0 %v2887
    %3142 = vmatpush.bf16.msra.mxu0 %v2879
    %3143 = vmatmul.bf16.gmra.mxu0 %v2475
    %v3144 = vpop.f32.mrf.mxu0
    %v3145 = vadd.f32 %v2479, %v3144
    %v3146 = vpop.f32.mrf.mxu0
    %3147 = vdwg.mxu0
    %3148 = vmatpush.bf16.msra.mxu0 %v2999
    %3149 = vmatpush.bf16.msra.mxu0 %v2991
    %3150 = vmatpush.bf16.msra.mxu0 %v2983
    %3151 = vmatpush.bf16.msra.mxu0 %v2975
    %3152 = vmatpush.bf16.msra.mxu0 %v2967
    %3153 = vmatpush.bf16.msra.mxu0 %v2959
    %3154 = vmatpush.bf16.msra.mxu0 %v2951
    %3155 = vmatpush.bf16.msra.mxu0 %v2943
    %3156 = vmatmul.bf16.gmra.mxu0 %v2476
    %v3157 = vpop.f32.mrf.mxu0
    %v3158 = vadd.f32 %v3145, %v3157
    %v3159 = vpop.f32.mrf.mxu0
    %3160 = vdwg.mxu0
    %3161 = vmatpush.bf16.msra.mxu0 %v2936
    %3162 = vmatpush.bf16.msra.mxu0 %v2928
    %3163 = vmatpush.bf16.msra.mxu0 %v2920
    %3164 = vmatpush.bf16.msra.mxu0 %v2912
    %3165 = vmatpush.bf16.msra.mxu0 %v2904
    %3166 = vmatpush.bf16.msra.mxu0 %v2896
    %3167 = vmatpush.bf16.msra.mxu0 %v2888
    %3168 = vmatpush.bf16.msra.mxu0 %v2880
    %3169 = vmatmul.bf16.gmra.mxu0 %v2475
    %v3170 = vpop.f32.mrf.mxu0
    %v3171 = vadd.f32 %v2480, %v3170
    %v3172 = vpop.f32.mrf.mxu0
    %3173 = vdwg.mxu0
    %3174 = vmatpush.bf16.msra.mxu0 %v3000
    %3175 = vmatpush.bf16.msra.mxu0 %v2992
    %3176 = vmatpush.bf16.msra.mxu0 %v2984
    %3177 = vmatpush.bf16.msra.mxu0 %v2976
    %3178 = vmatpush.bf16.msra.mxu0 %v2968
    %3179 = vmatpush.bf16.msra.mxu0 %v2960
    %3180 = vmatpush.bf16.msra.mxu0 %v2952
    %3181 = vmatpush.bf16.msra.mxu0 %v2944
    %3182 = vmatmul.bf16.gmra.mxu0 %v2476
    %v3183 = vpop.f32.mrf.mxu0
    %v3184 = vadd.f32 %v3171, %v3183
    %v3185 = vpop.f32.mrf.mxu0
    %3186 = vdwg.mxu0
    %3187 = vmatpush.bf16.msra.mxu0 %v2937
    %3188 = vmatpush.bf16.msra.mxu0 %v2929
    %3189 = vmatpush.bf16.msra.mxu0 %v2921
    %3190 = vmatpush.bf16.msra.mxu0 %v2913
    %3191 = vmatpush.bf16.msra.mxu0 %v2905
    %3192 = vmatpush.bf16.msra.mxu0 %v2897
    %3193 = vmatpush.bf16.msra.mxu0 %v2889
    %3194 = vmatpush.bf16.msra.mxu0 %v2881
    %3195 = vmatmul.bf16.gmra.mxu0 %v2475
    %v3196 = vpop.f32.mrf.mxu0
    %v3197 = vadd.f32 %v2481, %v3196
    %v3198 = vpop.f32.mrf.mxu0
    %3199 = vdwg.mxu0
    %3200 = vmatpush.bf16.msra.mxu0 %v3001
    %3201 = vmatpush.bf16.msra.mxu0 %v2993
    %3202 = vmatpush.bf16.msra.mxu0 %v2985
    %3203 = vmatpush.bf16.msra.mxu0 %v2977
    %3204 = vmatpush.bf16.msra.mxu0 %v2969
    %3205 = vmatpush.bf16.msra.mxu0 %v2961
    %3206 = vmatpush.bf16.msra.mxu0 %v2953
    %3207 = vmatpush.bf16.msra.mxu0 %v2945
    %3208 = vmatmul.bf16.gmra.mxu0 %v2476
    %v3209 = vpop.f32.mrf.mxu0
    %v3210 = vadd.f32 %v3197, %v3209
    %v3211 = vpop.f32.mrf.mxu0
    %3212 = vdwg.mxu0
    %3213 = vmatpush.bf16.msra.mxu0 %v2938
    %3214 = vmatpush.bf16.msra.mxu0 %v2930
    %3215 = vmatpush.bf16.msra.mxu0 %v2922
    %3216 = vmatpush.bf16.msra.mxu0 %v2914
    %3217 = vmatpush.bf16.msra.mxu0 %v2906
    %3218 = vmatpush.bf16.msra.mxu0 %v2898
    %3219 = vmatpush.bf16.msra.mxu0 %v2890
    %3220 = vmatpush.bf16.msra.mxu0 %v2882
    %3221 = vmatmul.bf16.gmra.mxu0 %v2475
    %v3222 = vpop.f32.mrf.mxu0
    %v3223 = vadd.f32 %v2482, %v3222
    %v3224 = vpop.f32.mrf.mxu0
    %3225 = vdwg.mxu0
    %3226 = vmatpush.bf16.msra.mxu0 %v3002
    %3227 = vmatpush.bf16.msra.mxu0 %v2994
    %3228 = vmatpush.bf16.msra.mxu0 %v2986
    %3229 = vmatpush.bf16.msra.mxu0 %v2978
    %3230 = vmatpush.bf16.msra.mxu0 %v2970
    %3231 = vmatpush.bf16.msra.mxu0 %v2962
    %3232 = vmatpush.bf16.msra.mxu0 %v2954
    %3233 = vmatpush.bf16.msra.mxu0 %v2946
    %3234 = vmatmul.bf16.gmra.mxu0 %v2476
    %v3235 = vpop.f32.mrf.mxu0
    %v3236 = vadd.f32 %v3223, %v3235
    %v3237 = vpop.f32.mrf.mxu0
    %3238 = vdwg.mxu0
    %3239 = vmatpush.bf16.msra.mxu0 %v2939
    %3240 = vmatpush.bf16.msra.mxu0 %v2931
    %3241 = vmatpush.bf16.msra.mxu0 %v2923
    %3242 = vmatpush.bf16.msra.mxu0 %v2915
    %3243 = vmatpush.bf16.msra.mxu0 %v2907
    %3244 = vmatpush.bf16.msra.mxu0 %v2899
    %3245 = vmatpush.bf16.msra.mxu0 %v2891
    %3246 = vmatpush.bf16.msra.mxu0 %v2883
    %3247 = vmatmul.bf16.gmra.mxu0 %v2475
    %v3248 = vpop.f32.mrf.mxu0
    %v3249 = vadd.f32 %v2483, %v3248
    %v3250 = vpop.f32.mrf.mxu0
    %3251 = vdwg.mxu0
    %3252 = vmatpush.bf16.msra.mxu0 %v3003
    %3253 = vmatpush.bf16.msra.mxu0 %v2995
    %3254 = vmatpush.bf16.msra.mxu0 %v2987
    %3255 = vmatpush.bf16.msra.mxu0 %v2979
    %3256 = vmatpush.bf16.msra.mxu0 %v2971
    %3257 = vmatpush.bf16.msra.mxu0 %v2963
    %3258 = vmatpush.bf16.msra.mxu0 %v2955
    %3259 = vmatpush.bf16.msra.mxu0 %v2947
    %3260 = vmatmul.bf16.gmra.mxu0 %v2476
    %v3261 = vpop.f32.mrf.mxu0
    %v3262 = vadd.f32 %v3249, %v3261
    %v3263 = vpop.f32.mrf.mxu0
    %3264 = vdwg.mxu0
    %3265 = vmatpush.bf16.msra.mxu0 %v2940
    %3266 = vmatpush.bf16.msra.mxu0 %v2932
    %3267 = vmatpush.bf16.msra.mxu0 %v2924
    %3268 = vmatpush.bf16.msra.mxu0 %v2916
    %3269 = vmatpush.bf16.msra.mxu0 %v2908
    %3270 = vmatpush.bf16.msra.mxu0 %v2900
    %3271 = vmatpush.bf16.msra.mxu0 %v2892
    %3272 = vmatpush.bf16.msra.mxu0 %v2884
    %3273 = vmatmul.bf16.gmra.mxu0 %v2475
    %v3274 = vpop.f32.mrf.mxu0
    %v3275 = vadd.f32 %v2484, %v3274
    %v3276 = vpop.f32.mrf.mxu0
    %3277 = vdwg.mxu0
    %3278 = vmatpush.bf16.msra.mxu0 %v3004
    %3279 = vmatpush.bf16.msra.mxu0 %v2996
    %3280 = vmatpush.bf16.msra.mxu0 %v2988
    %3281 = vmatpush.bf16.msra.mxu0 %v2980
    %3282 = vmatpush.bf16.msra.mxu0 %v2972
    %3283 = vmatpush.bf16.msra.mxu0 %v2964
    %3284 = vmatpush.bf16.msra.mxu0 %v2956
    %3285 = vmatpush.bf16.msra.mxu0 %v2948
    %3286 = vmatmul.bf16.gmra.mxu0 %v2476
    %v3287 = vpop.f32.mrf.mxu0
    %v3288 = vadd.f32 %v3275, %v3287
    %v3289 = vpop.f32.mrf.mxu0
    %3290 = vdwg.mxu0
    %3291 = vmatpush.bf16.msra.mxu0 %v2941
    %3292 = vmatpush.bf16.msra.mxu0 %v2933
    %3293 = vmatpush.bf16.msra.mxu0 %v2925
    %3294 = vmatpush.bf16.msra.mxu0 %v2917
    %3295 = vmatpush.bf16.msra.mxu0 %v2909
    %3296 = vmatpush.bf16.msra.mxu0 %v2901
    %3297 = vmatpush.bf16.msra.mxu0 %v2893
    %3298 = vmatpush.bf16.msra.mxu0 %v2885
    %3299 = vmatmul.bf16.gmra.mxu0 %v2475
    %v3300 = vpop.f32.mrf.mxu0
    %v3301 = vadd.f32 %v2485, %v3300
    %v3302 = vpop.f32.mrf.mxu0
    %3303 = vdwg.mxu0
    %3304 = vmatpush.bf16.msra.mxu0 %v3005
    %3305 = vmatpush.bf16.msra.mxu0 %v2997
    %3306 = vmatpush.bf16.msra.mxu0 %v2989
    %3307 = vmatpush.bf16.msra.mxu0 %v2981
    %3308 = vmatpush.bf16.msra.mxu0 %v2973
    %3309 = vmatpush.bf16.msra.mxu0 %v2965
    %3310 = vmatpush.bf16.msra.mxu0 %v2957
    %3311 = vmatpush.bf16.msra.mxu0 %v2949
    %3312 = vmatmul.bf16.gmra.mxu0 %v2476
    %v3313 = vpop.f32.mrf.mxu0
    %v3314 = vadd.f32 %v3301, %v3313
    %v3315 = vpop.f32.mrf.mxu0
    %3316 = vdwg.mxu0
    %3317 = vmatpush.bf16.msra.mxu0 %v2942
    %3318 = vmatpush.bf16.msra.mxu0 %v2934
    %3319 = vmatpush.bf16.msra.mxu0 %v2926
    %3320 = vmatpush.bf16.msra.mxu0 %v2918
    %3321 = vmatpush.bf16.msra.mxu0 %v2910
    %3322 = vmatpush.bf16.msra.mxu0 %v2902
    %3323 = vmatpush.bf16.msra.mxu0 %v2894
    %3324 = vmatpush.bf16.msra.mxu0 %v2886
    %3325 = vmatmul.bf16.gmra.mxu0 %v2475
    %v3326 = vpop.f32.mrf.mxu0
    %v3327 = vadd.f32 %v2486, %v3326
    %v3328 = vpop.f32.mrf.mxu0
    %3329 = vdwg.mxu0
    %3330 = vmatpush.bf16.msra.mxu0 %v3006
    %3331 = vmatpush.bf16.msra.mxu0 %v2998
    %3332 = vmatpush.bf16.msra.mxu0 %v2990
    %3333 = vmatpush.bf16.msra.mxu0 %v2982
    %3334 = vmatpush.bf16.msra.mxu0 %v2974
    %3335 = vmatpush.bf16.msra.mxu0 %v2966
    %3336 = vmatpush.bf16.msra.mxu0 %v2958
    %3337 = vmatpush.bf16.msra.mxu0 %v2950
    %3338 = vmatmul.bf16.gmra.mxu0 %v2476
    %v3339 = vpop.f32.mrf.mxu0
    %v3340 = vadd.f32 %v3327, %v3339
    %v3341 = vpop.f32.mrf.mxu0
    %3342 = vdwg.mxu0
    %v3343 = vmax.f32 %v3158, 0.0
    %v3344 = vmax.f32 %v3184, 0.0
    %v3345 = vmax.f32 %v3210, 0.0
    %v3346 = vmax.f32 %v3236, 0.0
    %v3347 = vmax.f32 %v3262, 0.0
    %v3348 = vmax.f32 %v3288, 0.0
    %v3349 = vmax.f32 %v3314, 0.0
    %v3350 = vmax.f32 %v3340, 0.0
    %v3351 = vld [vmem:[#allocation8] sm:$0xff]
    %v3352 = vld [vmem:[#allocation8 + $0x8] sm:$0xff]
    %v3353 = vld [vmem:[#allocation8 + $0x10] sm:$0xff]
    %v3354 = vld [vmem:[#allocation8 + $0x18] sm:$0xff]
    %v3355 = vld [vmem:[#allocation8 + $0x20] sm:$0xff]
    %v3356 = vld [vmem:[#allocation8 + $0x28] sm:$0xff]
    %v3357 = vld [vmem:[#allocation8 + $0x30] sm:$0xff]
    %v3358 = vld [vmem:[#allocation8 + $0x38] sm:$0xff]
    %v3359 = vld [vmem:[#allocation8 + $0x40] sm:$0xff]
    %v3360 = vld [vmem:[#allocation8 + $0x48] sm:$0xff]
    %v3361 = vld [vmem:[#allocation8 + $0x50] sm:$0xff]
    %v3362 = vld [vmem:[#allocation8 + $0x58] sm:$0xff]
    %v3363 = vld [vmem:[#allocation8 + $0x60] sm:$0xff]
    %v3364 = vld [vmem:[#allocation8 + $0x68] sm:$0xff]
    %v3365 = vld [vmem:[#allocation8 + $0x70] sm:$0xff]
    %v3366 = vld [vmem:[#allocation8 + $0x78] sm:$0xff]
    %v3367 = vld [vmem:[#allocation8 + $0x80] sm:$0xff]
    %v3368 = vld [vmem:[#allocation8 + $0x88] sm:$0xff]
    %v3369 = vld [vmem:[#allocation8 + $0x90] sm:$0xff]
    %v3370 = vld [vmem:[#allocation8 + $0x98] sm:$0xff]
    %v3371 = vld [vmem:[#allocation8 + $0xa0] sm:$0xff]
    %v3372 = vld [vmem:[#allocation8 + $0xa8] sm:$0xff]
    %v3373 = vld [vmem:[#allocation8 + $0xb0] sm:$0xff]
    %v3374 = vld [vmem:[#allocation8 + $0xb8] sm:$0xff]
    %v3375 = vld [vmem:[#allocation8 + $0xc0] sm:$0xff]
    %v3376 = vld [vmem:[#allocation8 + $0xc8] sm:$0xff]
    %v3377 = vld [vmem:[#allocation8 + $0xd0] sm:$0xff]
    %v3378 = vld [vmem:[#allocation8 + $0xd8] sm:$0xff]
    %v3379 = vld [vmem:[#allocation8 + $0xe0] sm:$0xff]
    %v3380 = vld [vmem:[#allocation8 + $0xe8] sm:$0xff]
    %v3381 = vld [vmem:[#allocation8 + $0xf0] sm:$0xff]
    %v3382 = vld [vmem:[#allocation8 + $0xf8] sm:$0xff]
    %v3383 = vld [vmem:[#allocation8 + $0x100] sm:$0xff]
    %v3384 = vld [vmem:[#allocation8 + $0x108] sm:$0xff]
    %v3385 = vld [vmem:[#allocation8 + $0x110] sm:$0xff]
    %v3386 = vld [vmem:[#allocation8 + $0x118] sm:$0xff]
    %v3387 = vld [vmem:[#allocation8 + $0x120] sm:$0xff]
    %v3388 = vld [vmem:[#allocation8 + $0x128] sm:$0xff]
    %v3389 = vld [vmem:[#allocation8 + $0x130] sm:$0xff]
    %v3390 = vld [vmem:[#allocation8 + $0x138] sm:$0xff]
    %v3391 = vld [vmem:[#allocation8 + $0x140] sm:$0xff]
    %v3392 = vld [vmem:[#allocation8 + $0x148] sm:$0xff]
    %v3393 = vld [vmem:[#allocation8 + $0x150] sm:$0xff]
    %v3394 = vld [vmem:[#allocation8 + $0x158] sm:$0xff]
    %v3395 = vld [vmem:[#allocation8 + $0x160] sm:$0xff]
    %v3396 = vld [vmem:[#allocation8 + $0x168] sm:$0xff]
    %v3397 = vld [vmem:[#allocation8 + $0x170] sm:$0xff]
    %v3398 = vld [vmem:[#allocation8 + $0x178] sm:$0xff]
    %v3399 = vld [vmem:[#allocation8 + $0x180] sm:$0xff]
    %v3400 = vld [vmem:[#allocation8 + $0x188] sm:$0xff]
    %v3401 = vld [vmem:[#allocation8 + $0x190] sm:$0xff]
    %v3402 = vld [vmem:[#allocation8 + $0x198] sm:$0xff]
    %v3403 = vld [vmem:[#allocation8 + $0x1a0] sm:$0xff]
    %v3404 = vld [vmem:[#allocation8 + $0x1a8] sm:$0xff]
    %v3405 = vld [vmem:[#allocation8 + $0x1b0] sm:$0xff]
    %v3406 = vld [vmem:[#allocation8 + $0x1b8] sm:$0xff]
    %v3407 = vld [vmem:[#allocation8 + $0x1c0] sm:$0xff]
    %v3408 = vld [vmem:[#allocation8 + $0x1c8] sm:$0xff]
    %v3409 = vld [vmem:[#allocation8 + $0x1d0] sm:$0xff]
    %v3410 = vld [vmem:[#allocation8 + $0x1d8] sm:$0xff]
    %v3411 = vld [vmem:[#allocation8 + $0x1e0] sm:$0xff]
    %v3412 = vld [vmem:[#allocation8 + $0x1e8] sm:$0xff]
    %v3413 = vld [vmem:[#allocation8 + $0x1f0] sm:$0xff]
    %v3414 = vld [vmem:[#allocation8 + $0x1f8] sm:$0xff]
    %v3415 = vld [vmem:[#allocation8 + $0x200] sm:$0xff]
    %v3416 = vld [vmem:[#allocation8 + $0x208] sm:$0xff]
    %v3417 = vld [vmem:[#allocation8 + $0x210] sm:$0xff]
    %v3418 = vld [vmem:[#allocation8 + $0x218] sm:$0xff]
    %v3419 = vld [vmem:[#allocation8 + $0x220] sm:$0xff]
    %v3420 = vld [vmem:[#allocation8 + $0x228] sm:$0xff]
    %v3421 = vld [vmem:[#allocation8 + $0x230] sm:$0xff]
    %v3422 = vld [vmem:[#allocation8 + $0x238] sm:$0xff]
    %v3423 = vld [vmem:[#allocation8 + $0x240] sm:$0xff]
    %v3424 = vld [vmem:[#allocation8 + $0x248] sm:$0xff]
    %v3425 = vld [vmem:[#allocation8 + $0x250] sm:$0xff]
    %v3426 = vld [vmem:[#allocation8 + $0x258] sm:$0xff]
    %v3427 = vld [vmem:[#allocation8 + $0x260] sm:$0xff]
    %v3428 = vld [vmem:[#allocation8 + $0x268] sm:$0xff]
    %v3429 = vld [vmem:[#allocation8 + $0x270] sm:$0xff]
    %v3430 = vld [vmem:[#allocation8 + $0x278] sm:$0xff]
    %v3431 = vld [vmem:[#allocation8 + $0x280] sm:$0xff]
    %v3432 = vld [vmem:[#allocation8 + $0x288] sm:$0xff]
    %v3433 = vld [vmem:[#allocation8 + $0x290] sm:$0xff]
    %v3434 = vld [vmem:[#allocation8 + $0x298] sm:$0xff]
    %v3435 = vld [vmem:[#allocation8 + $0x2a0] sm:$0xff]
    %v3436 = vld [vmem:[#allocation8 + $0x2a8] sm:$0xff]
    %v3437 = vld [vmem:[#allocation8 + $0x2b0] sm:$0xff]
    %v3438 = vld [vmem:[#allocation8 + $0x2b8] sm:$0xff]
    %v3439 = vld [vmem:[#allocation8 + $0x2c0] sm:$0xff]
    %v3440 = vld [vmem:[#allocation8 + $0x2c8] sm:$0xff]
    %v3441 = vld [vmem:[#allocation8 + $0x2d0] sm:$0xff]
    %v3442 = vld [vmem:[#allocation8 + $0x2d8] sm:$0xff]
    %v3443 = vld [vmem:[#allocation8 + $0x2e0] sm:$0xff]
    %v3444 = vld [vmem:[#allocation8 + $0x2e8] sm:$0xff]
    %v3445 = vld [vmem:[#allocation8 + $0x2f0] sm:$0xff]
    %v3446 = vld [vmem:[#allocation8 + $0x2f8] sm:$0xff]
    %v3447 = vld [vmem:[#allocation8 + $0x300] sm:$0xff]
    %v3448 = vld [vmem:[#allocation8 + $0x308] sm:$0xff]
    %v3449 = vld [vmem:[#allocation8 + $0x310] sm:$0xff]
    %v3450 = vld [vmem:[#allocation8 + $0x318] sm:$0xff]
    %v3451 = vld [vmem:[#allocation8 + $0x320] sm:$0xff]
    %v3452 = vld [vmem:[#allocation8 + $0x328] sm:$0xff]
    %v3453 = vld [vmem:[#allocation8 + $0x330] sm:$0xff]
    %v3454 = vld [vmem:[#allocation8 + $0x338] sm:$0xff]
    %v3455 = vld [vmem:[#allocation8 + $0x340] sm:$0xff]
    %v3456 = vld [vmem:[#allocation8 + $0x348] sm:$0xff]
    %v3457 = vld [vmem:[#allocation8 + $0x350] sm:$0xff]
    %v3458 = vld [vmem:[#allocation8 + $0x358] sm:$0xff]
    %v3459 = vld [vmem:[#allocation8 + $0x360] sm:$0xff]
    %v3460 = vld [vmem:[#allocation8 + $0x368] sm:$0xff]
    %v3461 = vld [vmem:[#allocation8 + $0x370] sm:$0xff]
    %v3462 = vld [vmem:[#allocation8 + $0x378] sm:$0xff]
    %v3463 = vld [vmem:[#allocation8 + $0x380] sm:$0xff]
    %v3464 = vld [vmem:[#allocation8 + $0x388] sm:$0xff]
    %v3465 = vld [vmem:[#allocation8 + $0x390] sm:$0xff]
    %v3466 = vld [vmem:[#allocation8 + $0x398] sm:$0xff]
    %v3467 = vld [vmem:[#allocation8 + $0x3a0] sm:$0xff]
    %v3468 = vld [vmem:[#allocation8 + $0x3a8] sm:$0xff]
    %v3469 = vld [vmem:[#allocation8 + $0x3b0] sm:$0xff]
    %v3470 = vld [vmem:[#allocation8 + $0x3b8] sm:$0xff]
    %v3471 = vld [vmem:[#allocation8 + $0x3c0] sm:$0xff]
    %v3472 = vld [vmem:[#allocation8 + $0x3c8] sm:$0xff]
    %v3473 = vld [vmem:[#allocation8 + $0x3d0] sm:$0xff]
    %v3474 = vld [vmem:[#allocation8 + $0x3d8] sm:$0xff]
    %v3475 = vld [vmem:[#allocation8 + $0x3e0] sm:$0xff]
    %v3476 = vld [vmem:[#allocation8 + $0x3e8] sm:$0xff]
    %v3477 = vld [vmem:[#allocation8 + $0x3f0] sm:$0xff]
    %v3478 = vld [vmem:[#allocation8 + $0x3f8] sm:$0xff]
    %v3479 = vpack.c.bf16 %v3343, %v3343
    %v3480 = vpack.c.bf16 %v3344, %v3344
    %v3481 = vpack.c.bf16 %v3345, %v3345
    %v3482 = vpack.c.bf16 %v3346, %v3346
    %v3483 = vpack.c.bf16 %v3347, %v3347
    %v3484 = vpack.c.bf16 %v3348, %v3348
    %v3485 = vpack.c.bf16 %v3349, %v3349
    %v3486 = vpack.c.bf16 %v3350, %v3350
    %v3487 = vld [vmem:[%s17] sm:$0x3]
    %v3489 = vperm.slane %v3487, 0
    %v3490 = vperm.slane %v3487, 1
    %v3621 = vunpack.c.l.b16 %v3351
    %v3622 = vunpack.c.h.b16 %v3351
    %v3623 = vunpack.c.l.b16 %v3352
    %v3624 = vunpack.c.h.b16 %v3352
    %v3625 = vunpack.c.l.b16 %v3353
    %v3626 = vunpack.c.h.b16 %v3353
    %v3627 = vunpack.c.l.b16 %v3354
    %v3628 = vunpack.c.h.b16 %v3354
    %v3629 = vunpack.c.l.b16 %v3355
    %v3630 = vunpack.c.h.b16 %v3355
    %v3631 = vunpack.c.l.b16 %v3356
    %v3632 = vunpack.c.h.b16 %v3356
    %v3633 = vunpack.c.l.b16 %v3357
    %v3634 = vunpack.c.h.b16 %v3357
    %v3635 = vunpack.c.l.b16 %v3358
    %v3636 = vunpack.c.h.b16 %v3358
    %v3637 = vunpack.c.l.b16 %v3359
    %v3638 = vunpack.c.h.b16 %v3359
    %v3639 = vunpack.c.l.b16 %v3360
    %v3640 = vunpack.c.h.b16 %v3360
    %v3641 = vunpack.c.l.b16 %v3361
    %v3642 = vunpack.c.h.b16 %v3361
    %v3643 = vunpack.c.l.b16 %v3362
    %v3644 = vunpack.c.h.b16 %v3362
    %v3645 = vunpack.c.l.b16 %v3363
    %v3646 = vunpack.c.h.b16 %v3363
    %v3647 = vunpack.c.l.b16 %v3364
    %v3648 = vunpack.c.h.b16 %v3364
    %v3649 = vunpack.c.l.b16 %v3365
    %v3650 = vunpack.c.h.b16 %v3365
    %v3651 = vunpack.c.l.b16 %v3366
    %v3652 = vunpack.c.h.b16 %v3366
    %v3653 = vunpack.c.l.b16 %v3367
    %v3654 = vunpack.c.h.b16 %v3367
    %v3655 = vunpack.c.l.b16 %v3368
    %v3656 = vunpack.c.h.b16 %v3368
    %v3657 = vunpack.c.l.b16 %v3369
    %v3658 = vunpack.c.h.b16 %v3369
    %v3659 = vunpack.c.l.b16 %v3370
    %v3660 = vunpack.c.h.b16 %v3370
    %v3661 = vunpack.c.l.b16 %v3371
    %v3662 = vunpack.c.h.b16 %v3371
    %v3663 = vunpack.c.l.b16 %v3372
    %v3664 = vunpack.c.h.b16 %v3372
    %v3665 = vunpack.c.l.b16 %v3373
    %v3666 = vunpack.c.h.b16 %v3373
    %v3667 = vunpack.c.l.b16 %v3374
    %v3668 = vunpack.c.h.b16 %v3374
    %v3669 = vunpack.c.l.b16 %v3375
    %v3670 = vunpack.c.h.b16 %v3375
    %v3671 = vunpack.c.l.b16 %v3376
    %v3672 = vunpack.c.h.b16 %v3376
    %v3673 = vunpack.c.l.b16 %v3377
    %v3674 = vunpack.c.h.b16 %v3377
    %v3675 = vunpack.c.l.b16 %v3378
    %v3676 = vunpack.c.h.b16 %v3378
    %v3677 = vunpack.c.l.b16 %v3379
    %v3678 = vunpack.c.h.b16 %v3379
    %v3679 = vunpack.c.l.b16 %v3380
    %v3680 = vunpack.c.h.b16 %v3380
    %v3681 = vunpack.c.l.b16 %v3381
    %v3682 = vunpack.c.h.b16 %v3381
    %v3683 = vunpack.c.l.b16 %v3382
    %v3684 = vunpack.c.h.b16 %v3382
    %v3685 = vunpack.c.l.b16 %v3383
    %v3686 = vunpack.c.h.b16 %v3383
    %v3687 = vunpack.c.l.b16 %v3384
    %v3688 = vunpack.c.h.b16 %v3384
    %v3689 = vunpack.c.l.b16 %v3385
    %v3690 = vunpack.c.h.b16 %v3385
    %v3691 = vunpack.c.l.b16 %v3386
    %v3692 = vunpack.c.h.b16 %v3386
    %v3693 = vunpack.c.l.b16 %v3387
    %v3694 = vunpack.c.h.b16 %v3387
    %v3695 = vunpack.c.l.b16 %v3388
    %v3696 = vunpack.c.h.b16 %v3388
    %v3697 = vunpack.c.l.b16 %v3389
    %v3698 = vunpack.c.h.b16 %v3389
    %v3699 = vunpack.c.l.b16 %v3390
    %v3700 = vunpack.c.h.b16 %v3390
    %v3701 = vunpack.c.l.b16 %v3391
    %v3702 = vunpack.c.h.b16 %v3391
    %v3703 = vunpack.c.l.b16 %v3392
    %v3704 = vunpack.c.h.b16 %v3392
    %v3705 = vunpack.c.l.b16 %v3393
    %v3706 = vunpack.c.h.b16 %v3393
    %v3707 = vunpack.c.l.b16 %v3394
    %v3708 = vunpack.c.h.b16 %v3394
    %v3709 = vunpack.c.l.b16 %v3395
    %v3710 = vunpack.c.h.b16 %v3395
    %v3711 = vunpack.c.l.b16 %v3396
    %v3712 = vunpack.c.h.b16 %v3396
    %v3713 = vunpack.c.l.b16 %v3397
    %v3714 = vunpack.c.h.b16 %v3397
    %v3715 = vunpack.c.l.b16 %v3398
    %v3716 = vunpack.c.h.b16 %v3398
    %v3717 = vunpack.c.l.b16 %v3399
    %v3718 = vunpack.c.h.b16 %v3399
    %v3719 = vunpack.c.l.b16 %v3400
    %v3720 = vunpack.c.h.b16 %v3400
    %v3721 = vunpack.c.l.b16 %v3401
    %v3722 = vunpack.c.h.b16 %v3401
    %v3723 = vunpack.c.l.b16 %v3402
    %v3724 = vunpack.c.h.b16 %v3402
    %v3725 = vunpack.c.l.b16 %v3403
    %v3726 = vunpack.c.h.b16 %v3403
    %v3727 = vunpack.c.l.b16 %v3404
    %v3728 = vunpack.c.h.b16 %v3404
    %v3729 = vunpack.c.l.b16 %v3405
    %v3730 = vunpack.c.h.b16 %v3405
    %v3731 = vunpack.c.l.b16 %v3406
    %v3732 = vunpack.c.h.b16 %v3406
    %v3733 = vunpack.c.l.b16 %v3407
    %v3734 = vunpack.c.h.b16 %v3407
    %v3735 = vunpack.c.l.b16 %v3408
    %v3736 = vunpack.c.h.b16 %v3408
    %v3737 = vunpack.c.l.b16 %v3409
    %v3738 = vunpack.c.h.b16 %v3409
    %v3739 = vunpack.c.l.b16 %v3410
    %v3740 = vunpack.c.h.b16 %v3410
    %v3741 = vunpack.c.l.b16 %v3411
    %v3742 = vunpack.c.h.b16 %v3411
    %v3743 = vunpack.c.l.b16 %v3412
    %v3744 = vunpack.c.h.b16 %v3412
    %v3745 = vunpack.c.l.b16 %v3413
    %v3746 = vunpack.c.h.b16 %v3413
    %v3747 = vunpack.c.l.b16 %v3414
    %v3748 = vunpack.c.h.b16 %v3414
    %v3749 = vunpack.c.l.b16 %v3415
    %v3750 = vunpack.c.h.b16 %v3415
    %v3751 = vunpack.c.l.b16 %v3416
    %v3752 = vunpack.c.h.b16 %v3416
    %v3753 = vunpack.c.l.b16 %v3417
    %v3754 = vunpack.c.h.b16 %v3417
    %v3755 = vunpack.c.l.b16 %v3418
    %v3756 = vunpack.c.h.b16 %v3418
    %v3757 = vunpack.c.l.b16 %v3419
    %v3758 = vunpack.c.h.b16 %v3419
    %v3759 = vunpack.c.l.b16 %v3420
    %v3760 = vunpack.c.h.b16 %v3420
    %v3761 = vunpack.c.l.b16 %v3421
    %v3762 = vunpack.c.h.b16 %v3421
    %v3763 = vunpack.c.l.b16 %v3422
    %v3764 = vunpack.c.h.b16 %v3422
    %v3765 = vunpack.c.l.b16 %v3423
    %v3766 = vunpack.c.h.b16 %v3423
    %v3767 = vunpack.c.l.b16 %v3424
    %v3768 = vunpack.c.h.b16 %v3424
    %v3769 = vunpack.c.l.b16 %v3425
    %v3770 = vunpack.c.h.b16 %v3425
    %v3771 = vunpack.c.l.b16 %v3426
    %v3772 = vunpack.c.h.b16 %v3426
    %v3773 = vunpack.c.l.b16 %v3427
    %v3774 = vunpack.c.h.b16 %v3427
    %v3775 = vunpack.c.l.b16 %v3428
    %v3776 = vunpack.c.h.b16 %v3428
    %v3777 = vunpack.c.l.b16 %v3429
    %v3778 = vunpack.c.h.b16 %v3429
    %v3779 = vunpack.c.l.b16 %v3430
    %v3780 = vunpack.c.h.b16 %v3430
    %v3781 = vunpack.c.l.b16 %v3431
    %v3782 = vunpack.c.h.b16 %v3431
    %v3783 = vunpack.c.l.b16 %v3432
    %v3784 = vunpack.c.h.b16 %v3432
    %v3785 = vunpack.c.l.b16 %v3433
    %v3786 = vunpack.c.h.b16 %v3433
    %v3787 = vunpack.c.l.b16 %v3434
    %v3788 = vunpack.c.h.b16 %v3434
    %v3789 = vunpack.c.l.b16 %v3435
    %v3790 = vunpack.c.h.b16 %v3435
    %v3791 = vunpack.c.l.b16 %v3436
    %v3792 = vunpack.c.h.b16 %v3436
    %v3793 = vunpack.c.l.b16 %v3437
    %v3794 = vunpack.c.h.b16 %v3437
    %v3795 = vunpack.c.l.b16 %v3438
    %v3796 = vunpack.c.h.b16 %v3438
    %v3797 = vunpack.c.l.b16 %v3439
    %v3798 = vunpack.c.h.b16 %v3439
    %v3799 = vunpack.c.l.b16 %v3440
    %v3800 = vunpack.c.h.b16 %v3440
    %v3801 = vunpack.c.l.b16 %v3441
    %v3802 = vunpack.c.h.b16 %v3441
    %v3803 = vunpack.c.l.b16 %v3442
    %v3804 = vunpack.c.h.b16 %v3442
    %v3805 = vunpack.c.l.b16 %v3443
    %v3806 = vunpack.c.h.b16 %v3443
    %v3807 = vunpack.c.l.b16 %v3444
    %v3808 = vunpack.c.h.b16 %v3444
    %v3809 = vunpack.c.l.b16 %v3445
    %v3810 = vunpack.c.h.b16 %v3445
    %v3811 = vunpack.c.l.b16 %v3446
    %v3812 = vunpack.c.h.b16 %v3446
    %v3813 = vunpack.c.l.b16 %v3447
    %v3814 = vunpack.c.h.b16 %v3447
    %v3815 = vunpack.c.l.b16 %v3448
    %v3816 = vunpack.c.h.b16 %v3448
    %v3817 = vunpack.c.l.b16 %v3449
    %v3818 = vunpack.c.h.b16 %v3449
    %v3819 = vunpack.c.l.b16 %v3450
    %v3820 = vunpack.c.h.b16 %v3450
    %v3821 = vunpack.c.l.b16 %v3451
    %v3822 = vunpack.c.h.b16 %v3451
    %v3823 = vunpack.c.l.b16 %v3452
    %v3824 = vunpack.c.h.b16 %v3452
    %v3825 = vunpack.c.l.b16 %v3453
    %v3826 = vunpack.c.h.b16 %v3453
    %v3827 = vunpack.c.l.b16 %v3454
    %v3828 = vunpack.c.h.b16 %v3454
    %v3829 = vunpack.c.l.b16 %v3455
    %v3830 = vunpack.c.h.b16 %v3455
    %v3831 = vunpack.c.l.b16 %v3456
    %v3832 = vunpack.c.h.b16 %v3456
    %v3833 = vunpack.c.l.b16 %v3457
    %v3834 = vunpack.c.h.b16 %v3457
    %v3835 = vunpack.c.l.b16 %v3458
    %v3836 = vunpack.c.h.b16 %v3458
    %v3837 = vunpack.c.l.b16 %v3459
    %v3838 = vunpack.c.h.b16 %v3459
    %v3839 = vunpack.c.l.b16 %v3460
    %v3840 = vunpack.c.h.b16 %v3460
    %v3841 = vunpack.c.l.b16 %v3461
    %v3842 = vunpack.c.h.b16 %v3461
    %v3843 = vunpack.c.l.b16 %v3462
    %v3844 = vunpack.c.h.b16 %v3462
    %v3845 = vunpack.c.l.b16 %v3463
    %v3846 = vunpack.c.h.b16 %v3463
    %v3847 = vunpack.c.l.b16 %v3464
    %v3848 = vunpack.c.h.b16 %v3464
    %v3849 = vunpack.c.l.b16 %v3465
    %v3850 = vunpack.c.h.b16 %v3465
    %v3851 = vunpack.c.l.b16 %v3466
    %v3852 = vunpack.c.h.b16 %v3466
    %v3853 = vunpack.c.l.b16 %v3467
    %v3854 = vunpack.c.h.b16 %v3467
    %v3855 = vunpack.c.l.b16 %v3468
    %v3856 = vunpack.c.h.b16 %v3468
    %v3857 = vunpack.c.l.b16 %v3469
    %v3858 = vunpack.c.h.b16 %v3469
    %v3859 = vunpack.c.l.b16 %v3470
    %v3860 = vunpack.c.h.b16 %v3470
    %v3861 = vunpack.c.l.b16 %v3471
    %v3862 = vunpack.c.h.b16 %v3471
    %v3863 = vunpack.c.l.b16 %v3472
    %v3864 = vunpack.c.h.b16 %v3472
    %v3865 = vunpack.c.l.b16 %v3473
    %v3866 = vunpack.c.h.b16 %v3473
    %v3867 = vunpack.c.l.b16 %v3474
    %v3868 = vunpack.c.h.b16 %v3474
    %v3869 = vunpack.c.l.b16 %v3475
    %v3870 = vunpack.c.h.b16 %v3475
    %v3871 = vunpack.c.l.b16 %v3476
    %v3872 = vunpack.c.h.b16 %v3476
    %v3873 = vunpack.c.l.b16 %v3477
    %v3874 = vunpack.c.h.b16 %v3477
    %v3875 = vunpack.c.l.b16 %v3478
    %v3876 = vunpack.c.h.b16 %v3478
    %v3877 = vpack.c.b16 %v3623, %v3621
    %v3878 = vpack.c.b16 %v3624, %v3622
    %v3879 = vpack.c.b16 %v3627, %v3625
    %v3880 = vpack.c.b16 %v3628, %v3626
    %v3881 = vpack.c.b16 %v3631, %v3629
    %v3882 = vpack.c.b16 %v3632, %v3630
    %v3883 = vpack.c.b16 %v3635, %v3633
    %v3884 = vpack.c.b16 %v3636, %v3634
    %v3885 = vpack.c.b16 %v3639, %v3637
    %v3886 = vpack.c.b16 %v3640, %v3638
    %v3887 = vpack.c.b16 %v3643, %v3641
    %v3888 = vpack.c.b16 %v3644, %v3642
    %v3889 = vpack.c.b16 %v3647, %v3645
    %v3890 = vpack.c.b16 %v3648, %v3646
    %v3891 = vpack.c.b16 %v3651, %v3649
    %v3892 = vpack.c.b16 %v3652, %v3650
    %v3893 = vpack.c.b16 %v3655, %v3653
    %v3894 = vpack.c.b16 %v3656, %v3654
    %v3895 = vpack.c.b16 %v3659, %v3657
    %v3896 = vpack.c.b16 %v3660, %v3658
    %v3897 = vpack.c.b16 %v3663, %v3661
    %v3898 = vpack.c.b16 %v3664, %v3662
    %v3899 = vpack.c.b16 %v3667, %v3665
    %v3900 = vpack.c.b16 %v3668, %v3666
    %v3901 = vpack.c.b16 %v3671, %v3669
    %v3902 = vpack.c.b16 %v3672, %v3670
    %v3903 = vpack.c.b16 %v3675, %v3673
    %v3904 = vpack.c.b16 %v3676, %v3674
    %v3905 = vpack.c.b16 %v3679, %v3677
    %v3906 = vpack.c.b16 %v3680, %v3678
    %v3907 = vpack.c.b16 %v3683, %v3681
    %v3908 = vpack.c.b16 %v3684, %v3682
    %v3909 = vpack.c.b16 %v3687, %v3685
    %v3910 = vpack.c.b16 %v3688, %v3686
    %v3911 = vpack.c.b16 %v3691, %v3689
    %v3912 = vpack.c.b16 %v3692, %v3690
    %v3913 = vpack.c.b16 %v3695, %v3693
    %v3914 = vpack.c.b16 %v3696, %v3694
    %v3915 = vpack.c.b16 %v3699, %v3697
    %v3916 = vpack.c.b16 %v3700, %v3698
    %v3917 = vpack.c.b16 %v3703, %v3701
    %v3918 = vpack.c.b16 %v3704, %v3702
    %v3919 = vpack.c.b16 %v3707, %v3705
    %v3920 = vpack.c.b16 %v3708, %v3706
    %v3921 = vpack.c.b16 %v3711, %v3709
    %v3922 = vpack.c.b16 %v3712, %v3710
    %v3923 = vpack.c.b16 %v3715, %v3713
    %v3924 = vpack.c.b16 %v3716, %v3714
    %v3925 = vpack.c.b16 %v3719, %v3717
    %v3926 = vpack.c.b16 %v3720, %v3718
    %v3927 = vpack.c.b16 %v3723, %v3721
    %v3928 = vpack.c.b16 %v3724, %v3722
    %v3929 = vpack.c.b16 %v3727, %v3725
    %v3930 = vpack.c.b16 %v3728, %v3726
    %v3931 = vpack.c.b16 %v3731, %v3729
    %v3932 = vpack.c.b16 %v3732, %v3730
    %v3933 = vpack.c.b16 %v3735, %v3733
    %v3934 = vpack.c.b16 %v3736, %v3734
    %v3935 = vpack.c.b16 %v3739, %v3737
    %v3936 = vpack.c.b16 %v3740, %v3738
    %v3937 = vpack.c.b16 %v3743, %v3741
    %v3938 = vpack.c.b16 %v3744, %v3742
    %v3939 = vpack.c.b16 %v3747, %v3745
    %v3940 = vpack.c.b16 %v3748, %v3746
    %v3941 = vpack.c.b16 %v3751, %v3749
    %v3942 = vpack.c.b16 %v3752, %v3750
    %v3943 = vpack.c.b16 %v3755, %v3753
    %v3944 = vpack.c.b16 %v3756, %v3754
    %v3945 = vpack.c.b16 %v3759, %v3757
    %v3946 = vpack.c.b16 %v3760, %v3758
    %v3947 = vpack.c.b16 %v3763, %v3761
    %v3948 = vpack.c.b16 %v3764, %v3762
    %v3949 = vpack.c.b16 %v3767, %v3765
    %v3950 = vpack.c.b16 %v3768, %v3766
    %v3951 = vpack.c.b16 %v3771, %v3769
    %v3952 = vpack.c.b16 %v3772, %v3770
    %v3953 = vpack.c.b16 %v3775, %v3773
    %v3954 = vpack.c.b16 %v3776, %v3774
    %v3955 = vpack.c.b16 %v3779, %v3777
    %v3956 = vpack.c.b16 %v3780, %v3778
    %v3957 = vpack.c.b16 %v3783, %v3781
    %v3958 = vpack.c.b16 %v3784, %v3782
    %v3959 = vpack.c.b16 %v3787, %v3785
    %v3960 = vpack.c.b16 %v3788, %v3786
    %v3961 = vpack.c.b16 %v3791, %v3789
    %v3962 = vpack.c.b16 %v3792, %v3790
    %v3963 = vpack.c.b16 %v3795, %v3793
    %v3964 = vpack.c.b16 %v3796, %v3794
    %v3965 = vpack.c.b16 %v3799, %v3797
    %v3966 = vpack.c.b16 %v3800, %v3798
    %v3967 = vpack.c.b16 %v3803, %v3801
    %v3968 = vpack.c.b16 %v3804, %v3802
    %v3969 = vpack.c.b16 %v3807, %v3805
    %v3970 = vpack.c.b16 %v3808, %v3806
    %v3971 = vpack.c.b16 %v3811, %v3809
    %v3972 = vpack.c.b16 %v3812, %v3810
    %v3973 = vpack.c.b16 %v3815, %v3813
    %v3974 = vpack.c.b16 %v3816, %v3814
    %v3975 = vpack.c.b16 %v3819, %v3817
    %v3976 = vpack.c.b16 %v3820, %v3818
    %v3977 = vpack.c.b16 %v3823, %v3821
    %v3978 = vpack.c.b16 %v3824, %v3822
    %v3979 = vpack.c.b16 %v3827, %v3825
    %v3980 = vpack.c.b16 %v3828, %v3826
    %v3981 = vpack.c.b16 %v3831, %v3829
    %v3982 = vpack.c.b16 %v3832, %v3830
    %v3983 = vpack.c.b16 %v3835, %v3833
    %v3984 = vpack.c.b16 %v3836, %v3834
    %v3985 = vpack.c.b16 %v3839, %v3837
    %v3986 = vpack.c.b16 %v3840, %v3838
    %v3987 = vpack.c.b16 %v3843, %v3841
    %v3988 = vpack.c.b16 %v3844, %v3842
    %v3989 = vpack.c.b16 %v3847, %v3845
    %v3990 = vpack.c.b16 %v3848, %v3846
    %v3991 = vpack.c.b16 %v3851, %v3849
    %v3992 = vpack.c.b16 %v3852, %v3850
    %v3993 = vpack.c.b16 %v3855, %v3853
    %v3994 = vpack.c.b16 %v3856, %v3854
    %v3995 = vpack.c.b16 %v3859, %v3857
    %v3996 = vpack.c.b16 %v3860, %v3858
    %v3997 = vpack.c.b16 %v3863, %v3861
    %v3998 = vpack.c.b16 %v3864, %v3862
    %v3999 = vpack.c.b16 %v3867, %v3865
    %v4000 = vpack.c.b16 %v3868, %v3866
    %v4001 = vpack.c.b16 %v3871, %v3869
    %v4002 = vpack.c.b16 %v3872, %v3870
    %v4003 = vpack.c.b16 %v3875, %v3873
    %v4004 = vpack.c.b16 %v3876, %v3874
    %4133 = vmatpush.bf16.msra.mxu0 %v3891
    %4134 = vmatpush.bf16.msra.mxu0 %v3889
    %4135 = vmatpush.bf16.msra.mxu0 %v3887
    %4136 = vmatpush.bf16.msra.mxu0 %v3885
    %4137 = vmatpush.bf16.msra.mxu0 %v3883
    %4138 = vmatpush.bf16.msra.mxu0 %v3881
    %4139 = vmatpush.bf16.msra.mxu0 %v3879
    %4140 = vmatpush.bf16.msra.mxu0 %v3877
    %4141 = vmatmul.bf16.gmra.mxu0 %v3479
    %v4142 = vpop.f32.mrf.mxu0
    %v4143 = vadd.f32 %v3489, %v4142
    %v4144 = vpop.f32.mrf.mxu0
    %4145 = vdwg.mxu0
    %4146 = vmatpush.bf16.msra.mxu0 %v3907
    %4147 = vmatpush.bf16.msra.mxu0 %v3905
    %4148 = vmatpush.bf16.msra.mxu0 %v3903
    %4149 = vmatpush.bf16.msra.mxu0 %v3901
    %4150 = vmatpush.bf16.msra.mxu0 %v3899
    %4151 = vmatpush.bf16.msra.mxu0 %v3897
    %4152 = vmatpush.bf16.msra.mxu0 %v3895
    %4153 = vmatpush.bf16.msra.mxu0 %v3893
    %4154 = vmatmul.bf16.gmra.mxu0 %v3480
    %v4155 = vpop.f32.mrf.mxu0
    %v4156 = vadd.f32 %v4143, %v4155
    %v4157 = vpop.f32.mrf.mxu0
    %4158 = vdwg.mxu0
    %4159 = vmatpush.bf16.msra.mxu0 %v3923
    %4160 = vmatpush.bf16.msra.mxu0 %v3921
    %4161 = vmatpush.bf16.msra.mxu0 %v3919
    %4162 = vmatpush.bf16.msra.mxu0 %v3917
    %4163 = vmatpush.bf16.msra.mxu0 %v3915
    %4164 = vmatpush.bf16.msra.mxu0 %v3913
    %4165 = vmatpush.bf16.msra.mxu0 %v3911
    %4166 = vmatpush.bf16.msra.mxu0 %v3909
    %4167 = vmatmul.bf16.gmra.mxu0 %v3481
    %v4168 = vpop.f32.mrf.mxu0
    %v4169 = vadd.f32 %v4156, %v4168
    %v4170 = vpop.f32.mrf.mxu0
    %4171 = vdwg.mxu0
    %4172 = vmatpush.bf16.msra.mxu0 %v3939
    %4173 = vmatpush.bf16.msra.mxu0 %v3937
    %4174 = vmatpush.bf16.msra.mxu0 %v3935
    %4175 = vmatpush.bf16.msra.mxu0 %v3933
    %4176 = vmatpush.bf16.msra.mxu0 %v3931
    %4177 = vmatpush.bf16.msra.mxu0 %v3929
    %4178 = vmatpush.bf16.msra.mxu0 %v3927
    %4179 = vmatpush.bf16.msra.mxu0 %v3925
    %4180 = vmatmul.bf16.gmra.mxu0 %v3482
    %v4181 = vpop.f32.mrf.mxu0
    %v4182 = vadd.f32 %v4169, %v4181
    %v4183 = vpop.f32.mrf.mxu0
    %4184 = vdwg.mxu0
    %4185 = vmatpush.bf16.msra.mxu0 %v3955
    %4186 = vmatpush.bf16.msra.mxu0 %v3953
    %4187 = vmatpush.bf16.msra.mxu0 %v3951
    %4188 = vmatpush.bf16.msra.mxu0 %v3949
    %4189 = vmatpush.bf16.msra.mxu0 %v3947
    %4190 = vmatpush.bf16.msra.mxu0 %v3945
    %4191 = vmatpush.bf16.msra.mxu0 %v3943
    %4192 = vmatpush.bf16.msra.mxu0 %v3941
    %4193 = vmatmul.bf16.gmra.mxu0 %v3483
    %v4194 = vpop.f32.mrf.mxu0
    %v4195 = vadd.f32 %v4182, %v4194
    %v4196 = vpop.f32.mrf.mxu0
    %4197 = vdwg.mxu0
    %4198 = vmatpush.bf16.msra.mxu0 %v3971
    %4199 = vmatpush.bf16.msra.mxu0 %v3969
    %4200 = vmatpush.bf16.msra.mxu0 %v3967
    %4201 = vmatpush.bf16.msra.mxu0 %v3965
    %4202 = vmatpush.bf16.msra.mxu0 %v3963
    %4203 = vmatpush.bf16.msra.mxu0 %v3961
    %4204 = vmatpush.bf16.msra.mxu0 %v3959
    %4205 = vmatpush.bf16.msra.mxu0 %v3957
    %4206 = vmatmul.bf16.gmra.mxu0 %v3484
    %v4207 = vpop.f32.mrf.mxu0
    %v4208 = vadd.f32 %v4195, %v4207
    %v4209 = vpop.f32.mrf.mxu0
    %4210 = vdwg.mxu0
    %4211 = vmatpush.bf16.msra.mxu0 %v3987
    %4212 = vmatpush.bf16.msra.mxu0 %v3985
    %4213 = vmatpush.bf16.msra.mxu0 %v3983
    %4214 = vmatpush.bf16.msra.mxu0 %v3981
    %4215 = vmatpush.bf16.msra.mxu0 %v3979
    %4216 = vmatpush.bf16.msra.mxu0 %v3977
    %4217 = vmatpush.bf16.msra.mxu0 %v3975
    %4218 = vmatpush.bf16.msra.mxu0 %v3973
    %4219 = vmatmul.bf16.gmra.mxu0 %v3485
    %v4220 = vpop.f32.mrf.mxu0
    %v4221 = vadd.f32 %v4208, %v4220
    %v4222 = vpop.f32.mrf.mxu0
    %4223 = vdwg.mxu0
    %4224 = vmatpush.bf16.msra.mxu0 %v4003
    %4225 = vmatpush.bf16.msra.mxu0 %v4001
    %4226 = vmatpush.bf16.msra.mxu0 %v3999
    %4227 = vmatpush.bf16.msra.mxu0 %v3997
    %4228 = vmatpush.bf16.msra.mxu0 %v3995
    %4229 = vmatpush.bf16.msra.mxu0 %v3993
    %4230 = vmatpush.bf16.msra.mxu0 %v3991
    %4231 = vmatpush.bf16.msra.mxu0 %v3989
    %4232 = vmatmul.bf16.gmra.mxu0 %v3486
    %v4233 = vpop.f32.mrf.mxu0
    %v4234 = vadd.f32 %v4221, %v4233
    %v4235 = vpop.f32.mrf.mxu0
    %4236 = vdwg.mxu0
    %4237 = vmatpush.bf16.msra.mxu0 %v3892
    %4238 = vmatpush.bf16.msra.mxu0 %v3890
    %4239 = vmatpush.bf16.msra.mxu0 %v3888
    %4240 = vmatpush.bf16.msra.mxu0 %v3886
    %4241 = vmatpush.bf16.msra.mxu0 %v3884
    %4242 = vmatpush.bf16.msra.mxu0 %v3882
    %4243 = vmatpush.bf16.msra.mxu0 %v3880
    %4244 = vmatpush.bf16.msra.mxu0 %v3878
    %4245 = vmatmul.bf16.gmra.mxu0 %v3479
    %v4246 = vpop.f32.mrf.mxu0
    %v4247 = vadd.f32 %v3490, %v4246
    %v4248 = vpop.f32.mrf.mxu0
    %4249 = vdwg.mxu0
    %4250 = vmatpush.bf16.msra.mxu0 %v3908
    %4251 = vmatpush.bf16.msra.mxu0 %v3906
    %4252 = vmatpush.bf16.msra.mxu0 %v3904
    %4253 = vmatpush.bf16.msra.mxu0 %v3902
    %4254 = vmatpush.bf16.msra.mxu0 %v3900
    %4255 = vmatpush.bf16.msra.mxu0 %v3898
    %4256 = vmatpush.bf16.msra.mxu0 %v3896
    %4257 = vmatpush.bf16.msra.mxu0 %v3894
    %4258 = vmatmul.bf16.gmra.mxu0 %v3480
    %v4259 = vpop.f32.mrf.mxu0
    %v4260 = vadd.f32 %v4247, %v4259
    %v4261 = vpop.f32.mrf.mxu0
    %4262 = vdwg.mxu0
    %4263 = vmatpush.bf16.msra.mxu0 %v3924
    %4264 = vmatpush.bf16.msra.mxu0 %v3922
    %4265 = vmatpush.bf16.msra.mxu0 %v3920
    %4266 = vmatpush.bf16.msra.mxu0 %v3918
    %4267 = vmatpush.bf16.msra.mxu0 %v3916
    %4268 = vmatpush.bf16.msra.mxu0 %v3914
    %4269 = vmatpush.bf16.msra.mxu0 %v3912
    %4270 = vmatpush.bf16.msra.mxu0 %v3910
    %4271 = vmatmul.bf16.gmra.mxu0 %v3481
    %v4272 = vpop.f32.mrf.mxu0
    %v4273 = vadd.f32 %v4260, %v4272
    %v4274 = vpop.f32.mrf.mxu0
    %4275 = vdwg.mxu0
    %4276 = vmatpush.bf16.msra.mxu0 %v3940
    %4277 = vmatpush.bf16.msra.mxu0 %v3938
    %4278 = vmatpush.bf16.msra.mxu0 %v3936
    %4279 = vmatpush.bf16.msra.mxu0 %v3934
    %4280 = vmatpush.bf16.msra.mxu0 %v3932
    %4281 = vmatpush.bf16.msra.mxu0 %v3930
    %4282 = vmatpush.bf16.msra.mxu0 %v3928
    %4283 = vmatpush.bf16.msra.mxu0 %v3926
    %4284 = vmatmul.bf16.gmra.mxu0 %v3482
    %v4285 = vpop.f32.mrf.mxu0
    %v4286 = vadd.f32 %v4273, %v4285
    %v4287 = vpop.f32.mrf.mxu0
    %4288 = vdwg.mxu0
    %4289 = vmatpush.bf16.msra.mxu0 %v3956
    %4290 = vmatpush.bf16.msra.mxu0 %v3954
    %4291 = vmatpush.bf16.msra.mxu0 %v3952
    %4292 = vmatpush.bf16.msra.mxu0 %v3950
    %4293 = vmatpush.bf16.msra.mxu0 %v3948
    %4294 = vmatpush.bf16.msra.mxu0 %v3946
    %4295 = vmatpush.bf16.msra.mxu0 %v3944
    %4296 = vmatpush.bf16.msra.mxu0 %v3942
    %4297 = vmatmul.bf16.gmra.mxu0 %v3483
    %v4298 = vpop.f32.mrf.mxu0
    %v4299 = vadd.f32 %v4286, %v4298
    %v4300 = vpop.f32.mrf.mxu0
    %4301 = vdwg.mxu0
    %4302 = vmatpush.bf16.msra.mxu0 %v3972
    %4303 = vmatpush.bf16.msra.mxu0 %v3970
    %4304 = vmatpush.bf16.msra.mxu0 %v3968
    %4305 = vmatpush.bf16.msra.mxu0 %v3966
    %4306 = vmatpush.bf16.msra.mxu0 %v3964
    %4307 = vmatpush.bf16.msra.mxu0 %v3962
    %4308 = vmatpush.bf16.msra.mxu0 %v3960
    %4309 = vmatpush.bf16.msra.mxu0 %v3958
    %4310 = vmatmul.bf16.gmra.mxu0 %v3484
    %v4311 = vpop.f32.mrf.mxu0
    %v4312 = vadd.f32 %v4299, %v4311
    %v4313 = vpop.f32.mrf.mxu0
    %4314 = vdwg.mxu0
    %4315 = vmatpush.bf16.msra.mxu0 %v3988
    %4316 = vmatpush.bf16.msra.mxu0 %v3986
    %4317 = vmatpush.bf16.msra.mxu0 %v3984
    %4318 = vmatpush.bf16.msra.mxu0 %v3982
    %4319 = vmatpush.bf16.msra.mxu0 %v3980
    %4320 = vmatpush.bf16.msra.mxu0 %v3978
    %4321 = vmatpush.bf16.msra.mxu0 %v3976
    %4322 = vmatpush.bf16.msra.mxu0 %v3974
    %4323 = vmatmul.bf16.gmra.mxu0 %v3485
    %v4324 = vpop.f32.mrf.mxu0
    %v4325 = vadd.f32 %v4312, %v4324
    %v4326 = vpop.f32.mrf.mxu0
    %4327 = vdwg.mxu0
    %4328 = vmatpush.bf16.msra.mxu0 %v4004
    %4329 = vmatpush.bf16.msra.mxu0 %v4002
    %4330 = vmatpush.bf16.msra.mxu0 %v4000
    %4331 = vmatpush.bf16.msra.mxu0 %v3998
    %4332 = vmatpush.bf16.msra.mxu0 %v3996
    %4333 = vmatpush.bf16.msra.mxu0 %v3994
    %4334 = vmatpush.bf16.msra.mxu0 %v3992
    %4335 = vmatpush.bf16.msra.mxu0 %v3990
    %4336 = vmatmul.bf16.gmra.mxu0 %v3486
    %v4337 = vpop.f32.mrf.mxu0
    %v4338 = vadd.f32 %v4325, %v4337
    %v4339 = vpop.f32.mrf.mxu0
    %4340 = vdwg.mxu0
    %v4341 = vxor.u32 %v4234, 2147483648
    %v4342 = vxor.u32 %v4338, 2147483648
    %v4343 = vmul.f32 %v4341, 1.442695
    %v4344 = vpow.pop %v4343
    %v4345 = vmul.f32 %v4342, 1.442695
    %v4346 = vpow.pop %v4345
    %v4347 = vadd.f32 %v4344, 1.0
    %v4348 = vadd.f32 %v4346, 1.0
    %v4349 = vrcp.pop %v4347
    %v4350 = vmul.f32 %v4347, %v4349
    %v4351 = vsub.f32 1.0, %v4350
    %v4352 = vmul.f32 %v4349, %v4351
    %v4353 = vadd.f32 %v4349, %v4352
    %vm4354 = vweird.f32 %v4347
    %vm4355 = vweird.f32 %v4349
    %vm4356 = vmor %vm4354, %vm4355
    %v4357 = vsel %vm4356, %v4349, %v4353
    %v4358 = vand.u32 2147483647, %v4347
    %vm4359 = vcmp.eq.f32.partialorder %v4358, 8.507059e+37
    %v4360 = vand.u32 %v4347, 2147483648
    %v4361 = vor.u32 1.1754944e-38, %v4360
    %v4362 = vsel %vm4359, %v4361, %v4357
    %v4363 = vmul.f32 1.0, %v4362
    %v4364 = vrcp.pop %v4348
    %v4365 = vmul.f32 %v4348, %v4364
    %v4366 = vsub.f32 1.0, %v4365
    %v4367 = vmul.f32 %v4364, %v4366
    %v4368 = vadd.f32 %v4364, %v4367
    %vm4369 = vweird.f32 %v4348
    %vm4370 = vweird.f32 %v4364
    %vm4371 = vmor %vm4369, %vm4370
    %v4372 = vsel %vm4371, %v4364, %v4368
    %v4373 = vand.u32 2147483647, %v4348
    %vm4374 = vcmp.eq.f32.partialorder %v4373, 8.507059e+37
    %v4375 = vand.u32 %v4348, 2147483648
    %v4376 = vor.u32 1.1754944e-38, %v4375
    %v4377 = vsel %vm4374, %v4376, %v4372
    %v4378 = vmul.f32 1.0, %v4377
    %4379 = vst [vmem:[#allocation10] sm:$0xff] %v4363
    %4380 = vst [vmem:[#allocation10 + $0x8] sm:$0xff] %v4378
    %4381 = vst.msk [vmem:[#allocation11] sm:$0xff] %vm2213, %v2235
    // Predicated region
    $region90: #{tpu_custom_call.1} parent=1 // pred_check
      _
    $region91: #{tpu_custom_call.1} parent=1 // pred_check_branch
      %4383 = sbr.rel (0) target = $region93
    $region92: #{tpu_custom_call.1} parent=1 // pred_region
      %4385 = vsyncadd [#allocation4], 0
      %s4387 = sshll.u32 [#allocation10], 4
      %s4388 = int_to_ptr.vmem [resolvable:$true] %s4387
      %s4389 = sshll.u32 %s18, 4
      %s4390 = int_to_ptr.hbm [resolvable:$true] %s4389
      %4392 = dma.vmem_to_hbm [thread:$0]  %s4388, 256, %s4390, [#allocation4]
    $region93: #{tpu_custom_call.1} parent=1 // pred_fallthru
      _
    // Predicated region
    $region94: #{tpu_custom_call.1} parent=1 // pred_check
      _
    $region95: #{tpu_custom_call.1} parent=1 // pred_check_branch
      %4394 = sbr.rel (0) target = $region97
    $region96: #{tpu_custom_call.1} parent=1 // pred_region
      %4396 = vsyncadd [#allocation12], 0
      %s4398 = sshll.u32 [#allocation11], 4
      %s4399 = int_to_ptr.vmem [resolvable:$true] %s4398
      %s4400 = sshll.u32 %s19, 4
      %s4401 = int_to_ptr.hbm [resolvable:$true] %s4400
      %4403 = dma.vmem_to_hbm [thread:$0]  %s4399, 128, %s4401, [#allocation12]
    $region97: #{tpu_custom_call.1} parent=1 // pred_fallthru
      _
    // Predicated region
    $region98: #{tpu_custom_call.1} parent=1 // pred_check
      _
    $region99: #{tpu_custom_call.1} parent=1 // pred_check_branch
      %4405 = sbr.rel (0) target = $region101
    $region100: #{tpu_custom_call.1} parent=1 // pred_region
      %4407 = dma.done [#allocation4], 256
    $region101: #{tpu_custom_call.1} parent=1 // pred_fallthru
      _
    // Predicated region
    $region102: #{tpu_custom_call.1} parent=1 // pred_check
      _
    $region103: #{tpu_custom_call.1} parent=1 // pred_check_branch
      %4409 = sbr.rel (0) target = $region105
    $region104: #{tpu_custom_call.1} parent=1 // pred_region
      %4411 = dma.done [#allocation12], 128
    $region105: #{tpu_custom_call.1} parent=1 // pred_fallthru
      _
    %4412 = vsyncpa [#allocation3], 1
    %4413 = vsyncpa [#allocation6], 1
    %4414 = vsyncpa [#allocation9], 1
    %4415 = vsyncpa [#allocation4], 1
    %4416 = vsyncpa [#allocation12], 1

</llo_original>
